<compile_context>
chip_gen: v5e
topology: v5e:2x2
jax: 0.10.0
libtpu: 0.0.40
codegen_flags: <defaults>
</compile_context>

<pallas_src>
import functools

import jax
import jax.numpy as jnp
from jax import lax
from jax.experimental import pallas as pl
from jax.experimental.pallas import tpu as pltpu


# MXU operand dtype (accumulation is always f32 via preferred_element_type).
COMPUTE_DTYPE = jnp.bfloat16


# ----------------------------------------------------------------------------
# Fused kernel: multi-head causal attention + output projection on an
# (M, C) = (batch_block * T, C) slab of rows.
#   qkv = x @ Wqkv                 (one lane-dense MXU call, all heads, scale
#                                   pre-folded into the Q columns)
#   per (seq, head): softmax(mask(q k^T)) @ v   (normalized after the PV matmul)
#   y = att_concat @ Wp^T + b      (fused, lane-dense (M, C) output block)
# ----------------------------------------------------------------------------
def _mha_kernel(x_ref, wqkv_ref, wp_ref, b_ref, o_ref, qkv_scr, att_scr, *,
                n_head, head_size, seq_len):
    M, C = x_ref.shape
    T = seq_len
    bb = M // T                       # sequences in this block
    H = head_size
    NH = n_head * H
    cdt = wqkv_ref.dtype              # compute dtype (bf16)

    # (1) Fused QKV projection for all heads and all sequences of this block:
    #     (M, C) @ (C, 3*NH) -> (M, 3*NH), f32 accumulation.  The result is
    #     immediately written to a bf16 VMEM scratch so the huge f32
    #     intermediate never has to stay live in vregs.
    x = x_ref[...].astype(cdt)
    qkv_scr[...] = jnp.dot(
        x, wqkv_ref[...], preferred_element_type=jnp.float32).astype(cdt)

    # Causal mask, hoisted once and shared by every (sequence, head) pair.
    rows = lax.broadcasted_iota(jnp.int32, (T, T), 0)
    cols = lax.broadcasted_iota(jnp.int32, (T, T), 1)
    causal = cols <= rows
    neg = jnp.float32(-1e30)          # finite: robust even for masked-out rows

    # (2) Attention core.  q/k/v are re-loaded as small (T, H) slabs from the
    #     VMEM scratch (cheap strided loads) instead of being held in vregs.
    for b in range(bb):               # unrolled, bb is small (1 or B)
        r0 = b * T
        for h in range(n_head):       # unrolled
            c0 = h * H
            qh = qkv_scr[r0:r0 + T, c0:c0 + H]                      # (T, H)
            kh = qkv_scr[r0:r0 + T, NH + c0:NH + c0 + H]            # (T, H)
            vh = qkv_scr[r0:r0 + T, 2 * NH + c0:2 * NH + c0 + H]    # (T, H)

            # Scores: contract the H axes directly (no k.T materialization).
            s = lax.dot_general(qh, kh, (((1,), (1,)), ((), ())),
                                preferred_element_type=jnp.float32)  # (T, T)
            s = jnp.where(causal, s, neg)

            # Numerically stable softmax; normalization is deferred past the
            # PV matmul so the broadcast multiply is (T, H), not (T, T).
            m = jnp.max(s, axis=-1, keepdims=True)
            p = jnp.exp(s - m)
            denom = jnp.sum(p, axis=-1, keepdims=True)

            oh = jnp.dot(p.astype(cdt), vh,
                         preferred_element_type=jnp.float32)         # (T, H)
            oh = oh * pl.reciprocal(denom, approx=True)              # EUP slot

            # Store straight into the lane-dense concat scratch (head-major
            # column order == torch.cat([...], dim=-1)).
            att_scr[r0:r0 + T, c0:c0 + H] = oh.astype(cdt)

    # (3) Fused output projection: (M, NH) @ (NH, C) + b -> (M, C), lane-dense.
    y = jnp.dot(att_scr[...], wp_ref[...],
                preferred_element_type=jnp.float32) + b_ref[...]
    o_ref[...] = y.astype(o_ref.dtype)
    # TODO(synk): attention-prob and residual dropout are identity (eval mode).


# ----------------------------------------------------------------------------
# One-time parameter preparation (hoisted out of the per-call wrapper).
# ----------------------------------------------------------------------------
def prepare_params(params, dtype=COMPUTE_DTYPE):
    """Pack per-head weights into MXU-friendly operands. Call once, reuse."""
    wq, wk, wv, wpt, bp = (
        params["wq"], params["wk"], params["wv"], params["wpt"], params["bp"]
    )
    n_head, C, H = wq.shape
    NH = n_head * H

    def stack(w):                                  # (n_head, C, H) -> (C, NH)
        return jnp.transpose(w, (1, 0, 2)).reshape(C, NH)

    scale = 1.0 / (H ** 0.5)                       # folded into the Q columns
    wqkv = jnp.concatenate([stack(wq) * scale, stack(wk), stack(wv)],
                           axis=1).astype(dtype)                    # (C, 3*NH)
    return {
        "wqkv": wqkv,
        "wp": wpt.astype(dtype),                                    # (NH, C)
        "b": bp.reshape(1, C).astype(jnp.float32),                  # (1, C)
        "n_head": int(n_head),
        "head_size": int(H),
    }


def _single_tensorcore_chip():
    """True for single-TC chips (v5e / v6e) where collapsing the batch grid
    into one step is a win.  On 2-TC chips (v7x) keep >=2 parallel steps."""
    try:
        kind = jax.devices()[0].device_kind.lower()
    except Exception:
        return False
    markers = ("v5 lite", "v5e", "v5litepod", "v6 lite", "v6e")
    return any(m in kind for m in markers)


def multiheads_forward(x, packed, *, batch_block=None):
    """x: (B, T, C) f32; packed: output of prepare_params()."""
    B, T, C = x.shape
    n_head = packed["n_head"]
    H = packed["head_size"]
    NH = n_head * H

    if batch_block is None:
        # Single-TC chips: fold all of B into M (one grid step).
        # Multi-TC chips (v7x): keep B grid steps, marked "parallel".
        batch_block = B if _single_tensorcore_chip() else 1
    batch_block = max(1, min(batch_block, B))
    while B % batch_block != 0:
        batch_block -= 1
    grid_b = B // batch_block
    M = batch_block * T

    x2 = x.reshape(B * T, C)           # layout-trivial; lets the kernel work
                                       # on lane-dense 2-D (M, C) row slabs.

    kernel = functools.partial(_mha_kernel, n_head=n_head, head_size=H,
                               seq_len=T)
    out2 = pl.pallas_call(
        kernel,
        out_shape=jax.ShapeDtypeStruct((B * T, C), x.dtype),
        grid_spec=pltpu.PrefetchScalarGridSpec(
            num_scalar_prefetch=0,
            grid=(grid_b,),
            in_specs=[
                pl.BlockSpec((M, C), lambda i: (i, 0)),          # activations
                pl.BlockSpec((C, 3 * NH), lambda i: (0, 0)),     # resident W_qkv
                pl.BlockSpec((NH, C), lambda i: (0, 0)),         # resident W_proj
                pl.BlockSpec((1, C), lambda i: (0, 0)),          # resident bias
            ],
            out_specs=pl.BlockSpec((M, C), lambda i: (i, 0)),
            scratch_shapes=[
                pltpu.VMEM((M, 3 * NH), COMPUTE_DTYPE),          # qkv scratch
                pltpu.VMEM((M, NH), COMPUTE_DTYPE),              # concat scratch
            ],
        ),
        compiler_params=pltpu.CompilerParams(
            dimension_semantics=("parallel",)),
    )(x2, packed["wqkv"], packed["wp"], packed["b"])
    return out2.reshape(B, T, C)


# ----------------------------------------------------------------------------
# Pure-JAX f32 reference (mirrors the PyTorch module, eval mode)
# ----------------------------------------------------------------------------
def multiheads_ref(x, params):
    wq, wk, wv, wpt, bp = (
        params["wq"], params["wk"], params["wv"], params["wpt"], params["bp"]
    )
    B, T, C = x.shape
    n_head, _, H = wq.shape
    mask = jnp.tril(jnp.ones((T, T), dtype=bool))
    outs = []
    for h in range(n_head):
        q = x @ wq[h]
        k = x @ wk[h]
        v = x @ wv[h]
        wei = (q @ jnp.swapaxes(k, -2, -1)) / (H ** 0.5)
        wei = jnp.where(mask, wei, -jnp.inf)
        wei = jax.nn.softmax(wei, axis=-1)
        outs.append(wei @ v)
    x_cat = jnp.concatenate(outs, axis=-1)
    return x_cat @ wpt + bp


if __name__ == "__main__":
    # module constants (from the PyTorch script)
    n_embd = 384
    n_head = 6
    head_size = n_embd // n_head   # 64
    B, T = 2, 128                  # T <= block_size (256)

    key = jax.random.PRNGKey(0)
    kx, kq, kk, kv, kw, kb = jax.random.split(key, 6)

    lim_h = 1.0 / (n_embd ** 0.5)
    params = {
        "wq": jax.random.uniform(kq, (n_head, n_embd, head_size),
                                 jnp.float32, -lim_h, lim_h),
        "wk": jax.random.uniform(kk, (n_head, n_embd, head_size),
                                 jnp.float32, -lim_h, lim_h),
        "wv": jax.random.uniform(kv, (n_head, n_embd, head_size),
                                 jnp.float32, -lim_h, lim_h),
        # nn.Linear(n_head*head_size, n_embd).weight is (n_embd, NH);
        # store its transpose (in, out) for the kernel.
        "wpt": jax.random.uniform(kw, (n_head * head_size, n_embd),
                                  jnp.float32, -lim_h, lim_h),
        "bp": jax.random.uniform(kb, (n_embd,), jnp.float32, -lim_h, lim_h),
    }

    x = jax.random.normal(kx, (B, T, n_embd), jnp.float32)

    # One-time weight packing (hoisted out of the forward pass).
    packed = prepare_params(params)
    packed = jax.block_until_ready(packed)

    out = multiheads_forward(x, packed)
    out = jax.block_until_ready(out)

    ref = multiheads_ref(x, params)
    assert out.shape == (B, T, n_embd)
    # bf16 MXU operands + approx reciprocal => looser tolerance than pure-f32.
    assert jnp.allclose(out, ref, atol=5e-2, rtol=5e-2), "mismatch vs reference"

    print("KERNEL_OK")
</pallas_src>

<mosaic_0001>
module attributes {stable_mosaic.version = 11 : i64} {
  func.func @_mha_kernel(%arg0: i32, %arg1: memref<128x384xf32, #tpu.memory_space<vmem>>, %arg2: memref<384x1152xbf16, #tpu.memory_space<vmem>>, %arg3: memref<384x384xbf16, #tpu.memory_space<vmem>>, %arg4: memref<1x384xf32, #tpu.memory_space<vmem>>, %arg5: memref<128x384xf32, #tpu.memory_space<vmem>>, %arg6: memref<128x1152xbf16, #tpu.memory_space<vmem>>, %arg7: memref<128x384xbf16, #tpu.memory_space<vmem>>) attributes {dimension_semantics = [#tpu.dimension_semantics<parallel>], iteration_bounds = array<i64: 2>, scalar_prefetch = 0 : i64, scratch_operands = 2 : i64, tpu.core_type = #tpu.core_type<tc>, window_params = [{transform_indices = @transform_0, window_bounds = array<i64: 128, 384>}, {pipeline_mode = #tpu.pipeline_mode<synchronous>, transform_indices = @transform_1, window_bounds = array<i64: 384, 1152>}, {pipeline_mode = #tpu.pipeline_mode<synchronous>, transform_indices = @transform_2, window_bounds = array<i64: 384, 384>}, {pipeline_mode = #tpu.pipeline_mode<synchronous>, transform_indices = @transform_3, window_bounds = array<i64: 1, 384>}, {transform_indices = @transform_4, window_bounds = array<i64: 128, 384>}]} {
    %c0 = arith.constant 0 : index
    %c0_0 = arith.constant 0 : index
    %0 = vector.load %arg1[%c0, %c0_0] : memref<128x384xf32, #tpu.memory_space<vmem>>, vector<128x384xf32>
    %1 = arith.truncf %0 : vector<128x384xf32> to vector<128x384xbf16>
    %c0_1 = arith.constant 0 : index
    %c0_2 = arith.constant 0 : index
    %2 = vector.load %arg2[%c0_1, %c0_2] : memref<384x1152xbf16, #tpu.memory_space<vmem>>, vector<384x1152xbf16>
    %cst = arith.constant dense<0.000000e+00> : vector<128x1152xf32>
    %3 = tpu.matmul %1, %2, %cst {dimension_numbers = #tpu.dot_dimension_numbers<[1], [0], [0], [1], [0, 0, 1, 1], [], []>} : vector<128x384xbf16>, vector<384x1152xbf16>, vector<128x1152xf32> -> vector<128x1152xf32>
    %4 = arith.truncf %3 : vector<128x1152xf32> to vector<128x1152xbf16>
    %c0_3 = arith.constant 0 : index
    %c0_4 = arith.constant 0 : index
    %5 = vector.load %arg6[%c0_3, %c0_4] : memref<128x1152xbf16, #tpu.memory_space<vmem>>, vector<128x1152xbf16>
    tpu.vector_store %arg6[%c0_3, %c0_4], %4 {strides = array<i32>} : memref<128x1152xbf16, #tpu.memory_space<vmem>>, vector<128x1152xbf16>,
    %6 = tpu.iota {dimensions = array<i32: 0>} : vector<128x128xi32>
    %7 = tpu.iota {dimensions = array<i32: 1>} : vector<128x128xi32>
    %8 = arith.cmpi sle, %7, %6 : vector<128x128xi32>
    %c0_5 = arith.constant 0 : index
    %c0_6 = arith.constant 0 : index
    %9 = vector.load %arg6[%c0_5, %c0_6] : memref<128x1152xbf16, #tpu.memory_space<vmem>>, vector<128x64xbf16>
    %c0_7 = arith.constant 0 : index
    %c384 = arith.constant 384 : index
    %10 = vector.load %arg6[%c0_7, %c384] : memref<128x1152xbf16, #tpu.memory_space<vmem>>, vector<128x64xbf16>
    %c0_8 = arith.constant 0 : index
    %c768 = arith.constant 768 : index
    %11 = vector.load %arg6[%c0_8, %c768] : memref<128x1152xbf16, #tpu.memory_space<vmem>>, vector<128x64xbf16>
    %cst_9 = arith.constant dense<0.000000e+00> : vector<128x128xf32>
    %12 = tpu.matmul %9, %10, %cst_9 {dimension_numbers = #tpu.dot_dimension_numbers<[1], [1], [0], [0], [0, 0, 1, 0], [], []>} : vector<128x64xbf16>, vector<128x64xbf16>, vector<128x128xf32> -> vector<128x128xf32>
    %cst_10 = arith.constant -1.000000e+30 : f32
    %13 = vector.broadcast %cst_10 : f32 to vector<128x128xf32>
    %14 = arith.select %8, %12, %13 : vector<128x128xi1>, vector<128x128xf32>
    %cst_11 = arith.constant dense<0xFF800000> : vector<128xf32>
    %15 = vector.multi_reduction <maximumf>, %14, %cst_11 [1] : vector<128x128xf32> to vector<128xf32>
    %16 = vector.shape_cast %15 : vector<128xf32> to vector<128x1xf32>
    %17 = vector.broadcast %16 : vector<128x1xf32> to vector<128x128xf32>
    %18 = arith.subf %14, %17 : vector<128x128xf32>
    %19 = math.exp %18 : vector<128x128xf32>
    %cst_12 = arith.constant dense<0.000000e+00> : vector<128xf32>
    %20 = vector.multi_reduction <add>, %19, %cst_12 [1] : vector<128x128xf32> to vector<128xf32>
    %21 = vector.shape_cast %20 : vector<128xf32> to vector<128x1xf32>
    %22 = arith.truncf %19 : vector<128x128xf32> to vector<128x128xbf16>
    %cst_13 = arith.constant dense<0.000000e+00> : vector<128x64xf32>
    %23 = tpu.matmul %22, %11, %cst_13 {dimension_numbers = #tpu.dot_dimension_numbers<[1], [0], [0], [1], [0, 0, 1, 1], [], []>} : vector<128x128xbf16>, vector<128x64xbf16>, vector<128x64xf32> -> vector<128x64xf32>
    %24 = tpu.reciprocal %21 {approx = true} : vector<128x1xf32> -> vector<128x1xf32>
    %25 = vector.broadcast %24 : vector<128x1xf32> to vector<128x64xf32>
    %26 = arith.mulf %23, %25 : vector<128x64xf32>
    %27 = arith.truncf %26 : vector<128x64xf32> to vector<128x64xbf16>
    %c0_14 = arith.constant 0 : index
    %c0_15 = arith.constant 0 : index
    %28 = vector.load %arg7[%c0_14, %c0_15] : memref<128x384xbf16, #tpu.memory_space<vmem>>, vector<128x64xbf16>
    tpu.vector_store %arg7[%c0_14, %c0_15], %27 {strides = array<i32>} : memref<128x384xbf16, #tpu.memory_space<vmem>>, vector<128x64xbf16>,
    %c0_16 = arith.constant 0 : index
    %c64 = arith.constant 64 : index
    %29 = vector.load %arg6[%c0_16, %c64] : memref<128x1152xbf16, #tpu.memory_space<vmem>>, vector<128x64xbf16>
    %c0_17 = arith.constant 0 : index
    %c448 = arith.constant 448 : index
    %30 = vector.load %arg6[%c0_17, %c448] : memref<128x1152xbf16, #tpu.memory_space<vmem>>, vector<128x64xbf16>
    %c0_18 = arith.constant 0 : index
    %c832 = arith.constant 832 : index
    %31 = vector.load %arg6[%c0_18, %c832] : memref<128x1152xbf16, #tpu.memory_space<vmem>>, vector<128x64xbf16>
    %cst_19 = arith.constant dense<0.000000e+00> : vector<128x128xf32>
    %32 = tpu.matmul %29, %30, %cst_19 {dimension_numbers = #tpu.dot_dimension_numbers<[1], [1], [0], [0], [0, 0, 1, 0], [], []>} : vector<128x64xbf16>, vector<128x64xbf16>, vector<128x128xf32> -> vector<128x128xf32>
    %cst_20 = arith.constant -1.000000e+30 : f32
    %33 = vector.broadcast %cst_20 : f32 to vector<128x128xf32>
    %34 = arith.select %8, %32, %33 : vector<128x128xi1>, vector<128x128xf32>
    %cst_21 = arith.constant dense<0xFF800000> : vector<128xf32>
    %35 = vector.multi_reduction <maximumf>, %34, %cst_21 [1] : vector<128x128xf32> to vector<128xf32>
    %36 = vector.shape_cast %35 : vector<128xf32> to vector<128x1xf32>
    %37 = vector.broadcast %36 : vector<128x1xf32> to vector<128x128xf32>
    %38 = arith.subf %34, %37 : vector<128x128xf32>
    %39 = math.exp %38 : vector<128x128xf32>
    %cst_22 = arith.constant dense<0.000000e+00> : vector<128xf32>
    %40 = vector.multi_reduction <add>, %39, %cst_22 [1] : vector<128x128xf32> to vector<128xf32>
    %41 = vector.shape_cast %40 : vector<128xf32> to vector<128x1xf32>
    %42 = arith.truncf %39 : vector<128x128xf32> to vector<128x128xbf16>
    %cst_23 = arith.constant dense<0.000000e+00> : vector<128x64xf32>
    %43 = tpu.matmul %42, %31, %cst_23 {dimension_numbers = #tpu.dot_dimension_numbers<[1], [0], [0], [1], [0, 0, 1, 1], [], []>} : vector<128x128xbf16>, vector<128x64xbf16>, vector<128x64xf32> -> vector<128x64xf32>
    %44 = tpu.reciprocal %41 {approx = true} : vector<128x1xf32> -> vector<128x1xf32>
    %45 = vector.broadcast %44 : vector<128x1xf32> to vector<128x64xf32>
    %46 = arith.mulf %43, %45 : vector<128x64xf32>
    %47 = arith.truncf %46 : vector<128x64xf32> to vector<128x64xbf16>
    %c0_24 = arith.constant 0 : index
    %c64_25 = arith.constant 64 : index
    %48 = vector.load %arg7[%c0_24, %c64_25] : memref<128x384xbf16, #tpu.memory_space<vmem>>, vector<128x64xbf16>
    tpu.vector_store %arg7[%c0_24, %c64_25], %47 {strides = array<i32>} : memref<128x384xbf16, #tpu.memory_space<vmem>>, vector<128x64xbf16>,
    %c0_26 = arith.constant 0 : index
    %c128 = arith.constant 128 : index
    %49 = vector.load %arg6[%c0_26, %c128] : memref<128x1152xbf16, #tpu.memory_space<vmem>>, vector<128x64xbf16>
    %c0_27 = arith.constant 0 : index
    %c512 = arith.constant 512 : index
    %50 = vector.load %arg6[%c0_27, %c512] : memref<128x1152xbf16, #tpu.memory_space<vmem>>, vector<128x64xbf16>
    %c0_28 = arith.constant 0 : index
    %c896 = arith.constant 896 : index
    %51 = vector.load %arg6[%c0_28, %c896] : memref<128x1152xbf16, #tpu.memory_space<vmem>>, vector<128x64xbf16>
    %cst_29 = arith.constant dense<0.000000e+00> : vector<128x128xf32>
    %52 = tpu.matmul %49, %50, %cst_29 {dimension_numbers = #tpu.dot_dimension_numbers<[1], [1], [0], [0], [0, 0, 1, 0], [], []>} : vector<128x64xbf16>, vector<128x64xbf16>, vector<128x128xf32> -> vector<128x128xf32>
    %cst_30 = arith.constant -1.000000e+30 : f32
    %53 = vector.broadcast %cst_30 : f32 to vector<128x128xf32>
    %54 = arith.select %8, %52, %53 : vector<128x128xi1>, vector<128x128xf32>
    %cst_31 = arith.constant dense<0xFF800000> : vector<128xf32>
    %55 = vector.multi_reduction <maximumf>, %54, %cst_31 [1] : vector<128x128xf32> to vector<128xf32>
    %56 = vector.shape_cast %55 : vector<128xf32> to vector<128x1xf32>
    %57 = vector.broadcast %56 : vector<128x1xf32> to vector<128x128xf32>
    %58 = arith.subf %54, %57 : vector<128x128xf32>
    %59 = math.exp %58 : vector<128x128xf32>
    %cst_32 = arith.constant dense<0.000000e+00> : vector<128xf32>
    %60 = vector.multi_reduction <add>, %59, %cst_32 [1] : vector<128x128xf32> to vector<128xf32>
    %61 = vector.shape_cast %60 : vector<128xf32> to vector<128x1xf32>
    %62 = arith.truncf %59 : vector<128x128xf32> to vector<128x128xbf16>
    %cst_33 = arith.constant dense<0.000000e+00> : vector<128x64xf32>
    %63 = tpu.matmul %62, %51, %cst_33 {dimension_numbers = #tpu.dot_dimension_numbers<[1], [0], [0], [1], [0, 0, 1, 1], [], []>} : vector<128x128xbf16>, vector<128x64xbf16>, vector<128x64xf32> -> vector<128x64xf32>
    %64 = tpu.reciprocal %61 {approx = true} : vector<128x1xf32> -> vector<128x1xf32>
    %65 = vector.broadcast %64 : vector<128x1xf32> to vector<128x64xf32>
    %66 = arith.mulf %63, %65 : vector<128x64xf32>
    %67 = arith.truncf %66 : vector<128x64xf32> to vector<128x64xbf16>
    %c0_34 = arith.constant 0 : index
    %c128_35 = arith.constant 128 : index
    %68 = vector.load %arg7[%c0_34, %c128_35] : memref<128x384xbf16, #tpu.memory_space<vmem>>, vector<128x64xbf16>
    tpu.vector_store %arg7[%c0_34, %c128_35], %67 {strides = array<i32>} : memref<128x384xbf16, #tpu.memory_space<vmem>>, vector<128x64xbf16>,
    %c0_36 = arith.constant 0 : index
    %c192 = arith.constant 192 : index
    %69 = vector.load %arg6[%c0_36, %c192] : memref<128x1152xbf16, #tpu.memory_space<vmem>>, vector<128x64xbf16>
    %c0_37 = arith.constant 0 : index
    %c576 = arith.constant 576 : index
    %70 = vector.load %arg6[%c0_37, %c576] : memref<128x1152xbf16, #tpu.memory_space<vmem>>, vector<128x64xbf16>
    %c0_38 = arith.constant 0 : index
    %c960 = arith.constant 960 : index
    %71 = vector.load %arg6[%c0_38, %c960] : memref<128x1152xbf16, #tpu.memory_space<vmem>>, vector<128x64xbf16>
    %cst_39 = arith.constant dense<0.000000e+00> : vector<128x128xf32>
    %72 = tpu.matmul %69, %70, %cst_39 {dimension_numbers = #tpu.dot_dimension_numbers<[1], [1], [0], [0], [0, 0, 1, 0], [], []>} : vector<128x64xbf16>, vector<128x64xbf16>, vector<128x128xf32> -> vector<128x128xf32>
    %cst_40 = arith.constant -1.000000e+30 : f32
    %73 = vector.broadcast %cst_40 : f32 to vector<128x128xf32>
    %74 = arith.select %8, %72, %73 : vector<128x128xi1>, vector<128x128xf32>
    %cst_41 = arith.constant dense<0xFF800000> : vector<128xf32>
    %75 = vector.multi_reduction <maximumf>, %74, %cst_41 [1] : vector<128x128xf32> to vector<128xf32>
    %76 = vector.shape_cast %75 : vector<128xf32> to vector<128x1xf32>
    %77 = vector.broadcast %76 : vector<128x1xf32> to vector<128x128xf32>
    %78 = arith.subf %74, %77 : vector<128x128xf32>
    %79 = math.exp %78 : vector<128x128xf32>
    %cst_42 = arith.constant dense<0.000000e+00> : vector<128xf32>
    %80 = vector.multi_reduction <add>, %79, %cst_42 [1] : vector<128x128xf32> to vector<128xf32>
    %81 = vector.shape_cast %80 : vector<128xf32> to vector<128x1xf32>
    %82 = arith.truncf %79 : vector<128x128xf32> to vector<128x128xbf16>
    %cst_43 = arith.constant dense<0.000000e+00> : vector<128x64xf32>
    %83 = tpu.matmul %82, %71, %cst_43 {dimension_numbers = #tpu.dot_dimension_numbers<[1], [0], [0], [1], [0, 0, 1, 1], [], []>} : vector<128x128xbf16>, vector<128x64xbf16>, vector<128x64xf32> -> vector<128x64xf32>
    %84 = tpu.reciprocal %81 {approx = true} : vector<128x1xf32> -> vector<128x1xf32>
    %85 = vector.broadcast %84 : vector<128x1xf32> to vector<128x64xf32>
    %86 = arith.mulf %83, %85 : vector<128x64xf32>
    %87 = arith.truncf %86 : vector<128x64xf32> to vector<128x64xbf16>
    %c0_44 = arith.constant 0 : index
    %c192_45 = arith.constant 192 : index
    %88 = vector.load %arg7[%c0_44, %c192_45] : memref<128x384xbf16, #tpu.memory_space<vmem>>, vector<128x64xbf16>
    tpu.vector_store %arg7[%c0_44, %c192_45], %87 {strides = array<i32>} : memref<128x384xbf16, #tpu.memory_space<vmem>>, vector<128x64xbf16>,
    %c0_46 = arith.constant 0 : index
    %c256 = arith.constant 256 : index
    %89 = vector.load %arg6[%c0_46, %c256] : memref<128x1152xbf16, #tpu.memory_space<vmem>>, vector<128x64xbf16>
    %c0_47 = arith.constant 0 : index
    %c640 = arith.constant 640 : index
    %90 = vector.load %arg6[%c0_47, %c640] : memref<128x1152xbf16, #tpu.memory_space<vmem>>, vector<128x64xbf16>
    %c0_48 = arith.constant 0 : index
    %c1024 = arith.constant 1024 : index
    %91 = vector.load %arg6[%c0_48, %c1024] : memref<128x1152xbf16, #tpu.memory_space<vmem>>, vector<128x64xbf16>
    %cst_49 = arith.constant dense<0.000000e+00> : vector<128x128xf32>
    %92 = tpu.matmul %89, %90, %cst_49 {dimension_numbers = #tpu.dot_dimension_numbers<[1], [1], [0], [0], [0, 0, 1, 0], [], []>} : vector<128x64xbf16>, vector<128x64xbf16>, vector<128x128xf32> -> vector<128x128xf32>
    %cst_50 = arith.constant -1.000000e+30 : f32
    %93 = vector.broadcast %cst_50 : f32 to vector<128x128xf32>
    %94 = arith.select %8, %92, %93 : vector<128x128xi1>, vector<128x128xf32>
    %cst_51 = arith.constant dense<0xFF800000> : vector<128xf32>
    %95 = vector.multi_reduction <maximumf>, %94, %cst_51 [1] : vector<128x128xf32> to vector<128xf32>
    %96 = vector.shape_cast %95 : vector<128xf32> to vector<128x1xf32>
    %97 = vector.broadcast %96 : vector<128x1xf32> to vector<128x128xf32>
    %98 = arith.subf %94, %97 : vector<128x128xf32>
    %99 = math.exp %98 : vector<128x128xf32>
    %cst_52 = arith.constant dense<0.000000e+00> : vector<128xf32>
    %100 = vector.multi_reduction <add>, %99, %cst_52 [1] : vector<128x128xf32> to vector<128xf32>
    %101 = vector.shape_cast %100 : vector<128xf32> to vector<128x1xf32>
    %102 = arith.truncf %99 : vector<128x128xf32> to vector<128x128xbf16>
    %cst_53 = arith.constant dense<0.000000e+00> : vector<128x64xf32>
    %103 = tpu.matmul %102, %91, %cst_53 {dimension_numbers = #tpu.dot_dimension_numbers<[1], [0], [0], [1], [0, 0, 1, 1], [], []>} : vector<128x128xbf16>, vector<128x64xbf16>, vector<128x64xf32> -> vector<128x64xf32>
    %104 = tpu.reciprocal %101 {approx = true} : vector<128x1xf32> -> vector<128x1xf32>
    %105 = vector.broadcast %104 : vector<128x1xf32> to vector<128x64xf32>
    %106 = arith.mulf %103, %105 : vector<128x64xf32>
    %107 = arith.truncf %106 : vector<128x64xf32> to vector<128x64xbf16>
    %c0_54 = arith.constant 0 : index
    %c256_55 = arith.constant 256 : index
    %108 = vector.load %arg7[%c0_54, %c256_55] : memref<128x384xbf16, #tpu.memory_space<vmem>>, vector<128x64xbf16>
    tpu.vector_store %arg7[%c0_54, %c256_55], %107 {strides = array<i32>} : memref<128x384xbf16, #tpu.memory_space<vmem>>, vector<128x64xbf16>,
    %c0_56 = arith.constant 0 : index
    %c320 = arith.constant 320 : index
    %109 = vector.load %arg6[%c0_56, %c320] : memref<128x1152xbf16, #tpu.memory_space<vmem>>, vector<128x64xbf16>
    %c0_57 = arith.constant 0 : index
    %c704 = arith.constant 704 : index
    %110 = vector.load %arg6[%c0_57, %c704] : memref<128x1152xbf16, #tpu.memory_space<vmem>>, vector<128x64xbf16>
    %c0_58 = arith.constant 0 : index
    %c1088 = arith.constant 1088 : index
    %111 = vector.load %arg6[%c0_58, %c1088] : memref<128x1152xbf16, #tpu.memory_space<vmem>>, vector<128x64xbf16>
    %cst_59 = arith.constant dense<0.000000e+00> : vector<128x128xf32>
    %112 = tpu.matmul %109, %110, %cst_59 {dimension_numbers = #tpu.dot_dimension_numbers<[1], [1], [0], [0], [0, 0, 1, 0], [], []>} : vector<128x64xbf16>, vector<128x64xbf16>, vector<128x128xf32> -> vector<128x128xf32>
    %cst_60 = arith.constant -1.000000e+30 : f32
    %113 = vector.broadcast %cst_60 : f32 to vector<128x128xf32>
    %114 = arith.select %8, %112, %113 : vector<128x128xi1>, vector<128x128xf32>
    %cst_61 = arith.constant dense<0xFF800000> : vector<128xf32>
    %115 = vector.multi_reduction <maximumf>, %114, %cst_61 [1] : vector<128x128xf32> to vector<128xf32>
    %116 = vector.shape_cast %115 : vector<128xf32> to vector<128x1xf32>
    %117 = vector.broadcast %116 : vector<128x1xf32> to vector<128x128xf32>
    %118 = arith.subf %114, %117 : vector<128x128xf32>
    %119 = math.exp %118 : vector<128x128xf32>
    %cst_62 = arith.constant dense<0.000000e+00> : vector<128xf32>
    %120 = vector.multi_reduction <add>, %119, %cst_62 [1] : vector<128x128xf32> to vector<128xf32>
    %121 = vector.shape_cast %120 : vector<128xf32> to vector<128x1xf32>
    %122 = arith.truncf %119 : vector<128x128xf32> to vector<128x128xbf16>
    %cst_63 = arith.constant dense<0.000000e+00> : vector<128x64xf32>
    %123 = tpu.matmul %122, %111, %cst_63 {dimension_numbers = #tpu.dot_dimension_numbers<[1], [0], [0], [1], [0, 0, 1, 1], [], []>} : vector<128x128xbf16>, vector<128x64xbf16>, vector<128x64xf32> -> vector<128x64xf32>
    %124 = tpu.reciprocal %121 {approx = true} : vector<128x1xf32> -> vector<128x1xf32>
    %125 = vector.broadcast %124 : vector<128x1xf32> to vector<128x64xf32>
    %126 = arith.mulf %123, %125 : vector<128x64xf32>
    %127 = arith.truncf %126 : vector<128x64xf32> to vector<128x64xbf16>
    %c0_64 = arith.constant 0 : index
    %c320_65 = arith.constant 320 : index
    %128 = vector.load %arg7[%c0_64, %c320_65] : memref<128x384xbf16, #tpu.memory_space<vmem>>, vector<128x64xbf16>
    tpu.vector_store %arg7[%c0_64, %c320_65], %127 {strides = array<i32>} : memref<128x384xbf16, #tpu.memory_space<vmem>>, vector<128x64xbf16>,
    %c0_66 = arith.constant 0 : index
    %c0_67 = arith.constant 0 : index
    %129 = vector.load %arg7[%c0_66, %c0_67] : memref<128x384xbf16, #tpu.memory_space<vmem>>, vector<128x384xbf16>
    %c0_68 = arith.constant 0 : index
    %c0_69 = arith.constant 0 : index
    %130 = vector.load %arg3[%c0_68, %c0_69] : memref<384x384xbf16, #tpu.memory_space<vmem>>, vector<384x384xbf16>
    %cst_70 = arith.constant dense<0.000000e+00> : vector<128x384xf32>
    %131 = tpu.matmul %129, %130, %cst_70 {dimension_numbers = #tpu.dot_dimension_numbers<[1], [0], [0], [1], [0, 0, 1, 1], [], []>} : vector<128x384xbf16>, vector<384x384xbf16>, vector<128x384xf32> -> vector<128x384xf32>
    %c0_71 = arith.constant 0 : index
    %c0_72 = arith.constant 0 : index
    %132 = vector.load %arg4[%c0_71, %c0_72] : memref<1x384xf32, #tpu.memory_space<vmem>>, vector<1x384xf32>
    %133 = vector.broadcast %132 : vector<1x384xf32> to vector<128x384xf32>
    %134 = arith.addf %131, %133 : vector<128x384xf32>
    %c0_73 = arith.constant 0 : index
    %c0_74 = arith.constant 0 : index
    %135 = vector.load %arg5[%c0_73, %c0_74] : memref<128x384xf32, #tpu.memory_space<vmem>>, vector<128x384xf32>
    tpu.vector_store %arg5[%c0_73, %c0_74], %134 {strides = array<i32>} : memref<128x384xf32, #tpu.memory_space<vmem>>, vector<128x384xf32>,
    return
  }
  func.func @transform_0(%arg0: i32) -> (i32, i32) {
    %c0_i32 = arith.constant 0 : i32
    %c0_i32_0 = arith.constant 0 : i32
    return %arg0, %c0_i32 : i32, i32
  }
  func.func @transform_1(%arg0: i32) -> (i32, i32) {
    %c0_i32 = arith.constant 0 : i32
    %c0_i32_0 = arith.constant 0 : i32
    %c0_i32_1 = arith.constant 0 : i32
    return %c0_i32, %c0_i32_0 : i32, i32
  }
  func.func @transform_2(%arg0: i32) -> (i32, i32) {
    %c0_i32 = arith.constant 0 : i32
    %c0_i32_0 = arith.constant 0 : i32
    %c0_i32_1 = arith.constant 0 : i32
    return %c0_i32, %c0_i32_0 : i32, i32
  }
  func.func @transform_3(%arg0: i32) -> (i32, i32) {
    %c0_i32 = arith.constant 0 : i32
    %c0_i32_0 = arith.constant 0 : i32
    %c0_i32_1 = arith.constant 0 : i32
    return %c0_i32, %c0_i32_0 : i32, i32
  }
  func.func @transform_4(%arg0: i32) -> (i32, i32) {
    %c0_i32 = arith.constant 0 : i32
    %c0_i32_0 = arith.constant 0 : i32
    return %arg0, %c0_i32 : i32, i32
  }
}

</mosaic_0001>

<llo_original>
// kernel: tpu_custom_call.1
$region0: #{tpu_custom_call.1}
  #allocation0 [shape = 'u32[]', space=smem, size = 0x4, offset = 0x4, fixed_abs, tag = 'smem constant byte address 0x4 - core index']
  #allocation1 [shape = 'u32[72,128]{1,0:T(1,128)}', space=vmem, size = 0x9000, scoped, tag = 'internal scratch']
  #allocation2 [shape = 'bf16[128,1152]{1,0:T(8,128)(2,1)}', space=vmem, size = 0x48000, scoped, tag = 'scratch operand']
  #allocation3 [shape = 'bf16[128,384]{1,0:T(8,128)(2,1)}', space=vmem, size = 0x18000, scoped, tag = 'scratch operand']
  %s0 = inlined_call_operand.hbm [shape: f32[256,384], index: 0, kind: input, shape index: {}]
  %s1 = inlined_call_operand.hbm [shape: bf16[384,1152], index: 1, kind: input, shape index: {}]
  %s2 = inlined_call_operand.hbm [shape: bf16[384,384], index: 2, kind: input, shape index: {}]
  %s3 = inlined_call_operand.hbm [shape: f32[1,384], index: 3, kind: input, shape index: {}]
  %s4 = inlined_call_operand.hbm [shape: f32[256,384], index: 4, kind: output, shape index: {}]
  %s5 = sld [smem:[#allocation0]]
  $region65: #{tpu_custom_call.1} parent=0
    _
  %s7 = ssub.s32 1, %s5
  %s8 = scalar_select 0, %s7, %s5
  $region1: #{tpu_custom_call.1} parent=0
    #allocation4 [shape = 'u8[393216]{0}', space=vmem, size = 0x60000, scoped, tag = 'input window, operand 0']
    #allocation5 [shape = 's32[2]{0}', space=sflag, size = 0x8, scoped, tag = 'scoped memory for tpu_custom_call.1']
    #allocation6 [shape = 's32[2]{0}', space=sflag, size = 0x8, scoped, tag = 'scoped memory for tpu_custom_call.1']
    #allocation7 [shape = 'u8[884736]{0}', space=vmem, size = 0xd8000, scoped, tag = 'input window, operand 1, single buffered']
    #allocation8 [shape = 's32[1]{0}', space=sflag, size = 0x4, scoped, tag = 'scoped memory for tpu_custom_call.1']
    #allocation9 [shape = 'u8[294912]{0}', space=vmem, size = 0x48000, scoped, tag = 'input window, operand 2, single buffered']
    #allocation10 [shape = 'u8[1536]{0}', space=vmem, size = 0x800, scoped, tag = 'input window, operand 3, single buffered']
    #allocation11 [shape = 's32[1]{0}', space=sflag, size = 0x4, scoped, tag = 'scoped memory for tpu_custom_call.1']
    #allocation12 [shape = 'u8[393216]{0}', space=vmem, size = 0x60000, scoped, tag = 'output window, operand 0']
    %9 = vsyncpa [#allocation5], 0
    %s10 = scalar_lea.sflag [#allocation5], 1
    %11 = vsyncpa %s10, 0
    %12 = vsyncpa [#allocation8], 0
    %13 = vsyncpa [#allocation11], 0
    %14 = vsyncpa [#allocation6], 0
    %s15 = scalar_lea.sflag [#allocation6], 1
    %16 = vsyncpa %s15, 0
    loop: start=0, step=1, limit=4
    $region2: #{tpu_custom_call.1} parent=1 // loop_pre_header
      _
    $region3: #{tpu_custom_call.1} parent=1 // loop_header
      %s18 = sphi 0, %s22
      %p19 = scmp.ge.s32.totalorder %s18, 4
      %s28 = sphi 0, %s30
      %s31 = sphi 0, %s28
      %s32 = sphi 0, %s31
      %s48 = sphi 0, %s32
      %s52 = sphi 0, %s52
      %s54 = sphi 0, %s52
      %s55 = sphi 0, %s54
      %s69 = sphi 0, %s55
      %s73 = sphi 0, %s73
      %s75 = sphi 0, %s73
      %s76 = sphi 0, %s75
      %s90 = sphi 0, %s76
      %s94 = sphi 0, %s94
      %s96 = sphi 0, %s94
      %s97 = sphi 0, %s96
      %s111 = sphi 0, %s97
      %s117 = sphi 0, %s119
      %s120 = sphi 0, %s117
      %s121 = sphi 0, %s120
      %s137 = sphi 0, %s121
    $region4: #{tpu_custom_call.1} parent=1 // loop_header_branch
      %21 = sbr.rel (%p19) target = $region8
    $region5: #{tpu_custom_call.1} parent=1 // loop_body
      %s23 = ssub.s32 %s18, 1
      %s24 = ssub.s32 %s18, 2
      %s25 = sadd.s32 %s18, 1
      %s26 = ssub.s32 %s18, %s25
      %p27 = scmp.eq.s32.totalorder %s26, 0
      %s29 = sadd.s32 %s28, 1
      %s30 = scalar_select %p27, %s28, %s29
      %p33 = pneg %p27
      %p34 = scmp.eq.s32.totalorder %s18, 1
      %p35 = por %p33, %p34
      %p36 = scmp.ne.s32.totalorder %s28, %s31
      %p37 = scmp.eq.s32.totalorder %s18, 0
      %p38 = por %p36, %p37
      %p39 = scmp.ne.s32.totalorder %s28, %s31
      %p40 = scmp.eq.s32.totalorder %s23, 1
      %p41 = por %p39, %p40
      %p42 = scmp.ne.s32.totalorder %s31, %s32
      %p43 = scmp.eq.s32.totalorder %s23, 0
      %p44 = por %p42, %p43
      %p45 = scmp.ne.s32.totalorder %s31, %s32
      %p46 = scmp.eq.s32.totalorder %s24, 1
      %p47 = por %p45, %p46
      %p49 = scmp.ne.s32.totalorder %s32, %s48
      %p50 = scmp.eq.s32.totalorder %s24, 0
      %p51 = por %p49, %p50
      %s53 = sadd.s32 %s52, 1
      %p56 = scmp.eq.s32.totalorder %s18, 1
      %p57 = scmp.ne.s32.totalorder %s52, %s54
      %p58 = scmp.eq.s32.totalorder %s18, 0
      %p59 = por %p57, %p58
      %p60 = scmp.ne.s32.totalorder %s52, %s54
      %p61 = scmp.eq.s32.totalorder %s23, 1
      %p62 = por %p60, %p61
      %p63 = scmp.ne.s32.totalorder %s54, %s55
      %p64 = scmp.eq.s32.totalorder %s23, 0
      %p65 = por %p63, %p64
      %p66 = scmp.ne.s32.totalorder %s54, %s55
      %p67 = scmp.eq.s32.totalorder %s24, 1
      %p68 = por %p66, %p67
      %p70 = scmp.ne.s32.totalorder %s55, %s69
      %p71 = scmp.eq.s32.totalorder %s24, 0
      %p72 = por %p70, %p71
      %s74 = sadd.s32 %s73, 1
      %p77 = scmp.eq.s32.totalorder %s18, 1
      %p78 = scmp.ne.s32.totalorder %s73, %s75
      %p79 = scmp.eq.s32.totalorder %s18, 0
      %p80 = por %p78, %p79
      %p81 = scmp.ne.s32.totalorder %s73, %s75
      %p82 = scmp.eq.s32.totalorder %s23, 1
      %p83 = por %p81, %p82
      %p84 = scmp.ne.s32.totalorder %s75, %s76
      %p85 = scmp.eq.s32.totalorder %s23, 0
      %p86 = por %p84, %p85
      %p87 = scmp.ne.s32.totalorder %s75, %s76
      %p88 = scmp.eq.s32.totalorder %s24, 1
      %p89 = por %p87, %p88
      %p91 = scmp.ne.s32.totalorder %s76, %s90
      %p92 = scmp.eq.s32.totalorder %s24, 0
      %p93 = por %p91, %p92
      %s95 = sadd.s32 %s94, 1
      %p98 = scmp.eq.s32.totalorder %s18, 1
      %p99 = scmp.ne.s32.totalorder %s94, %s96
      %p100 = scmp.eq.s32.totalorder %s18, 0
      %p101 = por %p99, %p100
      %p102 = scmp.ne.s32.totalorder %s94, %s96
      %p103 = scmp.eq.s32.totalorder %s23, 1
      %p104 = por %p102, %p103
      %p105 = scmp.ne.s32.totalorder %s96, %s97
      %p106 = scmp.eq.s32.totalorder %s23, 0
      %p107 = por %p105, %p106
      %p108 = scmp.ne.s32.totalorder %s96, %s97
      %p109 = scmp.eq.s32.totalorder %s24, 1
      %p110 = por %p108, %p109
      %p112 = scmp.ne.s32.totalorder %s97, %s111
      %p113 = scmp.eq.s32.totalorder %s24, 0
      %p114 = por %p112, %p113
      %s115 = ssub.s32 %s18, %s25
      %p116 = scmp.eq.s32.totalorder %s115, 0
      %s118 = sadd.s32 %s117, 1
      %s119 = scalar_select %p116, %s117, %s118
      %p122 = pneg %p116
      %p123 = scmp.eq.s32.totalorder %s18, 1
      %p124 = por %p122, %p123
      %p125 = scmp.ne.s32.totalorder %s117, %s120
      %p126 = scmp.eq.s32.totalorder %s18, 0
      %p127 = por %p125, %p126
      %p128 = scmp.ne.s32.totalorder %s117, %s120
      %p129 = scmp.eq.s32.totalorder %s23, 1
      %p130 = por %p128, %p129
      %p131 = scmp.ne.s32.totalorder %s120, %s121
      %p132 = scmp.eq.s32.totalorder %s23, 0
      %p133 = por %p131, %p132
      %p134 = scmp.ne.s32.totalorder %s120, %s121
      %p135 = scmp.eq.s32.totalorder %s24, 1
      %p136 = por %p134, %p135
      %p138 = scmp.ne.s32.totalorder %s121, %s137
      %p139 = scmp.eq.s32.totalorder %s24, 0
      %p140 = por %p138, %p139
      %p141 = scmp.le.s32.totalorder 1, %s18
      %p142 = scmp.lt.s32.totalorder %s18, 3
      %p143 = pnand %p141, %p142
      %p144 = pneg %p143
      // Predicated region
      $region9: #{tpu_custom_call.1} parent=5 // pred_check
        _
      $region10: #{tpu_custom_call.1} parent=5 // pred_check_branch
        %146 = sbr.rel (%p143) target = $region12
      $region11: #{tpu_custom_call.1} parent=5 // pred_region
        %s147 = ssub.s32 %s18, 1
        // Predicated region
        $region13: #{tpu_custom_call.1} parent=11 // pred_check
          %p148 = pneg %p65
        $region14: #{tpu_custom_call.1} parent=11 // pred_check_branch
          %150 = sbr.rel (%p148) target = $region16
        $region15: #{tpu_custom_call.1} parent=11 // pred_region
          %152 = vsyncadd [#allocation8], 0
          %s153 = sshll.u32 %s1, 4
          %s154 = int_to_ptr.hbm [resolvable:$true] %s153
          %s155 = sshll.u32 [#allocation7], 4
          %s156 = int_to_ptr.vmem [resolvable:$true] %s155
          %161 = dma.hbm_to_vmem [thread:$0]  %s154, 27648, %s156, [#allocation8], 576, 576, 36
        $region16: #{tpu_custom_call.1} parent=11 // pred_fallthru
          _
        // Predicated region
        $region17: #{tpu_custom_call.1} parent=11 // pred_check
          %p162 = pneg %p86
        $region18: #{tpu_custom_call.1} parent=11 // pred_check_branch
          %164 = sbr.rel (%p162) target = $region20
        $region19: #{tpu_custom_call.1} parent=11 // pred_region
          %166 = vsyncadd [#allocation8], 0
          %s167 = sshll.u32 %s2, 4
          %s168 = int_to_ptr.hbm [resolvable:$true] %s167
          %s169 = sshll.u32 [#allocation9], 4
          %s170 = int_to_ptr.vmem [resolvable:$true] %s169
          %175 = dma.hbm_to_vmem [thread:$0]  %s168, 9216, %s170, [#allocation8], 192, 192, 12
        $region20: #{tpu_custom_call.1} parent=11 // pred_fallthru
          _
        // Predicated region
        $region21: #{tpu_custom_call.1} parent=11 // pred_check
          %p176 = pneg %p107
        $region22: #{tpu_custom_call.1} parent=11 // pred_check_branch
          %178 = sbr.rel (%p176) target = $region24
        $region23: #{tpu_custom_call.1} parent=11 // pred_region
          %180 = vsyncadd [#allocation11], 0
          %s182 = sshll.u32 %s3, 4
          %s183 = int_to_ptr.hbm [resolvable:$true] %s182
          %s184 = sshll.u32 [#allocation10], 4
          %s185 = int_to_ptr.vmem [resolvable:$true] %s184
          %187 = dma.hbm_to_vmem [thread:$0]  %s183, 48, %s185, [#allocation11]
        $region24: #{tpu_custom_call.1} parent=11 // pred_fallthru
          _
      $region12: #{tpu_custom_call.1} parent=5 // pred_fallthru
        _
      %p188 = scmp.lt.s32.totalorder %s18, 2
      // Predicated region
      $region25: #{tpu_custom_call.1} parent=5 // pred_check
        %p189 = pneg %p188
      $region26: #{tpu_custom_call.1} parent=5 // pred_check_branch
        %191 = sbr.rel (%p189) target = $region28
      $region27: #{tpu_custom_call.1} parent=5 // pred_region
        // Predicated region
        $region29: #{tpu_custom_call.1} parent=27 // pred_check
          %p192 = pneg %p38
        $region30: #{tpu_custom_call.1} parent=27 // pred_check_branch
          %194 = sbr.rel (%p192) target = $region32
        $region31: #{tpu_custom_call.1} parent=27 // pred_region
          %s195 = sand.u32 %s28, 1
          %s196 = scalar_lea.sflag [#allocation5], %s195
          %s197 = sand.u32 %s28, 1
          %s198 = smul.addr %s197, 384
          %s199 = scalar_lea.vmem [#allocation4], %s198
          %s200 = smul.u32 16, %s18
          %202 = vsyncadd %s196, 0
          %s203 = smul.addr %s200, 3
          %s204 = smul.addr %s203, 8
          %s205 = scalar_lea.hbm %s0, %s204
          %s206 = sshll.u32 %s205, 4
          %s207 = int_to_ptr.hbm [resolvable:$true] %s206
          %s208 = sshll.u32 %s199, 4
          %s209 = int_to_ptr.vmem [resolvable:$true] %s208
          %214 = dma.hbm_to_vmem [thread:$0]  %s207, 6144, %s209, %s196, 384, 384, 24
        $region32: #{tpu_custom_call.1} parent=27 // pred_fallthru
          _
      $region28: #{tpu_custom_call.1} parent=5 // pred_fallthru
        _
      %p215 = scmp.le.s32.totalorder 1, %s18
      %p216 = scmp.lt.s32.totalorder %s18, 3
      %p217 = pnand %p215, %p216
      %p218 = pneg %p217
      // Predicated region
      $region33: #{tpu_custom_call.1} parent=5 // pred_check
        _
      $region34: #{tpu_custom_call.1} parent=5 // pred_check_branch
        %220 = sbr.rel (%p217) target = $region36
      $region35: #{tpu_custom_call.1} parent=5 // pred_region
        %s221 = ssub.s32 %s18, 1
        %s222 = sand.u32 %s31, 1
        %s223 = scalar_lea.sflag [#allocation5], %s222
        %s224 = sand.u32 %s31, 1
        %s225 = smul.addr %s224, 384
        %s226 = scalar_lea.vmem [#allocation4], %s225
        // Predicated region
        $region37: #{tpu_custom_call.1} parent=35 // pred_check
          %p227 = pneg %p44
        $region38: #{tpu_custom_call.1} parent=35 // pred_check_branch
          %229 = sbr.rel (%p227) target = $region40
        $region39: #{tpu_custom_call.1} parent=35 // pred_region
          %231 = dma.done %s223, 6144
        $region40: #{tpu_custom_call.1} parent=35 // pred_fallthru
          _
        // Predicated region
        $region41: #{tpu_custom_call.1} parent=35 // pred_check
          %p232 = pneg %p65
        $region42: #{tpu_custom_call.1} parent=35 // pred_check_branch
          %234 = sbr.rel (%p232) target = $region44
        $region43: #{tpu_custom_call.1} parent=35 // pred_region
          %236 = dma.done [#allocation8], 27648
        $region44: #{tpu_custom_call.1} parent=35 // pred_fallthru
          _
        // Predicated region
        $region45: #{tpu_custom_call.1} parent=35 // pred_check
          %p237 = pneg %p86
        $region46: #{tpu_custom_call.1} parent=35 // pred_check_branch
          %239 = sbr.rel (%p237) target = $region48
        $region47: #{tpu_custom_call.1} parent=35 // pred_region
          %241 = dma.done [#allocation8], 9216
        $region48: #{tpu_custom_call.1} parent=35 // pred_fallthru
          _
        // Predicated region
        $region49: #{tpu_custom_call.1} parent=35 // pred_check
          %p242 = pneg %p107
        $region50: #{tpu_custom_call.1} parent=35 // pred_check_branch
          %244 = sbr.rel (%p242) target = $region52
        $region51: #{tpu_custom_call.1} parent=35 // pred_region
          %246 = dma.done [#allocation11], 48
        $region52: #{tpu_custom_call.1} parent=35 // pred_fallthru
          _
        %s247 = sand.u32 %s31, 1
        %s248 = scalar_lea.sflag [#allocation5], %s247
        %s249 = sand.u32 %s31, 1
        %s250 = smul.addr %s249, 384
        %s251 = scalar_lea.vmem [#allocation4], %s250
        %p252 = pneg %p44
        %p253 = pneg %p41
        %p254 = pneg %p65
        %p255 = pneg %p62
        %p256 = pneg %p86
        %p257 = pneg %p83
        %p258 = pneg %p107
        %p259 = pneg %p104
        %p260 = pneg %p133
        %p261 = pneg %p130
        %s262 = sand.u32 %s120, 1
        %s263 = scalar_lea.sflag [#allocation6], %s262
        %s264 = sand.u32 %s120, 1
        %s265 = smul.addr %s264, 384
        %s266 = scalar_lea.vmem [#allocation12], %s265
        %s267 = smul.u32 16, %s23
        %s268 = smul.u32 16, %s23
        %v269 = vld [vmem:[%s226] sm:$0xff]
        %v270 = vld [vmem:[%s226 + $0x8] sm:$0xff]
        %v271 = vld [vmem:[%s226 + $0x10] sm:$0xff]
        %v272 = vld [vmem:[%s226 + $0x18] sm:$0xff]
        %v273 = vld [vmem:[%s226 + $0x20] sm:$0xff]
        %v274 = vld [vmem:[%s226 + $0x28] sm:$0xff]
        %v275 = vld [vmem:[%s226 + $0x30] sm:$0xff]
        %v276 = vld [vmem:[%s226 + $0x38] sm:$0xff]
        %v277 = vld [vmem:[%s226 + $0x40] sm:$0xff]
        %v278 = vld [vmem:[%s226 + $0x48] sm:$0xff]
        %v279 = vld [vmem:[%s226 + $0x50] sm:$0xff]
        %v280 = vld [vmem:[%s226 + $0x58] sm:$0xff]
        %v281 = vld [vmem:[%s226 + $0x60] sm:$0xff]
        %v282 = vld [vmem:[%s226 + $0x68] sm:$0xff]
        %v283 = vld [vmem:[%s226 + $0x70] sm:$0xff]
        %v284 = vld [vmem:[%s226 + $0x78] sm:$0xff]
        %v285 = vld [vmem:[%s226 + $0x80] sm:$0xff]
        %v286 = vld [vmem:[%s226 + $0x88] sm:$0xff]
        %v287 = vld [vmem:[%s226 + $0x90] sm:$0xff]
        %v288 = vld [vmem:[%s226 + $0x98] sm:$0xff]
        %v289 = vld [vmem:[%s226 + $0xa0] sm:$0xff]
        %v290 = vld [vmem:[%s226 + $0xa8] sm:$0xff]
        %v291 = vld [vmem:[%s226 + $0xb0] sm:$0xff]
        %v292 = vld [vmem:[%s226 + $0xb8] sm:$0xff]
        %v293 = vld [vmem:[%s226 + $0xc0] sm:$0xff]
        %v294 = vld [vmem:[%s226 + $0xc8] sm:$0xff]
        %v295 = vld [vmem:[%s226 + $0xd0] sm:$0xff]
        %v296 = vld [vmem:[%s226 + $0xd8] sm:$0xff]
        %v297 = vld [vmem:[%s226 + $0xe0] sm:$0xff]
        %v298 = vld [vmem:[%s226 + $0xe8] sm:$0xff]
        %v299 = vld [vmem:[%s226 + $0xf0] sm:$0xff]
        %v300 = vld [vmem:[%s226 + $0xf8] sm:$0xff]
        %v301 = vld [vmem:[%s226 + $0x100] sm:$0xff]
        %v302 = vld [vmem:[%s226 + $0x108] sm:$0xff]
        %v303 = vld [vmem:[%s226 + $0x110] sm:$0xff]
        %v304 = vld [vmem:[%s226 + $0x118] sm:$0xff]
        %v305 = vld [vmem:[%s226 + $0x120] sm:$0xff]
        %v306 = vld [vmem:[%s226 + $0x128] sm:$0xff]
        %v307 = vld [vmem:[%s226 + $0x130] sm:$0xff]
        %v308 = vld [vmem:[%s226 + $0x138] sm:$0xff]
        %v309 = vld [vmem:[%s226 + $0x140] sm:$0xff]
        %v310 = vld [vmem:[%s226 + $0x148] sm:$0xff]
        %v311 = vld [vmem:[%s226 + $0x150] sm:$0xff]
        %v312 = vld [vmem:[%s226 + $0x158] sm:$0xff]
        %v313 = vld [vmem:[%s226 + $0x160] sm:$0xff]
        %v314 = vld [vmem:[%s226 + $0x168] sm:$0xff]
        %v315 = vld [vmem:[%s226 + $0x170] sm:$0xff]
        %v316 = vld [vmem:[%s226 + $0x178] sm:$0xff]
        %v317 = vpack.c.bf16 %v272, %v269
        %v318 = vpack.c.bf16 %v273, %v270
        %v319 = vpack.c.bf16 %v274, %v271
        %v320 = vpack.c.bf16 %v278, %v275
        %v321 = vpack.c.bf16 %v279, %v276
        %v322 = vpack.c.bf16 %v280, %v277
        %v323 = vpack.c.bf16 %v284, %v281
        %v324 = vpack.c.bf16 %v285, %v282
        %v325 = vpack.c.bf16 %v286, %v283
        %v326 = vpack.c.bf16 %v290, %v287
        %v327 = vpack.c.bf16 %v291, %v288
        %v328 = vpack.c.bf16 %v292, %v289
        %v329 = vpack.c.bf16 %v296, %v293
        %v330 = vpack.c.bf16 %v297, %v294
        %v331 = vpack.c.bf16 %v298, %v295
        %v332 = vpack.c.bf16 %v302, %v299
        %v333 = vpack.c.bf16 %v303, %v300
        %v334 = vpack.c.bf16 %v304, %v301
        %v335 = vpack.c.bf16 %v308, %v305
        %v336 = vpack.c.bf16 %v309, %v306
        %v337 = vpack.c.bf16 %v310, %v307
        %v338 = vpack.c.bf16 %v314, %v311
        %v339 = vpack.c.bf16 %v315, %v312
        %v340 = vpack.c.bf16 %v316, %v313
        %v341 = vld [vmem:[#allocation7] sm:$0xff]
        %v342 = vld [vmem:[#allocation7 + $0x8] sm:$0xff]
        %v343 = vld [vmem:[#allocation7 + $0x10] sm:$0xff]
        %v344 = vld [vmem:[#allocation7 + $0x18] sm:$0xff]
        %v345 = vld [vmem:[#allocation7 + $0x20] sm:$0xf]
        %v346 = vld [vmem:[#allocation7 + $0x24] sm:$0xff]
        %v347 = vld [vmem:[#allocation7 + $0x2c] sm:$0xff]
        %v348 = vld [vmem:[#allocation7 + $0x34] sm:$0xff]
        %v349 = vld [vmem:[#allocation7 + $0x3c] sm:$0xff]
        %v350 = vld [vmem:[#allocation7 + $0x44] sm:$0xf]
        %v351 = vld [vmem:[#allocation7 + $0x48] sm:$0xff]
        %v352 = vld [vmem:[#allocation7 + $0x50] sm:$0xff]
        %v353 = vld [vmem:[#allocation7 + $0x58] sm:$0xff]
        %v354 = vld [vmem:[#allocation7 + $0x60] sm:$0xff]
        %v355 = vld [vmem:[#allocation7 + $0x68] sm:$0xf]
        %v356 = vld [vmem:[#allocation7 + $0x6c] sm:$0xff]
        %v357 = vld [vmem:[#allocation7 + $0x74] sm:$0xff]
        %v358 = vld [vmem:[#allocation7 + $0x7c] sm:$0xff]
        %v359 = vld [vmem:[#allocation7 + $0x84] sm:$0xff]
        %v360 = vld [vmem:[#allocation7 + $0x8c] sm:$0xf]
        %v361 = vld [vmem:[#allocation7 + $0x90] sm:$0xff]
        %v362 = vld [vmem:[#allocation7 + $0x98] sm:$0xff]
        %v363 = vld [vmem:[#allocation7 + $0xa0] sm:$0xff]
        %v364 = vld [vmem:[#allocation7 + $0xa8] sm:$0xff]
        %v365 = vld [vmem:[#allocation7 + $0xb0] sm:$0xf]
        %v366 = vld [vmem:[#allocation7 + $0xb4] sm:$0xff]
        %v367 = vld [vmem:[#allocation7 + $0xbc] sm:$0xff]
        %v368 = vld [vmem:[#allocation7 + $0xc4] sm:$0xff]
        %v369 = vld [vmem:[#allocation7 + $0xcc] sm:$0xff]
        %v370 = vld [vmem:[#allocation7 + $0xd4] sm:$0xf]
        %v371 = vld [vmem:[#allocation7 + $0xd8] sm:$0xff]
        %v372 = vld [vmem:[#allocation7 + $0xe0] sm:$0xff]
        %v373 = vld [vmem:[#allocation7 + $0xe8] sm:$0xff]
        %v374 = vld [vmem:[#allocation7 + $0xf0] sm:$0xff]
        %v375 = vld [vmem:[#allocation7 + $0xf8] sm:$0xf]
        %v376 = vld [vmem:[#allocation7 + $0xfc] sm:$0xff]
        %v377 = vld [vmem:[#allocation7 + $0x104] sm:$0xff]
        %v378 = vld [vmem:[#allocation7 + $0x10c] sm:$0xff]
        %v379 = vld [vmem:[#allocation7 + $0x114] sm:$0xff]
        %v380 = vld [vmem:[#allocation7 + $0x11c] sm:$0xf]
        %v381 = vld [vmem:[#allocation7 + $0x120] sm:$0xff]
        %v382 = vld [vmem:[#allocation7 + $0x128] sm:$0xff]
        %v383 = vld [vmem:[#allocation7 + $0x130] sm:$0xff]
        %v384 = vld [vmem:[#allocation7 + $0x138] sm:$0xff]
        %v385 = vld [vmem:[#allocation7 + $0x140] sm:$0xf]
        %v386 = vld [vmem:[#allocation7 + $0x144] sm:$0xff]
        %v387 = vld [vmem:[#allocation7 + $0x14c] sm:$0xff]
        %v388 = vld [vmem:[#allocation7 + $0x154] sm:$0xff]
        %v389 = vld [vmem:[#allocation7 + $0x15c] sm:$0xff]
        %v390 = vld [vmem:[#allocation7 + $0x164] sm:$0xf]
        %v391 = vld [vmem:[#allocation7 + $0x168] sm:$0xff]
        %v392 = vld [vmem:[#allocation7 + $0x170] sm:$0xff]
        %v393 = vld [vmem:[#allocation7 + $0x178] sm:$0xff]
        %v394 = vld [vmem:[#allocation7 + $0x180] sm:$0xff]
        %v395 = vld [vmem:[#allocation7 + $0x188] sm:$0xf]
        %v396 = vld [vmem:[#allocation7 + $0x18c] sm:$0xff]
        %v397 = vld [vmem:[#allocation7 + $0x194] sm:$0xff]
        %v398 = vld [vmem:[#allocation7 + $0x19c] sm:$0xff]
        %v399 = vld [vmem:[#allocation7 + $0x1a4] sm:$0xff]
        %v400 = vld [vmem:[#allocation7 + $0x1ac] sm:$0xf]
        %v401 = vld [vmem:[#allocation7 + $0x1b0] sm:$0xff]
        %v402 = vld [vmem:[#allocation7 + $0x1b8] sm:$0xff]
        %v403 = vld [vmem:[#allocation7 + $0x1c0] sm:$0xff]
        %v404 = vld [vmem:[#allocation7 + $0x1c8] sm:$0xff]
        %v405 = vld [vmem:[#allocation7 + $0x1d0] sm:$0xf]
        %v406 = vld [vmem:[#allocation7 + $0x1d4] sm:$0xff]
        %v407 = vld [vmem:[#allocation7 + $0x1dc] sm:$0xff]
        %v408 = vld [vmem:[#allocation7 + $0x1e4] sm:$0xff]
        %v409 = vld [vmem:[#allocation7 + $0x1ec] sm:$0xff]
        %v410 = vld [vmem:[#allocation7 + $0x1f4] sm:$0xf]
        %v411 = vld [vmem:[#allocation7 + $0x1f8] sm:$0xff]
        %v412 = vld [vmem:[#allocation7 + $0x200] sm:$0xff]
        %v413 = vld [vmem:[#allocation7 + $0x208] sm:$0xff]
        %v414 = vld [vmem:[#allocation7 + $0x210] sm:$0xff]
        %v415 = vld [vmem:[#allocation7 + $0x218] sm:$0xf]
        %v416 = vld [vmem:[#allocation7 + $0x21c] sm:$0xff]
        %v417 = vld [vmem:[#allocation7 + $0x224] sm:$0xff]
        %v418 = vld [vmem:[#allocation7 + $0x22c] sm:$0xff]
        %v419 = vld [vmem:[#allocation7 + $0x234] sm:$0xff]
        %v420 = vld [vmem:[#allocation7 + $0x23c] sm:$0xf]
        %v421 = vld [vmem:[#allocation7 + $0x240] sm:$0xff]
        %v422 = vld [vmem:[#allocation7 + $0x248] sm:$0xff]
        %v423 = vld [vmem:[#allocation7 + $0x250] sm:$0xff]
        %v424 = vld [vmem:[#allocation7 + $0x258] sm:$0xff]
        %v425 = vld [vmem:[#allocation7 + $0x260] sm:$0xf]
        %v426 = vld [vmem:[#allocation7 + $0x264] sm:$0xff]
        %v427 = vld [vmem:[#allocation7 + $0x26c] sm:$0xff]
        %v428 = vld [vmem:[#allocation7 + $0x274] sm:$0xff]
        %v429 = vld [vmem:[#allocation7 + $0x27c] sm:$0xff]
        %v430 = vld [vmem:[#allocation7 + $0x284] sm:$0xf]
        %v431 = vld [vmem:[#allocation7 + $0x288] sm:$0xff]
        %v432 = vld [vmem:[#allocation7 + $0x290] sm:$0xff]
        %v433 = vld [vmem:[#allocation7 + $0x298] sm:$0xff]
        %v434 = vld [vmem:[#allocation7 + $0x2a0] sm:$0xff]
        %v435 = vld [vmem:[#allocation7 + $0x2a8] sm:$0xf]
        %v436 = vld [vmem:[#allocation7 + $0x2ac] sm:$0xff]
        %v437 = vld [vmem:[#allocation7 + $0x2b4] sm:$0xff]
        %v438 = vld [vmem:[#allocation7 + $0x2bc] sm:$0xff]
        %v439 = vld [vmem:[#allocation7 + $0x2c4] sm:$0xff]
        %v440 = vld [vmem:[#allocation7 + $0x2cc] sm:$0xf]
        %v441 = vld [vmem:[#allocation7 + $0x2d0] sm:$0xff]
        %v442 = vld [vmem:[#allocation7 + $0x2d8] sm:$0xff]
        %v443 = vld [vmem:[#allocation7 + $0x2e0] sm:$0xff]
        %v444 = vld [vmem:[#allocation7 + $0x2e8] sm:$0xff]
        %v445 = vld [vmem:[#allocation7 + $0x2f0] sm:$0xf]
        %v446 = vld [vmem:[#allocation7 + $0x2f4] sm:$0xff]
        %v447 = vld [vmem:[#allocation7 + $0x2fc] sm:$0xff]
        %v448 = vld [vmem:[#allocation7 + $0x304] sm:$0xff]
        %v449 = vld [vmem:[#allocation7 + $0x30c] sm:$0xff]
        %v450 = vld [vmem:[#allocation7 + $0x314] sm:$0xf]
        %v451 = vld [vmem:[#allocation7 + $0x318] sm:$0xff]
        %v452 = vld [vmem:[#allocation7 + $0x320] sm:$0xff]
        %v453 = vld [vmem:[#allocation7 + $0x328] sm:$0xff]
        %v454 = vld [vmem:[#allocation7 + $0x330] sm:$0xff]
        %v455 = vld [vmem:[#allocation7 + $0x338] sm:$0xf]
        %v456 = vld [vmem:[#allocation7 + $0x33c] sm:$0xff]
        %v457 = vld [vmem:[#allocation7 + $0x344] sm:$0xff]
        %v458 = vld [vmem:[#allocation7 + $0x34c] sm:$0xff]
        %v459 = vld [vmem:[#allocation7 + $0x354] sm:$0xff]
        %v460 = vld [vmem:[#allocation7 + $0x35c] sm:$0xf]
        %v461 = vld [vmem:[#allocation7 + $0x360] sm:$0xff]
        %v462 = vld [vmem:[#allocation7 + $0x368] sm:$0xff]
        %v463 = vld [vmem:[#allocation7 + $0x370] sm:$0xff]
        %v464 = vld [vmem:[#allocation7 + $0x378] sm:$0xff]
        %v465 = vld [vmem:[#allocation7 + $0x380] sm:$0xf]
        %v466 = vld [vmem:[#allocation7 + $0x384] sm:$0xff]
        %v467 = vld [vmem:[#allocation7 + $0x38c] sm:$0xff]
        %v468 = vld [vmem:[#allocation7 + $0x394] sm:$0xff]
        %v469 = vld [vmem:[#allocation7 + $0x39c] sm:$0xff]
        %v470 = vld [vmem:[#allocation7 + $0x3a4] sm:$0xf]
        %v471 = vld [vmem:[#allocation7 + $0x3a8] sm:$0xff]
        %v472 = vld [vmem:[#allocation7 + $0x3b0] sm:$0xff]
        %v473 = vld [vmem:[#allocation7 + $0x3b8] sm:$0xff]
        %v474 = vld [vmem:[#allocation7 + $0x3c0] sm:$0xff]
        %v475 = vld [vmem:[#allocation7 + $0x3c8] sm:$0xf]
        %v476 = vld [vmem:[#allocation7 + $0x3cc] sm:$0xff]
        %v477 = vld [vmem:[#allocation7 + $0x3d4] sm:$0xff]
        %v478 = vld [vmem:[#allocation7 + $0x3dc] sm:$0xff]
        %v479 = vld [vmem:[#allocation7 + $0x3e4] sm:$0xff]
        %v480 = vld [vmem:[#allocation7 + $0x3ec] sm:$0xf]
        %v481 = vld [vmem:[#allocation7 + $0x3f0] sm:$0xff]
        %v482 = vld [vmem:[#allocation7 + $0x3f8] sm:$0xff]
        %v483 = vld [vmem:[#allocation7 + $0x400] sm:$0xff]
        %v484 = vld [vmem:[#allocation7 + $0x408] sm:$0xff]
        %v485 = vld [vmem:[#allocation7 + $0x410] sm:$0xf]
        %v486 = vld [vmem:[#allocation7 + $0x414] sm:$0xff]
        %v487 = vld [vmem:[#allocation7 + $0x41c] sm:$0xff]
        %v488 = vld [vmem:[#allocation7 + $0x424] sm:$0xff]
        %v489 = vld [vmem:[#allocation7 + $0x42c] sm:$0xff]
        %v490 = vld [vmem:[#allocation7 + $0x434] sm:$0xf]
        %v491 = vld [vmem:[#allocation7 + $0x438] sm:$0xff]
        %v492 = vld [vmem:[#allocation7 + $0x440] sm:$0xff]
        %v493 = vld [vmem:[#allocation7 + $0x448] sm:$0xff]
        %v494 = vld [vmem:[#allocation7 + $0x450] sm:$0xff]
        %v495 = vld [vmem:[#allocation7 + $0x458] sm:$0xf]
        %v496 = vld [vmem:[#allocation7 + $0x45c] sm:$0xff]
        %v497 = vld [vmem:[#allocation7 + $0x464] sm:$0xff]
        %v498 = vld [vmem:[#allocation7 + $0x46c] sm:$0xff]
        %v499 = vld [vmem:[#allocation7 + $0x474] sm:$0xff]
        %v500 = vld [vmem:[#allocation7 + $0x47c] sm:$0xf]
        %v501 = vld [vmem:[#allocation7 + $0x480] sm:$0xff]
        %v502 = vld [vmem:[#allocation7 + $0x488] sm:$0xff]
        %v503 = vld [vmem:[#allocation7 + $0x490] sm:$0xff]
        %v504 = vld [vmem:[#allocation7 + $0x498] sm:$0xff]
        %v505 = vld [vmem:[#allocation7 + $0x4a0] sm:$0xf]
        %v506 = vld [vmem:[#allocation7 + $0x4a4] sm:$0xff]
        %v507 = vld [vmem:[#allocation7 + $0x4ac] sm:$0xff]
        %v508 = vld [vmem:[#allocation7 + $0x4b4] sm:$0xff]
        %v509 = vld [vmem:[#allocation7 + $0x4bc] sm:$0xff]
        %v510 = vld [vmem:[#allocation7 + $0x4c4] sm:$0xf]
        %v511 = vld [vmem:[#allocation7 + $0x4c8] sm:$0xff]
        %v512 = vld [vmem:[#allocation7 + $0x4d0] sm:$0xff]
        %v513 = vld [vmem:[#allocation7 + $0x4d8] sm:$0xff]
        %v514 = vld [vmem:[#allocation7 + $0x4e0] sm:$0xff]
        %v515 = vld [vmem:[#allocation7 + $0x4e8] sm:$0xf]
        %v516 = vld [vmem:[#allocation7 + $0x4ec] sm:$0xff]
        %v517 = vld [vmem:[#allocation7 + $0x4f4] sm:$0xff]
        %v518 = vld [vmem:[#allocation7 + $0x4fc] sm:$0xff]
        %v519 = vld [vmem:[#allocation7 + $0x504] sm:$0xff]
        %v520 = vld [vmem:[#allocation7 + $0x50c] sm:$0xf]
        %v521 = vld [vmem:[#allocation7 + $0x510] sm:$0xff]
        %v522 = vld [vmem:[#allocation7 + $0x518] sm:$0xff]
        %v523 = vld [vmem:[#allocation7 + $0x520] sm:$0xff]
        %v524 = vld [vmem:[#allocation7 + $0x528] sm:$0xff]
        %v525 = vld [vmem:[#allocation7 + $0x530] sm:$0xf]
        %v526 = vld [vmem:[#allocation7 + $0x534] sm:$0xff]
        %v527 = vld [vmem:[#allocation7 + $0x53c] sm:$0xff]
        %v528 = vld [vmem:[#allocation7 + $0x544] sm:$0xff]
        %v529 = vld [vmem:[#allocation7 + $0x54c] sm:$0xff]
        %v530 = vld [vmem:[#allocation7 + $0x554] sm:$0xf]
        %v531 = vld [vmem:[#allocation7 + $0x558] sm:$0xff]
        %v532 = vld [vmem:[#allocation7 + $0x560] sm:$0xff]
        %v533 = vld [vmem:[#allocation7 + $0x568] sm:$0xff]
        %v534 = vld [vmem:[#allocation7 + $0x570] sm:$0xff]
        %v535 = vld [vmem:[#allocation7 + $0x578] sm:$0xf]
        %v536 = vld [vmem:[#allocation7 + $0x57c] sm:$0xff]
        %v537 = vld [vmem:[#allocation7 + $0x584] sm:$0xff]
        %v538 = vld [vmem:[#allocation7 + $0x58c] sm:$0xff]
        %v539 = vld [vmem:[#allocation7 + $0x594] sm:$0xff]
        %v540 = vld [vmem:[#allocation7 + $0x59c] sm:$0xf]
        %v541 = vld [vmem:[#allocation7 + $0x5a0] sm:$0xff]
        %v542 = vld [vmem:[#allocation7 + $0x5a8] sm:$0xff]
        %v543 = vld [vmem:[#allocation7 + $0x5b0] sm:$0xff]
        %v544 = vld [vmem:[#allocation7 + $0x5b8] sm:$0xff]
        %v545 = vld [vmem:[#allocation7 + $0x5c0] sm:$0xf]
        %v546 = vld [vmem:[#allocation7 + $0x5c4] sm:$0xff]
        %v547 = vld [vmem:[#allocation7 + $0x5cc] sm:$0xff]
        %v548 = vld [vmem:[#allocation7 + $0x5d4] sm:$0xff]
        %v549 = vld [vmem:[#allocation7 + $0x5dc] sm:$0xff]
        %v550 = vld [vmem:[#allocation7 + $0x5e4] sm:$0xf]
        %v551 = vld [vmem:[#allocation7 + $0x5e8] sm:$0xff]
        %v552 = vld [vmem:[#allocation7 + $0x5f0] sm:$0xff]
        %v553 = vld [vmem:[#allocation7 + $0x5f8] sm:$0xff]
        %v554 = vld [vmem:[#allocation7 + $0x600] sm:$0xff]
        %v555 = vld [vmem:[#allocation7 + $0x608] sm:$0xf]
        %v556 = vld [vmem:[#allocation7 + $0x60c] sm:$0xff]
        %v557 = vld [vmem:[#allocation7 + $0x614] sm:$0xff]
        %v558 = vld [vmem:[#allocation7 + $0x61c] sm:$0xff]
        %v559 = vld [vmem:[#allocation7 + $0x624] sm:$0xff]
        %v560 = vld [vmem:[#allocation7 + $0x62c] sm:$0xf]
        %v561 = vld [vmem:[#allocation7 + $0x630] sm:$0xff]
        %v562 = vld [vmem:[#allocation7 + $0x638] sm:$0xff]
        %v563 = vld [vmem:[#allocation7 + $0x640] sm:$0xff]
        %v564 = vld [vmem:[#allocation7 + $0x648] sm:$0xff]
        %v565 = vld [vmem:[#allocation7 + $0x650] sm:$0xf]
        %v566 = vld [vmem:[#allocation7 + $0x654] sm:$0xff]
        %v567 = vld [vmem:[#allocation7 + $0x65c] sm:$0xff]
        %v568 = vld [vmem:[#allocation7 + $0x664] sm:$0xff]
        %v569 = vld [vmem:[#allocation7 + $0x66c] sm:$0xff]
        %v570 = vld [vmem:[#allocation7 + $0x674] sm:$0xf]
        %v571 = vld [vmem:[#allocation7 + $0x678] sm:$0xff]
        %v572 = vld [vmem:[#allocation7 + $0x680] sm:$0xff]
        %v573 = vld [vmem:[#allocation7 + $0x688] sm:$0xff]
        %v574 = vld [vmem:[#allocation7 + $0x690] sm:$0xff]
        %v575 = vld [vmem:[#allocation7 + $0x698] sm:$0xf]
        %v576 = vld [vmem:[#allocation7 + $0x69c] sm:$0xff]
        %v577 = vld [vmem:[#allocation7 + $0x6a4] sm:$0xff]
        %v578 = vld [vmem:[#allocation7 + $0x6ac] sm:$0xff]
        %v579 = vld [vmem:[#allocation7 + $0x6b4] sm:$0xff]
        %v580 = vld [vmem:[#allocation7 + $0x6bc] sm:$0xf]
        %v821 = vunpack.c.l.b16 %v341
        %v822 = vunpack.c.h.b16 %v341
        %v823 = vunpack.c.l.b16 %v342
        %v824 = vunpack.c.h.b16 %v342
        %v825 = vunpack.c.l.b16 %v343
        %v826 = vunpack.c.h.b16 %v343
        %v827 = vunpack.c.l.b16 %v344
        %v828 = vunpack.c.h.b16 %v344
        %v829 = vunpack.c.l.b16 %v345
        %v830 = vunpack.c.l.b16 %v346
        %v831 = vunpack.c.h.b16 %v346
        %v832 = vunpack.c.l.b16 %v347
        %v833 = vunpack.c.h.b16 %v347
        %v834 = vunpack.c.l.b16 %v348
        %v835 = vunpack.c.h.b16 %v348
        %v836 = vunpack.c.l.b16 %v349
        %v837 = vunpack.c.h.b16 %v349
        %v838 = vunpack.c.l.b16 %v350
        %v839 = vunpack.c.l.b16 %v351
        %v840 = vunpack.c.h.b16 %v351
        %v841 = vunpack.c.l.b16 %v352
        %v842 = vunpack.c.h.b16 %v352
        %v843 = vunpack.c.l.b16 %v353
        %v844 = vunpack.c.h.b16 %v353
        %v845 = vunpack.c.l.b16 %v354
        %v846 = vunpack.c.h.b16 %v354
        %v847 = vunpack.c.l.b16 %v355
        %v848 = vunpack.c.l.b16 %v356
        %v849 = vunpack.c.h.b16 %v356
        %v850 = vunpack.c.l.b16 %v357
        %v851 = vunpack.c.h.b16 %v357
        %v852 = vunpack.c.l.b16 %v358
        %v853 = vunpack.c.h.b16 %v358
        %v854 = vunpack.c.l.b16 %v359
        %v855 = vunpack.c.h.b16 %v359
        %v856 = vunpack.c.l.b16 %v360
        %v857 = vunpack.c.l.b16 %v361
        %v858 = vunpack.c.h.b16 %v361
        %v859 = vunpack.c.l.b16 %v362
        %v860 = vunpack.c.h.b16 %v362
        %v861 = vunpack.c.l.b16 %v363
        %v862 = vunpack.c.h.b16 %v363
        %v863 = vunpack.c.l.b16 %v364
        %v864 = vunpack.c.h.b16 %v364
        %v865 = vunpack.c.l.b16 %v365
        %v866 = vunpack.c.l.b16 %v366
        %v867 = vunpack.c.h.b16 %v366
        %v868 = vunpack.c.l.b16 %v367
        %v869 = vunpack.c.h.b16 %v367
        %v870 = vunpack.c.l.b16 %v368
        %v871 = vunpack.c.h.b16 %v368
        %v872 = vunpack.c.l.b16 %v369
        %v873 = vunpack.c.h.b16 %v369
        %v874 = vunpack.c.l.b16 %v370
        %v875 = vunpack.c.l.b16 %v371
        %v876 = vunpack.c.h.b16 %v371
        %v877 = vunpack.c.l.b16 %v372
        %v878 = vunpack.c.h.b16 %v372
        %v879 = vunpack.c.l.b16 %v373
        %v880 = vunpack.c.h.b16 %v373
        %v881 = vunpack.c.l.b16 %v374
        %v882 = vunpack.c.h.b16 %v374
        %v883 = vunpack.c.l.b16 %v375
        %v884 = vunpack.c.l.b16 %v376
        %v885 = vunpack.c.h.b16 %v376
        %v886 = vunpack.c.l.b16 %v377
        %v887 = vunpack.c.h.b16 %v377
        %v888 = vunpack.c.l.b16 %v378
        %v889 = vunpack.c.h.b16 %v378
        %v890 = vunpack.c.l.b16 %v379
        %v891 = vunpack.c.h.b16 %v379
        %v892 = vunpack.c.l.b16 %v380
        %v893 = vunpack.c.l.b16 %v381
        %v894 = vunpack.c.h.b16 %v381
        %v895 = vunpack.c.l.b16 %v382
        %v896 = vunpack.c.h.b16 %v382
        %v897 = vunpack.c.l.b16 %v383
        %v898 = vunpack.c.h.b16 %v383
        %v899 = vunpack.c.l.b16 %v384
        %v900 = vunpack.c.h.b16 %v384
        %v901 = vunpack.c.l.b16 %v385
        %v902 = vunpack.c.l.b16 %v386
        %v903 = vunpack.c.h.b16 %v386
        %v904 = vunpack.c.l.b16 %v387
        %v905 = vunpack.c.h.b16 %v387
        %v906 = vunpack.c.l.b16 %v388
        %v907 = vunpack.c.h.b16 %v388
        %v908 = vunpack.c.l.b16 %v389
        %v909 = vunpack.c.h.b16 %v389
        %v910 = vunpack.c.l.b16 %v390
        %v911 = vunpack.c.l.b16 %v391
        %v912 = vunpack.c.h.b16 %v391
        %v913 = vunpack.c.l.b16 %v392
        %v914 = vunpack.c.h.b16 %v392
        %v915 = vunpack.c.l.b16 %v393
        %v916 = vunpack.c.h.b16 %v393
        %v917 = vunpack.c.l.b16 %v394
        %v918 = vunpack.c.h.b16 %v394
        %v919 = vunpack.c.l.b16 %v395
        %v920 = vunpack.c.l.b16 %v396
        %v921 = vunpack.c.h.b16 %v396
        %v922 = vunpack.c.l.b16 %v397
        %v923 = vunpack.c.h.b16 %v397
        %v924 = vunpack.c.l.b16 %v398
        %v925 = vunpack.c.h.b16 %v398
        %v926 = vunpack.c.l.b16 %v399
        %v927 = vunpack.c.h.b16 %v399
        %v928 = vunpack.c.l.b16 %v400
        %v929 = vunpack.c.l.b16 %v401
        %v930 = vunpack.c.h.b16 %v401
        %v931 = vunpack.c.l.b16 %v402
        %v932 = vunpack.c.h.b16 %v402
        %v933 = vunpack.c.l.b16 %v403
        %v934 = vunpack.c.h.b16 %v403
        %v935 = vunpack.c.l.b16 %v404
        %v936 = vunpack.c.h.b16 %v404
        %v937 = vunpack.c.l.b16 %v405
        %v938 = vunpack.c.l.b16 %v406
        %v939 = vunpack.c.h.b16 %v406
        %v940 = vunpack.c.l.b16 %v407
        %v941 = vunpack.c.h.b16 %v407
        %v942 = vunpack.c.l.b16 %v408
        %v943 = vunpack.c.h.b16 %v408
        %v944 = vunpack.c.l.b16 %v409
        %v945 = vunpack.c.h.b16 %v409
        %v946 = vunpack.c.l.b16 %v410
        %v947 = vunpack.c.l.b16 %v411
        %v948 = vunpack.c.h.b16 %v411
        %v949 = vunpack.c.l.b16 %v412
        %v950 = vunpack.c.h.b16 %v412
        %v951 = vunpack.c.l.b16 %v413
        %v952 = vunpack.c.h.b16 %v413
        %v953 = vunpack.c.l.b16 %v414
        %v954 = vunpack.c.h.b16 %v414
        %v955 = vunpack.c.l.b16 %v415
        %v956 = vunpack.c.l.b16 %v416
        %v957 = vunpack.c.h.b16 %v416
        %v958 = vunpack.c.l.b16 %v417
        %v959 = vunpack.c.h.b16 %v417
        %v960 = vunpack.c.l.b16 %v418
        %v961 = vunpack.c.h.b16 %v418
        %v962 = vunpack.c.l.b16 %v419
        %v963 = vunpack.c.h.b16 %v419
        %v964 = vunpack.c.l.b16 %v420
        %v965 = vunpack.c.l.b16 %v421
        %v966 = vunpack.c.h.b16 %v421
        %v967 = vunpack.c.l.b16 %v422
        %v968 = vunpack.c.h.b16 %v422
        %v969 = vunpack.c.l.b16 %v423
        %v970 = vunpack.c.h.b16 %v423
        %v971 = vunpack.c.l.b16 %v424
        %v972 = vunpack.c.h.b16 %v424
        %v973 = vunpack.c.l.b16 %v425
        %v974 = vunpack.c.l.b16 %v426
        %v975 = vunpack.c.h.b16 %v426
        %v976 = vunpack.c.l.b16 %v427
        %v977 = vunpack.c.h.b16 %v427
        %v978 = vunpack.c.l.b16 %v428
        %v979 = vunpack.c.h.b16 %v428
        %v980 = vunpack.c.l.b16 %v429
        %v981 = vunpack.c.h.b16 %v429
        %v982 = vunpack.c.l.b16 %v430
        %v983 = vunpack.c.l.b16 %v431
        %v984 = vunpack.c.h.b16 %v431
        %v985 = vunpack.c.l.b16 %v432
        %v986 = vunpack.c.h.b16 %v432
        %v987 = vunpack.c.l.b16 %v433
        %v988 = vunpack.c.h.b16 %v433
        %v989 = vunpack.c.l.b16 %v434
        %v990 = vunpack.c.h.b16 %v434
        %v991 = vunpack.c.l.b16 %v435
        %v992 = vunpack.c.l.b16 %v436
        %v993 = vunpack.c.h.b16 %v436
        %v994 = vunpack.c.l.b16 %v437
        %v995 = vunpack.c.h.b16 %v437
        %v996 = vunpack.c.l.b16 %v438
        %v997 = vunpack.c.h.b16 %v438
        %v998 = vunpack.c.l.b16 %v439
        %v999 = vunpack.c.h.b16 %v439
        %v1000 = vunpack.c.l.b16 %v440
        %v1001 = vunpack.c.l.b16 %v441
        %v1002 = vunpack.c.h.b16 %v441
        %v1003 = vunpack.c.l.b16 %v442
        %v1004 = vunpack.c.h.b16 %v442
        %v1005 = vunpack.c.l.b16 %v443
        %v1006 = vunpack.c.h.b16 %v443
        %v1007 = vunpack.c.l.b16 %v444
        %v1008 = vunpack.c.h.b16 %v444
        %v1009 = vunpack.c.l.b16 %v445
        %v1010 = vunpack.c.l.b16 %v446
        %v1011 = vunpack.c.h.b16 %v446
        %v1012 = vunpack.c.l.b16 %v447
        %v1013 = vunpack.c.h.b16 %v447
        %v1014 = vunpack.c.l.b16 %v448
        %v1015 = vunpack.c.h.b16 %v448
        %v1016 = vunpack.c.l.b16 %v449
        %v1017 = vunpack.c.h.b16 %v449
        %v1018 = vunpack.c.l.b16 %v450
        %v1019 = vunpack.c.l.b16 %v451
        %v1020 = vunpack.c.h.b16 %v451
        %v1021 = vunpack.c.l.b16 %v452
        %v1022 = vunpack.c.h.b16 %v452
        %v1023 = vunpack.c.l.b16 %v453
        %v1024 = vunpack.c.h.b16 %v453
        %v1025 = vunpack.c.l.b16 %v454
        %v1026 = vunpack.c.h.b16 %v454
        %v1027 = vunpack.c.l.b16 %v455
        %v1028 = vunpack.c.l.b16 %v456
        %v1029 = vunpack.c.h.b16 %v456
        %v1030 = vunpack.c.l.b16 %v457
        %v1031 = vunpack.c.h.b16 %v457
        %v1032 = vunpack.c.l.b16 %v458
        %v1033 = vunpack.c.h.b16 %v458
        %v1034 = vunpack.c.l.b16 %v459
        %v1035 = vunpack.c.h.b16 %v459
        %v1036 = vunpack.c.l.b16 %v460
        %v1037 = vunpack.c.l.b16 %v461
        %v1038 = vunpack.c.h.b16 %v461
        %v1039 = vunpack.c.l.b16 %v462
        %v1040 = vunpack.c.h.b16 %v462
        %v1041 = vunpack.c.l.b16 %v463
        %v1042 = vunpack.c.h.b16 %v463
        %v1043 = vunpack.c.l.b16 %v464
        %v1044 = vunpack.c.h.b16 %v464
        %v1045 = vunpack.c.l.b16 %v465
        %v1046 = vunpack.c.l.b16 %v466
        %v1047 = vunpack.c.h.b16 %v466
        %v1048 = vunpack.c.l.b16 %v467
        %v1049 = vunpack.c.h.b16 %v467
        %v1050 = vunpack.c.l.b16 %v468
        %v1051 = vunpack.c.h.b16 %v468
        %v1052 = vunpack.c.l.b16 %v469
        %v1053 = vunpack.c.h.b16 %v469
        %v1054 = vunpack.c.l.b16 %v470
        %v1055 = vunpack.c.l.b16 %v471
        %v1056 = vunpack.c.h.b16 %v471
        %v1057 = vunpack.c.l.b16 %v472
        %v1058 = vunpack.c.h.b16 %v472
        %v1059 = vunpack.c.l.b16 %v473
        %v1060 = vunpack.c.h.b16 %v473
        %v1061 = vunpack.c.l.b16 %v474
        %v1062 = vunpack.c.h.b16 %v474
        %v1063 = vunpack.c.l.b16 %v475
        %v1064 = vunpack.c.l.b16 %v476
        %v1065 = vunpack.c.h.b16 %v476
        %v1066 = vunpack.c.l.b16 %v477
        %v1067 = vunpack.c.h.b16 %v477
        %v1068 = vunpack.c.l.b16 %v478
        %v1069 = vunpack.c.h.b16 %v478
        %v1070 = vunpack.c.l.b16 %v479
        %v1071 = vunpack.c.h.b16 %v479
        %v1072 = vunpack.c.l.b16 %v480
        %v1073 = vunpack.c.l.b16 %v481
        %v1074 = vunpack.c.h.b16 %v481
        %v1075 = vunpack.c.l.b16 %v482
        %v1076 = vunpack.c.h.b16 %v482
        %v1077 = vunpack.c.l.b16 %v483
        %v1078 = vunpack.c.h.b16 %v483
        %v1079 = vunpack.c.l.b16 %v484
        %v1080 = vunpack.c.h.b16 %v484
        %v1081 = vunpack.c.l.b16 %v485
        %v1082 = vunpack.c.l.b16 %v486
        %v1083 = vunpack.c.h.b16 %v486
        %v1084 = vunpack.c.l.b16 %v487
        %v1085 = vunpack.c.h.b16 %v487
        %v1086 = vunpack.c.l.b16 %v488
        %v1087 = vunpack.c.h.b16 %v488
        %v1088 = vunpack.c.l.b16 %v489
        %v1089 = vunpack.c.h.b16 %v489
        %v1090 = vunpack.c.l.b16 %v490
        %v1091 = vunpack.c.l.b16 %v491
        %v1092 = vunpack.c.h.b16 %v491
        %v1093 = vunpack.c.l.b16 %v492
        %v1094 = vunpack.c.h.b16 %v492
        %v1095 = vunpack.c.l.b16 %v493
        %v1096 = vunpack.c.h.b16 %v493
        %v1097 = vunpack.c.l.b16 %v494
        %v1098 = vunpack.c.h.b16 %v494
        %v1099 = vunpack.c.l.b16 %v495
        %v1100 = vunpack.c.l.b16 %v496
        %v1101 = vunpack.c.h.b16 %v496
        %v1102 = vunpack.c.l.b16 %v497
        %v1103 = vunpack.c.h.b16 %v497
        %v1104 = vunpack.c.l.b16 %v498
        %v1105 = vunpack.c.h.b16 %v498
        %v1106 = vunpack.c.l.b16 %v499
        %v1107 = vunpack.c.h.b16 %v499
        %v1108 = vunpack.c.l.b16 %v500
        %v1109 = vunpack.c.l.b16 %v501
        %v1110 = vunpack.c.h.b16 %v501
        %v1111 = vunpack.c.l.b16 %v502
        %v1112 = vunpack.c.h.b16 %v502
        %v1113 = vunpack.c.l.b16 %v503
        %v1114 = vunpack.c.h.b16 %v503
        %v1115 = vunpack.c.l.b16 %v504
        %v1116 = vunpack.c.h.b16 %v504
        %v1117 = vunpack.c.l.b16 %v505
        %v1118 = vunpack.c.l.b16 %v506
        %v1119 = vunpack.c.h.b16 %v506
        %v1120 = vunpack.c.l.b16 %v507
        %v1121 = vunpack.c.h.b16 %v507
        %v1122 = vunpack.c.l.b16 %v508
        %v1123 = vunpack.c.h.b16 %v508
        %v1124 = vunpack.c.l.b16 %v509
        %v1125 = vunpack.c.h.b16 %v509
        %v1126 = vunpack.c.l.b16 %v510
        %v1127 = vunpack.c.l.b16 %v511
        %v1128 = vunpack.c.h.b16 %v511
        %v1129 = vunpack.c.l.b16 %v512
        %v1130 = vunpack.c.h.b16 %v512
        %v1131 = vunpack.c.l.b16 %v513
        %v1132 = vunpack.c.h.b16 %v513
        %v1133 = vunpack.c.l.b16 %v514
        %v1134 = vunpack.c.h.b16 %v514
        %v1135 = vunpack.c.l.b16 %v515
        %v1136 = vunpack.c.l.b16 %v516
        %v1137 = vunpack.c.h.b16 %v516
        %v1138 = vunpack.c.l.b16 %v517
        %v1139 = vunpack.c.h.b16 %v517
        %v1140 = vunpack.c.l.b16 %v518
        %v1141 = vunpack.c.h.b16 %v518
        %v1142 = vunpack.c.l.b16 %v519
        %v1143 = vunpack.c.h.b16 %v519
        %v1144 = vunpack.c.l.b16 %v520
        %v1145 = vunpack.c.l.b16 %v521
        %v1146 = vunpack.c.h.b16 %v521
        %v1147 = vunpack.c.l.b16 %v522
        %v1148 = vunpack.c.h.b16 %v522
        %v1149 = vunpack.c.l.b16 %v523
        %v1150 = vunpack.c.h.b16 %v523
        %v1151 = vunpack.c.l.b16 %v524
        %v1152 = vunpack.c.h.b16 %v524
        %v1153 = vunpack.c.l.b16 %v525
        %v1154 = vunpack.c.l.b16 %v526
        %v1155 = vunpack.c.h.b16 %v526
        %v1156 = vunpack.c.l.b16 %v527
        %v1157 = vunpack.c.h.b16 %v527
        %v1158 = vunpack.c.l.b16 %v528
        %v1159 = vunpack.c.h.b16 %v528
        %v1160 = vunpack.c.l.b16 %v529
        %v1161 = vunpack.c.h.b16 %v529
        %v1162 = vunpack.c.l.b16 %v530
        %v1163 = vunpack.c.l.b16 %v531
        %v1164 = vunpack.c.h.b16 %v531
        %v1165 = vunpack.c.l.b16 %v532
        %v1166 = vunpack.c.h.b16 %v532
        %v1167 = vunpack.c.l.b16 %v533
        %v1168 = vunpack.c.h.b16 %v533
        %v1169 = vunpack.c.l.b16 %v534
        %v1170 = vunpack.c.h.b16 %v534
        %v1171 = vunpack.c.l.b16 %v535
        %v1172 = vunpack.c.l.b16 %v536
        %v1173 = vunpack.c.h.b16 %v536
        %v1174 = vunpack.c.l.b16 %v537
        %v1175 = vunpack.c.h.b16 %v537
        %v1176 = vunpack.c.l.b16 %v538
        %v1177 = vunpack.c.h.b16 %v538
        %v1178 = vunpack.c.l.b16 %v539
        %v1179 = vunpack.c.h.b16 %v539
        %v1180 = vunpack.c.l.b16 %v540
        %v1181 = vunpack.c.l.b16 %v541
        %v1182 = vunpack.c.h.b16 %v541
        %v1183 = vunpack.c.l.b16 %v542
        %v1184 = vunpack.c.h.b16 %v542
        %v1185 = vunpack.c.l.b16 %v543
        %v1186 = vunpack.c.h.b16 %v543
        %v1187 = vunpack.c.l.b16 %v544
        %v1188 = vunpack.c.h.b16 %v544
        %v1189 = vunpack.c.l.b16 %v545
        %v1190 = vunpack.c.l.b16 %v546
        %v1191 = vunpack.c.h.b16 %v546
        %v1192 = vunpack.c.l.b16 %v547
        %v1193 = vunpack.c.h.b16 %v547
        %v1194 = vunpack.c.l.b16 %v548
        %v1195 = vunpack.c.h.b16 %v548
        %v1196 = vunpack.c.l.b16 %v549
        %v1197 = vunpack.c.h.b16 %v549
        %v1198 = vunpack.c.l.b16 %v550
        %v1199 = vunpack.c.l.b16 %v551
        %v1200 = vunpack.c.h.b16 %v551
        %v1201 = vunpack.c.l.b16 %v552
        %v1202 = vunpack.c.h.b16 %v552
        %v1203 = vunpack.c.l.b16 %v553
        %v1204 = vunpack.c.h.b16 %v553
        %v1205 = vunpack.c.l.b16 %v554
        %v1206 = vunpack.c.h.b16 %v554
        %v1207 = vunpack.c.l.b16 %v555
        %v1208 = vunpack.c.l.b16 %v556
        %v1209 = vunpack.c.h.b16 %v556
        %v1210 = vunpack.c.l.b16 %v557
        %v1211 = vunpack.c.h.b16 %v557
        %v1212 = vunpack.c.l.b16 %v558
        %v1213 = vunpack.c.h.b16 %v558
        %v1214 = vunpack.c.l.b16 %v559
        %v1215 = vunpack.c.h.b16 %v559
        %v1216 = vunpack.c.l.b16 %v560
        %v1217 = vunpack.c.l.b16 %v561
        %v1218 = vunpack.c.h.b16 %v561
        %v1219 = vunpack.c.l.b16 %v562
        %v1220 = vunpack.c.h.b16 %v562
        %v1221 = vunpack.c.l.b16 %v563
        %v1222 = vunpack.c.h.b16 %v563
        %v1223 = vunpack.c.l.b16 %v564
        %v1224 = vunpack.c.h.b16 %v564
        %v1225 = vunpack.c.l.b16 %v565
        %v1226 = vunpack.c.l.b16 %v566
        %v1227 = vunpack.c.h.b16 %v566
        %v1228 = vunpack.c.l.b16 %v567
        %v1229 = vunpack.c.h.b16 %v567
        %v1230 = vunpack.c.l.b16 %v568
        %v1231 = vunpack.c.h.b16 %v568
        %v1232 = vunpack.c.l.b16 %v569
        %v1233 = vunpack.c.h.b16 %v569
        %v1234 = vunpack.c.l.b16 %v570
        %v1235 = vunpack.c.l.b16 %v571
        %v1236 = vunpack.c.h.b16 %v571
        %v1237 = vunpack.c.l.b16 %v572
        %v1238 = vunpack.c.h.b16 %v572
        %v1239 = vunpack.c.l.b16 %v573
        %v1240 = vunpack.c.h.b16 %v573
        %v1241 = vunpack.c.l.b16 %v574
        %v1242 = vunpack.c.h.b16 %v574
        %v1243 = vunpack.c.l.b16 %v575
        %v1244 = vunpack.c.l.b16 %v576
        %v1245 = vunpack.c.h.b16 %v576
        %v1246 = vunpack.c.l.b16 %v577
        %v1247 = vunpack.c.h.b16 %v577
        %v1248 = vunpack.c.l.b16 %v578
        %v1249 = vunpack.c.h.b16 %v578
        %v1250 = vunpack.c.l.b16 %v579
        %v1251 = vunpack.c.h.b16 %v579
        %v1252 = vunpack.c.l.b16 %v580
        %v1253 = vpack.c.b16 %v830, %v821
        %v1254 = vpack.c.b16 %v831, %v822
        %v1255 = vpack.c.b16 %v832, %v823
        %v1256 = vpack.c.b16 %v833, %v824
        %v1257 = vpack.c.b16 %v834, %v825
        %v1258 = vpack.c.b16 %v835, %v826
        %v1259 = vpack.c.b16 %v836, %v827
        %v1260 = vpack.c.b16 %v837, %v828
        %v1261 = vpack.c.b16 %v838, %v829
        %v1262 = vpack.c.b16 %v848, %v839
        %v1263 = vpack.c.b16 %v849, %v840
        %v1264 = vpack.c.b16 %v850, %v841
        %v1265 = vpack.c.b16 %v851, %v842
        %v1266 = vpack.c.b16 %v852, %v843
        %v1267 = vpack.c.b16 %v853, %v844
        %v1268 = vpack.c.b16 %v854, %v845
        %v1269 = vpack.c.b16 %v855, %v846
        %v1270 = vpack.c.b16 %v856, %v847
        %v1271 = vpack.c.b16 %v866, %v857
        %v1272 = vpack.c.b16 %v867, %v858
        %v1273 = vpack.c.b16 %v868, %v859
        %v1274 = vpack.c.b16 %v869, %v860
        %v1275 = vpack.c.b16 %v870, %v861
        %v1276 = vpack.c.b16 %v871, %v862
        %v1277 = vpack.c.b16 %v872, %v863
        %v1278 = vpack.c.b16 %v873, %v864
        %v1279 = vpack.c.b16 %v874, %v865
        %v1280 = vpack.c.b16 %v884, %v875
        %v1281 = vpack.c.b16 %v885, %v876
        %v1282 = vpack.c.b16 %v886, %v877
        %v1283 = vpack.c.b16 %v887, %v878
        %v1284 = vpack.c.b16 %v888, %v879
        %v1285 = vpack.c.b16 %v889, %v880
        %v1286 = vpack.c.b16 %v890, %v881
        %v1287 = vpack.c.b16 %v891, %v882
        %v1288 = vpack.c.b16 %v892, %v883
        %v1289 = vpack.c.b16 %v902, %v893
        %v1290 = vpack.c.b16 %v903, %v894
        %v1291 = vpack.c.b16 %v904, %v895
        %v1292 = vpack.c.b16 %v905, %v896
        %v1293 = vpack.c.b16 %v906, %v897
        %v1294 = vpack.c.b16 %v907, %v898
        %v1295 = vpack.c.b16 %v908, %v899
        %v1296 = vpack.c.b16 %v909, %v900
        %v1297 = vpack.c.b16 %v910, %v901
        %v1298 = vpack.c.b16 %v920, %v911
        %v1299 = vpack.c.b16 %v921, %v912
        %v1300 = vpack.c.b16 %v922, %v913
        %v1301 = vpack.c.b16 %v923, %v914
        %v1302 = vpack.c.b16 %v924, %v915
        %v1303 = vpack.c.b16 %v925, %v916
        %v1304 = vpack.c.b16 %v926, %v917
        %v1305 = vpack.c.b16 %v927, %v918
        %v1306 = vpack.c.b16 %v928, %v919
        %v1307 = vpack.c.b16 %v938, %v929
        %v1308 = vpack.c.b16 %v939, %v930
        %v1309 = vpack.c.b16 %v940, %v931
        %v1310 = vpack.c.b16 %v941, %v932
        %v1311 = vpack.c.b16 %v942, %v933
        %v1312 = vpack.c.b16 %v943, %v934
        %v1313 = vpack.c.b16 %v944, %v935
        %v1314 = vpack.c.b16 %v945, %v936
        %v1315 = vpack.c.b16 %v946, %v937
        %v1316 = vpack.c.b16 %v956, %v947
        %v1317 = vpack.c.b16 %v957, %v948
        %v1318 = vpack.c.b16 %v958, %v949
        %v1319 = vpack.c.b16 %v959, %v950
        %v1320 = vpack.c.b16 %v960, %v951
        %v1321 = vpack.c.b16 %v961, %v952
        %v1322 = vpack.c.b16 %v962, %v953
        %v1323 = vpack.c.b16 %v963, %v954
        %v1324 = vpack.c.b16 %v964, %v955
        %v1325 = vpack.c.b16 %v974, %v965
        %v1326 = vpack.c.b16 %v975, %v966
        %v1327 = vpack.c.b16 %v976, %v967
        %v1328 = vpack.c.b16 %v977, %v968
        %v1329 = vpack.c.b16 %v978, %v969
        %v1330 = vpack.c.b16 %v979, %v970
        %v1331 = vpack.c.b16 %v980, %v971
        %v1332 = vpack.c.b16 %v981, %v972
        %v1333 = vpack.c.b16 %v982, %v973
        %v1334 = vpack.c.b16 %v992, %v983
        %v1335 = vpack.c.b16 %v993, %v984
        %v1336 = vpack.c.b16 %v994, %v985
        %v1337 = vpack.c.b16 %v995, %v986
        %v1338 = vpack.c.b16 %v996, %v987
        %v1339 = vpack.c.b16 %v997, %v988
        %v1340 = vpack.c.b16 %v998, %v989
        %v1341 = vpack.c.b16 %v999, %v990
        %v1342 = vpack.c.b16 %v1000, %v991
        %v1343 = vpack.c.b16 %v1010, %v1001
        %v1344 = vpack.c.b16 %v1011, %v1002
        %v1345 = vpack.c.b16 %v1012, %v1003
        %v1346 = vpack.c.b16 %v1013, %v1004
        %v1347 = vpack.c.b16 %v1014, %v1005
        %v1348 = vpack.c.b16 %v1015, %v1006
        %v1349 = vpack.c.b16 %v1016, %v1007
        %v1350 = vpack.c.b16 %v1017, %v1008
        %v1351 = vpack.c.b16 %v1018, %v1009
        %v1352 = vpack.c.b16 %v1028, %v1019
        %v1353 = vpack.c.b16 %v1029, %v1020
        %v1354 = vpack.c.b16 %v1030, %v1021
        %v1355 = vpack.c.b16 %v1031, %v1022
        %v1356 = vpack.c.b16 %v1032, %v1023
        %v1357 = vpack.c.b16 %v1033, %v1024
        %v1358 = vpack.c.b16 %v1034, %v1025
        %v1359 = vpack.c.b16 %v1035, %v1026
        %v1360 = vpack.c.b16 %v1036, %v1027
        %v1361 = vpack.c.b16 %v1046, %v1037
        %v1362 = vpack.c.b16 %v1047, %v1038
        %v1363 = vpack.c.b16 %v1048, %v1039
        %v1364 = vpack.c.b16 %v1049, %v1040
        %v1365 = vpack.c.b16 %v1050, %v1041
        %v1366 = vpack.c.b16 %v1051, %v1042
        %v1367 = vpack.c.b16 %v1052, %v1043
        %v1368 = vpack.c.b16 %v1053, %v1044
        %v1369 = vpack.c.b16 %v1054, %v1045
        %v1370 = vpack.c.b16 %v1064, %v1055
        %v1371 = vpack.c.b16 %v1065, %v1056
        %v1372 = vpack.c.b16 %v1066, %v1057
        %v1373 = vpack.c.b16 %v1067, %v1058
        %v1374 = vpack.c.b16 %v1068, %v1059
        %v1375 = vpack.c.b16 %v1069, %v1060
        %v1376 = vpack.c.b16 %v1070, %v1061
        %v1377 = vpack.c.b16 %v1071, %v1062
        %v1378 = vpack.c.b16 %v1072, %v1063
        %v1379 = vpack.c.b16 %v1082, %v1073
        %v1380 = vpack.c.b16 %v1083, %v1074
        %v1381 = vpack.c.b16 %v1084, %v1075
        %v1382 = vpack.c.b16 %v1085, %v1076
        %v1383 = vpack.c.b16 %v1086, %v1077
        %v1384 = vpack.c.b16 %v1087, %v1078
        %v1385 = vpack.c.b16 %v1088, %v1079
        %v1386 = vpack.c.b16 %v1089, %v1080
        %v1387 = vpack.c.b16 %v1090, %v1081
        %v1388 = vpack.c.b16 %v1100, %v1091
        %v1389 = vpack.c.b16 %v1101, %v1092
        %v1390 = vpack.c.b16 %v1102, %v1093
        %v1391 = vpack.c.b16 %v1103, %v1094
        %v1392 = vpack.c.b16 %v1104, %v1095
        %v1393 = vpack.c.b16 %v1105, %v1096
        %v1394 = vpack.c.b16 %v1106, %v1097
        %v1395 = vpack.c.b16 %v1107, %v1098
        %v1396 = vpack.c.b16 %v1108, %v1099
        %v1397 = vpack.c.b16 %v1118, %v1109
        %v1398 = vpack.c.b16 %v1119, %v1110
        %v1399 = vpack.c.b16 %v1120, %v1111
        %v1400 = vpack.c.b16 %v1121, %v1112
        %v1401 = vpack.c.b16 %v1122, %v1113
        %v1402 = vpack.c.b16 %v1123, %v1114
        %v1403 = vpack.c.b16 %v1124, %v1115
        %v1404 = vpack.c.b16 %v1125, %v1116
        %v1405 = vpack.c.b16 %v1126, %v1117
        %v1406 = vpack.c.b16 %v1136, %v1127
        %v1407 = vpack.c.b16 %v1137, %v1128
        %v1408 = vpack.c.b16 %v1138, %v1129
        %v1409 = vpack.c.b16 %v1139, %v1130
        %v1410 = vpack.c.b16 %v1140, %v1131
        %v1411 = vpack.c.b16 %v1141, %v1132
        %v1412 = vpack.c.b16 %v1142, %v1133
        %v1413 = vpack.c.b16 %v1143, %v1134
        %v1414 = vpack.c.b16 %v1144, %v1135
        %v1415 = vpack.c.b16 %v1154, %v1145
        %v1416 = vpack.c.b16 %v1155, %v1146
        %v1417 = vpack.c.b16 %v1156, %v1147
        %v1418 = vpack.c.b16 %v1157, %v1148
        %v1419 = vpack.c.b16 %v1158, %v1149
        %v1420 = vpack.c.b16 %v1159, %v1150
        %v1421 = vpack.c.b16 %v1160, %v1151
        %v1422 = vpack.c.b16 %v1161, %v1152
        %v1423 = vpack.c.b16 %v1162, %v1153
        %v1424 = vpack.c.b16 %v1172, %v1163
        %v1425 = vpack.c.b16 %v1173, %v1164
        %v1426 = vpack.c.b16 %v1174, %v1165
        %v1427 = vpack.c.b16 %v1175, %v1166
        %v1428 = vpack.c.b16 %v1176, %v1167
        %v1429 = vpack.c.b16 %v1177, %v1168
        %v1430 = vpack.c.b16 %v1178, %v1169
        %v1431 = vpack.c.b16 %v1179, %v1170
        %v1432 = vpack.c.b16 %v1180, %v1171
        %v1433 = vpack.c.b16 %v1190, %v1181
        %v1434 = vpack.c.b16 %v1191, %v1182
        %v1435 = vpack.c.b16 %v1192, %v1183
        %v1436 = vpack.c.b16 %v1193, %v1184
        %v1437 = vpack.c.b16 %v1194, %v1185
        %v1438 = vpack.c.b16 %v1195, %v1186
        %v1439 = vpack.c.b16 %v1196, %v1187
        %v1440 = vpack.c.b16 %v1197, %v1188
        %v1441 = vpack.c.b16 %v1198, %v1189
        %v1442 = vpack.c.b16 %v1208, %v1199
        %v1443 = vpack.c.b16 %v1209, %v1200
        %v1444 = vpack.c.b16 %v1210, %v1201
        %v1445 = vpack.c.b16 %v1211, %v1202
        %v1446 = vpack.c.b16 %v1212, %v1203
        %v1447 = vpack.c.b16 %v1213, %v1204
        %v1448 = vpack.c.b16 %v1214, %v1205
        %v1449 = vpack.c.b16 %v1215, %v1206
        %v1450 = vpack.c.b16 %v1216, %v1207
        %v1451 = vpack.c.b16 %v1226, %v1217
        %v1452 = vpack.c.b16 %v1227, %v1218
        %v1453 = vpack.c.b16 %v1228, %v1219
        %v1454 = vpack.c.b16 %v1229, %v1220
        %v1455 = vpack.c.b16 %v1230, %v1221
        %v1456 = vpack.c.b16 %v1231, %v1222
        %v1457 = vpack.c.b16 %v1232, %v1223
        %v1458 = vpack.c.b16 %v1233, %v1224
        %v1459 = vpack.c.b16 %v1234, %v1225
        %v1460 = vpack.c.b16 %v1244, %v1235
        %v1461 = vpack.c.b16 %v1245, %v1236
        %v1462 = vpack.c.b16 %v1246, %v1237
        %v1463 = vpack.c.b16 %v1247, %v1238
        %v1464 = vpack.c.b16 %v1248, %v1239
        %v1465 = vpack.c.b16 %v1249, %v1240
        %v1466 = vpack.c.b16 %v1250, %v1241
        %v1467 = vpack.c.b16 %v1251, %v1242
        %v1468 = vpack.c.b16 %v1252, %v1243
        %1685 = vmatpush.bf16.msra.mxu0 %v1316
        %1686 = vmatpush.bf16.msra.mxu0 %v1307
        %1687 = vmatpush.bf16.msra.mxu0 %v1298
        %1688 = vmatpush.bf16.msra.mxu0 %v1289
        %1689 = vmatpush.bf16.msra.mxu0 %v1280
        %1690 = vmatpush.bf16.msra.mxu0 %v1271
        %1691 = vmatpush.bf16.msra.mxu0 %v1262
        %1692 = vmatpush.bf16.msra.mxu0 %v1253
        %1693 = vmatmul.bf16.gmra.mxu0 %v317
        %v1694 = vpop.f32.mrf.mxu0
        %v1695 = vadd.f32 0.0, %v1694
        %v1696 = vpop.f32.mrf.mxu0
        %v1697 = vadd.f32 0.0, %v1696
        %1698 = vmatmul.bf16.gmra.mxu0 %v320
        %v1699 = vpop.f32.mrf.mxu0
        %v1700 = vadd.f32 0.0, %v1699
        %v1701 = vpop.f32.mrf.mxu0
        %v1702 = vadd.f32 0.0, %v1701
        %1703 = vmatmul.bf16.gmra.mxu0 %v323
        %v1704 = vpop.f32.mrf.mxu0
        %v1705 = vadd.f32 0.0, %v1704
        %v1706 = vpop.f32.mrf.mxu0
        %v1707 = vadd.f32 0.0, %v1706
        %1708 = vmatmul.bf16.gmra.mxu0 %v326
        %v1709 = vpop.f32.mrf.mxu0
        %v1710 = vadd.f32 0.0, %v1709
        %v1711 = vpop.f32.mrf.mxu0
        %v1712 = vadd.f32 0.0, %v1711
        %1713 = vmatmul.bf16.gmra.mxu0 %v329
        %v1714 = vpop.f32.mrf.mxu0
        %v1715 = vadd.f32 0.0, %v1714
        %v1716 = vpop.f32.mrf.mxu0
        %v1717 = vadd.f32 0.0, %v1716
        %1718 = vmatmul.bf16.gmra.mxu0 %v332
        %v1719 = vpop.f32.mrf.mxu0
        %v1720 = vadd.f32 0.0, %v1719
        %v1721 = vpop.f32.mrf.mxu0
        %v1722 = vadd.f32 0.0, %v1721
        %1723 = vmatmul.bf16.gmra.mxu0 %v335
        %v1724 = vpop.f32.mrf.mxu0
        %v1725 = vadd.f32 0.0, %v1724
        %v1726 = vpop.f32.mrf.mxu0
        %v1727 = vadd.f32 0.0, %v1726
        %1728 = vmatmul.bf16.gmra.mxu0 %v338
        %v1729 = vpop.f32.mrf.mxu0
        %v1730 = vadd.f32 0.0, %v1729
        %v1731 = vpop.f32.mrf.mxu0
        %v1732 = vadd.f32 0.0, %v1731
        %1733 = vdwg.mxu0
        %1734 = vmatpush.bf16.msra.mxu0 %v1388
        %1735 = vmatpush.bf16.msra.mxu0 %v1379
        %1736 = vmatpush.bf16.msra.mxu0 %v1370
        %1737 = vmatpush.bf16.msra.mxu0 %v1361
        %1738 = vmatpush.bf16.msra.mxu0 %v1352
        %1739 = vmatpush.bf16.msra.mxu0 %v1343
        %1740 = vmatpush.bf16.msra.mxu0 %v1334
        %1741 = vmatpush.bf16.msra.mxu0 %v1325
        %1742 = vmatmul.bf16.gmra.mxu0 %v318
        %v1743 = vpop.f32.mrf.mxu0
        %v1744 = vadd.f32 %v1695, %v1743
        %v1745 = vpop.f32.mrf.mxu0
        %v1746 = vadd.f32 %v1697, %v1745
        %1747 = vmatmul.bf16.gmra.mxu0 %v321
        %v1748 = vpop.f32.mrf.mxu0
        %v1749 = vadd.f32 %v1700, %v1748
        %v1750 = vpop.f32.mrf.mxu0
        %v1751 = vadd.f32 %v1702, %v1750
        %1752 = vmatmul.bf16.gmra.mxu0 %v324
        %v1753 = vpop.f32.mrf.mxu0
        %v1754 = vadd.f32 %v1705, %v1753
        %v1755 = vpop.f32.mrf.mxu0
        %v1756 = vadd.f32 %v1707, %v1755
        %1757 = vmatmul.bf16.gmra.mxu0 %v327
        %v1758 = vpop.f32.mrf.mxu0
        %v1759 = vadd.f32 %v1710, %v1758
        %v1760 = vpop.f32.mrf.mxu0
        %v1761 = vadd.f32 %v1712, %v1760
        %1762 = vmatmul.bf16.gmra.mxu0 %v330
        %v1763 = vpop.f32.mrf.mxu0
        %v1764 = vadd.f32 %v1715, %v1763
        %v1765 = vpop.f32.mrf.mxu0
        %v1766 = vadd.f32 %v1717, %v1765
        %1767 = vmatmul.bf16.gmra.mxu0 %v333
        %v1768 = vpop.f32.mrf.mxu0
        %v1769 = vadd.f32 %v1720, %v1768
        %v1770 = vpop.f32.mrf.mxu0
        %v1771 = vadd.f32 %v1722, %v1770
        %1772 = vmatmul.bf16.gmra.mxu0 %v336
        %v1773 = vpop.f32.mrf.mxu0
        %v1774 = vadd.f32 %v1725, %v1773
        %v1775 = vpop.f32.mrf.mxu0
        %v1776 = vadd.f32 %v1727, %v1775
        %1777 = vmatmul.bf16.gmra.mxu0 %v339
        %v1778 = vpop.f32.mrf.mxu0
        %v1779 = vadd.f32 %v1730, %v1778
        %v1780 = vpop.f32.mrf.mxu0
        %v1781 = vadd.f32 %v1732, %v1780
        %1782 = vdwg.mxu0
        %1783 = vmatpush.bf16.msra.mxu0 %v1460
        %1784 = vmatpush.bf16.msra.mxu0 %v1451
        %1785 = vmatpush.bf16.msra.mxu0 %v1442
        %1786 = vmatpush.bf16.msra.mxu0 %v1433
        %1787 = vmatpush.bf16.msra.mxu0 %v1424
        %1788 = vmatpush.bf16.msra.mxu0 %v1415
        %1789 = vmatpush.bf16.msra.mxu0 %v1406
        %1790 = vmatpush.bf16.msra.mxu0 %v1397
        %1791 = vmatmul.bf16.gmra.mxu0 %v319
        %v1792 = vpop.f32.mrf.mxu0
        %v1793 = vadd.f32 %v1744, %v1792
        %v1794 = vpop.f32.mrf.mxu0
        %v1795 = vadd.f32 %v1746, %v1794
        %1796 = vmatmul.bf16.gmra.mxu0 %v322
        %v1797 = vpop.f32.mrf.mxu0
        %v1798 = vadd.f32 %v1749, %v1797
        %v1799 = vpop.f32.mrf.mxu0
        %v1800 = vadd.f32 %v1751, %v1799
        %1801 = vmatmul.bf16.gmra.mxu0 %v325
        %v1802 = vpop.f32.mrf.mxu0
        %v1803 = vadd.f32 %v1754, %v1802
        %v1804 = vpop.f32.mrf.mxu0
        %v1805 = vadd.f32 %v1756, %v1804
        %1806 = vmatmul.bf16.gmra.mxu0 %v328
        %v1807 = vpop.f32.mrf.mxu0
        %v1808 = vadd.f32 %v1759, %v1807
        %v1809 = vpop.f32.mrf.mxu0
        %v1810 = vadd.f32 %v1761, %v1809
        %1811 = vmatmul.bf16.gmra.mxu0 %v331
        %v1812 = vpop.f32.mrf.mxu0
        %v1813 = vadd.f32 %v1764, %v1812
        %v1814 = vpop.f32.mrf.mxu0
        %v1815 = vadd.f32 %v1766, %v1814
        %1816 = vmatmul.bf16.gmra.mxu0 %v334
        %v1817 = vpop.f32.mrf.mxu0
        %v1818 = vadd.f32 %v1769, %v1817
        %v1819 = vpop.f32.mrf.mxu0
        %v1820 = vadd.f32 %v1771, %v1819
        %1821 = vmatmul.bf16.gmra.mxu0 %v337
        %v1822 = vpop.f32.mrf.mxu0
        %v1823 = vadd.f32 %v1774, %v1822
        %v1824 = vpop.f32.mrf.mxu0
        %v1825 = vadd.f32 %v1776, %v1824
        %1826 = vmatmul.bf16.gmra.mxu0 %v340
        %v1827 = vpop.f32.mrf.mxu0
        %v1828 = vadd.f32 %v1779, %v1827
        %v1829 = vpop.f32.mrf.mxu0
        %v1830 = vadd.f32 %v1781, %v1829
        %1831 = vdwg.mxu0
        %1832 = vmatpush.bf16.msra.mxu0 %v1317
        %1833 = vmatpush.bf16.msra.mxu0 %v1308
        %1834 = vmatpush.bf16.msra.mxu0 %v1299
        %1835 = vmatpush.bf16.msra.mxu0 %v1290
        %1836 = vmatpush.bf16.msra.mxu0 %v1281
        %1837 = vmatpush.bf16.msra.mxu0 %v1272
        %1838 = vmatpush.bf16.msra.mxu0 %v1263
        %1839 = vmatpush.bf16.msra.mxu0 %v1254
        %1840 = vmatmul.bf16.gmra.mxu0 %v317
        %v1841 = vpop.f32.mrf.mxu0
        %v1842 = vadd.f32 0.0, %v1841
        %v1843 = vpop.f32.mrf.mxu0
        %v1844 = vadd.f32 0.0, %v1843
        %1845 = vmatmul.bf16.gmra.mxu0 %v320
        %v1846 = vpop.f32.mrf.mxu0
        %v1847 = vadd.f32 0.0, %v1846
        %v1848 = vpop.f32.mrf.mxu0
        %v1849 = vadd.f32 0.0, %v1848
        %1850 = vmatmul.bf16.gmra.mxu0 %v323
        %v1851 = vpop.f32.mrf.mxu0
        %v1852 = vadd.f32 0.0, %v1851
        %v1853 = vpop.f32.mrf.mxu0
        %v1854 = vadd.f32 0.0, %v1853
        %1855 = vmatmul.bf16.gmra.mxu0 %v326
        %v1856 = vpop.f32.mrf.mxu0
        %v1857 = vadd.f32 0.0, %v1856
        %v1858 = vpop.f32.mrf.mxu0
        %v1859 = vadd.f32 0.0, %v1858
        %1860 = vmatmul.bf16.gmra.mxu0 %v329
        %v1861 = vpop.f32.mrf.mxu0
        %v1862 = vadd.f32 0.0, %v1861
        %v1863 = vpop.f32.mrf.mxu0
        %v1864 = vadd.f32 0.0, %v1863
        %1865 = vmatmul.bf16.gmra.mxu0 %v332
        %v1866 = vpop.f32.mrf.mxu0
        %v1867 = vadd.f32 0.0, %v1866
        %v1868 = vpop.f32.mrf.mxu0
        %v1869 = vadd.f32 0.0, %v1868
        %1870 = vmatmul.bf16.gmra.mxu0 %v335
        %v1871 = vpop.f32.mrf.mxu0
        %v1872 = vadd.f32 0.0, %v1871
        %v1873 = vpop.f32.mrf.mxu0
        %v1874 = vadd.f32 0.0, %v1873
        %1875 = vmatmul.bf16.gmra.mxu0 %v338
        %v1876 = vpop.f32.mrf.mxu0
        %v1877 = vadd.f32 0.0, %v1876
        %v1878 = vpop.f32.mrf.mxu0
        %v1879 = vadd.f32 0.0, %v1878
        %1880 = vdwg.mxu0
        %1881 = vmatpush.bf16.msra.mxu0 %v1389
        %1882 = vmatpush.bf16.msra.mxu0 %v1380
        %1883 = vmatpush.bf16.msra.mxu0 %v1371
        %1884 = vmatpush.bf16.msra.mxu0 %v1362
        %1885 = vmatpush.bf16.msra.mxu0 %v1353
        %1886 = vmatpush.bf16.msra.mxu0 %v1344
        %1887 = vmatpush.bf16.msra.mxu0 %v1335
        %1888 = vmatpush.bf16.msra.mxu0 %v1326
        %1889 = vmatmul.bf16.gmra.mxu0 %v318
        %v1890 = vpop.f32.mrf.mxu0
        %v1891 = vadd.f32 %v1842, %v1890
        %v1892 = vpop.f32.mrf.mxu0
        %v1893 = vadd.f32 %v1844, %v1892
        %1894 = vmatmul.bf16.gmra.mxu0 %v321
        %v1895 = vpop.f32.mrf.mxu0
        %v1896 = vadd.f32 %v1847, %v1895
        %v1897 = vpop.f32.mrf.mxu0
        %v1898 = vadd.f32 %v1849, %v1897
        %1899 = vmatmul.bf16.gmra.mxu0 %v324
        %v1900 = vpop.f32.mrf.mxu0
        %v1901 = vadd.f32 %v1852, %v1900
        %v1902 = vpop.f32.mrf.mxu0
        %v1903 = vadd.f32 %v1854, %v1902
        %1904 = vmatmul.bf16.gmra.mxu0 %v327
        %v1905 = vpop.f32.mrf.mxu0
        %v1906 = vadd.f32 %v1857, %v1905
        %v1907 = vpop.f32.mrf.mxu0
        %v1908 = vadd.f32 %v1859, %v1907
        %1909 = vmatmul.bf16.gmra.mxu0 %v330
        %v1910 = vpop.f32.mrf.mxu0
        %v1911 = vadd.f32 %v1862, %v1910
        %v1912 = vpop.f32.mrf.mxu0
        %v1913 = vadd.f32 %v1864, %v1912
        %1914 = vmatmul.bf16.gmra.mxu0 %v333
        %v1915 = vpop.f32.mrf.mxu0
        %v1916 = vadd.f32 %v1867, %v1915
        %v1917 = vpop.f32.mrf.mxu0
        %v1918 = vadd.f32 %v1869, %v1917
        %1919 = vmatmul.bf16.gmra.mxu0 %v336
        %v1920 = vpop.f32.mrf.mxu0
        %v1921 = vadd.f32 %v1872, %v1920
        %v1922 = vpop.f32.mrf.mxu0
        %v1923 = vadd.f32 %v1874, %v1922
        %1924 = vmatmul.bf16.gmra.mxu0 %v339
        %v1925 = vpop.f32.mrf.mxu0
        %v1926 = vadd.f32 %v1877, %v1925
        %v1927 = vpop.f32.mrf.mxu0
        %v1928 = vadd.f32 %v1879, %v1927
        %1929 = vdwg.mxu0
        %1930 = vmatpush.bf16.msra.mxu0 %v1461
        %1931 = vmatpush.bf16.msra.mxu0 %v1452
        %1932 = vmatpush.bf16.msra.mxu0 %v1443
        %1933 = vmatpush.bf16.msra.mxu0 %v1434
        %1934 = vmatpush.bf16.msra.mxu0 %v1425
        %1935 = vmatpush.bf16.msra.mxu0 %v1416
        %1936 = vmatpush.bf16.msra.mxu0 %v1407
        %1937 = vmatpush.bf16.msra.mxu0 %v1398
        %1938 = vmatmul.bf16.gmra.mxu0 %v319
        %v1939 = vpop.f32.mrf.mxu0
        %v1940 = vadd.f32 %v1891, %v1939
        %v1941 = vpop.f32.mrf.mxu0
        %v1942 = vadd.f32 %v1893, %v1941
        %1943 = vmatmul.bf16.gmra.mxu0 %v322
        %v1944 = vpop.f32.mrf.mxu0
        %v1945 = vadd.f32 %v1896, %v1944
        %v1946 = vpop.f32.mrf.mxu0
        %v1947 = vadd.f32 %v1898, %v1946
        %1948 = vmatmul.bf16.gmra.mxu0 %v325
        %v1949 = vpop.f32.mrf.mxu0
        %v1950 = vadd.f32 %v1901, %v1949
        %v1951 = vpop.f32.mrf.mxu0
        %v1952 = vadd.f32 %v1903, %v1951
        %1953 = vmatmul.bf16.gmra.mxu0 %v328
        %v1954 = vpop.f32.mrf.mxu0
        %v1955 = vadd.f32 %v1906, %v1954
        %v1956 = vpop.f32.mrf.mxu0
        %v1957 = vadd.f32 %v1908, %v1956
        %1958 = vmatmul.bf16.gmra.mxu0 %v331
        %v1959 = vpop.f32.mrf.mxu0
        %v1960 = vadd.f32 %v1911, %v1959
        %v1961 = vpop.f32.mrf.mxu0
        %v1962 = vadd.f32 %v1913, %v1961
        %1963 = vmatmul.bf16.gmra.mxu0 %v334
        %v1964 = vpop.f32.mrf.mxu0
        %v1965 = vadd.f32 %v1916, %v1964
        %v1966 = vpop.f32.mrf.mxu0
        %v1967 = vadd.f32 %v1918, %v1966
        %1968 = vmatmul.bf16.gmra.mxu0 %v337
        %v1969 = vpop.f32.mrf.mxu0
        %v1970 = vadd.f32 %v1921, %v1969
        %v1971 = vpop.f32.mrf.mxu0
        %v1972 = vadd.f32 %v1923, %v1971
        %1973 = vmatmul.bf16.gmra.mxu0 %v340
        %v1974 = vpop.f32.mrf.mxu0
        %v1975 = vadd.f32 %v1926, %v1974
        %v1976 = vpop.f32.mrf.mxu0
        %v1977 = vadd.f32 %v1928, %v1976
        %1978 = vdwg.mxu0
        %1979 = vmatpush.bf16.msra.mxu0 %v1318
        %1980 = vmatpush.bf16.msra.mxu0 %v1309
        %1981 = vmatpush.bf16.msra.mxu0 %v1300
        %1982 = vmatpush.bf16.msra.mxu0 %v1291
        %1983 = vmatpush.bf16.msra.mxu0 %v1282
        %1984 = vmatpush.bf16.msra.mxu0 %v1273
        %1985 = vmatpush.bf16.msra.mxu0 %v1264
        %1986 = vmatpush.bf16.msra.mxu0 %v1255
        %1987 = vmatmul.bf16.gmra.mxu0 %v317
        %v1988 = vpop.f32.mrf.mxu0
        %v1989 = vadd.f32 0.0, %v1988
        %v1990 = vpop.f32.mrf.mxu0
        %v1991 = vadd.f32 0.0, %v1990
        %1992 = vmatmul.bf16.gmra.mxu0 %v320
        %v1993 = vpop.f32.mrf.mxu0
        %v1994 = vadd.f32 0.0, %v1993
        %v1995 = vpop.f32.mrf.mxu0
        %v1996 = vadd.f32 0.0, %v1995
        %1997 = vmatmul.bf16.gmra.mxu0 %v323
        %v1998 = vpop.f32.mrf.mxu0
        %v1999 = vadd.f32 0.0, %v1998
        %v2000 = vpop.f32.mrf.mxu0
        %v2001 = vadd.f32 0.0, %v2000
        %2002 = vmatmul.bf16.gmra.mxu0 %v326
        %v2003 = vpop.f32.mrf.mxu0
        %v2004 = vadd.f32 0.0, %v2003
        %v2005 = vpop.f32.mrf.mxu0
        %v2006 = vadd.f32 0.0, %v2005
        %2007 = vmatmul.bf16.gmra.mxu0 %v329
        %v2008 = vpop.f32.mrf.mxu0
        %v2009 = vadd.f32 0.0, %v2008
        %v2010 = vpop.f32.mrf.mxu0
        %v2011 = vadd.f32 0.0, %v2010
        %2012 = vmatmul.bf16.gmra.mxu0 %v332
        %v2013 = vpop.f32.mrf.mxu0
        %v2014 = vadd.f32 0.0, %v2013
        %v2015 = vpop.f32.mrf.mxu0
        %v2016 = vadd.f32 0.0, %v2015
        %2017 = vmatmul.bf16.gmra.mxu0 %v335
        %v2018 = vpop.f32.mrf.mxu0
        %v2019 = vadd.f32 0.0, %v2018
        %v2020 = vpop.f32.mrf.mxu0
        %v2021 = vadd.f32 0.0, %v2020
        %2022 = vmatmul.bf16.gmra.mxu0 %v338
        %v2023 = vpop.f32.mrf.mxu0
        %v2024 = vadd.f32 0.0, %v2023
        %v2025 = vpop.f32.mrf.mxu0
        %v2026 = vadd.f32 0.0, %v2025
        %2027 = vdwg.mxu0
        %2028 = vmatpush.bf16.msra.mxu0 %v1390
        %2029 = vmatpush.bf16.msra.mxu0 %v1381
        %2030 = vmatpush.bf16.msra.mxu0 %v1372
        %2031 = vmatpush.bf16.msra.mxu0 %v1363
        %2032 = vmatpush.bf16.msra.mxu0 %v1354
        %2033 = vmatpush.bf16.msra.mxu0 %v1345
        %2034 = vmatpush.bf16.msra.mxu0 %v1336
        %2035 = vmatpush.bf16.msra.mxu0 %v1327
        %2036 = vmatmul.bf16.gmra.mxu0 %v318
        %v2037 = vpop.f32.mrf.mxu0
        %v2038 = vadd.f32 %v1989, %v2037
        %v2039 = vpop.f32.mrf.mxu0
        %v2040 = vadd.f32 %v1991, %v2039
        %2041 = vmatmul.bf16.gmra.mxu0 %v321
        %v2042 = vpop.f32.mrf.mxu0
        %v2043 = vadd.f32 %v1994, %v2042
        %v2044 = vpop.f32.mrf.mxu0
        %v2045 = vadd.f32 %v1996, %v2044
        %2046 = vmatmul.bf16.gmra.mxu0 %v324
        %v2047 = vpop.f32.mrf.mxu0
        %v2048 = vadd.f32 %v1999, %v2047
        %v2049 = vpop.f32.mrf.mxu0
        %v2050 = vadd.f32 %v2001, %v2049
        %2051 = vmatmul.bf16.gmra.mxu0 %v327
        %v2052 = vpop.f32.mrf.mxu0
        %v2053 = vadd.f32 %v2004, %v2052
        %v2054 = vpop.f32.mrf.mxu0
        %v2055 = vadd.f32 %v2006, %v2054
        %2056 = vmatmul.bf16.gmra.mxu0 %v330
        %v2057 = vpop.f32.mrf.mxu0
        %v2058 = vadd.f32 %v2009, %v2057
        %v2059 = vpop.f32.mrf.mxu0
        %v2060 = vadd.f32 %v2011, %v2059
        %2061 = vmatmul.bf16.gmra.mxu0 %v333
        %v2062 = vpop.f32.mrf.mxu0
        %v2063 = vadd.f32 %v2014, %v2062
        %v2064 = vpop.f32.mrf.mxu0
        %v2065 = vadd.f32 %v2016, %v2064
        %2066 = vmatmul.bf16.gmra.mxu0 %v336
        %v2067 = vpop.f32.mrf.mxu0
        %v2068 = vadd.f32 %v2019, %v2067
        %v2069 = vpop.f32.mrf.mxu0
        %v2070 = vadd.f32 %v2021, %v2069
        %2071 = vmatmul.bf16.gmra.mxu0 %v339
        %v2072 = vpop.f32.mrf.mxu0
        %v2073 = vadd.f32 %v2024, %v2072
        %v2074 = vpop.f32.mrf.mxu0
        %v2075 = vadd.f32 %v2026, %v2074
        %2076 = vdwg.mxu0
        %2077 = vmatpush.bf16.msra.mxu0 %v1462
        %2078 = vmatpush.bf16.msra.mxu0 %v1453
        %2079 = vmatpush.bf16.msra.mxu0 %v1444
        %2080 = vmatpush.bf16.msra.mxu0 %v1435
        %2081 = vmatpush.bf16.msra.mxu0 %v1426
        %2082 = vmatpush.bf16.msra.mxu0 %v1417
        %2083 = vmatpush.bf16.msra.mxu0 %v1408
        %2084 = vmatpush.bf16.msra.mxu0 %v1399
        %2085 = vmatmul.bf16.gmra.mxu0 %v319
        %v2086 = vpop.f32.mrf.mxu0
        %v2087 = vadd.f32 %v2038, %v2086
        %v2088 = vpop.f32.mrf.mxu0
        %v2089 = vadd.f32 %v2040, %v2088
        %2090 = vmatmul.bf16.gmra.mxu0 %v322
        %v2091 = vpop.f32.mrf.mxu0
        %v2092 = vadd.f32 %v2043, %v2091
        %v2093 = vpop.f32.mrf.mxu0
        %v2094 = vadd.f32 %v2045, %v2093
        %2095 = vmatmul.bf16.gmra.mxu0 %v325
        %v2096 = vpop.f32.mrf.mxu0
        %v2097 = vadd.f32 %v2048, %v2096
        %v2098 = vpop.f32.mrf.mxu0
        %v2099 = vadd.f32 %v2050, %v2098
        %2100 = vmatmul.bf16.gmra.mxu0 %v328
        %v2101 = vpop.f32.mrf.mxu0
        %v2102 = vadd.f32 %v2053, %v2101
        %v2103 = vpop.f32.mrf.mxu0
        %v2104 = vadd.f32 %v2055, %v2103
        %2105 = vmatmul.bf16.gmra.mxu0 %v331
        %v2106 = vpop.f32.mrf.mxu0
        %v2107 = vadd.f32 %v2058, %v2106
        %v2108 = vpop.f32.mrf.mxu0
        %v2109 = vadd.f32 %v2060, %v2108
        %2110 = vmatmul.bf16.gmra.mxu0 %v334
        %v2111 = vpop.f32.mrf.mxu0
        %v2112 = vadd.f32 %v2063, %v2111
        %v2113 = vpop.f32.mrf.mxu0
        %v2114 = vadd.f32 %v2065, %v2113
        %2115 = vmatmul.bf16.gmra.mxu0 %v337
        %v2116 = vpop.f32.mrf.mxu0
        %v2117 = vadd.f32 %v2068, %v2116
        %v2118 = vpop.f32.mrf.mxu0
        %v2119 = vadd.f32 %v2070, %v2118
        %2120 = vmatmul.bf16.gmra.mxu0 %v340
        %v2121 = vpop.f32.mrf.mxu0
        %v2122 = vadd.f32 %v2073, %v2121
        %v2123 = vpop.f32.mrf.mxu0
        %v2124 = vadd.f32 %v2075, %v2123
        %2125 = vdwg.mxu0
        %2126 = vmatpush.bf16.msra.mxu0 %v1319
        %2127 = vmatpush.bf16.msra.mxu0 %v1310
        %2128 = vmatpush.bf16.msra.mxu0 %v1301
        %2129 = vmatpush.bf16.msra.mxu0 %v1292
        %2130 = vmatpush.bf16.msra.mxu0 %v1283
        %2131 = vmatpush.bf16.msra.mxu0 %v1274
        %2132 = vmatpush.bf16.msra.mxu0 %v1265
        %2133 = vmatpush.bf16.msra.mxu0 %v1256
        %2134 = vmatmul.bf16.gmra.mxu0 %v317
        %v2135 = vpop.f32.mrf.mxu0
        %v2136 = vadd.f32 0.0, %v2135
        %v2137 = vpop.f32.mrf.mxu0
        %v2138 = vadd.f32 0.0, %v2137
        %2139 = vmatmul.bf16.gmra.mxu0 %v320
        %v2140 = vpop.f32.mrf.mxu0
        %v2141 = vadd.f32 0.0, %v2140
        %v2142 = vpop.f32.mrf.mxu0
        %v2143 = vadd.f32 0.0, %v2142
        %2144 = vmatmul.bf16.gmra.mxu0 %v323
        %v2145 = vpop.f32.mrf.mxu0
        %v2146 = vadd.f32 0.0, %v2145
        %v2147 = vpop.f32.mrf.mxu0
        %v2148 = vadd.f32 0.0, %v2147
        %2149 = vmatmul.bf16.gmra.mxu0 %v326
        %v2150 = vpop.f32.mrf.mxu0
        %v2151 = vadd.f32 0.0, %v2150
        %v2152 = vpop.f32.mrf.mxu0
        %v2153 = vadd.f32 0.0, %v2152
        %2154 = vmatmul.bf16.gmra.mxu0 %v329
        %v2155 = vpop.f32.mrf.mxu0
        %v2156 = vadd.f32 0.0, %v2155
        %v2157 = vpop.f32.mrf.mxu0
        %v2158 = vadd.f32 0.0, %v2157
        %2159 = vmatmul.bf16.gmra.mxu0 %v332
        %v2160 = vpop.f32.mrf.mxu0
        %v2161 = vadd.f32 0.0, %v2160
        %v2162 = vpop.f32.mrf.mxu0
        %v2163 = vadd.f32 0.0, %v2162
        %2164 = vmatmul.bf16.gmra.mxu0 %v335
        %v2165 = vpop.f32.mrf.mxu0
        %v2166 = vadd.f32 0.0, %v2165
        %v2167 = vpop.f32.mrf.mxu0
        %v2168 = vadd.f32 0.0, %v2167
        %2169 = vmatmul.bf16.gmra.mxu0 %v338
        %v2170 = vpop.f32.mrf.mxu0
        %v2171 = vadd.f32 0.0, %v2170
        %v2172 = vpop.f32.mrf.mxu0
        %v2173 = vadd.f32 0.0, %v2172
        %2174 = vdwg.mxu0
        %2175 = vmatpush.bf16.msra.mxu0 %v1391
        %2176 = vmatpush.bf16.msra.mxu0 %v1382
        %2177 = vmatpush.bf16.msra.mxu0 %v1373
        %2178 = vmatpush.bf16.msra.mxu0 %v1364
        %2179 = vmatpush.bf16.msra.mxu0 %v1355
        %2180 = vmatpush.bf16.msra.mxu0 %v1346
        %2181 = vmatpush.bf16.msra.mxu0 %v1337
        %2182 = vmatpush.bf16.msra.mxu0 %v1328
        %2183 = vmatmul.bf16.gmra.mxu0 %v318
        %v2184 = vpop.f32.mrf.mxu0
        %v2185 = vadd.f32 %v2136, %v2184
        %v2186 = vpop.f32.mrf.mxu0
        %v2187 = vadd.f32 %v2138, %v2186
        %2188 = vmatmul.bf16.gmra.mxu0 %v321
        %v2189 = vpop.f32.mrf.mxu0
        %v2190 = vadd.f32 %v2141, %v2189
        %v2191 = vpop.f32.mrf.mxu0
        %v2192 = vadd.f32 %v2143, %v2191
        %2193 = vmatmul.bf16.gmra.mxu0 %v324
        %v2194 = vpop.f32.mrf.mxu0
        %v2195 = vadd.f32 %v2146, %v2194
        %v2196 = vpop.f32.mrf.mxu0
        %v2197 = vadd.f32 %v2148, %v2196
        %2198 = vmatmul.bf16.gmra.mxu0 %v327
        %v2199 = vpop.f32.mrf.mxu0
        %v2200 = vadd.f32 %v2151, %v2199
        %v2201 = vpop.f32.mrf.mxu0
        %v2202 = vadd.f32 %v2153, %v2201
        %2203 = vmatmul.bf16.gmra.mxu0 %v330
        %v2204 = vpop.f32.mrf.mxu0
        %v2205 = vadd.f32 %v2156, %v2204
        %v2206 = vpop.f32.mrf.mxu0
        %v2207 = vadd.f32 %v2158, %v2206
        %2208 = vmatmul.bf16.gmra.mxu0 %v333
        %v2209 = vpop.f32.mrf.mxu0
        %v2210 = vadd.f32 %v2161, %v2209
        %v2211 = vpop.f32.mrf.mxu0
        %v2212 = vadd.f32 %v2163, %v2211
        %2213 = vmatmul.bf16.gmra.mxu0 %v336
        %v2214 = vpop.f32.mrf.mxu0
        %v2215 = vadd.f32 %v2166, %v2214
        %v2216 = vpop.f32.mrf.mxu0
        %v2217 = vadd.f32 %v2168, %v2216
        %2218 = vmatmul.bf16.gmra.mxu0 %v339
        %v2219 = vpop.f32.mrf.mxu0
        %v2220 = vadd.f32 %v2171, %v2219
        %v2221 = vpop.f32.mrf.mxu0
        %v2222 = vadd.f32 %v2173, %v2221
        %2223 = vdwg.mxu0
        %2224 = vmatpush.bf16.msra.mxu0 %v1463
        %2225 = vmatpush.bf16.msra.mxu0 %v1454
        %2226 = vmatpush.bf16.msra.mxu0 %v1445
        %2227 = vmatpush.bf16.msra.mxu0 %v1436
        %2228 = vmatpush.bf16.msra.mxu0 %v1427
        %2229 = vmatpush.bf16.msra.mxu0 %v1418
        %2230 = vmatpush.bf16.msra.mxu0 %v1409
        %2231 = vmatpush.bf16.msra.mxu0 %v1400
        %2232 = vmatmul.bf16.gmra.mxu0 %v319
        %v2233 = vpop.f32.mrf.mxu0
        %v2234 = vadd.f32 %v2185, %v2233
        %v2235 = vpop.f32.mrf.mxu0
        %v2236 = vadd.f32 %v2187, %v2235
        %2237 = vmatmul.bf16.gmra.mxu0 %v322
        %v2238 = vpop.f32.mrf.mxu0
        %v2239 = vadd.f32 %v2190, %v2238
        %v2240 = vpop.f32.mrf.mxu0
        %v2241 = vadd.f32 %v2192, %v2240
        %2242 = vmatmul.bf16.gmra.mxu0 %v325
        %v2243 = vpop.f32.mrf.mxu0
        %v2244 = vadd.f32 %v2195, %v2243
        %v2245 = vpop.f32.mrf.mxu0
        %v2246 = vadd.f32 %v2197, %v2245
        %2247 = vmatmul.bf16.gmra.mxu0 %v328
        %v2248 = vpop.f32.mrf.mxu0
        %v2249 = vadd.f32 %v2200, %v2248
        %v2250 = vpop.f32.mrf.mxu0
        %v2251 = vadd.f32 %v2202, %v2250
        %2252 = vmatmul.bf16.gmra.mxu0 %v331
        %v2253 = vpop.f32.mrf.mxu0
        %v2254 = vadd.f32 %v2205, %v2253
        %v2255 = vpop.f32.mrf.mxu0
        %v2256 = vadd.f32 %v2207, %v2255
        %2257 = vmatmul.bf16.gmra.mxu0 %v334
        %v2258 = vpop.f32.mrf.mxu0
        %v2259 = vadd.f32 %v2210, %v2258
        %v2260 = vpop.f32.mrf.mxu0
        %v2261 = vadd.f32 %v2212, %v2260
        %2262 = vmatmul.bf16.gmra.mxu0 %v337
        %v2263 = vpop.f32.mrf.mxu0
        %v2264 = vadd.f32 %v2215, %v2263
        %v2265 = vpop.f32.mrf.mxu0
        %v2266 = vadd.f32 %v2217, %v2265
        %2267 = vmatmul.bf16.gmra.mxu0 %v340
        %v2268 = vpop.f32.mrf.mxu0
        %v2269 = vadd.f32 %v2220, %v2268
        %v2270 = vpop.f32.mrf.mxu0
        %v2271 = vadd.f32 %v2222, %v2270
        %2272 = vdwg.mxu0
        %2273 = vmatpush.bf16.msra.mxu0 %v1320
        %2274 = vmatpush.bf16.msra.mxu0 %v1311
        %2275 = vmatpush.bf16.msra.mxu0 %v1302
        %2276 = vmatpush.bf16.msra.mxu0 %v1293
        %2277 = vmatpush.bf16.msra.mxu0 %v1284
        %2278 = vmatpush.bf16.msra.mxu0 %v1275
        %2279 = vmatpush.bf16.msra.mxu0 %v1266
        %2280 = vmatpush.bf16.msra.mxu0 %v1257
        %2281 = vmatmul.bf16.gmra.mxu0 %v317
        %v2282 = vpop.f32.mrf.mxu0
        %v2283 = vadd.f32 0.0, %v2282
        %v2284 = vpop.f32.mrf.mxu0
        %v2285 = vadd.f32 0.0, %v2284
        %2286 = vmatmul.bf16.gmra.mxu0 %v320
        %v2287 = vpop.f32.mrf.mxu0
        %v2288 = vadd.f32 0.0, %v2287
        %v2289 = vpop.f32.mrf.mxu0
        %v2290 = vadd.f32 0.0, %v2289
        %2291 = vmatmul.bf16.gmra.mxu0 %v323
        %v2292 = vpop.f32.mrf.mxu0
        %v2293 = vadd.f32 0.0, %v2292
        %v2294 = vpop.f32.mrf.mxu0
        %v2295 = vadd.f32 0.0, %v2294
        %2296 = vmatmul.bf16.gmra.mxu0 %v326
        %v2297 = vpop.f32.mrf.mxu0
        %v2298 = vadd.f32 0.0, %v2297
        %v2299 = vpop.f32.mrf.mxu0
        %v2300 = vadd.f32 0.0, %v2299
        %2301 = vmatmul.bf16.gmra.mxu0 %v329
        %v2302 = vpop.f32.mrf.mxu0
        %v2303 = vadd.f32 0.0, %v2302
        %v2304 = vpop.f32.mrf.mxu0
        %v2305 = vadd.f32 0.0, %v2304
        %2306 = vmatmul.bf16.gmra.mxu0 %v332
        %v2307 = vpop.f32.mrf.mxu0
        %v2308 = vadd.f32 0.0, %v2307
        %v2309 = vpop.f32.mrf.mxu0
        %v2310 = vadd.f32 0.0, %v2309
        %2311 = vmatmul.bf16.gmra.mxu0 %v335
        %v2312 = vpop.f32.mrf.mxu0
        %v2313 = vadd.f32 0.0, %v2312
        %v2314 = vpop.f32.mrf.mxu0
        %v2315 = vadd.f32 0.0, %v2314
        %2316 = vmatmul.bf16.gmra.mxu0 %v338
        %v2317 = vpop.f32.mrf.mxu0
        %v2318 = vadd.f32 0.0, %v2317
        %v2319 = vpop.f32.mrf.mxu0
        %v2320 = vadd.f32 0.0, %v2319
        %2321 = vdwg.mxu0
        %2322 = vmatpush.bf16.msra.mxu0 %v1392
        %2323 = vmatpush.bf16.msra.mxu0 %v1383
        %2324 = vmatpush.bf16.msra.mxu0 %v1374
        %2325 = vmatpush.bf16.msra.mxu0 %v1365
        %2326 = vmatpush.bf16.msra.mxu0 %v1356
        %2327 = vmatpush.bf16.msra.mxu0 %v1347
        %2328 = vmatpush.bf16.msra.mxu0 %v1338
        %2329 = vmatpush.bf16.msra.mxu0 %v1329
        %2330 = vmatmul.bf16.gmra.mxu0 %v318
        %v2331 = vpop.f32.mrf.mxu0
        %v2332 = vadd.f32 %v2283, %v2331
        %v2333 = vpop.f32.mrf.mxu0
        %v2334 = vadd.f32 %v2285, %v2333
        %2335 = vmatmul.bf16.gmra.mxu0 %v321
        %v2336 = vpop.f32.mrf.mxu0
        %v2337 = vadd.f32 %v2288, %v2336
        %v2338 = vpop.f32.mrf.mxu0
        %v2339 = vadd.f32 %v2290, %v2338
        %2340 = vmatmul.bf16.gmra.mxu0 %v324
        %v2341 = vpop.f32.mrf.mxu0
        %v2342 = vadd.f32 %v2293, %v2341
        %v2343 = vpop.f32.mrf.mxu0
        %v2344 = vadd.f32 %v2295, %v2343
        %2345 = vmatmul.bf16.gmra.mxu0 %v327
        %v2346 = vpop.f32.mrf.mxu0
        %v2347 = vadd.f32 %v2298, %v2346
        %v2348 = vpop.f32.mrf.mxu0
        %v2349 = vadd.f32 %v2300, %v2348
        %2350 = vmatmul.bf16.gmra.mxu0 %v330
        %v2351 = vpop.f32.mrf.mxu0
        %v2352 = vadd.f32 %v2303, %v2351
        %v2353 = vpop.f32.mrf.mxu0
        %v2354 = vadd.f32 %v2305, %v2353
        %2355 = vmatmul.bf16.gmra.mxu0 %v333
        %v2356 = vpop.f32.mrf.mxu0
        %v2357 = vadd.f32 %v2308, %v2356
        %v2358 = vpop.f32.mrf.mxu0
        %v2359 = vadd.f32 %v2310, %v2358
        %2360 = vmatmul.bf16.gmra.mxu0 %v336
        %v2361 = vpop.f32.mrf.mxu0
        %v2362 = vadd.f32 %v2313, %v2361
        %v2363 = vpop.f32.mrf.mxu0
        %v2364 = vadd.f32 %v2315, %v2363
        %2365 = vmatmul.bf16.gmra.mxu0 %v339
        %v2366 = vpop.f32.mrf.mxu0
        %v2367 = vadd.f32 %v2318, %v2366
        %v2368 = vpop.f32.mrf.mxu0
        %v2369 = vadd.f32 %v2320, %v2368
        %2370 = vdwg.mxu0
        %2371 = vmatpush.bf16.msra.mxu0 %v1464
        %2372 = vmatpush.bf16.msra.mxu0 %v1455
        %2373 = vmatpush.bf16.msra.mxu0 %v1446
        %2374 = vmatpush.bf16.msra.mxu0 %v1437
        %2375 = vmatpush.bf16.msra.mxu0 %v1428
        %2376 = vmatpush.bf16.msra.mxu0 %v1419
        %2377 = vmatpush.bf16.msra.mxu0 %v1410
        %2378 = vmatpush.bf16.msra.mxu0 %v1401
        %2379 = vmatmul.bf16.gmra.mxu0 %v319
        %v2380 = vpop.f32.mrf.mxu0
        %v2381 = vadd.f32 %v2332, %v2380
        %v2382 = vpop.f32.mrf.mxu0
        %v2383 = vadd.f32 %v2334, %v2382
        %2384 = vmatmul.bf16.gmra.mxu0 %v322
        %v2385 = vpop.f32.mrf.mxu0
        %v2386 = vadd.f32 %v2337, %v2385
        %v2387 = vpop.f32.mrf.mxu0
        %v2388 = vadd.f32 %v2339, %v2387
        %2389 = vmatmul.bf16.gmra.mxu0 %v325
        %v2390 = vpop.f32.mrf.mxu0
        %v2391 = vadd.f32 %v2342, %v2390
        %v2392 = vpop.f32.mrf.mxu0
        %v2393 = vadd.f32 %v2344, %v2392
        %2394 = vmatmul.bf16.gmra.mxu0 %v328
        %v2395 = vpop.f32.mrf.mxu0
        %v2396 = vadd.f32 %v2347, %v2395
        %v2397 = vpop.f32.mrf.mxu0
        %v2398 = vadd.f32 %v2349, %v2397
        %2399 = vmatmul.bf16.gmra.mxu0 %v331
        %v2400 = vpop.f32.mrf.mxu0
        %v2401 = vadd.f32 %v2352, %v2400
        %v2402 = vpop.f32.mrf.mxu0
        %v2403 = vadd.f32 %v2354, %v2402
        %2404 = vmatmul.bf16.gmra.mxu0 %v334
        %v2405 = vpop.f32.mrf.mxu0
        %v2406 = vadd.f32 %v2357, %v2405
        %v2407 = vpop.f32.mrf.mxu0
        %v2408 = vadd.f32 %v2359, %v2407
        %2409 = vmatmul.bf16.gmra.mxu0 %v337
        %v2410 = vpop.f32.mrf.mxu0
        %v2411 = vadd.f32 %v2362, %v2410
        %v2412 = vpop.f32.mrf.mxu0
        %v2413 = vadd.f32 %v2364, %v2412
        %2414 = vmatmul.bf16.gmra.mxu0 %v340
        %v2415 = vpop.f32.mrf.mxu0
        %v2416 = vadd.f32 %v2367, %v2415
        %v2417 = vpop.f32.mrf.mxu0
        %v2418 = vadd.f32 %v2369, %v2417
        %2419 = vdwg.mxu0
        %2420 = vmatpush.bf16.msra.mxu0 %v1321
        %2421 = vmatpush.bf16.msra.mxu0 %v1312
        %2422 = vmatpush.bf16.msra.mxu0 %v1303
        %2423 = vmatpush.bf16.msra.mxu0 %v1294
        %2424 = vmatpush.bf16.msra.mxu0 %v1285
        %2425 = vmatpush.bf16.msra.mxu0 %v1276
        %2426 = vmatpush.bf16.msra.mxu0 %v1267
        %2427 = vmatpush.bf16.msra.mxu0 %v1258
        %2428 = vmatmul.bf16.gmra.mxu0 %v317
        %v2429 = vpop.f32.mrf.mxu0
        %v2430 = vadd.f32 0.0, %v2429
        %v2431 = vpop.f32.mrf.mxu0
        %v2432 = vadd.f32 0.0, %v2431
        %2433 = vmatmul.bf16.gmra.mxu0 %v320
        %v2434 = vpop.f32.mrf.mxu0
        %v2435 = vadd.f32 0.0, %v2434
        %v2436 = vpop.f32.mrf.mxu0
        %v2437 = vadd.f32 0.0, %v2436
        %2438 = vmatmul.bf16.gmra.mxu0 %v323
        %v2439 = vpop.f32.mrf.mxu0
        %v2440 = vadd.f32 0.0, %v2439
        %v2441 = vpop.f32.mrf.mxu0
        %v2442 = vadd.f32 0.0, %v2441
        %2443 = vmatmul.bf16.gmra.mxu0 %v326
        %v2444 = vpop.f32.mrf.mxu0
        %v2445 = vadd.f32 0.0, %v2444
        %v2446 = vpop.f32.mrf.mxu0
        %v2447 = vadd.f32 0.0, %v2446
        %2448 = vmatmul.bf16.gmra.mxu0 %v329
        %v2449 = vpop.f32.mrf.mxu0
        %v2450 = vadd.f32 0.0, %v2449
        %v2451 = vpop.f32.mrf.mxu0
        %v2452 = vadd.f32 0.0, %v2451
        %2453 = vmatmul.bf16.gmra.mxu0 %v332
        %v2454 = vpop.f32.mrf.mxu0
        %v2455 = vadd.f32 0.0, %v2454
        %v2456 = vpop.f32.mrf.mxu0
        %v2457 = vadd.f32 0.0, %v2456
        %2458 = vmatmul.bf16.gmra.mxu0 %v335
        %v2459 = vpop.f32.mrf.mxu0
        %v2460 = vadd.f32 0.0, %v2459
        %v2461 = vpop.f32.mrf.mxu0
        %v2462 = vadd.f32 0.0, %v2461
        %2463 = vmatmul.bf16.gmra.mxu0 %v338
        %v2464 = vpop.f32.mrf.mxu0
        %v2465 = vadd.f32 0.0, %v2464
        %v2466 = vpop.f32.mrf.mxu0
        %v2467 = vadd.f32 0.0, %v2466
        %2468 = vdwg.mxu0
        %2469 = vmatpush.bf16.msra.mxu0 %v1393
        %2470 = vmatpush.bf16.msra.mxu0 %v1384
        %2471 = vmatpush.bf16.msra.mxu0 %v1375
        %2472 = vmatpush.bf16.msra.mxu0 %v1366
        %2473 = vmatpush.bf16.msra.mxu0 %v1357
        %2474 = vmatpush.bf16.msra.mxu0 %v1348
        %2475 = vmatpush.bf16.msra.mxu0 %v1339
        %2476 = vmatpush.bf16.msra.mxu0 %v1330
        %2477 = vmatmul.bf16.gmra.mxu0 %v318
        %v2478 = vpop.f32.mrf.mxu0
        %v2479 = vadd.f32 %v2430, %v2478
        %v2480 = vpop.f32.mrf.mxu0
        %v2481 = vadd.f32 %v2432, %v2480
        %2482 = vmatmul.bf16.gmra.mxu0 %v321
        %v2483 = vpop.f32.mrf.mxu0
        %v2484 = vadd.f32 %v2435, %v2483
        %v2485 = vpop.f32.mrf.mxu0
        %v2486 = vadd.f32 %v2437, %v2485
        %2487 = vmatmul.bf16.gmra.mxu0 %v324
        %v2488 = vpop.f32.mrf.mxu0
        %v2489 = vadd.f32 %v2440, %v2488
        %v2490 = vpop.f32.mrf.mxu0
        %v2491 = vadd.f32 %v2442, %v2490
        %2492 = vmatmul.bf16.gmra.mxu0 %v327
        %v2493 = vpop.f32.mrf.mxu0
        %v2494 = vadd.f32 %v2445, %v2493
        %v2495 = vpop.f32.mrf.mxu0
        %v2496 = vadd.f32 %v2447, %v2495
        %2497 = vmatmul.bf16.gmra.mxu0 %v330
        %v2498 = vpop.f32.mrf.mxu0
        %v2499 = vadd.f32 %v2450, %v2498
        %v2500 = vpop.f32.mrf.mxu0
        %v2501 = vadd.f32 %v2452, %v2500
        %2502 = vmatmul.bf16.gmra.mxu0 %v333
        %v2503 = vpop.f32.mrf.mxu0
        %v2504 = vadd.f32 %v2455, %v2503
        %v2505 = vpop.f32.mrf.mxu0
        %v2506 = vadd.f32 %v2457, %v2505
        %2507 = vmatmul.bf16.gmra.mxu0 %v336
        %v2508 = vpop.f32.mrf.mxu0
        %v2509 = vadd.f32 %v2460, %v2508
        %v2510 = vpop.f32.mrf.mxu0
        %v2511 = vadd.f32 %v2462, %v2510
        %2512 = vmatmul.bf16.gmra.mxu0 %v339
        %v2513 = vpop.f32.mrf.mxu0
        %v2514 = vadd.f32 %v2465, %v2513
        %v2515 = vpop.f32.mrf.mxu0
        %v2516 = vadd.f32 %v2467, %v2515
        %2517 = vdwg.mxu0
        %2518 = vmatpush.bf16.msra.mxu0 %v1465
        %2519 = vmatpush.bf16.msra.mxu0 %v1456
        %2520 = vmatpush.bf16.msra.mxu0 %v1447
        %2521 = vmatpush.bf16.msra.mxu0 %v1438
        %2522 = vmatpush.bf16.msra.mxu0 %v1429
        %2523 = vmatpush.bf16.msra.mxu0 %v1420
        %2524 = vmatpush.bf16.msra.mxu0 %v1411
        %2525 = vmatpush.bf16.msra.mxu0 %v1402
        %2526 = vmatmul.bf16.gmra.mxu0 %v319
        %v2527 = vpop.f32.mrf.mxu0
        %v2528 = vadd.f32 %v2479, %v2527
        %v2529 = vpop.f32.mrf.mxu0
        %v2530 = vadd.f32 %v2481, %v2529
        %2531 = vmatmul.bf16.gmra.mxu0 %v322
        %v2532 = vpop.f32.mrf.mxu0
        %v2533 = vadd.f32 %v2484, %v2532
        %v2534 = vpop.f32.mrf.mxu0
        %v2535 = vadd.f32 %v2486, %v2534
        %2536 = vmatmul.bf16.gmra.mxu0 %v325
        %v2537 = vpop.f32.mrf.mxu0
        %v2538 = vadd.f32 %v2489, %v2537
        %v2539 = vpop.f32.mrf.mxu0
        %v2540 = vadd.f32 %v2491, %v2539
        %2541 = vmatmul.bf16.gmra.mxu0 %v328
        %v2542 = vpop.f32.mrf.mxu0
        %v2543 = vadd.f32 %v2494, %v2542
        %v2544 = vpop.f32.mrf.mxu0
        %v2545 = vadd.f32 %v2496, %v2544
        %2546 = vmatmul.bf16.gmra.mxu0 %v331
        %v2547 = vpop.f32.mrf.mxu0
        %v2548 = vadd.f32 %v2499, %v2547
        %v2549 = vpop.f32.mrf.mxu0
        %v2550 = vadd.f32 %v2501, %v2549
        %2551 = vmatmul.bf16.gmra.mxu0 %v334
        %v2552 = vpop.f32.mrf.mxu0
        %v2553 = vadd.f32 %v2504, %v2552
        %v2554 = vpop.f32.mrf.mxu0
        %v2555 = vadd.f32 %v2506, %v2554
        %2556 = vmatmul.bf16.gmra.mxu0 %v337
        %v2557 = vpop.f32.mrf.mxu0
        %v2558 = vadd.f32 %v2509, %v2557
        %v2559 = vpop.f32.mrf.mxu0
        %v2560 = vadd.f32 %v2511, %v2559
        %2561 = vmatmul.bf16.gmra.mxu0 %v340
        %v2562 = vpop.f32.mrf.mxu0
        %v2563 = vadd.f32 %v2514, %v2562
        %v2564 = vpop.f32.mrf.mxu0
        %v2565 = vadd.f32 %v2516, %v2564
        %2566 = vdwg.mxu0
        %2567 = vmatpush.bf16.msra.mxu0 %v1322
        %2568 = vmatpush.bf16.msra.mxu0 %v1313
        %2569 = vmatpush.bf16.msra.mxu0 %v1304
        %2570 = vmatpush.bf16.msra.mxu0 %v1295
        %2571 = vmatpush.bf16.msra.mxu0 %v1286
        %2572 = vmatpush.bf16.msra.mxu0 %v1277
        %2573 = vmatpush.bf16.msra.mxu0 %v1268
        %2574 = vmatpush.bf16.msra.mxu0 %v1259
        %2575 = vmatmul.bf16.gmra.mxu0 %v317
        %v2576 = vpop.f32.mrf.mxu0
        %v2577 = vadd.f32 0.0, %v2576
        %v2578 = vpop.f32.mrf.mxu0
        %v2579 = vadd.f32 0.0, %v2578
        %2580 = vmatmul.bf16.gmra.mxu0 %v320
        %v2581 = vpop.f32.mrf.mxu0
        %v2582 = vadd.f32 0.0, %v2581
        %v2583 = vpop.f32.mrf.mxu0
        %v2584 = vadd.f32 0.0, %v2583
        %2585 = vmatmul.bf16.gmra.mxu0 %v323
        %v2586 = vpop.f32.mrf.mxu0
        %v2587 = vadd.f32 0.0, %v2586
        %v2588 = vpop.f32.mrf.mxu0
        %v2589 = vadd.f32 0.0, %v2588
        %2590 = vmatmul.bf16.gmra.mxu0 %v326
        %v2591 = vpop.f32.mrf.mxu0
        %v2592 = vadd.f32 0.0, %v2591
        %v2593 = vpop.f32.mrf.mxu0
        %v2594 = vadd.f32 0.0, %v2593
        %2595 = vmatmul.bf16.gmra.mxu0 %v329
        %v2596 = vpop.f32.mrf.mxu0
        %v2597 = vadd.f32 0.0, %v2596
        %v2598 = vpop.f32.mrf.mxu0
        %v2599 = vadd.f32 0.0, %v2598
        %2600 = vmatmul.bf16.gmra.mxu0 %v332
        %v2601 = vpop.f32.mrf.mxu0
        %v2602 = vadd.f32 0.0, %v2601
        %v2603 = vpop.f32.mrf.mxu0
        %v2604 = vadd.f32 0.0, %v2603
        %2605 = vmatmul.bf16.gmra.mxu0 %v335
        %v2606 = vpop.f32.mrf.mxu0
        %v2607 = vadd.f32 0.0, %v2606
        %v2608 = vpop.f32.mrf.mxu0
        %v2609 = vadd.f32 0.0, %v2608
        %2610 = vmatmul.bf16.gmra.mxu0 %v338
        %v2611 = vpop.f32.mrf.mxu0
        %v2612 = vadd.f32 0.0, %v2611
        %v2613 = vpop.f32.mrf.mxu0
        %v2614 = vadd.f32 0.0, %v2613
        %2615 = vdwg.mxu0
        %2616 = vmatpush.bf16.msra.mxu0 %v1394
        %2617 = vmatpush.bf16.msra.mxu0 %v1385
        %2618 = vmatpush.bf16.msra.mxu0 %v1376
        %2619 = vmatpush.bf16.msra.mxu0 %v1367
        %2620 = vmatpush.bf16.msra.mxu0 %v1358
        %2621 = vmatpush.bf16.msra.mxu0 %v1349
        %2622 = vmatpush.bf16.msra.mxu0 %v1340
        %2623 = vmatpush.bf16.msra.mxu0 %v1331
        %2624 = vmatmul.bf16.gmra.mxu0 %v318
        %v2625 = vpop.f32.mrf.mxu0
        %v2626 = vadd.f32 %v2577, %v2625
        %v2627 = vpop.f32.mrf.mxu0
        %v2628 = vadd.f32 %v2579, %v2627
        %2629 = vmatmul.bf16.gmra.mxu0 %v321
        %v2630 = vpop.f32.mrf.mxu0
        %v2631 = vadd.f32 %v2582, %v2630
        %v2632 = vpop.f32.mrf.mxu0
        %v2633 = vadd.f32 %v2584, %v2632
        %2634 = vmatmul.bf16.gmra.mxu0 %v324
        %v2635 = vpop.f32.mrf.mxu0
        %v2636 = vadd.f32 %v2587, %v2635
        %v2637 = vpop.f32.mrf.mxu0
        %v2638 = vadd.f32 %v2589, %v2637
        %2639 = vmatmul.bf16.gmra.mxu0 %v327
        %v2640 = vpop.f32.mrf.mxu0
        %v2641 = vadd.f32 %v2592, %v2640
        %v2642 = vpop.f32.mrf.mxu0
        %v2643 = vadd.f32 %v2594, %v2642
        %2644 = vmatmul.bf16.gmra.mxu0 %v330
        %v2645 = vpop.f32.mrf.mxu0
        %v2646 = vadd.f32 %v2597, %v2645
        %v2647 = vpop.f32.mrf.mxu0
        %v2648 = vadd.f32 %v2599, %v2647
        %2649 = vmatmul.bf16.gmra.mxu0 %v333
        %v2650 = vpop.f32.mrf.mxu0
        %v2651 = vadd.f32 %v2602, %v2650
        %v2652 = vpop.f32.mrf.mxu0
        %v2653 = vadd.f32 %v2604, %v2652
        %2654 = vmatmul.bf16.gmra.mxu0 %v336
        %v2655 = vpop.f32.mrf.mxu0
        %v2656 = vadd.f32 %v2607, %v2655
        %v2657 = vpop.f32.mrf.mxu0
        %v2658 = vadd.f32 %v2609, %v2657
        %2659 = vmatmul.bf16.gmra.mxu0 %v339
        %v2660 = vpop.f32.mrf.mxu0
        %v2661 = vadd.f32 %v2612, %v2660
        %v2662 = vpop.f32.mrf.mxu0
        %v2663 = vadd.f32 %v2614, %v2662
        %2664 = vdwg.mxu0
        %2665 = vmatpush.bf16.msra.mxu0 %v1466
        %2666 = vmatpush.bf16.msra.mxu0 %v1457
        %2667 = vmatpush.bf16.msra.mxu0 %v1448
        %2668 = vmatpush.bf16.msra.mxu0 %v1439
        %2669 = vmatpush.bf16.msra.mxu0 %v1430
        %2670 = vmatpush.bf16.msra.mxu0 %v1421
        %2671 = vmatpush.bf16.msra.mxu0 %v1412
        %2672 = vmatpush.bf16.msra.mxu0 %v1403
        %2673 = vmatmul.bf16.gmra.mxu0 %v319
        %v2674 = vpop.f32.mrf.mxu0
        %v2675 = vadd.f32 %v2626, %v2674
        %v2676 = vpop.f32.mrf.mxu0
        %v2677 = vadd.f32 %v2628, %v2676
        %2678 = vmatmul.bf16.gmra.mxu0 %v322
        %v2679 = vpop.f32.mrf.mxu0
        %v2680 = vadd.f32 %v2631, %v2679
        %v2681 = vpop.f32.mrf.mxu0
        %v2682 = vadd.f32 %v2633, %v2681
        %2683 = vmatmul.bf16.gmra.mxu0 %v325
        %v2684 = vpop.f32.mrf.mxu0
        %v2685 = vadd.f32 %v2636, %v2684
        %v2686 = vpop.f32.mrf.mxu0
        %v2687 = vadd.f32 %v2638, %v2686
        %2688 = vmatmul.bf16.gmra.mxu0 %v328
        %v2689 = vpop.f32.mrf.mxu0
        %v2690 = vadd.f32 %v2641, %v2689
        %v2691 = vpop.f32.mrf.mxu0
        %v2692 = vadd.f32 %v2643, %v2691
        %2693 = vmatmul.bf16.gmra.mxu0 %v331
        %v2694 = vpop.f32.mrf.mxu0
        %v2695 = vadd.f32 %v2646, %v2694
        %v2696 = vpop.f32.mrf.mxu0
        %v2697 = vadd.f32 %v2648, %v2696
        %2698 = vmatmul.bf16.gmra.mxu0 %v334
        %v2699 = vpop.f32.mrf.mxu0
        %v2700 = vadd.f32 %v2651, %v2699
        %v2701 = vpop.f32.mrf.mxu0
        %v2702 = vadd.f32 %v2653, %v2701
        %2703 = vmatmul.bf16.gmra.mxu0 %v337
        %v2704 = vpop.f32.mrf.mxu0
        %v2705 = vadd.f32 %v2656, %v2704
        %v2706 = vpop.f32.mrf.mxu0
        %v2707 = vadd.f32 %v2658, %v2706
        %2708 = vmatmul.bf16.gmra.mxu0 %v340
        %v2709 = vpop.f32.mrf.mxu0
        %v2710 = vadd.f32 %v2661, %v2709
        %v2711 = vpop.f32.mrf.mxu0
        %v2712 = vadd.f32 %v2663, %v2711
        %2713 = vdwg.mxu0
        %2714 = vmatpush.bf16.msra.mxu0 %v1323
        %2715 = vmatpush.bf16.msra.mxu0 %v1314
        %2716 = vmatpush.bf16.msra.mxu0 %v1305
        %2717 = vmatpush.bf16.msra.mxu0 %v1296
        %2718 = vmatpush.bf16.msra.mxu0 %v1287
        %2719 = vmatpush.bf16.msra.mxu0 %v1278
        %2720 = vmatpush.bf16.msra.mxu0 %v1269
        %2721 = vmatpush.bf16.msra.mxu0 %v1260
        %2722 = vmatmul.bf16.gmra.mxu0 %v317
        %v2723 = vpop.f32.mrf.mxu0
        %v2724 = vadd.f32 0.0, %v2723
        %v2725 = vpop.f32.mrf.mxu0
        %v2726 = vadd.f32 0.0, %v2725
        %2727 = vmatmul.bf16.gmra.mxu0 %v320
        %v2728 = vpop.f32.mrf.mxu0
        %v2729 = vadd.f32 0.0, %v2728
        %v2730 = vpop.f32.mrf.mxu0
        %v2731 = vadd.f32 0.0, %v2730
        %2732 = vmatmul.bf16.gmra.mxu0 %v323
        %v2733 = vpop.f32.mrf.mxu0
        %v2734 = vadd.f32 0.0, %v2733
        %v2735 = vpop.f32.mrf.mxu0
        %v2736 = vadd.f32 0.0, %v2735
        %2737 = vmatmul.bf16.gmra.mxu0 %v326
        %v2738 = vpop.f32.mrf.mxu0
        %v2739 = vadd.f32 0.0, %v2738
        %v2740 = vpop.f32.mrf.mxu0
        %v2741 = vadd.f32 0.0, %v2740
        %2742 = vmatmul.bf16.gmra.mxu0 %v329
        %v2743 = vpop.f32.mrf.mxu0
        %v2744 = vadd.f32 0.0, %v2743
        %v2745 = vpop.f32.mrf.mxu0
        %v2746 = vadd.f32 0.0, %v2745
        %2747 = vmatmul.bf16.gmra.mxu0 %v332
        %v2748 = vpop.f32.mrf.mxu0
        %v2749 = vadd.f32 0.0, %v2748
        %v2750 = vpop.f32.mrf.mxu0
        %v2751 = vadd.f32 0.0, %v2750
        %2752 = vmatmul.bf16.gmra.mxu0 %v335
        %v2753 = vpop.f32.mrf.mxu0
        %v2754 = vadd.f32 0.0, %v2753
        %v2755 = vpop.f32.mrf.mxu0
        %v2756 = vadd.f32 0.0, %v2755
        %2757 = vmatmul.bf16.gmra.mxu0 %v338
        %v2758 = vpop.f32.mrf.mxu0
        %v2759 = vadd.f32 0.0, %v2758
        %v2760 = vpop.f32.mrf.mxu0
        %v2761 = vadd.f32 0.0, %v2760
        %2762 = vdwg.mxu0
        %2763 = vmatpush.bf16.msra.mxu0 %v1395
        %2764 = vmatpush.bf16.msra.mxu0 %v1386
        %2765 = vmatpush.bf16.msra.mxu0 %v1377
        %2766 = vmatpush.bf16.msra.mxu0 %v1368
        %2767 = vmatpush.bf16.msra.mxu0 %v1359
        %2768 = vmatpush.bf16.msra.mxu0 %v1350
        %2769 = vmatpush.bf16.msra.mxu0 %v1341
        %2770 = vmatpush.bf16.msra.mxu0 %v1332
        %2771 = vmatmul.bf16.gmra.mxu0 %v318
        %v2772 = vpop.f32.mrf.mxu0
        %v2773 = vadd.f32 %v2724, %v2772
        %v2774 = vpop.f32.mrf.mxu0
        %v2775 = vadd.f32 %v2726, %v2774
        %2776 = vmatmul.bf16.gmra.mxu0 %v321
        %v2777 = vpop.f32.mrf.mxu0
        %v2778 = vadd.f32 %v2729, %v2777
        %v2779 = vpop.f32.mrf.mxu0
        %v2780 = vadd.f32 %v2731, %v2779
        %2781 = vmatmul.bf16.gmra.mxu0 %v324
        %v2782 = vpop.f32.mrf.mxu0
        %v2783 = vadd.f32 %v2734, %v2782
        %v2784 = vpop.f32.mrf.mxu0
        %v2785 = vadd.f32 %v2736, %v2784
        %2786 = vmatmul.bf16.gmra.mxu0 %v327
        %v2787 = vpop.f32.mrf.mxu0
        %v2788 = vadd.f32 %v2739, %v2787
        %v2789 = vpop.f32.mrf.mxu0
        %v2790 = vadd.f32 %v2741, %v2789
        %2791 = vmatmul.bf16.gmra.mxu0 %v330
        %v2792 = vpop.f32.mrf.mxu0
        %v2793 = vadd.f32 %v2744, %v2792
        %v2794 = vpop.f32.mrf.mxu0
        %v2795 = vadd.f32 %v2746, %v2794
        %2796 = vmatmul.bf16.gmra.mxu0 %v333
        %v2797 = vpop.f32.mrf.mxu0
        %v2798 = vadd.f32 %v2749, %v2797
        %v2799 = vpop.f32.mrf.mxu0
        %v2800 = vadd.f32 %v2751, %v2799
        %2801 = vmatmul.bf16.gmra.mxu0 %v336
        %v2802 = vpop.f32.mrf.mxu0
        %v2803 = vadd.f32 %v2754, %v2802
        %v2804 = vpop.f32.mrf.mxu0
        %v2805 = vadd.f32 %v2756, %v2804
        %2806 = vmatmul.bf16.gmra.mxu0 %v339
        %v2807 = vpop.f32.mrf.mxu0
        %v2808 = vadd.f32 %v2759, %v2807
        %v2809 = vpop.f32.mrf.mxu0
        %v2810 = vadd.f32 %v2761, %v2809
        %2811 = vdwg.mxu0
        %2812 = vmatpush.bf16.msra.mxu0 %v1467
        %2813 = vmatpush.bf16.msra.mxu0 %v1458
        %2814 = vmatpush.bf16.msra.mxu0 %v1449
        %2815 = vmatpush.bf16.msra.mxu0 %v1440
        %2816 = vmatpush.bf16.msra.mxu0 %v1431
        %2817 = vmatpush.bf16.msra.mxu0 %v1422
        %2818 = vmatpush.bf16.msra.mxu0 %v1413
        %2819 = vmatpush.bf16.msra.mxu0 %v1404
        %2820 = vmatmul.bf16.gmra.mxu0 %v319
        %v2821 = vpop.f32.mrf.mxu0
        %v2822 = vadd.f32 %v2773, %v2821
        %v2823 = vpop.f32.mrf.mxu0
        %v2824 = vadd.f32 %v2775, %v2823
        %2825 = vmatmul.bf16.gmra.mxu0 %v322
        %v2826 = vpop.f32.mrf.mxu0
        %v2827 = vadd.f32 %v2778, %v2826
        %v2828 = vpop.f32.mrf.mxu0
        %v2829 = vadd.f32 %v2780, %v2828
        %2830 = vmatmul.bf16.gmra.mxu0 %v325
        %v2831 = vpop.f32.mrf.mxu0
        %v2832 = vadd.f32 %v2783, %v2831
        %v2833 = vpop.f32.mrf.mxu0
        %v2834 = vadd.f32 %v2785, %v2833
        %2835 = vmatmul.bf16.gmra.mxu0 %v328
        %v2836 = vpop.f32.mrf.mxu0
        %v2837 = vadd.f32 %v2788, %v2836
        %v2838 = vpop.f32.mrf.mxu0
        %v2839 = vadd.f32 %v2790, %v2838
        %2840 = vmatmul.bf16.gmra.mxu0 %v331
        %v2841 = vpop.f32.mrf.mxu0
        %v2842 = vadd.f32 %v2793, %v2841
        %v2843 = vpop.f32.mrf.mxu0
        %v2844 = vadd.f32 %v2795, %v2843
        %2845 = vmatmul.bf16.gmra.mxu0 %v334
        %v2846 = vpop.f32.mrf.mxu0
        %v2847 = vadd.f32 %v2798, %v2846
        %v2848 = vpop.f32.mrf.mxu0
        %v2849 = vadd.f32 %v2800, %v2848
        %2850 = vmatmul.bf16.gmra.mxu0 %v337
        %v2851 = vpop.f32.mrf.mxu0
        %v2852 = vadd.f32 %v2803, %v2851
        %v2853 = vpop.f32.mrf.mxu0
        %v2854 = vadd.f32 %v2805, %v2853
        %2855 = vmatmul.bf16.gmra.mxu0 %v340
        %v2856 = vpop.f32.mrf.mxu0
        %v2857 = vadd.f32 %v2808, %v2856
        %v2858 = vpop.f32.mrf.mxu0
        %v2859 = vadd.f32 %v2810, %v2858
        %2860 = vdwg.mxu0
        %2861 = vmatpush.bf16.msra.mxu0 %v1324
        %2862 = vmatpush.bf16.msra.mxu0 %v1315
        %2863 = vmatpush.bf16.msra.mxu0 %v1306
        %2864 = vmatpush.bf16.msra.mxu0 %v1297
        %2865 = vmatpush.bf16.msra.mxu0 %v1288
        %2866 = vmatpush.bf16.msra.mxu0 %v1279
        %2867 = vmatpush.bf16.msra.mxu0 %v1270
        %2868 = vmatpush.bf16.msra.mxu0 %v1261
        %2869 = vmatmul.bf16.gmra.mxu0 %v317
        %v2870 = vpop.f32.mrf.mxu0
        %v2871 = vadd.f32 0.0, %v2870
        %v2872 = vpop.f32.mrf.mxu0
        %v2873 = vadd.f32 0.0, %v2872
        %2874 = vmatmul.bf16.gmra.mxu0 %v320
        %v2875 = vpop.f32.mrf.mxu0
        %v2876 = vadd.f32 0.0, %v2875
        %v2877 = vpop.f32.mrf.mxu0
        %v2878 = vadd.f32 0.0, %v2877
        %2879 = vmatmul.bf16.gmra.mxu0 %v323
        %v2880 = vpop.f32.mrf.mxu0
        %v2881 = vadd.f32 0.0, %v2880
        %v2882 = vpop.f32.mrf.mxu0
        %v2883 = vadd.f32 0.0, %v2882
        %2884 = vmatmul.bf16.gmra.mxu0 %v326
        %v2885 = vpop.f32.mrf.mxu0
        %v2886 = vadd.f32 0.0, %v2885
        %v2887 = vpop.f32.mrf.mxu0
        %v2888 = vadd.f32 0.0, %v2887
        %2889 = vmatmul.bf16.gmra.mxu0 %v329
        %v2890 = vpop.f32.mrf.mxu0
        %v2891 = vadd.f32 0.0, %v2890
        %v2892 = vpop.f32.mrf.mxu0
        %v2893 = vadd.f32 0.0, %v2892
        %2894 = vmatmul.bf16.gmra.mxu0 %v332
        %v2895 = vpop.f32.mrf.mxu0
        %v2896 = vadd.f32 0.0, %v2895
        %v2897 = vpop.f32.mrf.mxu0
        %v2898 = vadd.f32 0.0, %v2897
        %2899 = vmatmul.bf16.gmra.mxu0 %v335
        %v2900 = vpop.f32.mrf.mxu0
        %v2901 = vadd.f32 0.0, %v2900
        %v2902 = vpop.f32.mrf.mxu0
        %v2903 = vadd.f32 0.0, %v2902
        %2904 = vmatmul.bf16.gmra.mxu0 %v338
        %v2905 = vpop.f32.mrf.mxu0
        %v2906 = vadd.f32 0.0, %v2905
        %v2907 = vpop.f32.mrf.mxu0
        %v2908 = vadd.f32 0.0, %v2907
        %2909 = vdwg.mxu0
        %2910 = vmatpush.bf16.msra.mxu0 %v1396
        %2911 = vmatpush.bf16.msra.mxu0 %v1387
        %2912 = vmatpush.bf16.msra.mxu0 %v1378
        %2913 = vmatpush.bf16.msra.mxu0 %v1369
        %2914 = vmatpush.bf16.msra.mxu0 %v1360
        %2915 = vmatpush.bf16.msra.mxu0 %v1351
        %2916 = vmatpush.bf16.msra.mxu0 %v1342
        %2917 = vmatpush.bf16.msra.mxu0 %v1333
        %2918 = vmatmul.bf16.gmra.mxu0 %v318
        %v2919 = vpop.f32.mrf.mxu0
        %v2920 = vadd.f32 %v2871, %v2919
        %v2921 = vpop.f32.mrf.mxu0
        %v2922 = vadd.f32 %v2873, %v2921
        %2923 = vmatmul.bf16.gmra.mxu0 %v321
        %v2924 = vpop.f32.mrf.mxu0
        %v2925 = vadd.f32 %v2876, %v2924
        %v2926 = vpop.f32.mrf.mxu0
        %v2927 = vadd.f32 %v2878, %v2926
        %2928 = vmatmul.bf16.gmra.mxu0 %v324
        %v2929 = vpop.f32.mrf.mxu0
        %v2930 = vadd.f32 %v2881, %v2929
        %v2931 = vpop.f32.mrf.mxu0
        %v2932 = vadd.f32 %v2883, %v2931
        %2933 = vmatmul.bf16.gmra.mxu0 %v327
        %v2934 = vpop.f32.mrf.mxu0
        %v2935 = vadd.f32 %v2886, %v2934
        %v2936 = vpop.f32.mrf.mxu0
        %v2937 = vadd.f32 %v2888, %v2936
        %2938 = vmatmul.bf16.gmra.mxu0 %v330
        %v2939 = vpop.f32.mrf.mxu0
        %v2940 = vadd.f32 %v2891, %v2939
        %v2941 = vpop.f32.mrf.mxu0
        %v2942 = vadd.f32 %v2893, %v2941
        %2943 = vmatmul.bf16.gmra.mxu0 %v333
        %v2944 = vpop.f32.mrf.mxu0
        %v2945 = vadd.f32 %v2896, %v2944
        %v2946 = vpop.f32.mrf.mxu0
        %v2947 = vadd.f32 %v2898, %v2946
        %2948 = vmatmul.bf16.gmra.mxu0 %v336
        %v2949 = vpop.f32.mrf.mxu0
        %v2950 = vadd.f32 %v2901, %v2949
        %v2951 = vpop.f32.mrf.mxu0
        %v2952 = vadd.f32 %v2903, %v2951
        %2953 = vmatmul.bf16.gmra.mxu0 %v339
        %v2954 = vpop.f32.mrf.mxu0
        %v2955 = vadd.f32 %v2906, %v2954
        %v2956 = vpop.f32.mrf.mxu0
        %v2957 = vadd.f32 %v2908, %v2956
        %2958 = vdwg.mxu0
        %2959 = vmatpush.bf16.msra.mxu0 %v1468
        %2960 = vmatpush.bf16.msra.mxu0 %v1459
        %2961 = vmatpush.bf16.msra.mxu0 %v1450
        %2962 = vmatpush.bf16.msra.mxu0 %v1441
        %2963 = vmatpush.bf16.msra.mxu0 %v1432
        %2964 = vmatpush.bf16.msra.mxu0 %v1423
        %2965 = vmatpush.bf16.msra.mxu0 %v1414
        %2966 = vmatpush.bf16.msra.mxu0 %v1405
        %2967 = vmatmul.bf16.gmra.mxu0 %v319
        %v2968 = vpop.f32.mrf.mxu0
        %v2969 = vadd.f32 %v2920, %v2968
        %v2970 = vpop.f32.mrf.mxu0
        %v2971 = vadd.f32 %v2922, %v2970
        %2972 = vmatmul.bf16.gmra.mxu0 %v322
        %v2973 = vpop.f32.mrf.mxu0
        %v2974 = vadd.f32 %v2925, %v2973
        %v2975 = vpop.f32.mrf.mxu0
        %v2976 = vadd.f32 %v2927, %v2975
        %2977 = vmatmul.bf16.gmra.mxu0 %v325
        %v2978 = vpop.f32.mrf.mxu0
        %v2979 = vadd.f32 %v2930, %v2978
        %v2980 = vpop.f32.mrf.mxu0
        %v2981 = vadd.f32 %v2932, %v2980
        %2982 = vmatmul.bf16.gmra.mxu0 %v328
        %v2983 = vpop.f32.mrf.mxu0
        %v2984 = vadd.f32 %v2935, %v2983
        %v2985 = vpop.f32.mrf.mxu0
        %v2986 = vadd.f32 %v2937, %v2985
        %2987 = vmatmul.bf16.gmra.mxu0 %v331
        %v2988 = vpop.f32.mrf.mxu0
        %v2989 = vadd.f32 %v2940, %v2988
        %v2990 = vpop.f32.mrf.mxu0
        %v2991 = vadd.f32 %v2942, %v2990
        %2992 = vmatmul.bf16.gmra.mxu0 %v334
        %v2993 = vpop.f32.mrf.mxu0
        %v2994 = vadd.f32 %v2945, %v2993
        %v2995 = vpop.f32.mrf.mxu0
        %v2996 = vadd.f32 %v2947, %v2995
        %2997 = vmatmul.bf16.gmra.mxu0 %v337
        %v2998 = vpop.f32.mrf.mxu0
        %v2999 = vadd.f32 %v2950, %v2998
        %v3000 = vpop.f32.mrf.mxu0
        %v3001 = vadd.f32 %v2952, %v3000
        %3002 = vmatmul.bf16.gmra.mxu0 %v340
        %v3003 = vpop.f32.mrf.mxu0
        %v3004 = vadd.f32 %v2955, %v3003
        %v3005 = vpop.f32.mrf.mxu0
        %v3006 = vadd.f32 %v2957, %v3005
        %3007 = vdwg.mxu0
        %v3008 = vpack.c.bf16 %v1940, %v1793
        %v3009 = vpack.c.bf16 %v2234, %v2087
        %v3010 = vpack.c.bf16 %v2528, %v2381
        %v3011 = vpack.c.bf16 %v2822, %v2675
        %v3012 = vpack.c.bf16 %v2969, %v2969
        %v3013 = vpack.c.bf16 %v1942, %v1795
        %v3014 = vpack.c.bf16 %v2236, %v2089
        %v3015 = vpack.c.bf16 %v2530, %v2383
        %v3016 = vpack.c.bf16 %v2824, %v2677
        %v3017 = vpack.c.bf16 %v2971, %v2971
        %v3018 = vpack.c.bf16 %v1945, %v1798
        %v3019 = vpack.c.bf16 %v2239, %v2092
        %v3020 = vpack.c.bf16 %v2533, %v2386
        %v3021 = vpack.c.bf16 %v2827, %v2680
        %v3022 = vpack.c.bf16 %v2974, %v2974
        %v3023 = vpack.c.bf16 %v1947, %v1800
        %v3024 = vpack.c.bf16 %v2241, %v2094
        %v3025 = vpack.c.bf16 %v2535, %v2388
        %v3026 = vpack.c.bf16 %v2829, %v2682
        %v3027 = vpack.c.bf16 %v2976, %v2976
        %v3028 = vpack.c.bf16 %v1950, %v1803
        %v3029 = vpack.c.bf16 %v2244, %v2097
        %v3030 = vpack.c.bf16 %v2538, %v2391
        %v3031 = vpack.c.bf16 %v2832, %v2685
        %v3032 = vpack.c.bf16 %v2979, %v2979
        %v3033 = vpack.c.bf16 %v1952, %v1805
        %v3034 = vpack.c.bf16 %v2246, %v2099
        %v3035 = vpack.c.bf16 %v2540, %v2393
        %v3036 = vpack.c.bf16 %v2834, %v2687
        %v3037 = vpack.c.bf16 %v2981, %v2981
        %v3038 = vpack.c.bf16 %v1955, %v1808
        %v3039 = vpack.c.bf16 %v2249, %v2102
        %v3040 = vpack.c.bf16 %v2543, %v2396
        %v3041 = vpack.c.bf16 %v2837, %v2690
        %v3042 = vpack.c.bf16 %v2984, %v2984
        %v3043 = vpack.c.bf16 %v1957, %v1810
        %v3044 = vpack.c.bf16 %v2251, %v2104
        %v3045 = vpack.c.bf16 %v2545, %v2398
        %v3046 = vpack.c.bf16 %v2839, %v2692
        %v3047 = vpack.c.bf16 %v2986, %v2986
        %v3048 = vpack.c.bf16 %v1960, %v1813
        %v3049 = vpack.c.bf16 %v2254, %v2107
        %v3050 = vpack.c.bf16 %v2548, %v2401
        %v3051 = vpack.c.bf16 %v2842, %v2695
        %v3052 = vpack.c.bf16 %v2989, %v2989
        %v3053 = vpack.c.bf16 %v1962, %v1815
        %v3054 = vpack.c.bf16 %v2256, %v2109
        %v3055 = vpack.c.bf16 %v2550, %v2403
        %v3056 = vpack.c.bf16 %v2844, %v2697
        %v3057 = vpack.c.bf16 %v2991, %v2991
        %v3058 = vpack.c.bf16 %v1965, %v1818
        %v3059 = vpack.c.bf16 %v2259, %v2112
        %v3060 = vpack.c.bf16 %v2553, %v2406
        %v3061 = vpack.c.bf16 %v2847, %v2700
        %v3062 = vpack.c.bf16 %v2994, %v2994
        %v3063 = vpack.c.bf16 %v1967, %v1820
        %v3064 = vpack.c.bf16 %v2261, %v2114
        %v3065 = vpack.c.bf16 %v2555, %v2408
        %v3066 = vpack.c.bf16 %v2849, %v2702
        %v3067 = vpack.c.bf16 %v2996, %v2996
        %v3068 = vpack.c.bf16 %v1970, %v1823
        %v3069 = vpack.c.bf16 %v2264, %v2117
        %v3070 = vpack.c.bf16 %v2558, %v2411
        %v3071 = vpack.c.bf16 %v2852, %v2705
        %v3072 = vpack.c.bf16 %v2999, %v2999
        %v3073 = vpack.c.bf16 %v1972, %v1825
        %v3074 = vpack.c.bf16 %v2266, %v2119
        %v3075 = vpack.c.bf16 %v2560, %v2413
        %v3076 = vpack.c.bf16 %v2854, %v2707
        %v3077 = vpack.c.bf16 %v3001, %v3001
        %v3078 = vpack.c.bf16 %v1975, %v1828
        %v3079 = vpack.c.bf16 %v2269, %v2122
        %v3080 = vpack.c.bf16 %v2563, %v2416
        %v3081 = vpack.c.bf16 %v2857, %v2710
        %v3082 = vpack.c.bf16 %v3004, %v3004
        %v3083 = vpack.c.bf16 %v1977, %v1830
        %v3084 = vpack.c.bf16 %v2271, %v2124
        %v3085 = vpack.c.bf16 %v2565, %v2418
        %v3086 = vpack.c.bf16 %v2859, %v2712
        %v3087 = vpack.c.bf16 %v3006, %v3006
        %3088 = vst [vmem:[#allocation2] sm:$0xff] %v3008
        %3089 = vst [vmem:[#allocation2 + $0x8] sm:$0xff] %v3009
        %3090 = vst [vmem:[#allocation2 + $0x10] sm:$0xff] %v3010
        %3091 = vst [vmem:[#allocation2 + $0x18] sm:$0xff] %v3011
        %3092 = vst [vmem:[#allocation2 + $0x20] sm:$0xf] %v3012
        %3093 = vst [vmem:[#allocation2 + $0x24] sm:$0xff] %v3013
        %3094 = vst [vmem:[#allocation2 + $0x2c] sm:$0xff] %v3014
        %3095 = vst [vmem:[#allocation2 + $0x34] sm:$0xff] %v3015
        %3096 = vst [vmem:[#allocation2 + $0x3c] sm:$0xff] %v3016
        %3097 = vst [vmem:[#allocation2 + $0x44] sm:$0xf] %v3017
        %3098 = vst [vmem:[#allocation2 + $0x48] sm:$0xff] %v3018
        %3099 = vst [vmem:[#allocation2 + $0x50] sm:$0xff] %v3019
        %3100 = vst [vmem:[#allocation2 + $0x58] sm:$0xff] %v3020
        %3101 = vst [vmem:[#allocation2 + $0x60] sm:$0xff] %v3021
        %3102 = vst [vmem:[#allocation2 + $0x68] sm:$0xf] %v3022
        %3103 = vst [vmem:[#allocation2 + $0x6c] sm:$0xff] %v3023
        %3104 = vst [vmem:[#allocation2 + $0x74] sm:$0xff] %v3024
        %3105 = vst [vmem:[#allocation2 + $0x7c] sm:$0xff] %v3025
        %3106 = vst [vmem:[#allocation2 + $0x84] sm:$0xff] %v3026
        %3107 = vst [vmem:[#allocation2 + $0x8c] sm:$0xf] %v3027
        %3108 = vst [vmem:[#allocation2 + $0x90] sm:$0xff] %v3028
        %3109 = vst [vmem:[#allocation2 + $0x98] sm:$0xff] %v3029
        %3110 = vst [vmem:[#allocation2 + $0xa0] sm:$0xff] %v3030
        %3111 = vst [vmem:[#allocation2 + $0xa8] sm:$0xff] %v3031
        %3112 = vst [vmem:[#allocation2 + $0xb0] sm:$0xf] %v3032
        %3113 = vst [vmem:[#allocation2 + $0xb4] sm:$0xff] %v3033
        %3114 = vst [vmem:[#allocation2 + $0xbc] sm:$0xff] %v3034
        %3115 = vst [vmem:[#allocation2 + $0xc4] sm:$0xff] %v3035
        %3116 = vst [vmem:[#allocation2 + $0xcc] sm:$0xff] %v3036
        %3117 = vst [vmem:[#allocation2 + $0xd4] sm:$0xf] %v3037
        %3118 = vst [vmem:[#allocation2 + $0xd8] sm:$0xff] %v3038
        %3119 = vst [vmem:[#allocation2 + $0xe0] sm:$0xff] %v3039
        %3120 = vst [vmem:[#allocation2 + $0xe8] sm:$0xff] %v3040
        %3121 = vst [vmem:[#allocation2 + $0xf0] sm:$0xff] %v3041
        %3122 = vst [vmem:[#allocation2 + $0xf8] sm:$0xf] %v3042
        %3123 = vst [vmem:[#allocation2 + $0xfc] sm:$0xff] %v3043
        %3124 = vst [vmem:[#allocation2 + $0x104] sm:$0xff] %v3044
        %3125 = vst [vmem:[#allocation2 + $0x10c] sm:$0xff] %v3045
        %3126 = vst [vmem:[#allocation2 + $0x114] sm:$0xff] %v3046
        %3127 = vst [vmem:[#allocation2 + $0x11c] sm:$0xf] %v3047
        %3128 = vst [vmem:[#allocation2 + $0x120] sm:$0xff] %v3048
        %3129 = vst [vmem:[#allocation2 + $0x128] sm:$0xff] %v3049
        %3130 = vst [vmem:[#allocation2 + $0x130] sm:$0xff] %v3050
        %3131 = vst [vmem:[#allocation2 + $0x138] sm:$0xff] %v3051
        %3132 = vst [vmem:[#allocation2 + $0x140] sm:$0xf] %v3052
        %3133 = vst [vmem:[#allocation2 + $0x144] sm:$0xff] %v3053
        %3134 = vst [vmem:[#allocation2 + $0x14c] sm:$0xff] %v3054
        %3135 = vst [vmem:[#allocation2 + $0x154] sm:$0xff] %v3055
        %3136 = vst [vmem:[#allocation2 + $0x15c] sm:$0xff] %v3056
        %3137 = vst [vmem:[#allocation2 + $0x164] sm:$0xf] %v3057
        %3138 = vst [vmem:[#allocation2 + $0x168] sm:$0xff] %v3058
        %3139 = vst [vmem:[#allocation2 + $0x170] sm:$0xff] %v3059
        %3140 = vst [vmem:[#allocation2 + $0x178] sm:$0xff] %v3060
        %3141 = vst [vmem:[#allocation2 + $0x180] sm:$0xff] %v3061
        %3142 = vst [vmem:[#allocation2 + $0x188] sm:$0xf] %v3062
        %3143 = vst [vmem:[#allocation2 + $0x18c] sm:$0xff] %v3063
        %3144 = vst [vmem:[#allocation2 + $0x194] sm:$0xff] %v3064
        %3145 = vst [vmem:[#allocation2 + $0x19c] sm:$0xff] %v3065
        %3146 = vst [vmem:[#allocation2 + $0x1a4] sm:$0xff] %v3066
        %3147 = vst [vmem:[#allocation2 + $0x1ac] sm:$0xf] %v3067
        %3148 = vst [vmem:[#allocation2 + $0x1b0] sm:$0xff] %v3068
        %3149 = vst [vmem:[#allocation2 + $0x1b8] sm:$0xff] %v3069
        %3150 = vst [vmem:[#allocation2 + $0x1c0] sm:$0xff] %v3070
        %3151 = vst [vmem:[#allocation2 + $0x1c8] sm:$0xff] %v3071
        %3152 = vst [vmem:[#allocation2 + $0x1d0] sm:$0xf] %v3072
        %3153 = vst [vmem:[#allocation2 + $0x1d4] sm:$0xff] %v3073
        %3154 = vst [vmem:[#allocation2 + $0x1dc] sm:$0xff] %v3074
        %3155 = vst [vmem:[#allocation2 + $0x1e4] sm:$0xff] %v3075
        %3156 = vst [vmem:[#allocation2 + $0x1ec] sm:$0xff] %v3076
        %3157 = vst [vmem:[#allocation2 + $0x1f4] sm:$0xf] %v3077
        %3158 = vst [vmem:[#allocation2 + $0x1f8] sm:$0xff] %v3078
        %3159 = vst [vmem:[#allocation2 + $0x200] sm:$0xff] %v3079
        %3160 = vst [vmem:[#allocation2 + $0x208] sm:$0xff] %v3080
        %3161 = vst [vmem:[#allocation2 + $0x210] sm:$0xff] %v3081
        %3162 = vst [vmem:[#allocation2 + $0x218] sm:$0xf] %v3082
        %3163 = vst [vmem:[#allocation2 + $0x21c] sm:$0xff] %v3083
        %3164 = vst [vmem:[#allocation2 + $0x224] sm:$0xff] %v3084
        %3165 = vst [vmem:[#allocation2 + $0x22c] sm:$0xff] %v3085
        %3166 = vst [vmem:[#allocation2 + $0x234] sm:$0xff] %v3086
        %3167 = vst [vmem:[#allocation2 + $0x23c] sm:$0xf] %v3087
        %v3168 = vlaneseq
        %v3169 = vshrl.u32 %v3168, 7
        %v3170 = vadd.s32 %v3169, 8
        %v3171 = vadd.s32 %v3169, 16
        %v3172 = vadd.s32 %v3169, 24
        %v3173 = vadd.s32 %v3169, 32
        %v3174 = vadd.s32 %v3169, 40
        %v3175 = vadd.s32 %v3169, 48
        %v3176 = vadd.s32 %v3169, 56
        %v3177 = vadd.s32 %v3169, 64
        %v3178 = vadd.s32 %v3169, 72
        %v3179 = vadd.s32 %v3169, 80
        %v3180 = vadd.s32 %v3169, 88
        %v3181 = vadd.s32 %v3169, 96
        %v3182 = vadd.s32 %v3169, 104
        %v3183 = vadd.s32 %v3169, 112
        %v3184 = vadd.s32 %v3169, 120
        %v3185 = vlaneseq
        %v3186 = vand.u32 %v3185, 127
        %vm3187 = vcmp.le.s32.totalorder %v3186, %v3169
        %vm3188 = vcmp.le.s32.totalorder %v3186, %v3170
        %vm3189 = vcmp.le.s32.totalorder %v3186, %v3171
        %vm3190 = vcmp.le.s32.totalorder %v3186, %v3172
        %vm3191 = vcmp.le.s32.totalorder %v3186, %v3173
        %vm3192 = vcmp.le.s32.totalorder %v3186, %v3174
        %vm3193 = vcmp.le.s32.totalorder %v3186, %v3175
        %vm3194 = vcmp.le.s32.totalorder %v3186, %v3176
        %vm3195 = vcmp.le.s32.totalorder %v3186, %v3177
        %vm3196 = vcmp.le.s32.totalorder %v3186, %v3178
        %vm3197 = vcmp.le.s32.totalorder %v3186, %v3179
        %vm3198 = vcmp.le.s32.totalorder %v3186, %v3180
        %vm3199 = vcmp.le.s32.totalorder %v3186, %v3181
        %vm3200 = vcmp.le.s32.totalorder %v3186, %v3182
        %vm3201 = vcmp.le.s32.totalorder %v3186, %v3183
        %vm3202 = vcmp.le.s32.totalorder %v3186, %v3184
        %v3203 = vld [vmem:[#allocation2] sm:$0xf]
        %v3204 = vld [vmem:[#allocation2 + $0x24] sm:$0xf]
        %v3205 = vld [vmem:[#allocation2 + $0x48] sm:$0xf]
        %v3206 = vld [vmem:[#allocation2 + $0x6c] sm:$0xf]
        %v3207 = vld [vmem:[#allocation2 + $0x90] sm:$0xf]
        %v3208 = vld [vmem:[#allocation2 + $0xb4] sm:$0xf]
        %v3209 = vld [vmem:[#allocation2 + $0xd8] sm:$0xf]
        %v3210 = vld [vmem:[#allocation2 + $0xfc] sm:$0xf]
        %v3211 = vld [vmem:[#allocation2 + $0x120] sm:$0xf]
        %v3212 = vld [vmem:[#allocation2 + $0x144] sm:$0xf]
        %v3213 = vld [vmem:[#allocation2 + $0x168] sm:$0xf]
        %v3214 = vld [vmem:[#allocation2 + $0x18c] sm:$0xf]
        %v3215 = vld [vmem:[#allocation2 + $0x1b0] sm:$0xf]
        %v3216 = vld [vmem:[#allocation2 + $0x1d4] sm:$0xf]
        %v3217 = vld [vmem:[#allocation2 + $0x1f8] sm:$0xf]
        %v3218 = vld [vmem:[#allocation2 + $0x21c] sm:$0xf]
        %v3219 = vld [vmem:[#allocation2 + $0xc] sm:$0xf]
        %v3220 = vld [vmem:[#allocation2 + $0x30] sm:$0xf]
        %v3221 = vld [vmem:[#allocation2 + $0x54] sm:$0xf]
        %v3222 = vld [vmem:[#allocation2 + $0x78] sm:$0xf]
        %v3223 = vld [vmem:[#allocation2 + $0x9c] sm:$0xf]
        %v3224 = vld [vmem:[#allocation2 + $0xc0] sm:$0xf]
        %v3225 = vld [vmem:[#allocation2 + $0xe4] sm:$0xf]
        %v3226 = vld [vmem:[#allocation2 + $0x108] sm:$0xf]
        %v3227 = vld [vmem:[#allocation2 + $0x12c] sm:$0xf]
        %v3228 = vld [vmem:[#allocation2 + $0x150] sm:$0xf]
        %v3229 = vld [vmem:[#allocation2 + $0x174] sm:$0xf]
        %v3230 = vld [vmem:[#allocation2 + $0x198] sm:$0xf]
        %v3231 = vld [vmem:[#allocation2 + $0x1bc] sm:$0xf]
        %v3232 = vld [vmem:[#allocation2 + $0x1e0] sm:$0xf]
        %v3233 = vld [vmem:[#allocation2 + $0x204] sm:$0xf]
        %v3234 = vld [vmem:[#allocation2 + $0x228] sm:$0xf]
        %v3235 = vld [vmem:[#allocation2 + $0x18] sm:$0xf]
        %v3236 = vld [vmem:[#allocation2 + $0x3c] sm:$0xf]
        %v3237 = vld [vmem:[#allocation2 + $0x60] sm:$0xf]
        %v3238 = vld [vmem:[#allocation2 + $0x84] sm:$0xf]
        %v3239 = vld [vmem:[#allocation2 + $0xa8] sm:$0xf]
        %v3240 = vld [vmem:[#allocation2 + $0xcc] sm:$0xf]
        %v3241 = vld [vmem:[#allocation2 + $0xf0] sm:$0xf]
        %v3242 = vld [vmem:[#allocation2 + $0x114] sm:$0xf]
        %v3243 = vld [vmem:[#allocation2 + $0x138] sm:$0xf]
        %v3244 = vld [vmem:[#allocation2 + $0x15c] sm:$0xf]
        %v3245 = vld [vmem:[#allocation2 + $0x180] sm:$0xf]
        %v3246 = vld [vmem:[#allocation2 + $0x1a4] sm:$0xf]
        %v3247 = vld [vmem:[#allocation2 + $0x1c8] sm:$0xf]
        %v3248 = vld [vmem:[#allocation2 + $0x1ec] sm:$0xf]
        %v3249 = vld [vmem:[#allocation2 + $0x210] sm:$0xf]
        %v3250 = vld [vmem:[#allocation2 + $0x234] sm:$0xf]
        %v3267 = vunpack.c.l.b16 %v3203
        %v3268 = vunpack.c.l.b16 %v3204
        %v3269 = vunpack.c.l.b16 %v3205
        %v3270 = vunpack.c.l.b16 %v3206
        %v3271 = vunpack.c.l.b16 %v3207
        %v3272 = vunpack.c.l.b16 %v3208
        %v3273 = vunpack.c.l.b16 %v3209
        %v3274 = vunpack.c.l.b16 %v3210
        %v3275 = vunpack.c.l.b16 %v3211
        %v3276 = vunpack.c.l.b16 %v3212
        %v3277 = vunpack.c.l.b16 %v3213
        %v3278 = vunpack.c.l.b16 %v3214
        %v3279 = vunpack.c.l.b16 %v3215
        %v3280 = vunpack.c.l.b16 %v3216
        %v3281 = vunpack.c.l.b16 %v3217
        %v3282 = vunpack.c.l.b16 %v3218
        %v3283 = vpack.c.b16 %v3268, %v3267
        %v3284 = vpack.c.b16 %v3270, %v3269
        %v3285 = vpack.c.b16 %v3272, %v3271
        %v3286 = vpack.c.b16 %v3274, %v3273
        %v3287 = vpack.c.b16 %v3276, %v3275
        %v3288 = vpack.c.b16 %v3278, %v3277
        %v3289 = vpack.c.b16 %v3280, %v3279
        %v3290 = vpack.c.b16 %v3282, %v3281
        %v3307 = vunpack.c.l.b16 %v3219
        %v3308 = vunpack.c.l.b16 %v3220
        %v3309 = vunpack.c.l.b16 %v3221
        %v3310 = vunpack.c.l.b16 %v3222
        %v3311 = vunpack.c.l.b16 %v3223
        %v3312 = vunpack.c.l.b16 %v3224
        %v3313 = vunpack.c.l.b16 %v3225
        %v3314 = vunpack.c.l.b16 %v3226
        %v3315 = vunpack.c.l.b16 %v3227
        %v3316 = vunpack.c.l.b16 %v3228
        %v3317 = vunpack.c.l.b16 %v3229
        %v3318 = vunpack.c.l.b16 %v3230
        %v3319 = vunpack.c.l.b16 %v3231
        %v3320 = vunpack.c.l.b16 %v3232
        %v3321 = vunpack.c.l.b16 %v3233
        %v3322 = vunpack.c.l.b16 %v3234
        %v3323 = vpack.c.b16 %v3308, %v3307
        %v3324 = vpack.c.b16 %v3310, %v3309
        %v3325 = vpack.c.b16 %v3312, %v3311
        %v3326 = vpack.c.b16 %v3314, %v3313
        %v3327 = vpack.c.b16 %v3316, %v3315
        %v3328 = vpack.c.b16 %v3318, %v3317
        %v3329 = vpack.c.b16 %v3320, %v3319
        %v3330 = vpack.c.b16 %v3322, %v3321
        %vm3331 = vcmask 523264
        %v3333 = vsel %vm3331, %v3283, 0
        %v3336 = vsel %vm3331, %v3284, 0
        %v3339 = vsel %vm3331, %v3285, 0
        %v3342 = vsel %vm3331, %v3286, 0
        %v3345 = vsel %vm3331, %v3287, 0
        %v3348 = vsel %vm3331, %v3288, 0
        %v3351 = vsel %vm3331, %v3289, 0
        %v3354 = vsel %vm3331, %v3290, 0
        %v3357 = vsel %vm3331, %v3323, 0
        %v3360 = vsel %vm3331, %v3324, 0
        %v3363 = vsel %vm3331, %v3325, 0
        %v3366 = vsel %vm3331, %v3326, 0
        %v3369 = vsel %vm3331, %v3327, 0
        %v3372 = vsel %vm3331, %v3328, 0
        %v3375 = vsel %vm3331, %v3329, 0
        %v3378 = vsel %vm3331, %v3330, 0
        %3380 = vmatpush.bf16.xpose.msra.mxu0 %v3378
        %3381 = vmatpush.bf16.xpose.msra.mxu0 %v3375
        %3382 = vmatpush.bf16.xpose.msra.mxu0 %v3372
        %3383 = vmatpush.bf16.xpose.msra.mxu0 %v3369
        %3384 = vmatpush.bf16.xpose.msra.mxu0 %v3366
        %3385 = vmatpush.bf16.xpose.msra.mxu0 %v3363
        %3386 = vmatpush.bf16.xpose.msra.mxu0 %v3360
        %3387 = vmatpush.bf16.xpose.msra.mxu0 %v3357
        %3388 = vmatmul.bf16.gmra.mxu0 %v3333
        %v3389 = vpop.f32.mrf.mxu0
        %v3390 = vadd.f32 0.0, %v3389
        %v3391 = vpop.f32.mrf.mxu0
        %v3392 = vadd.f32 0.0, %v3391
        %3393 = vmatmul.bf16.gmra.mxu0 %v3336
        %v3394 = vpop.f32.mrf.mxu0
        %v3395 = vadd.f32 0.0, %v3394
        %v3396 = vpop.f32.mrf.mxu0
        %v3397 = vadd.f32 0.0, %v3396
        %3398 = vmatmul.bf16.gmra.mxu0 %v3339
        %v3399 = vpop.f32.mrf.mxu0
        %v3400 = vadd.f32 0.0, %v3399
        %v3401 = vpop.f32.mrf.mxu0
        %v3402 = vadd.f32 0.0, %v3401
        %3403 = vmatmul.bf16.gmra.mxu0 %v3342
        %v3404 = vpop.f32.mrf.mxu0
        %v3405 = vadd.f32 0.0, %v3404
        %v3406 = vpop.f32.mrf.mxu0
        %v3407 = vadd.f32 0.0, %v3406
        %3408 = vmatmul.bf16.gmra.mxu0 %v3345
        %v3409 = vpop.f32.mrf.mxu0
        %v3410 = vadd.f32 0.0, %v3409
        %v3411 = vpop.f32.mrf.mxu0
        %v3412 = vadd.f32 0.0, %v3411
        %3413 = vmatmul.bf16.gmra.mxu0 %v3348
        %v3414 = vpop.f32.mrf.mxu0
        %v3415 = vadd.f32 0.0, %v3414
        %v3416 = vpop.f32.mrf.mxu0
        %v3417 = vadd.f32 0.0, %v3416
        %3418 = vmatmul.bf16.gmra.mxu0 %v3351
        %v3419 = vpop.f32.mrf.mxu0
        %v3420 = vadd.f32 0.0, %v3419
        %v3421 = vpop.f32.mrf.mxu0
        %v3422 = vadd.f32 0.0, %v3421
        %3423 = vmatmul.bf16.gmra.mxu0 %v3354
        %v3424 = vpop.f32.mrf.mxu0
        %v3425 = vadd.f32 0.0, %v3424
        %v3426 = vpop.f32.mrf.mxu0
        %v3427 = vadd.f32 0.0, %v3426
        %3428 = vdwg.mxu0
        %v3429 = vsel %vm3187, %v3390, -1e+30
        %v3430 = vsel %vm3188, %v3392, -1e+30
        %v3431 = vsel %vm3189, %v3395, -1e+30
        %v3432 = vsel %vm3190, %v3397, -1e+30
        %v3433 = vsel %vm3191, %v3400, -1e+30
        %v3434 = vsel %vm3192, %v3402, -1e+30
        %v3435 = vsel %vm3193, %v3405, -1e+30
        %v3436 = vsel %vm3194, %v3407, -1e+30
        %v3437 = vsel %vm3195, %v3410, -1e+30
        %v3438 = vsel %vm3196, %v3412, -1e+30
        %v3439 = vsel %vm3197, %v3415, -1e+30
        %v3440 = vsel %vm3198, %v3417, -1e+30
        %v3441 = vsel %vm3199, %v3420, -1e+30
        %v3442 = vsel %vm3200, %v3422, -1e+30
        %v3443 = vsel %vm3201, %v3425, -1e+30
        %v3444 = vsel %vm3202, %v3427, -1e+30
        %3445 = vmax.xlane.f32.xlu0 %v3429
        %v3446 = vpop.xlane.xlu0 %3445
        %3447 = vmax.xlane.f32.xlu0 %v3430
        %v3448 = vpop.xlane.xlu0 %3447
        %3449 = vmax.xlane.f32.xlu0 %v3431
        %v3450 = vpop.xlane.xlu0 %3449
        %3451 = vmax.xlane.f32.xlu0 %v3432
        %v3452 = vpop.xlane.xlu0 %3451
        %3453 = vmax.xlane.f32.xlu0 %v3433
        %v3454 = vpop.xlane.xlu0 %3453
        %3455 = vmax.xlane.f32.xlu0 %v3434
        %v3456 = vpop.xlane.xlu0 %3455
        %3457 = vmax.xlane.f32.xlu0 %v3435
        %v3458 = vpop.xlane.xlu0 %3457
        %3459 = vmax.xlane.f32.xlu0 %v3436
        %v3460 = vpop.xlane.xlu0 %3459
        %3461 = vmax.xlane.f32.xlu0 %v3437
        %v3462 = vpop.xlane.xlu0 %3461
        %3463 = vmax.xlane.f32.xlu0 %v3438
        %v3464 = vpop.xlane.xlu0 %3463
        %3465 = vmax.xlane.f32.xlu0 %v3439
        %v3466 = vpop.xlane.xlu0 %3465
        %3467 = vmax.xlane.f32.xlu0 %v3440
        %v3468 = vpop.xlane.xlu0 %3467
        %3469 = vmax.xlane.f32.xlu0 %v3441
        %v3470 = vpop.xlane.xlu0 %3469
        %3471 = vmax.xlane.f32.xlu0 %v3442
        %v3472 = vpop.xlane.xlu0 %3471
        %3473 = vmax.xlane.f32.xlu0 %v3443
        %v3474 = vpop.xlane.xlu0 %3473
        %3475 = vmax.xlane.f32.xlu0 %v3444
        %v3476 = vpop.xlane.xlu0 %3475
        %v3477 = vsub.f32 %v3429, %v3446
        %v3478 = vsub.f32 %v3430, %v3448
        %v3479 = vsub.f32 %v3431, %v3450
        %v3480 = vsub.f32 %v3432, %v3452
        %v3481 = vsub.f32 %v3433, %v3454
        %v3482 = vsub.f32 %v3434, %v3456
        %v3483 = vsub.f32 %v3435, %v3458
        %v3484 = vsub.f32 %v3436, %v3460
        %v3485 = vsub.f32 %v3437, %v3462
        %v3486 = vsub.f32 %v3438, %v3464
        %v3487 = vsub.f32 %v3439, %v3466
        %v3488 = vsub.f32 %v3440, %v3468
        %v3489 = vsub.f32 %v3441, %v3470
        %v3490 = vsub.f32 %v3442, %v3472
        %v3491 = vsub.f32 %v3443, %v3474
        %v3492 = vsub.f32 %v3444, %v3476
        %v3493 = vmul.f32 %v3477, 1.442695
        %v3494 = vpow.pop %v3493
        %v3495 = vmul.f32 %v3478, 1.442695
        %v3496 = vpow.pop %v3495
        %v3497 = vmul.f32 %v3479, 1.442695
        %v3498 = vpow.pop %v3497
        %v3499 = vmul.f32 %v3480, 1.442695
        %v3500 = vpow.pop %v3499
        %v3501 = vmul.f32 %v3481, 1.442695
        %v3502 = vpow.pop %v3501
        %v3503 = vmul.f32 %v3482, 1.442695
        %v3504 = vpow.pop %v3503
        %v3505 = vmul.f32 %v3483, 1.442695
        %v3506 = vpow.pop %v3505
        %v3507 = vmul.f32 %v3484, 1.442695
        %v3508 = vpow.pop %v3507
        %v3509 = vmul.f32 %v3485, 1.442695
        %v3510 = vpow.pop %v3509
        %v3511 = vmul.f32 %v3486, 1.442695
        %v3512 = vpow.pop %v3511
        %v3513 = vmul.f32 %v3487, 1.442695
        %v3514 = vpow.pop %v3513
        %v3515 = vmul.f32 %v3488, 1.442695
        %v3516 = vpow.pop %v3515
        %v3517 = vmul.f32 %v3489, 1.442695
        %v3518 = vpow.pop %v3517
        %v3519 = vmul.f32 %v3490, 1.442695
        %v3520 = vpow.pop %v3519
        %v3521 = vmul.f32 %v3491, 1.442695
        %v3522 = vpow.pop %v3521
        %v3523 = vmul.f32 %v3492, 1.442695
        %v3524 = vpow.pop %v3523
        %3525 = vadd.xlane.f32.xlu0 %v3494
        %v3526 = vpop.xlane.xlu0 %3525
        %3527 = vadd.xlane.f32.xlu0 %v3496
        %v3528 = vpop.xlane.xlu0 %3527
        %3529 = vadd.xlane.f32.xlu0 %v3498
        %v3530 = vpop.xlane.xlu0 %3529
        %3531 = vadd.xlane.f32.xlu0 %v3500
        %v3532 = vpop.xlane.xlu0 %3531
        %3533 = vadd.xlane.f32.xlu0 %v3502
        %v3534 = vpop.xlane.xlu0 %3533
        %3535 = vadd.xlane.f32.xlu0 %v3504
        %v3536 = vpop.xlane.xlu0 %3535
        %3537 = vadd.xlane.f32.xlu0 %v3506
        %v3538 = vpop.xlane.xlu0 %3537
        %3539 = vadd.xlane.f32.xlu0 %v3508
        %v3540 = vpop.xlane.xlu0 %3539
        %3541 = vadd.xlane.f32.xlu0 %v3510
        %v3542 = vpop.xlane.xlu0 %3541
        %3543 = vadd.xlane.f32.xlu0 %v3512
        %v3544 = vpop.xlane.xlu0 %3543
        %3545 = vadd.xlane.f32.xlu0 %v3514
        %v3546 = vpop.xlane.xlu0 %3545
        %3547 = vadd.xlane.f32.xlu0 %v3516
        %v3548 = vpop.xlane.xlu0 %3547
        %3549 = vadd.xlane.f32.xlu0 %v3518
        %v3550 = vpop.xlane.xlu0 %3549
        %3551 = vadd.xlane.f32.xlu0 %v3520
        %v3552 = vpop.xlane.xlu0 %3551
        %3553 = vadd.xlane.f32.xlu0 %v3522
        %v3554 = vpop.xlane.xlu0 %3553
        %3555 = vadd.xlane.f32.xlu0 %v3524
        %v3556 = vpop.xlane.xlu0 %3555
        %v3557 = vpack.c.bf16 %v3496, %v3494
        %v3558 = vpack.c.bf16 %v3500, %v3498
        %v3559 = vpack.c.bf16 %v3504, %v3502
        %v3560 = vpack.c.bf16 %v3508, %v3506
        %v3561 = vpack.c.bf16 %v3512, %v3510
        %v3562 = vpack.c.bf16 %v3516, %v3514
        %v3563 = vpack.c.bf16 %v3520, %v3518
        %v3564 = vpack.c.bf16 %v3524, %v3522
        %v3581 = vunpack.c.l.b16 %v3235
        %v3582 = vunpack.c.l.b16 %v3236
        %v3583 = vunpack.c.l.b16 %v3237
        %v3584 = vunpack.c.l.b16 %v3238
        %v3585 = vunpack.c.l.b16 %v3239
        %v3586 = vunpack.c.l.b16 %v3240
        %v3587 = vunpack.c.l.b16 %v3241
        %v3588 = vunpack.c.l.b16 %v3242
        %v3589 = vunpack.c.l.b16 %v3243
        %v3590 = vunpack.c.l.b16 %v3244
        %v3591 = vunpack.c.l.b16 %v3245
        %v3592 = vunpack.c.l.b16 %v3246
        %v3593 = vunpack.c.l.b16 %v3247
        %v3594 = vunpack.c.l.b16 %v3248
        %v3595 = vunpack.c.l.b16 %v3249
        %v3596 = vunpack.c.l.b16 %v3250
        %v3597 = vpack.c.b16 %v3582, %v3581
        %v3598 = vpack.c.b16 %v3584, %v3583
        %v3599 = vpack.c.b16 %v3586, %v3585
        %v3600 = vpack.c.b16 %v3588, %v3587
        %v3601 = vpack.c.b16 %v3590, %v3589
        %v3602 = vpack.c.b16 %v3592, %v3591
        %v3603 = vpack.c.b16 %v3594, %v3593
        %v3604 = vpack.c.b16 %v3596, %v3595
        %3613 = vmatpush.bf16.msra.mxu0 %v3604
        %3614 = vmatpush.bf16.msra.mxu0 %v3603
        %3615 = vmatpush.bf16.msra.mxu0 %v3602
        %3616 = vmatpush.bf16.msra.mxu0 %v3601
        %3617 = vmatpush.bf16.msra.mxu0 %v3600
        %3618 = vmatpush.bf16.msra.mxu0 %v3599
        %3619 = vmatpush.bf16.msra.mxu0 %v3598
        %3620 = vmatpush.bf16.msra.mxu0 %v3597
        %3621 = vmatmul.bf16.gmra.mxu0 %v3557
        %v3622 = vpop.f32.mrf.mxu0
        %v3623 = vadd.f32 0.0, %v3622
        %v3624 = vpop.f32.mrf.mxu0
        %v3625 = vadd.f32 0.0, %v3624
        %3626 = vmatmul.bf16.gmra.mxu0 %v3558
        %v3627 = vpop.f32.mrf.mxu0
        %v3628 = vadd.f32 0.0, %v3627
        %v3629 = vpop.f32.mrf.mxu0
        %v3630 = vadd.f32 0.0, %v3629
        %3631 = vmatmul.bf16.gmra.mxu0 %v3559
        %v3632 = vpop.f32.mrf.mxu0
        %v3633 = vadd.f32 0.0, %v3632
        %v3634 = vpop.f32.mrf.mxu0
        %v3635 = vadd.f32 0.0, %v3634
        %3636 = vmatmul.bf16.gmra.mxu0 %v3560
        %v3637 = vpop.f32.mrf.mxu0
        %v3638 = vadd.f32 0.0, %v3637
        %v3639 = vpop.f32.mrf.mxu0
        %v3640 = vadd.f32 0.0, %v3639
        %3641 = vmatmul.bf16.gmra.mxu0 %v3561
        %v3642 = vpop.f32.mrf.mxu0
        %v3643 = vadd.f32 0.0, %v3642
        %v3644 = vpop.f32.mrf.mxu0
        %v3645 = vadd.f32 0.0, %v3644
        %3646 = vmatmul.bf16.gmra.mxu0 %v3562
        %v3647 = vpop.f32.mrf.mxu0
        %v3648 = vadd.f32 0.0, %v3647
        %v3649 = vpop.f32.mrf.mxu0
        %v3650 = vadd.f32 0.0, %v3649
        %3651 = vmatmul.bf16.gmra.mxu0 %v3563
        %v3652 = vpop.f32.mrf.mxu0
        %v3653 = vadd.f32 0.0, %v3652
        %v3654 = vpop.f32.mrf.mxu0
        %v3655 = vadd.f32 0.0, %v3654
        %3656 = vmatmul.bf16.gmra.mxu0 %v3564
        %v3657 = vpop.f32.mrf.mxu0
        %v3658 = vadd.f32 0.0, %v3657
        %v3659 = vpop.f32.mrf.mxu0
        %v3660 = vadd.f32 0.0, %v3659
        %3661 = vdwg.mxu0
        %v3662 = vrcp.pop %v3526
        %v3663 = vrcp.pop %v3528
        %v3664 = vrcp.pop %v3530
        %v3665 = vrcp.pop %v3532
        %v3666 = vrcp.pop %v3534
        %v3667 = vrcp.pop %v3536
        %v3668 = vrcp.pop %v3538
        %v3669 = vrcp.pop %v3540
        %v3670 = vrcp.pop %v3542
        %v3671 = vrcp.pop %v3544
        %v3672 = vrcp.pop %v3546
        %v3673 = vrcp.pop %v3548
        %v3674 = vrcp.pop %v3550
        %v3675 = vrcp.pop %v3552
        %v3676 = vrcp.pop %v3554
        %v3677 = vrcp.pop %v3556
        %v3678 = vmul.f32 %v3623, %v3662
        %v3679 = vmul.f32 %v3625, %v3663
        %v3680 = vmul.f32 %v3628, %v3664
        %v3681 = vmul.f32 %v3630, %v3665
        %v3682 = vmul.f32 %v3633, %v3666
        %v3683 = vmul.f32 %v3635, %v3667
        %v3684 = vmul.f32 %v3638, %v3668
        %v3685 = vmul.f32 %v3640, %v3669
        %v3686 = vmul.f32 %v3643, %v3670
        %v3687 = vmul.f32 %v3645, %v3671
        %v3688 = vmul.f32 %v3648, %v3672
        %v3689 = vmul.f32 %v3650, %v3673
        %v3690 = vmul.f32 %v3653, %v3674
        %v3691 = vmul.f32 %v3655, %v3675
        %v3692 = vmul.f32 %v3658, %v3676
        %v3693 = vmul.f32 %v3660, %v3677
        %v3694 = vpack.c.bf16 %v3678, %v3678
        %v3695 = vpack.c.bf16 %v3679, %v3679
        %v3696 = vpack.c.bf16 %v3680, %v3680
        %v3697 = vpack.c.bf16 %v3681, %v3681
        %v3698 = vpack.c.bf16 %v3682, %v3682
        %v3699 = vpack.c.bf16 %v3683, %v3683
        %v3700 = vpack.c.bf16 %v3684, %v3684
        %v3701 = vpack.c.bf16 %v3685, %v3685
        %v3702 = vpack.c.bf16 %v3686, %v3686
        %v3703 = vpack.c.bf16 %v3687, %v3687
        %v3704 = vpack.c.bf16 %v3688, %v3688
        %v3705 = vpack.c.bf16 %v3689, %v3689
        %v3706 = vpack.c.bf16 %v3690, %v3690
        %v3707 = vpack.c.bf16 %v3691, %v3691
        %v3708 = vpack.c.bf16 %v3692, %v3692
        %v3709 = vpack.c.bf16 %v3693, %v3693
        %vm3710 = vcmask 519168
        %3711 = vst.msk [vmem:[#allocation3] sm:$0xf] %vm3710, %v3694
        %3712 = vst.msk [vmem:[#allocation3 + $0xc] sm:$0xf] %vm3710, %v3695
        %3713 = vst.msk [vmem:[#allocation3 + $0x18] sm:$0xf] %vm3710, %v3696
        %3714 = vst.msk [vmem:[#allocation3 + $0x24] sm:$0xf] %vm3710, %v3697
        %3715 = vst.msk [vmem:[#allocation3 + $0x30] sm:$0xf] %vm3710, %v3698
        %3716 = vst.msk [vmem:[#allocation3 + $0x3c] sm:$0xf] %vm3710, %v3699
        %3717 = vst.msk [vmem:[#allocation3 + $0x48] sm:$0xf] %vm3710, %v3700
        %3718 = vst.msk [vmem:[#allocation3 + $0x54] sm:$0xf] %vm3710, %v3701
        %3719 = vst.msk [vmem:[#allocation3 + $0x60] sm:$0xf] %vm3710, %v3702
        %3720 = vst.msk [vmem:[#allocation3 + $0x6c] sm:$0xf] %vm3710, %v3703
        %3721 = vst.msk [vmem:[#allocation3 + $0x78] sm:$0xf] %vm3710, %v3704
        %3722 = vst.msk [vmem:[#allocation3 + $0x84] sm:$0xf] %vm3710, %v3705
        %3723 = vst.msk [vmem:[#allocation3 + $0x90] sm:$0xf] %vm3710, %v3706
        %3724 = vst.msk [vmem:[#allocation3 + $0x9c] sm:$0xf] %vm3710, %v3707
        %3725 = vst.msk [vmem:[#allocation3 + $0xa8] sm:$0xf] %vm3710, %v3708
        %3726 = vst.msk [vmem:[#allocation3 + $0xb4] sm:$0xf] %vm3710, %v3709
        %v3727 = vld [vmem:[#allocation2] sm:$0xf]
        %v3728 = vld [vmem:[#allocation2 + $0x24] sm:$0xf]
        %v3729 = vld [vmem:[#allocation2 + $0x48] sm:$0xf]
        %v3730 = vld [vmem:[#allocation2 + $0x6c] sm:$0xf]
        %v3731 = vld [vmem:[#allocation2 + $0x90] sm:$0xf]
        %v3732 = vld [vmem:[#allocation2 + $0xb4] sm:$0xf]
        %v3733 = vld [vmem:[#allocation2 + $0xd8] sm:$0xf]
        %v3734 = vld [vmem:[#allocation2 + $0xfc] sm:$0xf]
        %v3735 = vld [vmem:[#allocation2 + $0x120] sm:$0xf]
        %v3736 = vld [vmem:[#allocation2 + $0x144] sm:$0xf]
        %v3737 = vld [vmem:[#allocation2 + $0x168] sm:$0xf]
        %v3738 = vld [vmem:[#allocation2 + $0x18c] sm:$0xf]
        %v3739 = vld [vmem:[#allocation2 + $0x1b0] sm:$0xf]
        %v3740 = vld [vmem:[#allocation2 + $0x1d4] sm:$0xf]
        %v3741 = vld [vmem:[#allocation2 + $0x1f8] sm:$0xf]
        %v3742 = vld [vmem:[#allocation2 + $0x21c] sm:$0xf]
        %v3743 = vld [vmem:[#allocation2 + $0xc] sm:$0xf]
        %v3744 = vld [vmem:[#allocation2 + $0x30] sm:$0xf]
        %v3745 = vld [vmem:[#allocation2 + $0x54] sm:$0xf]
        %v3746 = vld [vmem:[#allocation2 + $0x78] sm:$0xf]
        %v3747 = vld [vmem:[#allocation2 + $0x9c] sm:$0xf]
        %v3748 = vld [vmem:[#allocation2 + $0xc0] sm:$0xf]
        %v3749 = vld [vmem:[#allocation2 + $0xe4] sm:$0xf]
        %v3750 = vld [vmem:[#allocation2 + $0x108] sm:$0xf]
        %v3751 = vld [vmem:[#allocation2 + $0x12c] sm:$0xf]
        %v3752 = vld [vmem:[#allocation2 + $0x150] sm:$0xf]
        %v3753 = vld [vmem:[#allocation2 + $0x174] sm:$0xf]
        %v3754 = vld [vmem:[#allocation2 + $0x198] sm:$0xf]
        %v3755 = vld [vmem:[#allocation2 + $0x1bc] sm:$0xf]
        %v3756 = vld [vmem:[#allocation2 + $0x1e0] sm:$0xf]
        %v3757 = vld [vmem:[#allocation2 + $0x204] sm:$0xf]
        %v3758 = vld [vmem:[#allocation2 + $0x228] sm:$0xf]
        %v3759 = vld [vmem:[#allocation2 + $0x18] sm:$0xf]
        %v3760 = vld [vmem:[#allocation2 + $0x3c] sm:$0xf]
        %v3761 = vld [vmem:[#allocation2 + $0x60] sm:$0xf]
        %v3762 = vld [vmem:[#allocation2 + $0x84] sm:$0xf]
        %v3763 = vld [vmem:[#allocation2 + $0xa8] sm:$0xf]
        %v3764 = vld [vmem:[#allocation2 + $0xcc] sm:$0xf]
        %v3765 = vld [vmem:[#allocation2 + $0xf0] sm:$0xf]
        %v3766 = vld [vmem:[#allocation2 + $0x114] sm:$0xf]
        %v3767 = vld [vmem:[#allocation2 + $0x138] sm:$0xf]
        %v3768 = vld [vmem:[#allocation2 + $0x15c] sm:$0xf]
        %v3769 = vld [vmem:[#allocation2 + $0x180] sm:$0xf]
        %v3770 = vld [vmem:[#allocation2 + $0x1a4] sm:$0xf]
        %v3771 = vld [vmem:[#allocation2 + $0x1c8] sm:$0xf]
        %v3772 = vld [vmem:[#allocation2 + $0x1ec] sm:$0xf]
        %v3773 = vld [vmem:[#allocation2 + $0x210] sm:$0xf]
        %v3774 = vld [vmem:[#allocation2 + $0x234] sm:$0xf]
        %v3791 = vunpack.c.l.b16 %v3727
        %v3792 = vunpack.c.l.b16 %v3728
        %v3793 = vunpack.c.l.b16 %v3729
        %v3794 = vunpack.c.l.b16 %v3730
        %v3795 = vunpack.c.l.b16 %v3731
        %v3796 = vunpack.c.l.b16 %v3732
        %v3797 = vunpack.c.l.b16 %v3733
        %v3798 = vunpack.c.l.b16 %v3734
        %v3799 = vunpack.c.l.b16 %v3735
        %v3800 = vunpack.c.l.b16 %v3736
        %v3801 = vunpack.c.l.b16 %v3737
        %v3802 = vunpack.c.l.b16 %v3738
        %v3803 = vunpack.c.l.b16 %v3739
        %v3804 = vunpack.c.l.b16 %v3740
        %v3805 = vunpack.c.l.b16 %v3741
        %v3806 = vunpack.c.l.b16 %v3742
        %v3807 = vpack.c.b16 %v3792, %v3791
        %v3808 = vpack.c.b16 %v3794, %v3793
        %v3809 = vpack.c.b16 %v3796, %v3795
        %v3810 = vpack.c.b16 %v3798, %v3797
        %v3811 = vpack.c.b16 %v3800, %v3799
        %v3812 = vpack.c.b16 %v3802, %v3801
        %v3813 = vpack.c.b16 %v3804, %v3803
        %v3814 = vpack.c.b16 %v3806, %v3805
        %3815 = vrot.lane.b32.xlu0 %v3807, 64
        %v3816 = vpop.permute.xlu0 %3815
        %3817 = vrot.lane.b32.xlu0 %v3808, 64
        %v3818 = vpop.permute.xlu0 %3817
        %3819 = vrot.lane.b32.xlu0 %v3809, 64
        %v3820 = vpop.permute.xlu0 %3819
        %3821 = vrot.lane.b32.xlu0 %v3810, 64
        %v3822 = vpop.permute.xlu0 %3821
        %3823 = vrot.lane.b32.xlu0 %v3811, 64
        %v3824 = vpop.permute.xlu0 %3823
        %3825 = vrot.lane.b32.xlu0 %v3812, 64
        %v3826 = vpop.permute.xlu0 %3825
        %3827 = vrot.lane.b32.xlu0 %v3813, 64
        %v3828 = vpop.permute.xlu0 %3827
        %3829 = vrot.lane.b32.xlu0 %v3814, 64
        %v3830 = vpop.permute.xlu0 %3829
        %v3847 = vunpack.c.l.b16 %v3743
        %v3848 = vunpack.c.l.b16 %v3744
        %v3849 = vunpack.c.l.b16 %v3745
        %v3850 = vunpack.c.l.b16 %v3746
        %v3851 = vunpack.c.l.b16 %v3747
        %v3852 = vunpack.c.l.b16 %v3748
        %v3853 = vunpack.c.l.b16 %v3749
        %v3854 = vunpack.c.l.b16 %v3750
        %v3855 = vunpack.c.l.b16 %v3751
        %v3856 = vunpack.c.l.b16 %v3752
        %v3857 = vunpack.c.l.b16 %v3753
        %v3858 = vunpack.c.l.b16 %v3754
        %v3859 = vunpack.c.l.b16 %v3755
        %v3860 = vunpack.c.l.b16 %v3756
        %v3861 = vunpack.c.l.b16 %v3757
        %v3862 = vunpack.c.l.b16 %v3758
        %v3863 = vpack.c.b16 %v3848, %v3847
        %v3864 = vpack.c.b16 %v3850, %v3849
        %v3865 = vpack.c.b16 %v3852, %v3851
        %v3866 = vpack.c.b16 %v3854, %v3853
        %v3867 = vpack.c.b16 %v3856, %v3855
        %v3868 = vpack.c.b16 %v3858, %v3857
        %v3869 = vpack.c.b16 %v3860, %v3859
        %v3870 = vpack.c.b16 %v3862, %v3861
        %3871 = vrot.lane.b32.xlu0 %v3863, 64
        %v3872 = vpop.permute.xlu0 %3871
        %3873 = vrot.lane.b32.xlu0 %v3864, 64
        %v3874 = vpop.permute.xlu0 %3873
        %3875 = vrot.lane.b32.xlu0 %v3865, 64
        %v3876 = vpop.permute.xlu0 %3875
        %3877 = vrot.lane.b32.xlu0 %v3866, 64
        %v3878 = vpop.permute.xlu0 %3877
        %3879 = vrot.lane.b32.xlu0 %v3867, 64
        %v3880 = vpop.permute.xlu0 %3879
        %3881 = vrot.lane.b32.xlu0 %v3868, 64
        %v3882 = vpop.permute.xlu0 %3881
        %3883 = vrot.lane.b32.xlu0 %v3869, 64
        %v3884 = vpop.permute.xlu0 %3883
        %3885 = vrot.lane.b32.xlu0 %v3870, 64
        %v3886 = vpop.permute.xlu0 %3885
        %v3888 = vsel %vm3331, %v3816, 0
        %v3891 = vsel %vm3331, %v3818, 0
        %v3894 = vsel %vm3331, %v3820, 0
        %v3897 = vsel %vm3331, %v3822, 0
        %v3900 = vsel %vm3331, %v3824, 0
        %v3903 = vsel %vm3331, %v3826, 0
        %v3906 = vsel %vm3331, %v3828, 0
        %v3909 = vsel %vm3331, %v3830, 0
        %v3912 = vsel %vm3331, %v3872, 0
        %v3915 = vsel %vm3331, %v3874, 0
        %v3918 = vsel %vm3331, %v3876, 0
        %v3921 = vsel %vm3331, %v3878, 0
        %v3924 = vsel %vm3331, %v3880, 0
        %v3927 = vsel %vm3331, %v3882, 0
        %v3930 = vsel %vm3331, %v3884, 0
        %v3933 = vsel %vm3331, %v3886, 0
        %3935 = vmatpush.bf16.xpose.msra.mxu0 %v3933
        %3936 = vmatpush.bf16.xpose.msra.mxu0 %v3930
        %3937 = vmatpush.bf16.xpose.msra.mxu0 %v3927
        %3938 = vmatpush.bf16.xpose.msra.mxu0 %v3924
        %3939 = vmatpush.bf16.xpose.msra.mxu0 %v3921
        %3940 = vmatpush.bf16.xpose.msra.mxu0 %v3918
        %3941 = vmatpush.bf16.xpose.msra.mxu0 %v3915
        %3942 = vmatpush.bf16.xpose.msra.mxu0 %v3912
        %3943 = vmatmul.bf16.gmra.mxu0 %v3888
        %v3944 = vpop.f32.mrf.mxu0
        %v3945 = vadd.f32 0.0, %v3944
        %v3946 = vpop.f32.mrf.mxu0
        %v3947 = vadd.f32 0.0, %v3946
        %3948 = vmatmul.bf16.gmra.mxu0 %v3891
        %v3949 = vpop.f32.mrf.mxu0
        %v3950 = vadd.f32 0.0, %v3949
        %v3951 = vpop.f32.mrf.mxu0
        %v3952 = vadd.f32 0.0, %v3951
        %3953 = vmatmul.bf16.gmra.mxu0 %v3894
        %v3954 = vpop.f32.mrf.mxu0
        %v3955 = vadd.f32 0.0, %v3954
        %v3956 = vpop.f32.mrf.mxu0
        %v3957 = vadd.f32 0.0, %v3956
        %3958 = vmatmul.bf16.gmra.mxu0 %v3897
        %v3959 = vpop.f32.mrf.mxu0
        %v3960 = vadd.f32 0.0, %v3959
        %v3961 = vpop.f32.mrf.mxu0
        %v3962 = vadd.f32 0.0, %v3961
        %3963 = vmatmul.bf16.gmra.mxu0 %v3900
        %v3964 = vpop.f32.mrf.mxu0
        %v3965 = vadd.f32 0.0, %v3964
        %v3966 = vpop.f32.mrf.mxu0
        %v3967 = vadd.f32 0.0, %v3966
        %3968 = vmatmul.bf16.gmra.mxu0 %v3903
        %v3969 = vpop.f32.mrf.mxu0
        %v3970 = vadd.f32 0.0, %v3969
        %v3971 = vpop.f32.mrf.mxu0
        %v3972 = vadd.f32 0.0, %v3971
        %3973 = vmatmul.bf16.gmra.mxu0 %v3906
        %v3974 = vpop.f32.mrf.mxu0
        %v3975 = vadd.f32 0.0, %v3974
        %v3976 = vpop.f32.mrf.mxu0
        %v3977 = vadd.f32 0.0, %v3976
        %3978 = vmatmul.bf16.gmra.mxu0 %v3909
        %v3979 = vpop.f32.mrf.mxu0
        %v3980 = vadd.f32 0.0, %v3979
        %v3981 = vpop.f32.mrf.mxu0
        %v3982 = vadd.f32 0.0, %v3981
        %3983 = vdwg.mxu0
        %v3984 = vsel %vm3187, %v3945, -1e+30
        %v3985 = vsel %vm3188, %v3947, -1e+30
        %v3986 = vsel %vm3189, %v3950, -1e+30
        %v3987 = vsel %vm3190, %v3952, -1e+30
        %v3988 = vsel %vm3191, %v3955, -1e+30
        %v3989 = vsel %vm3192, %v3957, -1e+30
        %v3990 = vsel %vm3193, %v3960, -1e+30
        %v3991 = vsel %vm3194, %v3962, -1e+30
        %v3992 = vsel %vm3195, %v3965, -1e+30
        %v3993 = vsel %vm3196, %v3967, -1e+30
        %v3994 = vsel %vm3197, %v3970, -1e+30
        %v3995 = vsel %vm3198, %v3972, -1e+30
        %v3996 = vsel %vm3199, %v3975, -1e+30
        %v3997 = vsel %vm3200, %v3977, -1e+30
        %v3998 = vsel %vm3201, %v3980, -1e+30
        %v3999 = vsel %vm3202, %v3982, -1e+30
        %4000 = vmax.xlane.f32.xlu0 %v3984
        %v4001 = vpop.xlane.xlu0 %4000
        %4002 = vmax.xlane.f32.xlu0 %v3985
        %v4003 = vpop.xlane.xlu0 %4002
        %4004 = vmax.xlane.f32.xlu0 %v3986
        %v4005 = vpop.xlane.xlu0 %4004
        %4006 = vmax.xlane.f32.xlu0 %v3987
        %v4007 = vpop.xlane.xlu0 %4006
        %4008 = vmax.xlane.f32.xlu0 %v3988
        %v4009 = vpop.xlane.xlu0 %4008
        %4010 = vmax.xlane.f32.xlu0 %v3989
        %v4011 = vpop.xlane.xlu0 %4010
        %4012 = vmax.xlane.f32.xlu0 %v3990
        %v4013 = vpop.xlane.xlu0 %4012
        %4014 = vmax.xlane.f32.xlu0 %v3991
        %v4015 = vpop.xlane.xlu0 %4014
        %4016 = vmax.xlane.f32.xlu0 %v3992
        %v4017 = vpop.xlane.xlu0 %4016
        %4018 = vmax.xlane.f32.xlu0 %v3993
        %v4019 = vpop.xlane.xlu0 %4018
        %4020 = vmax.xlane.f32.xlu0 %v3994
        %v4021 = vpop.xlane.xlu0 %4020
        %4022 = vmax.xlane.f32.xlu0 %v3995
        %v4023 = vpop.xlane.xlu0 %4022
        %4024 = vmax.xlane.f32.xlu0 %v3996
        %v4025 = vpop.xlane.xlu0 %4024
        %4026 = vmax.xlane.f32.xlu0 %v3997
        %v4027 = vpop.xlane.xlu0 %4026
        %4028 = vmax.xlane.f32.xlu0 %v3998
        %v4029 = vpop.xlane.xlu0 %4028
        %4030 = vmax.xlane.f32.xlu0 %v3999
        %v4031 = vpop.xlane.xlu0 %4030
        %v4032 = vsub.f32 %v3984, %v4001
        %v4033 = vsub.f32 %v3985, %v4003
        %v4034 = vsub.f32 %v3986, %v4005
        %v4035 = vsub.f32 %v3987, %v4007
        %v4036 = vsub.f32 %v3988, %v4009
        %v4037 = vsub.f32 %v3989, %v4011
        %v4038 = vsub.f32 %v3990, %v4013
        %v4039 = vsub.f32 %v3991, %v4015
        %v4040 = vsub.f32 %v3992, %v4017
        %v4041 = vsub.f32 %v3993, %v4019
        %v4042 = vsub.f32 %v3994, %v4021
        %v4043 = vsub.f32 %v3995, %v4023
        %v4044 = vsub.f32 %v3996, %v4025
        %v4045 = vsub.f32 %v3997, %v4027
        %v4046 = vsub.f32 %v3998, %v4029
        %v4047 = vsub.f32 %v3999, %v4031
        %v4048 = vmul.f32 %v4032, 1.442695
        %v4049 = vpow.pop %v4048
        %v4050 = vmul.f32 %v4033, 1.442695
        %v4051 = vpow.pop %v4050
        %v4052 = vmul.f32 %v4034, 1.442695
        %v4053 = vpow.pop %v4052
        %v4054 = vmul.f32 %v4035, 1.442695
        %v4055 = vpow.pop %v4054
        %v4056 = vmul.f32 %v4036, 1.442695
        %v4057 = vpow.pop %v4056
        %v4058 = vmul.f32 %v4037, 1.442695
        %v4059 = vpow.pop %v4058
        %v4060 = vmul.f32 %v4038, 1.442695
        %v4061 = vpow.pop %v4060
        %v4062 = vmul.f32 %v4039, 1.442695
        %v4063 = vpow.pop %v4062
        %v4064 = vmul.f32 %v4040, 1.442695
        %v4065 = vpow.pop %v4064
        %v4066 = vmul.f32 %v4041, 1.442695
        %v4067 = vpow.pop %v4066
        %v4068 = vmul.f32 %v4042, 1.442695
        %v4069 = vpow.pop %v4068
        %v4070 = vmul.f32 %v4043, 1.442695
        %v4071 = vpow.pop %v4070
        %v4072 = vmul.f32 %v4044, 1.442695
        %v4073 = vpow.pop %v4072
        %v4074 = vmul.f32 %v4045, 1.442695
        %v4075 = vpow.pop %v4074
        %v4076 = vmul.f32 %v4046, 1.442695
        %v4077 = vpow.pop %v4076
        %v4078 = vmul.f32 %v4047, 1.442695
        %v4079 = vpow.pop %v4078
        %4080 = vadd.xlane.f32.xlu0 %v4049
        %v4081 = vpop.xlane.xlu0 %4080
        %4082 = vadd.xlane.f32.xlu0 %v4051
        %v4083 = vpop.xlane.xlu0 %4082
        %4084 = vadd.xlane.f32.xlu0 %v4053
        %v4085 = vpop.xlane.xlu0 %4084
        %4086 = vadd.xlane.f32.xlu0 %v4055
        %v4087 = vpop.xlane.xlu0 %4086
        %4088 = vadd.xlane.f32.xlu0 %v4057
        %v4089 = vpop.xlane.xlu0 %4088
        %4090 = vadd.xlane.f32.xlu0 %v4059
        %v4091 = vpop.xlane.xlu0 %4090
        %4092 = vadd.xlane.f32.xlu0 %v4061
        %v4093 = vpop.xlane.xlu0 %4092
        %4094 = vadd.xlane.f32.xlu0 %v4063
        %v4095 = vpop.xlane.xlu0 %4094
        %4096 = vadd.xlane.f32.xlu0 %v4065
        %v4097 = vpop.xlane.xlu0 %4096
        %4098 = vadd.xlane.f32.xlu0 %v4067
        %v4099 = vpop.xlane.xlu0 %4098
        %4100 = vadd.xlane.f32.xlu0 %v4069
        %v4101 = vpop.xlane.xlu0 %4100
        %4102 = vadd.xlane.f32.xlu0 %v4071
        %v4103 = vpop.xlane.xlu0 %4102
        %4104 = vadd.xlane.f32.xlu0 %v4073
        %v4105 = vpop.xlane.xlu0 %4104
        %4106 = vadd.xlane.f32.xlu0 %v4075
        %v4107 = vpop.xlane.xlu0 %4106
        %4108 = vadd.xlane.f32.xlu0 %v4077
        %v4109 = vpop.xlane.xlu0 %4108
        %4110 = vadd.xlane.f32.xlu0 %v4079
        %v4111 = vpop.xlane.xlu0 %4110
        %v4112 = vpack.c.bf16 %v4051, %v4049
        %v4113 = vpack.c.bf16 %v4055, %v4053
        %v4114 = vpack.c.bf16 %v4059, %v4057
        %v4115 = vpack.c.bf16 %v4063, %v4061
        %v4116 = vpack.c.bf16 %v4067, %v4065
        %v4117 = vpack.c.bf16 %v4071, %v4069
        %v4118 = vpack.c.bf16 %v4075, %v4073
        %v4119 = vpack.c.bf16 %v4079, %v4077
        %v4136 = vunpack.c.l.b16 %v3759
        %v4137 = vunpack.c.l.b16 %v3760
        %v4138 = vunpack.c.l.b16 %v3761
        %v4139 = vunpack.c.l.b16 %v3762
        %v4140 = vunpack.c.l.b16 %v3763
        %v4141 = vunpack.c.l.b16 %v3764
        %v4142 = vunpack.c.l.b16 %v3765
        %v4143 = vunpack.c.l.b16 %v3766
        %v4144 = vunpack.c.l.b16 %v3767
        %v4145 = vunpack.c.l.b16 %v3768
        %v4146 = vunpack.c.l.b16 %v3769
        %v4147 = vunpack.c.l.b16 %v3770
        %v4148 = vunpack.c.l.b16 %v3771
        %v4149 = vunpack.c.l.b16 %v3772
        %v4150 = vunpack.c.l.b16 %v3773
        %v4151 = vunpack.c.l.b16 %v3774
        %v4152 = vpack.c.b16 %v4137, %v4136
        %v4153 = vpack.c.b16 %v4139, %v4138
        %v4154 = vpack.c.b16 %v4141, %v4140
        %v4155 = vpack.c.b16 %v4143, %v4142
        %v4156 = vpack.c.b16 %v4145, %v4144
        %v4157 = vpack.c.b16 %v4147, %v4146
        %v4158 = vpack.c.b16 %v4149, %v4148
        %v4159 = vpack.c.b16 %v4151, %v4150
        %4160 = vrot.lane.b32.xlu0 %v4152, 64
        %v4161 = vpop.permute.xlu0 %4160
        %4162 = vrot.lane.b32.xlu0 %v4153, 64
        %v4163 = vpop.permute.xlu0 %4162
        %4164 = vrot.lane.b32.xlu0 %v4154, 64
        %v4165 = vpop.permute.xlu0 %4164
        %4166 = vrot.lane.b32.xlu0 %v4155, 64
        %v4167 = vpop.permute.xlu0 %4166
        %4168 = vrot.lane.b32.xlu0 %v4156, 64
        %v4169 = vpop.permute.xlu0 %4168
        %4170 = vrot.lane.b32.xlu0 %v4157, 64
        %v4171 = vpop.permute.xlu0 %4170
        %4172 = vrot.lane.b32.xlu0 %v4158, 64
        %v4173 = vpop.permute.xlu0 %4172
        %4174 = vrot.lane.b32.xlu0 %v4159, 64
        %v4175 = vpop.permute.xlu0 %4174
        %4184 = vmatpush.bf16.msra.mxu0 %v4175
        %4185 = vmatpush.bf16.msra.mxu0 %v4173
        %4186 = vmatpush.bf16.msra.mxu0 %v4171
        %4187 = vmatpush.bf16.msra.mxu0 %v4169
        %4188 = vmatpush.bf16.msra.mxu0 %v4167
        %4189 = vmatpush.bf16.msra.mxu0 %v4165
        %4190 = vmatpush.bf16.msra.mxu0 %v4163
        %4191 = vmatpush.bf16.msra.mxu0 %v4161
        %4192 = vmatmul.bf16.gmra.mxu0 %v4112
        %v4193 = vpop.f32.mrf.mxu0
        %v4194 = vadd.f32 0.0, %v4193
        %v4195 = vpop.f32.mrf.mxu0
        %v4196 = vadd.f32 0.0, %v4195
        %4197 = vmatmul.bf16.gmra.mxu0 %v4113
        %v4198 = vpop.f32.mrf.mxu0
        %v4199 = vadd.f32 0.0, %v4198
        %v4200 = vpop.f32.mrf.mxu0
        %v4201 = vadd.f32 0.0, %v4200
        %4202 = vmatmul.bf16.gmra.mxu0 %v4114
        %v4203 = vpop.f32.mrf.mxu0
        %v4204 = vadd.f32 0.0, %v4203
        %v4205 = vpop.f32.mrf.mxu0
        %v4206 = vadd.f32 0.0, %v4205
        %4207 = vmatmul.bf16.gmra.mxu0 %v4115
        %v4208 = vpop.f32.mrf.mxu0
        %v4209 = vadd.f32 0.0, %v4208
        %v4210 = vpop.f32.mrf.mxu0
        %v4211 = vadd.f32 0.0, %v4210
        %4212 = vmatmul.bf16.gmra.mxu0 %v4116
        %v4213 = vpop.f32.mrf.mxu0
        %v4214 = vadd.f32 0.0, %v4213
        %v4215 = vpop.f32.mrf.mxu0
        %v4216 = vadd.f32 0.0, %v4215
        %4217 = vmatmul.bf16.gmra.mxu0 %v4117
        %v4218 = vpop.f32.mrf.mxu0
        %v4219 = vadd.f32 0.0, %v4218
        %v4220 = vpop.f32.mrf.mxu0
        %v4221 = vadd.f32 0.0, %v4220
        %4222 = vmatmul.bf16.gmra.mxu0 %v4118
        %v4223 = vpop.f32.mrf.mxu0
        %v4224 = vadd.f32 0.0, %v4223
        %v4225 = vpop.f32.mrf.mxu0
        %v4226 = vadd.f32 0.0, %v4225
        %4227 = vmatmul.bf16.gmra.mxu0 %v4119
        %v4228 = vpop.f32.mrf.mxu0
        %v4229 = vadd.f32 0.0, %v4228
        %v4230 = vpop.f32.mrf.mxu0
        %v4231 = vadd.f32 0.0, %v4230
        %4232 = vdwg.mxu0
        %v4233 = vrcp.pop %v4081
        %v4234 = vrcp.pop %v4083
        %v4235 = vrcp.pop %v4085
        %v4236 = vrcp.pop %v4087
        %v4237 = vrcp.pop %v4089
        %v4238 = vrcp.pop %v4091
        %v4239 = vrcp.pop %v4093
        %v4240 = vrcp.pop %v4095
        %v4241 = vrcp.pop %v4097
        %v4242 = vrcp.pop %v4099
        %v4243 = vrcp.pop %v4101
        %v4244 = vrcp.pop %v4103
        %v4245 = vrcp.pop %v4105
        %v4246 = vrcp.pop %v4107
        %v4247 = vrcp.pop %v4109
        %v4248 = vrcp.pop %v4111
        %v4249 = vmul.f32 %v4194, %v4233
        %v4250 = vmul.f32 %v4196, %v4234
        %v4251 = vmul.f32 %v4199, %v4235
        %v4252 = vmul.f32 %v4201, %v4236
        %v4253 = vmul.f32 %v4204, %v4237
        %v4254 = vmul.f32 %v4206, %v4238
        %v4255 = vmul.f32 %v4209, %v4239
        %v4256 = vmul.f32 %v4211, %v4240
        %v4257 = vmul.f32 %v4214, %v4241
        %v4258 = vmul.f32 %v4216, %v4242
        %v4259 = vmul.f32 %v4219, %v4243
        %v4260 = vmul.f32 %v4221, %v4244
        %v4261 = vmul.f32 %v4224, %v4245
        %v4262 = vmul.f32 %v4226, %v4246
        %v4263 = vmul.f32 %v4229, %v4247
        %v4264 = vmul.f32 %v4231, %v4248
        %v4265 = vpack.c.bf16 %v4249, %v4249
        %v4266 = vpack.c.bf16 %v4250, %v4250
        %v4267 = vpack.c.bf16 %v4251, %v4251
        %v4268 = vpack.c.bf16 %v4252, %v4252
        %v4269 = vpack.c.bf16 %v4253, %v4253
        %v4270 = vpack.c.bf16 %v4254, %v4254
        %v4271 = vpack.c.bf16 %v4255, %v4255
        %v4272 = vpack.c.bf16 %v4256, %v4256
        %v4273 = vpack.c.bf16 %v4257, %v4257
        %v4274 = vpack.c.bf16 %v4258, %v4258
        %v4275 = vpack.c.bf16 %v4259, %v4259
        %v4276 = vpack.c.bf16 %v4260, %v4260
        %v4277 = vpack.c.bf16 %v4261, %v4261
        %v4278 = vpack.c.bf16 %v4262, %v4262
        %v4279 = vpack.c.bf16 %v4263, %v4263
        %v4280 = vpack.c.bf16 %v4264, %v4264
        %4297 = vrot.lane.b32.xlu0 %v4265, 64
        %v4298 = vpop.permute.xlu0 %4297
        %4299 = vrot.lane.b32.xlu0 %v4266, 64
        %v4300 = vpop.permute.xlu0 %4299
        %4301 = vrot.lane.b32.xlu0 %v4267, 64
        %v4302 = vpop.permute.xlu0 %4301
        %4303 = vrot.lane.b32.xlu0 %v4268, 64
        %v4304 = vpop.permute.xlu0 %4303
        %4305 = vrot.lane.b32.xlu0 %v4269, 64
        %v4306 = vpop.permute.xlu0 %4305
        %4307 = vrot.lane.b32.xlu0 %v4270, 64
        %v4308 = vpop.permute.xlu0 %4307
        %4309 = vrot.lane.b32.xlu0 %v4271, 64
        %v4310 = vpop.permute.xlu0 %4309
        %4311 = vrot.lane.b32.xlu0 %v4272, 64
        %v4312 = vpop.permute.xlu0 %4311
        %4313 = vrot.lane.b32.xlu0 %v4273, 64
        %v4314 = vpop.permute.xlu0 %4313
        %4315 = vrot.lane.b32.xlu0 %v4274, 64
        %v4316 = vpop.permute.xlu0 %4315
        %4317 = vrot.lane.b32.xlu0 %v4275, 64
        %v4318 = vpop.permute.xlu0 %4317
        %4319 = vrot.lane.b32.xlu0 %v4276, 64
        %v4320 = vpop.permute.xlu0 %4319
        %4321 = vrot.lane.b32.xlu0 %v4277, 64
        %v4322 = vpop.permute.xlu0 %4321
        %4323 = vrot.lane.b32.xlu0 %v4278, 64
        %v4324 = vpop.permute.xlu0 %4323
        %4325 = vrot.lane.b32.xlu0 %v4279, 64
        %v4326 = vpop.permute.xlu0 %4325
        %4327 = vrot.lane.b32.xlu0 %v4280, 64
        %v4328 = vpop.permute.xlu0 %4327
        %vm4345 = vcmask 1043968
        %4346 = vst.msk [vmem:[#allocation3] sm:$0xf] %vm4345, %v4298
        %4347 = vst.msk [vmem:[#allocation3 + $0xc] sm:$0xf] %vm4345, %v4300
        %4348 = vst.msk [vmem:[#allocation3 + $0x18] sm:$0xf] %vm4345, %v4302
        %4349 = vst.msk [vmem:[#allocation3 + $0x24] sm:$0xf] %vm4345, %v4304
        %4350 = vst.msk [vmem:[#allocation3 + $0x30] sm:$0xf] %vm4345, %v4306
        %4351 = vst.msk [vmem:[#allocation3 + $0x3c] sm:$0xf] %vm4345, %v4308
        %4352 = vst.msk [vmem:[#allocation3 + $0x48] sm:$0xf] %vm4345, %v4310
        %4353 = vst.msk [vmem:[#allocation3 + $0x54] sm:$0xf] %vm4345, %v4312
        %4354 = vst.msk [vmem:[#allocation3 + $0x60] sm:$0xf] %vm4345, %v4314
        %4355 = vst.msk [vmem:[#allocation3 + $0x6c] sm:$0xf] %vm4345, %v4316
        %4356 = vst.msk [vmem:[#allocation3 + $0x78] sm:$0xf] %vm4345, %v4318
        %4357 = vst.msk [vmem:[#allocation3 + $0x84] sm:$0xf] %vm4345, %v4320
        %4358 = vst.msk [vmem:[#allocation3 + $0x90] sm:$0xf] %vm4345, %v4322
        %4359 = vst.msk [vmem:[#allocation3 + $0x9c] sm:$0xf] %vm4345, %v4324
        %4360 = vst.msk [vmem:[#allocation3 + $0xa8] sm:$0xf] %vm4345, %v4326
        %4361 = vst.msk [vmem:[#allocation3 + $0xb4] sm:$0xf] %vm4345, %v4328
        %v4362 = vld [vmem:[#allocation2 + $0x4] sm:$0xf]
        %v4363 = vld [vmem:[#allocation2 + $0x28] sm:$0xf]
        %v4364 = vld [vmem:[#allocation2 + $0x4c] sm:$0xf]
        %v4365 = vld [vmem:[#allocation2 + $0x70] sm:$0xf]
        %v4366 = vld [vmem:[#allocation2 + $0x94] sm:$0xf]
        %v4367 = vld [vmem:[#allocation2 + $0xb8] sm:$0xf]
        %v4368 = vld [vmem:[#allocation2 + $0xdc] sm:$0xf]
        %v4369 = vld [vmem:[#allocation2 + $0x100] sm:$0xf]
        %v4370 = vld [vmem:[#allocation2 + $0x124] sm:$0xf]
        %v4371 = vld [vmem:[#allocation2 + $0x148] sm:$0xf]
        %v4372 = vld [vmem:[#allocation2 + $0x16c] sm:$0xf]
        %v4373 = vld [vmem:[#allocation2 + $0x190] sm:$0xf]
        %v4374 = vld [vmem:[#allocation2 + $0x1b4] sm:$0xf]
        %v4375 = vld [vmem:[#allocation2 + $0x1d8] sm:$0xf]
        %v4376 = vld [vmem:[#allocation2 + $0x1fc] sm:$0xf]
        %v4377 = vld [vmem:[#allocation2 + $0x220] sm:$0xf]
        %v4378 = vld [vmem:[#allocation2 + $0x10] sm:$0xf]
        %v4379 = vld [vmem:[#allocation2 + $0x34] sm:$0xf]
        %v4380 = vld [vmem:[#allocation2 + $0x58] sm:$0xf]
        %v4381 = vld [vmem:[#allocation2 + $0x7c] sm:$0xf]
        %v4382 = vld [vmem:[#allocation2 + $0xa0] sm:$0xf]
        %v4383 = vld [vmem:[#allocation2 + $0xc4] sm:$0xf]
        %v4384 = vld [vmem:[#allocation2 + $0xe8] sm:$0xf]
        %v4385 = vld [vmem:[#allocation2 + $0x10c] sm:$0xf]
        %v4386 = vld [vmem:[#allocation2 + $0x130] sm:$0xf]
        %v4387 = vld [vmem:[#allocation2 + $0x154] sm:$0xf]
        %v4388 = vld [vmem:[#allocation2 + $0x178] sm:$0xf]
        %v4389 = vld [vmem:[#allocation2 + $0x19c] sm:$0xf]
        %v4390 = vld [vmem:[#allocation2 + $0x1c0] sm:$0xf]
        %v4391 = vld [vmem:[#allocation2 + $0x1e4] sm:$0xf]
        %v4392 = vld [vmem:[#allocation2 + $0x208] sm:$0xf]
        %v4393 = vld [vmem:[#allocation2 + $0x22c] sm:$0xf]
        %v4394 = vld [vmem:[#allocation2 + $0x1c] sm:$0xf]
        %v4395 = vld [vmem:[#allocation2 + $0x40] sm:$0xf]
        %v4396 = vld [vmem:[#allocation2 + $0x64] sm:$0xf]
        %v4397 = vld [vmem:[#allocation2 + $0x88] sm:$0xf]
        %v4398 = vld [vmem:[#allocation2 + $0xac] sm:$0xf]
        %v4399 = vld [vmem:[#allocation2 + $0xd0] sm:$0xf]
        %v4400 = vld [vmem:[#allocation2 + $0xf4] sm:$0xf]
        %v4401 = vld [vmem:[#allocation2 + $0x118] sm:$0xf]
        %v4402 = vld [vmem:[#allocation2 + $0x13c] sm:$0xf]
        %v4403 = vld [vmem:[#allocation2 + $0x160] sm:$0xf]
        %v4404 = vld [vmem:[#allocation2 + $0x184] sm:$0xf]
        %v4405 = vld [vmem:[#allocation2 + $0x1a8] sm:$0xf]
        %v4406 = vld [vmem:[#allocation2 + $0x1cc] sm:$0xf]
        %v4407 = vld [vmem:[#allocation2 + $0x1f0] sm:$0xf]
        %v4408 = vld [vmem:[#allocation2 + $0x214] sm:$0xf]
        %v4409 = vld [vmem:[#allocation2 + $0x238] sm:$0xf]
        %v4426 = vunpack.c.l.b16 %v4362
        %v4427 = vunpack.c.l.b16 %v4363
        %v4428 = vunpack.c.l.b16 %v4364
        %v4429 = vunpack.c.l.b16 %v4365
        %v4430 = vunpack.c.l.b16 %v4366
        %v4431 = vunpack.c.l.b16 %v4367
        %v4432 = vunpack.c.l.b16 %v4368
        %v4433 = vunpack.c.l.b16 %v4369
        %v4434 = vunpack.c.l.b16 %v4370
        %v4435 = vunpack.c.l.b16 %v4371
        %v4436 = vunpack.c.l.b16 %v4372
        %v4437 = vunpack.c.l.b16 %v4373
        %v4438 = vunpack.c.l.b16 %v4374
        %v4439 = vunpack.c.l.b16 %v4375
        %v4440 = vunpack.c.l.b16 %v4376
        %v4441 = vunpack.c.l.b16 %v4377
        %v4442 = vpack.c.b16 %v4427, %v4426
        %v4443 = vpack.c.b16 %v4429, %v4428
        %v4444 = vpack.c.b16 %v4431, %v4430
        %v4445 = vpack.c.b16 %v4433, %v4432
        %v4446 = vpack.c.b16 %v4435, %v4434
        %v4447 = vpack.c.b16 %v4437, %v4436
        %v4448 = vpack.c.b16 %v4439, %v4438
        %v4449 = vpack.c.b16 %v4441, %v4440
        %v4466 = vunpack.c.l.b16 %v4378
        %v4467 = vunpack.c.l.b16 %v4379
        %v4468 = vunpack.c.l.b16 %v4380
        %v4469 = vunpack.c.l.b16 %v4381
        %v4470 = vunpack.c.l.b16 %v4382
        %v4471 = vunpack.c.l.b16 %v4383
        %v4472 = vunpack.c.l.b16 %v4384
        %v4473 = vunpack.c.l.b16 %v4385
        %v4474 = vunpack.c.l.b16 %v4386
        %v4475 = vunpack.c.l.b16 %v4387
        %v4476 = vunpack.c.l.b16 %v4388
        %v4477 = vunpack.c.l.b16 %v4389
        %v4478 = vunpack.c.l.b16 %v4390
        %v4479 = vunpack.c.l.b16 %v4391
        %v4480 = vunpack.c.l.b16 %v4392
        %v4481 = vunpack.c.l.b16 %v4393
        %v4482 = vpack.c.b16 %v4467, %v4466
        %v4483 = vpack.c.b16 %v4469, %v4468
        %v4484 = vpack.c.b16 %v4471, %v4470
        %v4485 = vpack.c.b16 %v4473, %v4472
        %v4486 = vpack.c.b16 %v4475, %v4474
        %v4487 = vpack.c.b16 %v4477, %v4476
        %v4488 = vpack.c.b16 %v4479, %v4478
        %v4489 = vpack.c.b16 %v4481, %v4480
        %v4491 = vsel %vm3331, %v4442, 0
        %v4494 = vsel %vm3331, %v4443, 0
        %v4497 = vsel %vm3331, %v4444, 0
        %v4500 = vsel %vm3331, %v4445, 0
        %v4503 = vsel %vm3331, %v4446, 0
        %v4506 = vsel %vm3331, %v4447, 0
        %v4509 = vsel %vm3331, %v4448, 0
        %v4512 = vsel %vm3331, %v4449, 0
        %v4515 = vsel %vm3331, %v4482, 0
        %v4518 = vsel %vm3331, %v4483, 0
        %v4521 = vsel %vm3331, %v4484, 0
        %v4524 = vsel %vm3331, %v4485, 0
        %v4527 = vsel %vm3331, %v4486, 0
        %v4530 = vsel %vm3331, %v4487, 0
        %v4533 = vsel %vm3331, %v4488, 0
        %v4536 = vsel %vm3331, %v4489, 0
        %4538 = vmatpush.bf16.xpose.msra.mxu0 %v4536
        %4539 = vmatpush.bf16.xpose.msra.mxu0 %v4533
        %4540 = vmatpush.bf16.xpose.msra.mxu0 %v4530
        %4541 = vmatpush.bf16.xpose.msra.mxu0 %v4527
        %4542 = vmatpush.bf16.xpose.msra.mxu0 %v4524
        %4543 = vmatpush.bf16.xpose.msra.mxu0 %v4521
        %4544 = vmatpush.bf16.xpose.msra.mxu0 %v4518
        %4545 = vmatpush.bf16.xpose.msra.mxu0 %v4515
        %4546 = vmatmul.bf16.gmra.mxu0 %v4491
        %v4547 = vpop.f32.mrf.mxu0
        %v4548 = vadd.f32 0.0, %v4547
        %v4549 = vpop.f32.mrf.mxu0
        %v4550 = vadd.f32 0.0, %v4549
        %4551 = vmatmul.bf16.gmra.mxu0 %v4494
        %v4552 = vpop.f32.mrf.mxu0
        %v4553 = vadd.f32 0.0, %v4552
        %v4554 = vpop.f32.mrf.mxu0
        %v4555 = vadd.f32 0.0, %v4554
        %4556 = vmatmul.bf16.gmra.mxu0 %v4497
        %v4557 = vpop.f32.mrf.mxu0
        %v4558 = vadd.f32 0.0, %v4557
        %v4559 = vpop.f32.mrf.mxu0
        %v4560 = vadd.f32 0.0, %v4559
        %4561 = vmatmul.bf16.gmra.mxu0 %v4500
        %v4562 = vpop.f32.mrf.mxu0
        %v4563 = vadd.f32 0.0, %v4562
        %v4564 = vpop.f32.mrf.mxu0
        %v4565 = vadd.f32 0.0, %v4564
        %4566 = vmatmul.bf16.gmra.mxu0 %v4503
        %v4567 = vpop.f32.mrf.mxu0
        %v4568 = vadd.f32 0.0, %v4567
        %v4569 = vpop.f32.mrf.mxu0
        %v4570 = vadd.f32 0.0, %v4569
        %4571 = vmatmul.bf16.gmra.mxu0 %v4506
        %v4572 = vpop.f32.mrf.mxu0
        %v4573 = vadd.f32 0.0, %v4572
        %v4574 = vpop.f32.mrf.mxu0
        %v4575 = vadd.f32 0.0, %v4574
        %4576 = vmatmul.bf16.gmra.mxu0 %v4509
        %v4577 = vpop.f32.mrf.mxu0
        %v4578 = vadd.f32 0.0, %v4577
        %v4579 = vpop.f32.mrf.mxu0
        %v4580 = vadd.f32 0.0, %v4579
        %4581 = vmatmul.bf16.gmra.mxu0 %v4512
        %v4582 = vpop.f32.mrf.mxu0
        %v4583 = vadd.f32 0.0, %v4582
        %v4584 = vpop.f32.mrf.mxu0
        %v4585 = vadd.f32 0.0, %v4584
        %4586 = vdwg.mxu0
        %v4587 = vsel %vm3187, %v4548, -1e+30
        %v4588 = vsel %vm3188, %v4550, -1e+30
        %v4589 = vsel %vm3189, %v4553, -1e+30
        %v4590 = vsel %vm3190, %v4555, -1e+30
        %v4591 = vsel %vm3191, %v4558, -1e+30
        %v4592 = vsel %vm3192, %v4560, -1e+30
        %v4593 = vsel %vm3193, %v4563, -1e+30
        %v4594 = vsel %vm3194, %v4565, -1e+30
        %v4595 = vsel %vm3195, %v4568, -1e+30
        %v4596 = vsel %vm3196, %v4570, -1e+30
        %v4597 = vsel %vm3197, %v4573, -1e+30
        %v4598 = vsel %vm3198, %v4575, -1e+30
        %v4599 = vsel %vm3199, %v4578, -1e+30
        %v4600 = vsel %vm3200, %v4580, -1e+30
        %v4601 = vsel %vm3201, %v4583, -1e+30
        %v4602 = vsel %vm3202, %v4585, -1e+30
        %4603 = vmax.xlane.f32.xlu0 %v4587
        %v4604 = vpop.xlane.xlu0 %4603
        %4605 = vmax.xlane.f32.xlu0 %v4588
        %v4606 = vpop.xlane.xlu0 %4605
        %4607 = vmax.xlane.f32.xlu0 %v4589
        %v4608 = vpop.xlane.xlu0 %4607
        %4609 = vmax.xlane.f32.xlu0 %v4590
        %v4610 = vpop.xlane.xlu0 %4609
        %4611 = vmax.xlane.f32.xlu0 %v4591
        %v4612 = vpop.xlane.xlu0 %4611
        %4613 = vmax.xlane.f32.xlu0 %v4592
        %v4614 = vpop.xlane.xlu0 %4613
        %4615 = vmax.xlane.f32.xlu0 %v4593
        %v4616 = vpop.xlane.xlu0 %4615
        %4617 = vmax.xlane.f32.xlu0 %v4594
        %v4618 = vpop.xlane.xlu0 %4617
        %4619 = vmax.xlane.f32.xlu0 %v4595
        %v4620 = vpop.xlane.xlu0 %4619
        %4621 = vmax.xlane.f32.xlu0 %v4596
        %v4622 = vpop.xlane.xlu0 %4621
        %4623 = vmax.xlane.f32.xlu0 %v4597
        %v4624 = vpop.xlane.xlu0 %4623
        %4625 = vmax.xlane.f32.xlu0 %v4598
        %v4626 = vpop.xlane.xlu0 %4625
        %4627 = vmax.xlane.f32.xlu0 %v4599
        %v4628 = vpop.xlane.xlu0 %4627
        %4629 = vmax.xlane.f32.xlu0 %v4600
        %v4630 = vpop.xlane.xlu0 %4629
        %4631 = vmax.xlane.f32.xlu0 %v4601
        %v4632 = vpop.xlane.xlu0 %4631
        %4633 = vmax.xlane.f32.xlu0 %v4602
        %v4634 = vpop.xlane.xlu0 %4633
        %v4635 = vsub.f32 %v4587, %v4604
        %v4636 = vsub.f32 %v4588, %v4606
        %v4637 = vsub.f32 %v4589, %v4608
        %v4638 = vsub.f32 %v4590, %v4610
        %v4639 = vsub.f32 %v4591, %v4612
        %v4640 = vsub.f32 %v4592, %v4614
        %v4641 = vsub.f32 %v4593, %v4616
        %v4642 = vsub.f32 %v4594, %v4618
        %v4643 = vsub.f32 %v4595, %v4620
        %v4644 = vsub.f32 %v4596, %v4622
        %v4645 = vsub.f32 %v4597, %v4624
        %v4646 = vsub.f32 %v4598, %v4626
        %v4647 = vsub.f32 %v4599, %v4628
        %v4648 = vsub.f32 %v4600, %v4630
        %v4649 = vsub.f32 %v4601, %v4632
        %v4650 = vsub.f32 %v4602, %v4634
        %v4651 = vmul.f32 %v4635, 1.442695
        %v4652 = vpow.pop %v4651
        %v4653 = vmul.f32 %v4636, 1.442695
        %v4654 = vpow.pop %v4653
        %v4655 = vmul.f32 %v4637, 1.442695
        %v4656 = vpow.pop %v4655
        %v4657 = vmul.f32 %v4638, 1.442695
        %v4658 = vpow.pop %v4657
        %v4659 = vmul.f32 %v4639, 1.442695
        %v4660 = vpow.pop %v4659
        %v4661 = vmul.f32 %v4640, 1.442695
        %v4662 = vpow.pop %v4661
        %v4663 = vmul.f32 %v4641, 1.442695
        %v4664 = vpow.pop %v4663
        %v4665 = vmul.f32 %v4642, 1.442695
        %v4666 = vpow.pop %v4665
        %v4667 = vmul.f32 %v4643, 1.442695
        %v4668 = vpow.pop %v4667
        %v4669 = vmul.f32 %v4644, 1.442695
        %v4670 = vpow.pop %v4669
        %v4671 = vmul.f32 %v4645, 1.442695
        %v4672 = vpow.pop %v4671
        %v4673 = vmul.f32 %v4646, 1.442695
        %v4674 = vpow.pop %v4673
        %v4675 = vmul.f32 %v4647, 1.442695
        %v4676 = vpow.pop %v4675
        %v4677 = vmul.f32 %v4648, 1.442695
        %v4678 = vpow.pop %v4677
        %v4679 = vmul.f32 %v4649, 1.442695
        %v4680 = vpow.pop %v4679
        %v4681 = vmul.f32 %v4650, 1.442695
        %v4682 = vpow.pop %v4681
        %4683 = vadd.xlane.f32.xlu0 %v4652
        %v4684 = vpop.xlane.xlu0 %4683
        %4685 = vadd.xlane.f32.xlu0 %v4654
        %v4686 = vpop.xlane.xlu0 %4685
        %4687 = vadd.xlane.f32.xlu0 %v4656
        %v4688 = vpop.xlane.xlu0 %4687
        %4689 = vadd.xlane.f32.xlu0 %v4658
        %v4690 = vpop.xlane.xlu0 %4689
        %4691 = vadd.xlane.f32.xlu0 %v4660
        %v4692 = vpop.xlane.xlu0 %4691
        %4693 = vadd.xlane.f32.xlu0 %v4662
        %v4694 = vpop.xlane.xlu0 %4693
        %4695 = vadd.xlane.f32.xlu0 %v4664
        %v4696 = vpop.xlane.xlu0 %4695
        %4697 = vadd.xlane.f32.xlu0 %v4666
        %v4698 = vpop.xlane.xlu0 %4697
        %4699 = vadd.xlane.f32.xlu0 %v4668
        %v4700 = vpop.xlane.xlu0 %4699
        %4701 = vadd.xlane.f32.xlu0 %v4670
        %v4702 = vpop.xlane.xlu0 %4701
        %4703 = vadd.xlane.f32.xlu0 %v4672
        %v4704 = vpop.xlane.xlu0 %4703
        %4705 = vadd.xlane.f32.xlu0 %v4674
        %v4706 = vpop.xlane.xlu0 %4705
        %4707 = vadd.xlane.f32.xlu0 %v4676
        %v4708 = vpop.xlane.xlu0 %4707
        %4709 = vadd.xlane.f32.xlu0 %v4678
        %v4710 = vpop.xlane.xlu0 %4709
        %4711 = vadd.xlane.f32.xlu0 %v4680
        %v4712 = vpop.xlane.xlu0 %4711
        %4713 = vadd.xlane.f32.xlu0 %v4682
        %v4714 = vpop.xlane.xlu0 %4713
        %v4715 = vpack.c.bf16 %v4654, %v4652
        %v4716 = vpack.c.bf16 %v4658, %v4656
        %v4717 = vpack.c.bf16 %v4662, %v4660
        %v4718 = vpack.c.bf16 %v4666, %v4664
        %v4719 = vpack.c.bf16 %v4670, %v4668
        %v4720 = vpack.c.bf16 %v4674, %v4672
        %v4721 = vpack.c.bf16 %v4678, %v4676
        %v4722 = vpack.c.bf16 %v4682, %v4680
        %v4739 = vunpack.c.l.b16 %v4394
        %v4740 = vunpack.c.l.b16 %v4395
        %v4741 = vunpack.c.l.b16 %v4396
        %v4742 = vunpack.c.l.b16 %v4397
        %v4743 = vunpack.c.l.b16 %v4398
        %v4744 = vunpack.c.l.b16 %v4399
        %v4745 = vunpack.c.l.b16 %v4400
        %v4746 = vunpack.c.l.b16 %v4401
        %v4747 = vunpack.c.l.b16 %v4402
        %v4748 = vunpack.c.l.b16 %v4403
        %v4749 = vunpack.c.l.b16 %v4404
        %v4750 = vunpack.c.l.b16 %v4405
        %v4751 = vunpack.c.l.b16 %v4406
        %v4752 = vunpack.c.l.b16 %v4407
        %v4753 = vunpack.c.l.b16 %v4408
        %v4754 = vunpack.c.l.b16 %v4409
        %v4755 = vpack.c.b16 %v4740, %v4739
        %v4756 = vpack.c.b16 %v4742, %v4741
        %v4757 = vpack.c.b16 %v4744, %v4743
        %v4758 = vpack.c.b16 %v4746, %v4745
        %v4759 = vpack.c.b16 %v4748, %v4747
        %v4760 = vpack.c.b16 %v4750, %v4749
        %v4761 = vpack.c.b16 %v4752, %v4751
        %v4762 = vpack.c.b16 %v4754, %v4753
        %4771 = vmatpush.bf16.msra.mxu0 %v4762
        %4772 = vmatpush.bf16.msra.mxu0 %v4761
        %4773 = vmatpush.bf16.msra.mxu0 %v4760
        %4774 = vmatpush.bf16.msra.mxu0 %v4759
        %4775 = vmatpush.bf16.msra.mxu0 %v4758
        %4776 = vmatpush.bf16.msra.mxu0 %v4757
        %4777 = vmatpush.bf16.msra.mxu0 %v4756
        %4778 = vmatpush.bf16.msra.mxu0 %v4755
        %4779 = vmatmul.bf16.gmra.mxu0 %v4715
        %v4780 = vpop.f32.mrf.mxu0
        %v4781 = vadd.f32 0.0, %v4780
        %v4782 = vpop.f32.mrf.mxu0
        %v4783 = vadd.f32 0.0, %v4782
        %4784 = vmatmul.bf16.gmra.mxu0 %v4716
        %v4785 = vpop.f32.mrf.mxu0
        %v4786 = vadd.f32 0.0, %v4785
        %v4787 = vpop.f32.mrf.mxu0
        %v4788 = vadd.f32 0.0, %v4787
        %4789 = vmatmul.bf16.gmra.mxu0 %v4717
        %v4790 = vpop.f32.mrf.mxu0
        %v4791 = vadd.f32 0.0, %v4790
        %v4792 = vpop.f32.mrf.mxu0
        %v4793 = vadd.f32 0.0, %v4792
        %4794 = vmatmul.bf16.gmra.mxu0 %v4718
        %v4795 = vpop.f32.mrf.mxu0
        %v4796 = vadd.f32 0.0, %v4795
        %v4797 = vpop.f32.mrf.mxu0
        %v4798 = vadd.f32 0.0, %v4797
        %4799 = vmatmul.bf16.gmra.mxu0 %v4719
        %v4800 = vpop.f32.mrf.mxu0
        %v4801 = vadd.f32 0.0, %v4800
        %v4802 = vpop.f32.mrf.mxu0
        %v4803 = vadd.f32 0.0, %v4802
        %4804 = vmatmul.bf16.gmra.mxu0 %v4720
        %v4805 = vpop.f32.mrf.mxu0
        %v4806 = vadd.f32 0.0, %v4805
        %v4807 = vpop.f32.mrf.mxu0
        %v4808 = vadd.f32 0.0, %v4807
        %4809 = vmatmul.bf16.gmra.mxu0 %v4721
        %v4810 = vpop.f32.mrf.mxu0
        %v4811 = vadd.f32 0.0, %v4810
        %v4812 = vpop.f32.mrf.mxu0
        %v4813 = vadd.f32 0.0, %v4812
        %4814 = vmatmul.bf16.gmra.mxu0 %v4722
        %v4815 = vpop.f32.mrf.mxu0
        %v4816 = vadd.f32 0.0, %v4815
        %v4817 = vpop.f32.mrf.mxu0
        %v4818 = vadd.f32 0.0, %v4817
        %4819 = vdwg.mxu0
        %v4820 = vrcp.pop %v4684
        %v4821 = vrcp.pop %v4686
        %v4822 = vrcp.pop %v4688
        %v4823 = vrcp.pop %v4690
        %v4824 = vrcp.pop %v4692
        %v4825 = vrcp.pop %v4694
        %v4826 = vrcp.pop %v4696
        %v4827 = vrcp.pop %v4698
        %v4828 = vrcp.pop %v4700
        %v4829 = vrcp.pop %v4702
        %v4830 = vrcp.pop %v4704
        %v4831 = vrcp.pop %v4706
        %v4832 = vrcp.pop %v4708
        %v4833 = vrcp.pop %v4710
        %v4834 = vrcp.pop %v4712
        %v4835 = vrcp.pop %v4714
        %v4836 = vmul.f32 %v4781, %v4820
        %v4837 = vmul.f32 %v4783, %v4821
        %v4838 = vmul.f32 %v4786, %v4822
        %v4839 = vmul.f32 %v4788, %v4823
        %v4840 = vmul.f32 %v4791, %v4824
        %v4841 = vmul.f32 %v4793, %v4825
        %v4842 = vmul.f32 %v4796, %v4826
        %v4843 = vmul.f32 %v4798, %v4827
        %v4844 = vmul.f32 %v4801, %v4828
        %v4845 = vmul.f32 %v4803, %v4829
        %v4846 = vmul.f32 %v4806, %v4830
        %v4847 = vmul.f32 %v4808, %v4831
        %v4848 = vmul.f32 %v4811, %v4832
        %v4849 = vmul.f32 %v4813, %v4833
        %v4850 = vmul.f32 %v4816, %v4834
        %v4851 = vmul.f32 %v4818, %v4835
        %v4852 = vpack.c.bf16 %v4836, %v4836
        %v4853 = vpack.c.bf16 %v4837, %v4837
        %v4854 = vpack.c.bf16 %v4838, %v4838
        %v4855 = vpack.c.bf16 %v4839, %v4839
        %v4856 = vpack.c.bf16 %v4840, %v4840
        %v4857 = vpack.c.bf16 %v4841, %v4841
        %v4858 = vpack.c.bf16 %v4842, %v4842
        %v4859 = vpack.c.bf16 %v4843, %v4843
        %v4860 = vpack.c.bf16 %v4844, %v4844
        %v4861 = vpack.c.bf16 %v4845, %v4845
        %v4862 = vpack.c.bf16 %v4846, %v4846
        %v4863 = vpack.c.bf16 %v4847, %v4847
        %v4864 = vpack.c.bf16 %v4848, %v4848
        %v4865 = vpack.c.bf16 %v4849, %v4849
        %v4866 = vpack.c.bf16 %v4850, %v4850
        %v4867 = vpack.c.bf16 %v4851, %v4851
        %4868 = vst.msk [vmem:[#allocation3 + $0x4] sm:$0xf] %vm3710, %v4852
        %4869 = vst.msk [vmem:[#allocation3 + $0x10] sm:$0xf] %vm3710, %v4853
        %4870 = vst.msk [vmem:[#allocation3 + $0x1c] sm:$0xf] %vm3710, %v4854
        %4871 = vst.msk [vmem:[#allocation3 + $0x28] sm:$0xf] %vm3710, %v4855
        %4872 = vst.msk [vmem:[#allocation3 + $0x34] sm:$0xf] %vm3710, %v4856
        %4873 = vst.msk [vmem:[#allocation3 + $0x40] sm:$0xf] %vm3710, %v4857
        %4874 = vst.msk [vmem:[#allocation3 + $0x4c] sm:$0xf] %vm3710, %v4858
        %4875 = vst.msk [vmem:[#allocation3 + $0x58] sm:$0xf] %vm3710, %v4859
        %4876 = vst.msk [vmem:[#allocation3 + $0x64] sm:$0xf] %vm3710, %v4860
        %4877 = vst.msk [vmem:[#allocation3 + $0x70] sm:$0xf] %vm3710, %v4861
        %4878 = vst.msk [vmem:[#allocation3 + $0x7c] sm:$0xf] %vm3710, %v4862
        %4879 = vst.msk [vmem:[#allocation3 + $0x88] sm:$0xf] %vm3710, %v4863
        %4880 = vst.msk [vmem:[#allocation3 + $0x94] sm:$0xf] %vm3710, %v4864
        %4881 = vst.msk [vmem:[#allocation3 + $0xa0] sm:$0xf] %vm3710, %v4865
        %4882 = vst.msk [vmem:[#allocation3 + $0xac] sm:$0xf] %vm3710, %v4866
        %4883 = vst.msk [vmem:[#allocation3 + $0xb8] sm:$0xf] %vm3710, %v4867
        %v4884 = vld [vmem:[#allocation2 + $0x4] sm:$0xf]
        %v4885 = vld [vmem:[#allocation2 + $0x28] sm:$0xf]
        %v4886 = vld [vmem:[#allocation2 + $0x4c] sm:$0xf]
        %v4887 = vld [vmem:[#allocation2 + $0x70] sm:$0xf]
        %v4888 = vld [vmem:[#allocation2 + $0x94] sm:$0xf]
        %v4889 = vld [vmem:[#allocation2 + $0xb8] sm:$0xf]
        %v4890 = vld [vmem:[#allocation2 + $0xdc] sm:$0xf]
        %v4891 = vld [vmem:[#allocation2 + $0x100] sm:$0xf]
        %v4892 = vld [vmem:[#allocation2 + $0x124] sm:$0xf]
        %v4893 = vld [vmem:[#allocation2 + $0x148] sm:$0xf]
        %v4894 = vld [vmem:[#allocation2 + $0x16c] sm:$0xf]
        %v4895 = vld [vmem:[#allocation2 + $0x190] sm:$0xf]
        %v4896 = vld [vmem:[#allocation2 + $0x1b4] sm:$0xf]
        %v4897 = vld [vmem:[#allocation2 + $0x1d8] sm:$0xf]
        %v4898 = vld [vmem:[#allocation2 + $0x1fc] sm:$0xf]
        %v4899 = vld [vmem:[#allocation2 + $0x220] sm:$0xf]
        %v4900 = vld [vmem:[#allocation2 + $0x10] sm:$0xf]
        %v4901 = vld [vmem:[#allocation2 + $0x34] sm:$0xf]
        %v4902 = vld [vmem:[#allocation2 + $0x58] sm:$0xf]
        %v4903 = vld [vmem:[#allocation2 + $0x7c] sm:$0xf]
        %v4904 = vld [vmem:[#allocation2 + $0xa0] sm:$0xf]
        %v4905 = vld [vmem:[#allocation2 + $0xc4] sm:$0xf]
        %v4906 = vld [vmem:[#allocation2 + $0xe8] sm:$0xf]
        %v4907 = vld [vmem:[#allocation2 + $0x10c] sm:$0xf]
        %v4908 = vld [vmem:[#allocation2 + $0x130] sm:$0xf]
        %v4909 = vld [vmem:[#allocation2 + $0x154] sm:$0xf]
        %v4910 = vld [vmem:[#allocation2 + $0x178] sm:$0xf]
        %v4911 = vld [vmem:[#allocation2 + $0x19c] sm:$0xf]
        %v4912 = vld [vmem:[#allocation2 + $0x1c0] sm:$0xf]
        %v4913 = vld [vmem:[#allocation2 + $0x1e4] sm:$0xf]
        %v4914 = vld [vmem:[#allocation2 + $0x208] sm:$0xf]
        %v4915 = vld [vmem:[#allocation2 + $0x22c] sm:$0xf]
        %v4916 = vld [vmem:[#allocation2 + $0x1c] sm:$0xf]
        %v4917 = vld [vmem:[#allocation2 + $0x40] sm:$0xf]
        %v4918 = vld [vmem:[#allocation2 + $0x64] sm:$0xf]
        %v4919 = vld [vmem:[#allocation2 + $0x88] sm:$0xf]
        %v4920 = vld [vmem:[#allocation2 + $0xac] sm:$0xf]
        %v4921 = vld [vmem:[#allocation2 + $0xd0] sm:$0xf]
        %v4922 = vld [vmem:[#allocation2 + $0xf4] sm:$0xf]
        %v4923 = vld [vmem:[#allocation2 + $0x118] sm:$0xf]
        %v4924 = vld [vmem:[#allocation2 + $0x13c] sm:$0xf]
        %v4925 = vld [vmem:[#allocation2 + $0x160] sm:$0xf]
        %v4926 = vld [vmem:[#allocation2 + $0x184] sm:$0xf]
        %v4927 = vld [vmem:[#allocation2 + $0x1a8] sm:$0xf]
        %v4928 = vld [vmem:[#allocation2 + $0x1cc] sm:$0xf]
        %v4929 = vld [vmem:[#allocation2 + $0x1f0] sm:$0xf]
        %v4930 = vld [vmem:[#allocation2 + $0x214] sm:$0xf]
        %v4931 = vld [vmem:[#allocation2 + $0x238] sm:$0xf]
        %v4948 = vunpack.c.l.b16 %v4884
        %v4949 = vunpack.c.l.b16 %v4885
        %v4950 = vunpack.c.l.b16 %v4886
        %v4951 = vunpack.c.l.b16 %v4887
        %v4952 = vunpack.c.l.b16 %v4888
        %v4953 = vunpack.c.l.b16 %v4889
        %v4954 = vunpack.c.l.b16 %v4890
        %v4955 = vunpack.c.l.b16 %v4891
        %v4956 = vunpack.c.l.b16 %v4892
        %v4957 = vunpack.c.l.b16 %v4893
        %v4958 = vunpack.c.l.b16 %v4894
        %v4959 = vunpack.c.l.b16 %v4895
        %v4960 = vunpack.c.l.b16 %v4896
        %v4961 = vunpack.c.l.b16 %v4897
        %v4962 = vunpack.c.l.b16 %v4898
        %v4963 = vunpack.c.l.b16 %v4899
        %v4964 = vpack.c.b16 %v4949, %v4948
        %v4965 = vpack.c.b16 %v4951, %v4950
        %v4966 = vpack.c.b16 %v4953, %v4952
        %v4967 = vpack.c.b16 %v4955, %v4954
        %v4968 = vpack.c.b16 %v4957, %v4956
        %v4969 = vpack.c.b16 %v4959, %v4958
        %v4970 = vpack.c.b16 %v4961, %v4960
        %v4971 = vpack.c.b16 %v4963, %v4962
        %4972 = vrot.lane.b32.xlu0 %v4964, 64
        %v4973 = vpop.permute.xlu0 %4972
        %4974 = vrot.lane.b32.xlu0 %v4965, 64
        %v4975 = vpop.permute.xlu0 %4974
        %4976 = vrot.lane.b32.xlu0 %v4966, 64
        %v4977 = vpop.permute.xlu0 %4976
        %4978 = vrot.lane.b32.xlu0 %v4967, 64
        %v4979 = vpop.permute.xlu0 %4978
        %4980 = vrot.lane.b32.xlu0 %v4968, 64
        %v4981 = vpop.permute.xlu0 %4980
        %4982 = vrot.lane.b32.xlu0 %v4969, 64
        %v4983 = vpop.permute.xlu0 %4982
        %4984 = vrot.lane.b32.xlu0 %v4970, 64
        %v4985 = vpop.permute.xlu0 %4984
        %4986 = vrot.lane.b32.xlu0 %v4971, 64
        %v4987 = vpop.permute.xlu0 %4986
        %v5004 = vunpack.c.l.b16 %v4900
        %v5005 = vunpack.c.l.b16 %v4901
        %v5006 = vunpack.c.l.b16 %v4902
        %v5007 = vunpack.c.l.b16 %v4903
        %v5008 = vunpack.c.l.b16 %v4904
        %v5009 = vunpack.c.l.b16 %v4905
        %v5010 = vunpack.c.l.b16 %v4906
        %v5011 = vunpack.c.l.b16 %v4907
        %v5012 = vunpack.c.l.b16 %v4908
        %v5013 = vunpack.c.l.b16 %v4909
        %v5014 = vunpack.c.l.b16 %v4910
        %v5015 = vunpack.c.l.b16 %v4911
        %v5016 = vunpack.c.l.b16 %v4912
        %v5017 = vunpack.c.l.b16 %v4913
        %v5018 = vunpack.c.l.b16 %v4914
        %v5019 = vunpack.c.l.b16 %v4915
        %v5020 = vpack.c.b16 %v5005, %v5004
        %v5021 = vpack.c.b16 %v5007, %v5006
        %v5022 = vpack.c.b16 %v5009, %v5008
        %v5023 = vpack.c.b16 %v5011, %v5010
        %v5024 = vpack.c.b16 %v5013, %v5012
        %v5025 = vpack.c.b16 %v5015, %v5014
        %v5026 = vpack.c.b16 %v5017, %v5016
        %v5027 = vpack.c.b16 %v5019, %v5018
        %5028 = vrot.lane.b32.xlu0 %v5020, 64
        %v5029 = vpop.permute.xlu0 %5028
        %5030 = vrot.lane.b32.xlu0 %v5021, 64
        %v5031 = vpop.permute.xlu0 %5030
        %5032 = vrot.lane.b32.xlu0 %v5022, 64
        %v5033 = vpop.permute.xlu0 %5032
        %5034 = vrot.lane.b32.xlu0 %v5023, 64
        %v5035 = vpop.permute.xlu0 %5034
        %5036 = vrot.lane.b32.xlu0 %v5024, 64
        %v5037 = vpop.permute.xlu0 %5036
        %5038 = vrot.lane.b32.xlu0 %v5025, 64
        %v5039 = vpop.permute.xlu0 %5038
        %5040 = vrot.lane.b32.xlu0 %v5026, 64
        %v5041 = vpop.permute.xlu0 %5040
        %5042 = vrot.lane.b32.xlu0 %v5027, 64
        %v5043 = vpop.permute.xlu0 %5042
        %v5045 = vsel %vm3331, %v4973, 0
        %v5048 = vsel %vm3331, %v4975, 0
        %v5051 = vsel %vm3331, %v4977, 0
        %v5054 = vsel %vm3331, %v4979, 0
        %v5057 = vsel %vm3331, %v4981, 0
        %v5060 = vsel %vm3331, %v4983, 0
        %v5063 = vsel %vm3331, %v4985, 0
        %v5066 = vsel %vm3331, %v4987, 0
        %v5069 = vsel %vm3331, %v5029, 0
        %v5072 = vsel %vm3331, %v5031, 0
        %v5075 = vsel %vm3331, %v5033, 0
        %v5078 = vsel %vm3331, %v5035, 0
        %v5081 = vsel %vm3331, %v5037, 0
        %v5084 = vsel %vm3331, %v5039, 0
        %v5087 = vsel %vm3331, %v5041, 0
        %v5090 = vsel %vm3331, %v5043, 0
        %5092 = vmatpush.bf16.xpose.msra.mxu0 %v5090
        %5093 = vmatpush.bf16.xpose.msra.mxu0 %v5087
        %5094 = vmatpush.bf16.xpose.msra.mxu0 %v5084
        %5095 = vmatpush.bf16.xpose.msra.mxu0 %v5081
        %5096 = vmatpush.bf16.xpose.msra.mxu0 %v5078
        %5097 = vmatpush.bf16.xpose.msra.mxu0 %v5075
        %5098 = vmatpush.bf16.xpose.msra.mxu0 %v5072
        %5099 = vmatpush.bf16.xpose.msra.mxu0 %v5069
        %5100 = vmatmul.bf16.gmra.mxu0 %v5045
        %v5101 = vpop.f32.mrf.mxu0
        %v5102 = vadd.f32 0.0, %v5101
        %v5103 = vpop.f32.mrf.mxu0
        %v5104 = vadd.f32 0.0, %v5103
        %5105 = vmatmul.bf16.gmra.mxu0 %v5048
        %v5106 = vpop.f32.mrf.mxu0
        %v5107 = vadd.f32 0.0, %v5106
        %v5108 = vpop.f32.mrf.mxu0
        %v5109 = vadd.f32 0.0, %v5108
        %5110 = vmatmul.bf16.gmra.mxu0 %v5051
        %v5111 = vpop.f32.mrf.mxu0
        %v5112 = vadd.f32 0.0, %v5111
        %v5113 = vpop.f32.mrf.mxu0
        %v5114 = vadd.f32 0.0, %v5113
        %5115 = vmatmul.bf16.gmra.mxu0 %v5054
        %v5116 = vpop.f32.mrf.mxu0
        %v5117 = vadd.f32 0.0, %v5116
        %v5118 = vpop.f32.mrf.mxu0
        %v5119 = vadd.f32 0.0, %v5118
        %5120 = vmatmul.bf16.gmra.mxu0 %v5057
        %v5121 = vpop.f32.mrf.mxu0
        %v5122 = vadd.f32 0.0, %v5121
        %v5123 = vpop.f32.mrf.mxu0
        %v5124 = vadd.f32 0.0, %v5123
        %5125 = vmatmul.bf16.gmra.mxu0 %v5060
        %v5126 = vpop.f32.mrf.mxu0
        %v5127 = vadd.f32 0.0, %v5126
        %v5128 = vpop.f32.mrf.mxu0
        %v5129 = vadd.f32 0.0, %v5128
        %5130 = vmatmul.bf16.gmra.mxu0 %v5063
        %v5131 = vpop.f32.mrf.mxu0
        %v5132 = vadd.f32 0.0, %v5131
        %v5133 = vpop.f32.mrf.mxu0
        %v5134 = vadd.f32 0.0, %v5133
        %5135 = vmatmul.bf16.gmra.mxu0 %v5066
        %v5136 = vpop.f32.mrf.mxu0
        %v5137 = vadd.f32 0.0, %v5136
        %v5138 = vpop.f32.mrf.mxu0
        %v5139 = vadd.f32 0.0, %v5138
        %5140 = vdwg.mxu0
        %v5141 = vsel %vm3187, %v5102, -1e+30
        %v5142 = vsel %vm3188, %v5104, -1e+30
        %v5143 = vsel %vm3189, %v5107, -1e+30
        %v5144 = vsel %vm3190, %v5109, -1e+30
        %v5145 = vsel %vm3191, %v5112, -1e+30
        %v5146 = vsel %vm3192, %v5114, -1e+30
        %v5147 = vsel %vm3193, %v5117, -1e+30
        %v5148 = vsel %vm3194, %v5119, -1e+30
        %v5149 = vsel %vm3195, %v5122, -1e+30
        %v5150 = vsel %vm3196, %v5124, -1e+30
        %v5151 = vsel %vm3197, %v5127, -1e+30
        %v5152 = vsel %vm3198, %v5129, -1e+30
        %v5153 = vsel %vm3199, %v5132, -1e+30
        %v5154 = vsel %vm3200, %v5134, -1e+30
        %v5155 = vsel %vm3201, %v5137, -1e+30
        %v5156 = vsel %vm3202, %v5139, -1e+30
        %5157 = vmax.xlane.f32.xlu0 %v5141
        %v5158 = vpop.xlane.xlu0 %5157
        %5159 = vmax.xlane.f32.xlu0 %v5142
        %v5160 = vpop.xlane.xlu0 %5159
        %5161 = vmax.xlane.f32.xlu0 %v5143
        %v5162 = vpop.xlane.xlu0 %5161
        %5163 = vmax.xlane.f32.xlu0 %v5144
        %v5164 = vpop.xlane.xlu0 %5163
        %5165 = vmax.xlane.f32.xlu0 %v5145
        %v5166 = vpop.xlane.xlu0 %5165
        %5167 = vmax.xlane.f32.xlu0 %v5146
        %v5168 = vpop.xlane.xlu0 %5167
        %5169 = vmax.xlane.f32.xlu0 %v5147
        %v5170 = vpop.xlane.xlu0 %5169
        %5171 = vmax.xlane.f32.xlu0 %v5148
        %v5172 = vpop.xlane.xlu0 %5171
        %5173 = vmax.xlane.f32.xlu0 %v5149
        %v5174 = vpop.xlane.xlu0 %5173
        %5175 = vmax.xlane.f32.xlu0 %v5150
        %v5176 = vpop.xlane.xlu0 %5175
        %5177 = vmax.xlane.f32.xlu0 %v5151
        %v5178 = vpop.xlane.xlu0 %5177
        %5179 = vmax.xlane.f32.xlu0 %v5152
        %v5180 = vpop.xlane.xlu0 %5179
        %5181 = vmax.xlane.f32.xlu0 %v5153
        %v5182 = vpop.xlane.xlu0 %5181
        %5183 = vmax.xlane.f32.xlu0 %v5154
        %v5184 = vpop.xlane.xlu0 %5183
        %5185 = vmax.xlane.f32.xlu0 %v5155
        %v5186 = vpop.xlane.xlu0 %5185
        %5187 = vmax.xlane.f32.xlu0 %v5156
        %v5188 = vpop.xlane.xlu0 %5187
        %v5189 = vsub.f32 %v5141, %v5158
        %v5190 = vsub.f32 %v5142, %v5160
        %v5191 = vsub.f32 %v5143, %v5162
        %v5192 = vsub.f32 %v5144, %v5164
        %v5193 = vsub.f32 %v5145, %v5166
        %v5194 = vsub.f32 %v5146, %v5168
        %v5195 = vsub.f32 %v5147, %v5170
        %v5196 = vsub.f32 %v5148, %v5172
        %v5197 = vsub.f32 %v5149, %v5174
        %v5198 = vsub.f32 %v5150, %v5176
        %v5199 = vsub.f32 %v5151, %v5178
        %v5200 = vsub.f32 %v5152, %v5180
        %v5201 = vsub.f32 %v5153, %v5182
        %v5202 = vsub.f32 %v5154, %v5184
        %v5203 = vsub.f32 %v5155, %v5186
        %v5204 = vsub.f32 %v5156, %v5188
        %v5205 = vmul.f32 %v5189, 1.442695
        %v5206 = vpow.pop %v5205
        %v5207 = vmul.f32 %v5190, 1.442695
        %v5208 = vpow.pop %v5207
        %v5209 = vmul.f32 %v5191, 1.442695
        %v5210 = vpow.pop %v5209
        %v5211 = vmul.f32 %v5192, 1.442695
        %v5212 = vpow.pop %v5211
        %v5213 = vmul.f32 %v5193, 1.442695
        %v5214 = vpow.pop %v5213
        %v5215 = vmul.f32 %v5194, 1.442695
        %v5216 = vpow.pop %v5215
        %v5217 = vmul.f32 %v5195, 1.442695
        %v5218 = vpow.pop %v5217
        %v5219 = vmul.f32 %v5196, 1.442695
        %v5220 = vpow.pop %v5219
        %v5221 = vmul.f32 %v5197, 1.442695
        %v5222 = vpow.pop %v5221
        %v5223 = vmul.f32 %v5198, 1.442695
        %v5224 = vpow.pop %v5223
        %v5225 = vmul.f32 %v5199, 1.442695
        %v5226 = vpow.pop %v5225
        %v5227 = vmul.f32 %v5200, 1.442695
        %v5228 = vpow.pop %v5227
        %v5229 = vmul.f32 %v5201, 1.442695
        %v5230 = vpow.pop %v5229
        %v5231 = vmul.f32 %v5202, 1.442695
        %v5232 = vpow.pop %v5231
        %v5233 = vmul.f32 %v5203, 1.442695
        %v5234 = vpow.pop %v5233
        %v5235 = vmul.f32 %v5204, 1.442695
        %v5236 = vpow.pop %v5235
        %5237 = vadd.xlane.f32.xlu0 %v5206
        %v5238 = vpop.xlane.xlu0 %5237
        %5239 = vadd.xlane.f32.xlu0 %v5208
        %v5240 = vpop.xlane.xlu0 %5239
        %5241 = vadd.xlane.f32.xlu0 %v5210
        %v5242 = vpop.xlane.xlu0 %5241
        %5243 = vadd.xlane.f32.xlu0 %v5212
        %v5244 = vpop.xlane.xlu0 %5243
        %5245 = vadd.xlane.f32.xlu0 %v5214
        %v5246 = vpop.xlane.xlu0 %5245
        %5247 = vadd.xlane.f32.xlu0 %v5216
        %v5248 = vpop.xlane.xlu0 %5247
        %5249 = vadd.xlane.f32.xlu0 %v5218
        %v5250 = vpop.xlane.xlu0 %5249
        %5251 = vadd.xlane.f32.xlu0 %v5220
        %v5252 = vpop.xlane.xlu0 %5251
        %5253 = vadd.xlane.f32.xlu0 %v5222
        %v5254 = vpop.xlane.xlu0 %5253
        %5255 = vadd.xlane.f32.xlu0 %v5224
        %v5256 = vpop.xlane.xlu0 %5255
        %5257 = vadd.xlane.f32.xlu0 %v5226
        %v5258 = vpop.xlane.xlu0 %5257
        %5259 = vadd.xlane.f32.xlu0 %v5228
        %v5260 = vpop.xlane.xlu0 %5259
        %5261 = vadd.xlane.f32.xlu0 %v5230
        %v5262 = vpop.xlane.xlu0 %5261
        %5263 = vadd.xlane.f32.xlu0 %v5232
        %v5264 = vpop.xlane.xlu0 %5263
        %5265 = vadd.xlane.f32.xlu0 %v5234
        %v5266 = vpop.xlane.xlu0 %5265
        %5267 = vadd.xlane.f32.xlu0 %v5236
        %v5268 = vpop.xlane.xlu0 %5267
        %v5269 = vpack.c.bf16 %v5208, %v5206
        %v5270 = vpack.c.bf16 %v5212, %v5210
        %v5271 = vpack.c.bf16 %v5216, %v5214
        %v5272 = vpack.c.bf16 %v5220, %v5218
        %v5273 = vpack.c.bf16 %v5224, %v5222
        %v5274 = vpack.c.bf16 %v5228, %v5226
        %v5275 = vpack.c.bf16 %v5232, %v5230
        %v5276 = vpack.c.bf16 %v5236, %v5234
        %v5293 = vunpack.c.l.b16 %v4916
        %v5294 = vunpack.c.l.b16 %v4917
        %v5295 = vunpack.c.l.b16 %v4918
        %v5296 = vunpack.c.l.b16 %v4919
        %v5297 = vunpack.c.l.b16 %v4920
        %v5298 = vunpack.c.l.b16 %v4921
        %v5299 = vunpack.c.l.b16 %v4922
        %v5300 = vunpack.c.l.b16 %v4923
        %v5301 = vunpack.c.l.b16 %v4924
        %v5302 = vunpack.c.l.b16 %v4925
        %v5303 = vunpack.c.l.b16 %v4926
        %v5304 = vunpack.c.l.b16 %v4927
        %v5305 = vunpack.c.l.b16 %v4928
        %v5306 = vunpack.c.l.b16 %v4929
        %v5307 = vunpack.c.l.b16 %v4930
        %v5308 = vunpack.c.l.b16 %v4931
        %v5309 = vpack.c.b16 %v5294, %v5293
        %v5310 = vpack.c.b16 %v5296, %v5295
        %v5311 = vpack.c.b16 %v5298, %v5297
        %v5312 = vpack.c.b16 %v5300, %v5299
        %v5313 = vpack.c.b16 %v5302, %v5301
        %v5314 = vpack.c.b16 %v5304, %v5303
        %v5315 = vpack.c.b16 %v5306, %v5305
        %v5316 = vpack.c.b16 %v5308, %v5307
        %5317 = vrot.lane.b32.xlu0 %v5309, 64
        %v5318 = vpop.permute.xlu0 %5317
        %5319 = vrot.lane.b32.xlu0 %v5310, 64
        %v5320 = vpop.permute.xlu0 %5319
        %5321 = vrot.lane.b32.xlu0 %v5311, 64
        %v5322 = vpop.permute.xlu0 %5321
        %5323 = vrot.lane.b32.xlu0 %v5312, 64
        %v5324 = vpop.permute.xlu0 %5323
        %5325 = vrot.lane.b32.xlu0 %v5313, 64
        %v5326 = vpop.permute.xlu0 %5325
        %5327 = vrot.lane.b32.xlu0 %v5314, 64
        %v5328 = vpop.permute.xlu0 %5327
        %5329 = vrot.lane.b32.xlu0 %v5315, 64
        %v5330 = vpop.permute.xlu0 %5329
        %5331 = vrot.lane.b32.xlu0 %v5316, 64
        %v5332 = vpop.permute.xlu0 %5331
        %5341 = vmatpush.bf16.msra.mxu0 %v5332
        %5342 = vmatpush.bf16.msra.mxu0 %v5330
        %5343 = vmatpush.bf16.msra.mxu0 %v5328
        %5344 = vmatpush.bf16.msra.mxu0 %v5326
        %5345 = vmatpush.bf16.msra.mxu0 %v5324
        %5346 = vmatpush.bf16.msra.mxu0 %v5322
        %5347 = vmatpush.bf16.msra.mxu0 %v5320
        %5348 = vmatpush.bf16.msra.mxu0 %v5318
        %5349 = vmatmul.bf16.gmra.mxu0 %v5269
        %v5350 = vpop.f32.mrf.mxu0
        %v5351 = vadd.f32 0.0, %v5350
        %v5352 = vpop.f32.mrf.mxu0
        %v5353 = vadd.f32 0.0, %v5352
        %5354 = vmatmul.bf16.gmra.mxu0 %v5270
        %v5355 = vpop.f32.mrf.mxu0
        %v5356 = vadd.f32 0.0, %v5355
        %v5357 = vpop.f32.mrf.mxu0
        %v5358 = vadd.f32 0.0, %v5357
        %5359 = vmatmul.bf16.gmra.mxu0 %v5271
        %v5360 = vpop.f32.mrf.mxu0
        %v5361 = vadd.f32 0.0, %v5360
        %v5362 = vpop.f32.mrf.mxu0
        %v5363 = vadd.f32 0.0, %v5362
        %5364 = vmatmul.bf16.gmra.mxu0 %v5272
        %v5365 = vpop.f32.mrf.mxu0
        %v5366 = vadd.f32 0.0, %v5365
        %v5367 = vpop.f32.mrf.mxu0
        %v5368 = vadd.f32 0.0, %v5367
        %5369 = vmatmul.bf16.gmra.mxu0 %v5273
        %v5370 = vpop.f32.mrf.mxu0
        %v5371 = vadd.f32 0.0, %v5370
        %v5372 = vpop.f32.mrf.mxu0
        %v5373 = vadd.f32 0.0, %v5372
        %5374 = vmatmul.bf16.gmra.mxu0 %v5274
        %v5375 = vpop.f32.mrf.mxu0
        %v5376 = vadd.f32 0.0, %v5375
        %v5377 = vpop.f32.mrf.mxu0
        %v5378 = vadd.f32 0.0, %v5377
        %5379 = vmatmul.bf16.gmra.mxu0 %v5275
        %v5380 = vpop.f32.mrf.mxu0
        %v5381 = vadd.f32 0.0, %v5380
        %v5382 = vpop.f32.mrf.mxu0
        %v5383 = vadd.f32 0.0, %v5382
        %5384 = vmatmul.bf16.gmra.mxu0 %v5276
        %v5385 = vpop.f32.mrf.mxu0
        %v5386 = vadd.f32 0.0, %v5385
        %v5387 = vpop.f32.mrf.mxu0
        %v5388 = vadd.f32 0.0, %v5387
        %5389 = vdwg.mxu0
        %v5390 = vrcp.pop %v5238
        %v5391 = vrcp.pop %v5240
        %v5392 = vrcp.pop %v5242
        %v5393 = vrcp.pop %v5244
        %v5394 = vrcp.pop %v5246
        %v5395 = vrcp.pop %v5248
        %v5396 = vrcp.pop %v5250
        %v5397 = vrcp.pop %v5252
        %v5398 = vrcp.pop %v5254
        %v5399 = vrcp.pop %v5256
        %v5400 = vrcp.pop %v5258
        %v5401 = vrcp.pop %v5260
        %v5402 = vrcp.pop %v5262
        %v5403 = vrcp.pop %v5264
        %v5404 = vrcp.pop %v5266
        %v5405 = vrcp.pop %v5268
        %v5406 = vmul.f32 %v5351, %v5390
        %v5407 = vmul.f32 %v5353, %v5391
        %v5408 = vmul.f32 %v5356, %v5392
        %v5409 = vmul.f32 %v5358, %v5393
        %v5410 = vmul.f32 %v5361, %v5394
        %v5411 = vmul.f32 %v5363, %v5395
        %v5412 = vmul.f32 %v5366, %v5396
        %v5413 = vmul.f32 %v5368, %v5397
        %v5414 = vmul.f32 %v5371, %v5398
        %v5415 = vmul.f32 %v5373, %v5399
        %v5416 = vmul.f32 %v5376, %v5400
        %v5417 = vmul.f32 %v5378, %v5401
        %v5418 = vmul.f32 %v5381, %v5402
        %v5419 = vmul.f32 %v5383, %v5403
        %v5420 = vmul.f32 %v5386, %v5404
        %v5421 = vmul.f32 %v5388, %v5405
        %v5422 = vpack.c.bf16 %v5406, %v5406
        %v5423 = vpack.c.bf16 %v5407, %v5407
        %v5424 = vpack.c.bf16 %v5408, %v5408
        %v5425 = vpack.c.bf16 %v5409, %v5409
        %v5426 = vpack.c.bf16 %v5410, %v5410
        %v5427 = vpack.c.bf16 %v5411, %v5411
        %v5428 = vpack.c.bf16 %v5412, %v5412
        %v5429 = vpack.c.bf16 %v5413, %v5413
        %v5430 = vpack.c.bf16 %v5414, %v5414
        %v5431 = vpack.c.bf16 %v5415, %v5415
        %v5432 = vpack.c.bf16 %v5416, %v5416
        %v5433 = vpack.c.bf16 %v5417, %v5417
        %v5434 = vpack.c.bf16 %v5418, %v5418
        %v5435 = vpack.c.bf16 %v5419, %v5419
        %v5436 = vpack.c.bf16 %v5420, %v5420
        %v5437 = vpack.c.bf16 %v5421, %v5421
        %5454 = vrot.lane.b32.xlu0 %v5422, 64
        %v5455 = vpop.permute.xlu0 %5454
        %5456 = vrot.lane.b32.xlu0 %v5423, 64
        %v5457 = vpop.permute.xlu0 %5456
        %5458 = vrot.lane.b32.xlu0 %v5424, 64
        %v5459 = vpop.permute.xlu0 %5458
        %5460 = vrot.lane.b32.xlu0 %v5425, 64
        %v5461 = vpop.permute.xlu0 %5460
        %5462 = vrot.lane.b32.xlu0 %v5426, 64
        %v5463 = vpop.permute.xlu0 %5462
        %5464 = vrot.lane.b32.xlu0 %v5427, 64
        %v5465 = vpop.permute.xlu0 %5464
        %5466 = vrot.lane.b32.xlu0 %v5428, 64
        %v5467 = vpop.permute.xlu0 %5466
        %5468 = vrot.lane.b32.xlu0 %v5429, 64
        %v5469 = vpop.permute.xlu0 %5468
        %5470 = vrot.lane.b32.xlu0 %v5430, 64
        %v5471 = vpop.permute.xlu0 %5470
        %5472 = vrot.lane.b32.xlu0 %v5431, 64
        %v5473 = vpop.permute.xlu0 %5472
        %5474 = vrot.lane.b32.xlu0 %v5432, 64
        %v5475 = vpop.permute.xlu0 %5474
        %5476 = vrot.lane.b32.xlu0 %v5433, 64
        %v5477 = vpop.permute.xlu0 %5476
        %5478 = vrot.lane.b32.xlu0 %v5434, 64
        %v5479 = vpop.permute.xlu0 %5478
        %5480 = vrot.lane.b32.xlu0 %v5435, 64
        %v5481 = vpop.permute.xlu0 %5480
        %5482 = vrot.lane.b32.xlu0 %v5436, 64
        %v5483 = vpop.permute.xlu0 %5482
        %5484 = vrot.lane.b32.xlu0 %v5437, 64
        %v5485 = vpop.permute.xlu0 %5484
        %5502 = vst.msk [vmem:[#allocation3 + $0x4] sm:$0xf] %vm4345, %v5455
        %5503 = vst.msk [vmem:[#allocation3 + $0x10] sm:$0xf] %vm4345, %v5457
        %5504 = vst.msk [vmem:[#allocation3 + $0x1c] sm:$0xf] %vm4345, %v5459
        %5505 = vst.msk [vmem:[#allocation3 + $0x28] sm:$0xf] %vm4345, %v5461
        %5506 = vst.msk [vmem:[#allocation3 + $0x34] sm:$0xf] %vm4345, %v5463
        %5507 = vst.msk [vmem:[#allocation3 + $0x40] sm:$0xf] %vm4345, %v5465
        %5508 = vst.msk [vmem:[#allocation3 + $0x4c] sm:$0xf] %vm4345, %v5467
        %5509 = vst.msk [vmem:[#allocation3 + $0x58] sm:$0xf] %vm4345, %v5469
        %5510 = vst.msk [vmem:[#allocation3 + $0x64] sm:$0xf] %vm4345, %v5471
        %5511 = vst.msk [vmem:[#allocation3 + $0x70] sm:$0xf] %vm4345, %v5473
        %5512 = vst.msk [vmem:[#allocation3 + $0x7c] sm:$0xf] %vm4345, %v5475
        %5513 = vst.msk [vmem:[#allocation3 + $0x88] sm:$0xf] %vm4345, %v5477
        %5514 = vst.msk [vmem:[#allocation3 + $0x94] sm:$0xf] %vm4345, %v5479
        %5515 = vst.msk [vmem:[#allocation3 + $0xa0] sm:$0xf] %vm4345, %v5481
        %5516 = vst.msk [vmem:[#allocation3 + $0xac] sm:$0xf] %vm4345, %v5483
        %5517 = vst.msk [vmem:[#allocation3 + $0xb8] sm:$0xf] %vm4345, %v5485
        %v5518 = vld [vmem:[#allocation2 + $0x8] sm:$0xf]
        %v5519 = vld [vmem:[#allocation2 + $0x2c] sm:$0xf]
        %v5520 = vld [vmem:[#allocation2 + $0x50] sm:$0xf]
        %v5521 = vld [vmem:[#allocation2 + $0x74] sm:$0xf]
        %v5522 = vld [vmem:[#allocation2 + $0x98] sm:$0xf]
        %v5523 = vld [vmem:[#allocation2 + $0xbc] sm:$0xf]
        %v5524 = vld [vmem:[#allocation2 + $0xe0] sm:$0xf]
        %v5525 = vld [vmem:[#allocation2 + $0x104] sm:$0xf]
        %v5526 = vld [vmem:[#allocation2 + $0x128] sm:$0xf]
        %v5527 = vld [vmem:[#allocation2 + $0x14c] sm:$0xf]
        %v5528 = vld [vmem:[#allocation2 + $0x170] sm:$0xf]
        %v5529 = vld [vmem:[#allocation2 + $0x194] sm:$0xf]
        %v5530 = vld [vmem:[#allocation2 + $0x1b8] sm:$0xf]
        %v5531 = vld [vmem:[#allocation2 + $0x1dc] sm:$0xf]
        %v5532 = vld [vmem:[#allocation2 + $0x200] sm:$0xf]
        %v5533 = vld [vmem:[#allocation2 + $0x224] sm:$0xf]
        %v5534 = vld [vmem:[#allocation2 + $0x14] sm:$0xf]
        %v5535 = vld [vmem:[#allocation2 + $0x38] sm:$0xf]
        %v5536 = vld [vmem:[#allocation2 + $0x5c] sm:$0xf]
        %v5537 = vld [vmem:[#allocation2 + $0x80] sm:$0xf]
        %v5538 = vld [vmem:[#allocation2 + $0xa4] sm:$0xf]
        %v5539 = vld [vmem:[#allocation2 + $0xc8] sm:$0xf]
        %v5540 = vld [vmem:[#allocation2 + $0xec] sm:$0xf]
        %v5541 = vld [vmem:[#allocation2 + $0x110] sm:$0xf]
        %v5542 = vld [vmem:[#allocation2 + $0x134] sm:$0xf]
        %v5543 = vld [vmem:[#allocation2 + $0x158] sm:$0xf]
        %v5544 = vld [vmem:[#allocation2 + $0x17c] sm:$0xf]
        %v5545 = vld [vmem:[#allocation2 + $0x1a0] sm:$0xf]
        %v5546 = vld [vmem:[#allocation2 + $0x1c4] sm:$0xf]
        %v5547 = vld [vmem:[#allocation2 + $0x1e8] sm:$0xf]
        %v5548 = vld [vmem:[#allocation2 + $0x20c] sm:$0xf]
        %v5549 = vld [vmem:[#allocation2 + $0x230] sm:$0xf]
        %v5550 = vld [vmem:[#allocation2 + $0x20] sm:$0xf]
        %v5551 = vld [vmem:[#allocation2 + $0x44] sm:$0xf]
        %v5552 = vld [vmem:[#allocation2 + $0x68] sm:$0xf]
        %v5553 = vld [vmem:[#allocation2 + $0x8c] sm:$0xf]
        %v5554 = vld [vmem:[#allocation2 + $0xb0] sm:$0xf]
        %v5555 = vld [vmem:[#allocation2 + $0xd4] sm:$0xf]
        %v5556 = vld [vmem:[#allocation2 + $0xf8] sm:$0xf]
        %v5557 = vld [vmem:[#allocation2 + $0x11c] sm:$0xf]
        %v5558 = vld [vmem:[#allocation2 + $0x140] sm:$0xf]
        %v5559 = vld [vmem:[#allocation2 + $0x164] sm:$0xf]
        %v5560 = vld [vmem:[#allocation2 + $0x188] sm:$0xf]
        %v5561 = vld [vmem:[#allocation2 + $0x1ac] sm:$0xf]
        %v5562 = vld [vmem:[#allocation2 + $0x1d0] sm:$0xf]
        %v5563 = vld [vmem:[#allocation2 + $0x1f4] sm:$0xf]
        %v5564 = vld [vmem:[#allocation2 + $0x218] sm:$0xf]
        %v5565 = vld [vmem:[#allocation2 + $0x23c] sm:$0xf]
        %v5582 = vunpack.c.l.b16 %v5518
        %v5583 = vunpack.c.l.b16 %v5519
        %v5584 = vunpack.c.l.b16 %v5520
        %v5585 = vunpack.c.l.b16 %v5521
        %v5586 = vunpack.c.l.b16 %v5522
        %v5587 = vunpack.c.l.b16 %v5523
        %v5588 = vunpack.c.l.b16 %v5524
        %v5589 = vunpack.c.l.b16 %v5525
        %v5590 = vunpack.c.l.b16 %v5526
        %v5591 = vunpack.c.l.b16 %v5527
        %v5592 = vunpack.c.l.b16 %v5528
        %v5593 = vunpack.c.l.b16 %v5529
        %v5594 = vunpack.c.l.b16 %v5530
        %v5595 = vunpack.c.l.b16 %v5531
        %v5596 = vunpack.c.l.b16 %v5532
        %v5597 = vunpack.c.l.b16 %v5533
        %v5598 = vpack.c.b16 %v5583, %v5582
        %v5599 = vpack.c.b16 %v5585, %v5584
        %v5600 = vpack.c.b16 %v5587, %v5586
        %v5601 = vpack.c.b16 %v5589, %v5588
        %v5602 = vpack.c.b16 %v5591, %v5590
        %v5603 = vpack.c.b16 %v5593, %v5592
        %v5604 = vpack.c.b16 %v5595, %v5594
        %v5605 = vpack.c.b16 %v5597, %v5596
        %v5622 = vunpack.c.l.b16 %v5534
        %v5623 = vunpack.c.l.b16 %v5535
        %v5624 = vunpack.c.l.b16 %v5536
        %v5625 = vunpack.c.l.b16 %v5537
        %v5626 = vunpack.c.l.b16 %v5538
        %v5627 = vunpack.c.l.b16 %v5539
        %v5628 = vunpack.c.l.b16 %v5540
        %v5629 = vunpack.c.l.b16 %v5541
        %v5630 = vunpack.c.l.b16 %v5542
        %v5631 = vunpack.c.l.b16 %v5543
        %v5632 = vunpack.c.l.b16 %v5544
        %v5633 = vunpack.c.l.b16 %v5545
        %v5634 = vunpack.c.l.b16 %v5546
        %v5635 = vunpack.c.l.b16 %v5547
        %v5636 = vunpack.c.l.b16 %v5548
        %v5637 = vunpack.c.l.b16 %v5549
        %v5638 = vpack.c.b16 %v5623, %v5622
        %v5639 = vpack.c.b16 %v5625, %v5624
        %v5640 = vpack.c.b16 %v5627, %v5626
        %v5641 = vpack.c.b16 %v5629, %v5628
        %v5642 = vpack.c.b16 %v5631, %v5630
        %v5643 = vpack.c.b16 %v5633, %v5632
        %v5644 = vpack.c.b16 %v5635, %v5634
        %v5645 = vpack.c.b16 %v5637, %v5636
        %v5647 = vsel %vm3331, %v5598, 0
        %v5650 = vsel %vm3331, %v5599, 0
        %v5653 = vsel %vm3331, %v5600, 0
        %v5656 = vsel %vm3331, %v5601, 0
        %v5659 = vsel %vm3331, %v5602, 0
        %v5662 = vsel %vm3331, %v5603, 0
        %v5665 = vsel %vm3331, %v5604, 0
        %v5668 = vsel %vm3331, %v5605, 0
        %v5671 = vsel %vm3331, %v5638, 0
        %v5674 = vsel %vm3331, %v5639, 0
        %v5677 = vsel %vm3331, %v5640, 0
        %v5680 = vsel %vm3331, %v5641, 0
        %v5683 = vsel %vm3331, %v5642, 0
        %v5686 = vsel %vm3331, %v5643, 0
        %v5689 = vsel %vm3331, %v5644, 0
        %v5692 = vsel %vm3331, %v5645, 0
        %5694 = vmatpush.bf16.xpose.msra.mxu0 %v5692
        %5695 = vmatpush.bf16.xpose.msra.mxu0 %v5689
        %5696 = vmatpush.bf16.xpose.msra.mxu0 %v5686
        %5697 = vmatpush.bf16.xpose.msra.mxu0 %v5683
        %5698 = vmatpush.bf16.xpose.msra.mxu0 %v5680
        %5699 = vmatpush.bf16.xpose.msra.mxu0 %v5677
        %5700 = vmatpush.bf16.xpose.msra.mxu0 %v5674
        %5701 = vmatpush.bf16.xpose.msra.mxu0 %v5671
        %5702 = vmatmul.bf16.gmra.mxu0 %v5647
        %v5703 = vpop.f32.mrf.mxu0
        %v5704 = vadd.f32 0.0, %v5703
        %v5705 = vpop.f32.mrf.mxu0
        %v5706 = vadd.f32 0.0, %v5705
        %5707 = vmatmul.bf16.gmra.mxu0 %v5650
        %v5708 = vpop.f32.mrf.mxu0
        %v5709 = vadd.f32 0.0, %v5708
        %v5710 = vpop.f32.mrf.mxu0
        %v5711 = vadd.f32 0.0, %v5710
        %5712 = vmatmul.bf16.gmra.mxu0 %v5653
        %v5713 = vpop.f32.mrf.mxu0
        %v5714 = vadd.f32 0.0, %v5713
        %v5715 = vpop.f32.mrf.mxu0
        %v5716 = vadd.f32 0.0, %v5715
        %5717 = vmatmul.bf16.gmra.mxu0 %v5656
        %v5718 = vpop.f32.mrf.mxu0
        %v5719 = vadd.f32 0.0, %v5718
        %v5720 = vpop.f32.mrf.mxu0
        %v5721 = vadd.f32 0.0, %v5720
        %5722 = vmatmul.bf16.gmra.mxu0 %v5659
        %v5723 = vpop.f32.mrf.mxu0
        %v5724 = vadd.f32 0.0, %v5723
        %v5725 = vpop.f32.mrf.mxu0
        %v5726 = vadd.f32 0.0, %v5725
        %5727 = vmatmul.bf16.gmra.mxu0 %v5662
        %v5728 = vpop.f32.mrf.mxu0
        %v5729 = vadd.f32 0.0, %v5728
        %v5730 = vpop.f32.mrf.mxu0
        %v5731 = vadd.f32 0.0, %v5730
        %5732 = vmatmul.bf16.gmra.mxu0 %v5665
        %v5733 = vpop.f32.mrf.mxu0
        %v5734 = vadd.f32 0.0, %v5733
        %v5735 = vpop.f32.mrf.mxu0
        %v5736 = vadd.f32 0.0, %v5735
        %5737 = vmatmul.bf16.gmra.mxu0 %v5668
        %v5738 = vpop.f32.mrf.mxu0
        %v5739 = vadd.f32 0.0, %v5738
        %v5740 = vpop.f32.mrf.mxu0
        %v5741 = vadd.f32 0.0, %v5740
        %5742 = vdwg.mxu0
        %v5743 = vsel %vm3187, %v5704, -1e+30
        %v5744 = vsel %vm3188, %v5706, -1e+30
        %v5745 = vsel %vm3189, %v5709, -1e+30
        %v5746 = vsel %vm3190, %v5711, -1e+30
        %v5747 = vsel %vm3191, %v5714, -1e+30
        %v5748 = vsel %vm3192, %v5716, -1e+30
        %v5749 = vsel %vm3193, %v5719, -1e+30
        %v5750 = vsel %vm3194, %v5721, -1e+30
        %v5751 = vsel %vm3195, %v5724, -1e+30
        %v5752 = vsel %vm3196, %v5726, -1e+30
        %v5753 = vsel %vm3197, %v5729, -1e+30
        %v5754 = vsel %vm3198, %v5731, -1e+30
        %v5755 = vsel %vm3199, %v5734, -1e+30
        %v5756 = vsel %vm3200, %v5736, -1e+30
        %v5757 = vsel %vm3201, %v5739, -1e+30
        %v5758 = vsel %vm3202, %v5741, -1e+30
        %5759 = vmax.xlane.f32.xlu0 %v5743
        %v5760 = vpop.xlane.xlu0 %5759
        %5761 = vmax.xlane.f32.xlu0 %v5744
        %v5762 = vpop.xlane.xlu0 %5761
        %5763 = vmax.xlane.f32.xlu0 %v5745
        %v5764 = vpop.xlane.xlu0 %5763
        %5765 = vmax.xlane.f32.xlu0 %v5746
        %v5766 = vpop.xlane.xlu0 %5765
        %5767 = vmax.xlane.f32.xlu0 %v5747
        %v5768 = vpop.xlane.xlu0 %5767
        %5769 = vmax.xlane.f32.xlu0 %v5748
        %v5770 = vpop.xlane.xlu0 %5769
        %5771 = vmax.xlane.f32.xlu0 %v5749
        %v5772 = vpop.xlane.xlu0 %5771
        %5773 = vmax.xlane.f32.xlu0 %v5750
        %v5774 = vpop.xlane.xlu0 %5773
        %5775 = vmax.xlane.f32.xlu0 %v5751
        %v5776 = vpop.xlane.xlu0 %5775
        %5777 = vmax.xlane.f32.xlu0 %v5752
        %v5778 = vpop.xlane.xlu0 %5777
        %5779 = vmax.xlane.f32.xlu0 %v5753
        %v5780 = vpop.xlane.xlu0 %5779
        %5781 = vmax.xlane.f32.xlu0 %v5754
        %v5782 = vpop.xlane.xlu0 %5781
        %5783 = vmax.xlane.f32.xlu0 %v5755
        %v5784 = vpop.xlane.xlu0 %5783
        %5785 = vmax.xlane.f32.xlu0 %v5756
        %v5786 = vpop.xlane.xlu0 %5785
        %5787 = vmax.xlane.f32.xlu0 %v5757
        %v5788 = vpop.xlane.xlu0 %5787
        %5789 = vmax.xlane.f32.xlu0 %v5758
        %v5790 = vpop.xlane.xlu0 %5789
        %v5791 = vsub.f32 %v5743, %v5760
        %v5792 = vsub.f32 %v5744, %v5762
        %v5793 = vsub.f32 %v5745, %v5764
        %v5794 = vsub.f32 %v5746, %v5766
        %v5795 = vsub.f32 %v5747, %v5768
        %v5796 = vsub.f32 %v5748, %v5770
        %v5797 = vsub.f32 %v5749, %v5772
        %v5798 = vsub.f32 %v5750, %v5774
        %v5799 = vsub.f32 %v5751, %v5776
        %v5800 = vsub.f32 %v5752, %v5778
        %v5801 = vsub.f32 %v5753, %v5780
        %v5802 = vsub.f32 %v5754, %v5782
        %v5803 = vsub.f32 %v5755, %v5784
        %v5804 = vsub.f32 %v5756, %v5786
        %v5805 = vsub.f32 %v5757, %v5788
        %v5806 = vsub.f32 %v5758, %v5790
        %v5807 = vmul.f32 %v5791, 1.442695
        %v5808 = vpow.pop %v5807
        %v5809 = vmul.f32 %v5792, 1.442695
        %v5810 = vpow.pop %v5809
        %v5811 = vmul.f32 %v5793, 1.442695
        %v5812 = vpow.pop %v5811
        %v5813 = vmul.f32 %v5794, 1.442695
        %v5814 = vpow.pop %v5813
        %v5815 = vmul.f32 %v5795, 1.442695
        %v5816 = vpow.pop %v5815
        %v5817 = vmul.f32 %v5796, 1.442695
        %v5818 = vpow.pop %v5817
        %v5819 = vmul.f32 %v5797, 1.442695
        %v5820 = vpow.pop %v5819
        %v5821 = vmul.f32 %v5798, 1.442695
        %v5822 = vpow.pop %v5821
        %v5823 = vmul.f32 %v5799, 1.442695
        %v5824 = vpow.pop %v5823
        %v5825 = vmul.f32 %v5800, 1.442695
        %v5826 = vpow.pop %v5825
        %v5827 = vmul.f32 %v5801, 1.442695
        %v5828 = vpow.pop %v5827
        %v5829 = vmul.f32 %v5802, 1.442695
        %v5830 = vpow.pop %v5829
        %v5831 = vmul.f32 %v5803, 1.442695
        %v5832 = vpow.pop %v5831
        %v5833 = vmul.f32 %v5804, 1.442695
        %v5834 = vpow.pop %v5833
        %v5835 = vmul.f32 %v5805, 1.442695
        %v5836 = vpow.pop %v5835
        %v5837 = vmul.f32 %v5806, 1.442695
        %v5838 = vpow.pop %v5837
        %5839 = vadd.xlane.f32.xlu0 %v5808
        %v5840 = vpop.xlane.xlu0 %5839
        %5841 = vadd.xlane.f32.xlu0 %v5810
        %v5842 = vpop.xlane.xlu0 %5841
        %5843 = vadd.xlane.f32.xlu0 %v5812
        %v5844 = vpop.xlane.xlu0 %5843
        %5845 = vadd.xlane.f32.xlu0 %v5814
        %v5846 = vpop.xlane.xlu0 %5845
        %5847 = vadd.xlane.f32.xlu0 %v5816
        %v5848 = vpop.xlane.xlu0 %5847
        %5849 = vadd.xlane.f32.xlu0 %v5818
        %v5850 = vpop.xlane.xlu0 %5849
        %5851 = vadd.xlane.f32.xlu0 %v5820
        %v5852 = vpop.xlane.xlu0 %5851
        %5853 = vadd.xlane.f32.xlu0 %v5822
        %v5854 = vpop.xlane.xlu0 %5853
        %5855 = vadd.xlane.f32.xlu0 %v5824
        %v5856 = vpop.xlane.xlu0 %5855
        %5857 = vadd.xlane.f32.xlu0 %v5826
        %v5858 = vpop.xlane.xlu0 %5857
        %5859 = vadd.xlane.f32.xlu0 %v5828
        %v5860 = vpop.xlane.xlu0 %5859
        %5861 = vadd.xlane.f32.xlu0 %v5830
        %v5862 = vpop.xlane.xlu0 %5861
        %5863 = vadd.xlane.f32.xlu0 %v5832
        %v5864 = vpop.xlane.xlu0 %5863
        %5865 = vadd.xlane.f32.xlu0 %v5834
        %v5866 = vpop.xlane.xlu0 %5865
        %5867 = vadd.xlane.f32.xlu0 %v5836
        %v5868 = vpop.xlane.xlu0 %5867
        %5869 = vadd.xlane.f32.xlu0 %v5838
        %v5870 = vpop.xlane.xlu0 %5869
        %v5871 = vpack.c.bf16 %v5810, %v5808
        %v5872 = vpack.c.bf16 %v5814, %v5812
        %v5873 = vpack.c.bf16 %v5818, %v5816
        %v5874 = vpack.c.bf16 %v5822, %v5820
        %v5875 = vpack.c.bf16 %v5826, %v5824
        %v5876 = vpack.c.bf16 %v5830, %v5828
        %v5877 = vpack.c.bf16 %v5834, %v5832
        %v5878 = vpack.c.bf16 %v5838, %v5836
        %v5895 = vunpack.c.l.b16 %v5550
        %v5896 = vunpack.c.l.b16 %v5551
        %v5897 = vunpack.c.l.b16 %v5552
        %v5898 = vunpack.c.l.b16 %v5553
        %v5899 = vunpack.c.l.b16 %v5554
        %v5900 = vunpack.c.l.b16 %v5555
        %v5901 = vunpack.c.l.b16 %v5556
        %v5902 = vunpack.c.l.b16 %v5557
        %v5903 = vunpack.c.l.b16 %v5558
        %v5904 = vunpack.c.l.b16 %v5559
        %v5905 = vunpack.c.l.b16 %v5560
        %v5906 = vunpack.c.l.b16 %v5561
        %v5907 = vunpack.c.l.b16 %v5562
        %v5908 = vunpack.c.l.b16 %v5563
        %v5909 = vunpack.c.l.b16 %v5564
        %v5910 = vunpack.c.l.b16 %v5565
        %v5911 = vpack.c.b16 %v5896, %v5895
        %v5912 = vpack.c.b16 %v5898, %v5897
        %v5913 = vpack.c.b16 %v5900, %v5899
        %v5914 = vpack.c.b16 %v5902, %v5901
        %v5915 = vpack.c.b16 %v5904, %v5903
        %v5916 = vpack.c.b16 %v5906, %v5905
        %v5917 = vpack.c.b16 %v5908, %v5907
        %v5918 = vpack.c.b16 %v5910, %v5909
        %5927 = vmatpush.bf16.msra.mxu0 %v5918
        %5928 = vmatpush.bf16.msra.mxu0 %v5917
        %5929 = vmatpush.bf16.msra.mxu0 %v5916
        %5930 = vmatpush.bf16.msra.mxu0 %v5915
        %5931 = vmatpush.bf16.msra.mxu0 %v5914
        %5932 = vmatpush.bf16.msra.mxu0 %v5913
        %5933 = vmatpush.bf16.msra.mxu0 %v5912
        %5934 = vmatpush.bf16.msra.mxu0 %v5911
        %5935 = vmatmul.bf16.gmra.mxu0 %v5871
        %v5936 = vpop.f32.mrf.mxu0
        %v5937 = vadd.f32 0.0, %v5936
        %v5938 = vpop.f32.mrf.mxu0
        %v5939 = vadd.f32 0.0, %v5938
        %5940 = vmatmul.bf16.gmra.mxu0 %v5872
        %v5941 = vpop.f32.mrf.mxu0
        %v5942 = vadd.f32 0.0, %v5941
        %v5943 = vpop.f32.mrf.mxu0
        %v5944 = vadd.f32 0.0, %v5943
        %5945 = vmatmul.bf16.gmra.mxu0 %v5873
        %v5946 = vpop.f32.mrf.mxu0
        %v5947 = vadd.f32 0.0, %v5946
        %v5948 = vpop.f32.mrf.mxu0
        %v5949 = vadd.f32 0.0, %v5948
        %5950 = vmatmul.bf16.gmra.mxu0 %v5874
        %v5951 = vpop.f32.mrf.mxu0
        %v5952 = vadd.f32 0.0, %v5951
        %v5953 = vpop.f32.mrf.mxu0
        %v5954 = vadd.f32 0.0, %v5953
        %5955 = vmatmul.bf16.gmra.mxu0 %v5875
        %v5956 = vpop.f32.mrf.mxu0
        %v5957 = vadd.f32 0.0, %v5956
        %v5958 = vpop.f32.mrf.mxu0
        %v5959 = vadd.f32 0.0, %v5958
        %5960 = vmatmul.bf16.gmra.mxu0 %v5876
        %v5961 = vpop.f32.mrf.mxu0
        %v5962 = vadd.f32 0.0, %v5961
        %v5963 = vpop.f32.mrf.mxu0
        %v5964 = vadd.f32 0.0, %v5963
        %5965 = vmatmul.bf16.gmra.mxu0 %v5877
        %v5966 = vpop.f32.mrf.mxu0
        %v5967 = vadd.f32 0.0, %v5966
        %v5968 = vpop.f32.mrf.mxu0
        %v5969 = vadd.f32 0.0, %v5968
        %5970 = vmatmul.bf16.gmra.mxu0 %v5878
        %v5971 = vpop.f32.mrf.mxu0
        %v5972 = vadd.f32 0.0, %v5971
        %v5973 = vpop.f32.mrf.mxu0
        %v5974 = vadd.f32 0.0, %v5973
        %5975 = vdwg.mxu0
        %v5976 = vrcp.pop %v5840
        %v5977 = vrcp.pop %v5842
        %v5978 = vrcp.pop %v5844
        %v5979 = vrcp.pop %v5846
        %v5980 = vrcp.pop %v5848
        %v5981 = vrcp.pop %v5850
        %v5982 = vrcp.pop %v5852
        %v5983 = vrcp.pop %v5854
        %v5984 = vrcp.pop %v5856
        %v5985 = vrcp.pop %v5858
        %v5986 = vrcp.pop %v5860
        %v5987 = vrcp.pop %v5862
        %v5988 = vrcp.pop %v5864
        %v5989 = vrcp.pop %v5866
        %v5990 = vrcp.pop %v5868
        %v5991 = vrcp.pop %v5870
        %v5992 = vmul.f32 %v5937, %v5976
        %v5993 = vmul.f32 %v5939, %v5977
        %v5994 = vmul.f32 %v5942, %v5978
        %v5995 = vmul.f32 %v5944, %v5979
        %v5996 = vmul.f32 %v5947, %v5980
        %v5997 = vmul.f32 %v5949, %v5981
        %v5998 = vmul.f32 %v5952, %v5982
        %v5999 = vmul.f32 %v5954, %v5983
        %v6000 = vmul.f32 %v5957, %v5984
        %v6001 = vmul.f32 %v5959, %v5985
        %v6002 = vmul.f32 %v5962, %v5986
        %v6003 = vmul.f32 %v5964, %v5987
        %v6004 = vmul.f32 %v5967, %v5988
        %v6005 = vmul.f32 %v5969, %v5989
        %v6006 = vmul.f32 %v5972, %v5990
        %v6007 = vmul.f32 %v5974, %v5991
        %v6008 = vpack.c.bf16 %v5992, %v5992
        %v6009 = vpack.c.bf16 %v5993, %v5993
        %v6010 = vpack.c.bf16 %v5994, %v5994
        %v6011 = vpack.c.bf16 %v5995, %v5995
        %v6012 = vpack.c.bf16 %v5996, %v5996
        %v6013 = vpack.c.bf16 %v5997, %v5997
        %v6014 = vpack.c.bf16 %v5998, %v5998
        %v6015 = vpack.c.bf16 %v5999, %v5999
        %v6016 = vpack.c.bf16 %v6000, %v6000
        %v6017 = vpack.c.bf16 %v6001, %v6001
        %v6018 = vpack.c.bf16 %v6002, %v6002
        %v6019 = vpack.c.bf16 %v6003, %v6003
        %v6020 = vpack.c.bf16 %v6004, %v6004
        %v6021 = vpack.c.bf16 %v6005, %v6005
        %v6022 = vpack.c.bf16 %v6006, %v6006
        %v6023 = vpack.c.bf16 %v6007, %v6007
        %6024 = vst.msk [vmem:[#allocation3 + $0x8] sm:$0xf] %vm3710, %v6008
        %6025 = vst.msk [vmem:[#allocation3 + $0x14] sm:$0xf] %vm3710, %v6009
        %6026 = vst.msk [vmem:[#allocation3 + $0x20] sm:$0xf] %vm3710, %v6010
        %6027 = vst.msk [vmem:[#allocation3 + $0x2c] sm:$0xf] %vm3710, %v6011
        %6028 = vst.msk [vmem:[#allocation3 + $0x38] sm:$0xf] %vm3710, %v6012
        %6029 = vst.msk [vmem:[#allocation3 + $0x44] sm:$0xf] %vm3710, %v6013
        %6030 = vst.msk [vmem:[#allocation3 + $0x50] sm:$0xf] %vm3710, %v6014
        %6031 = vst.msk [vmem:[#allocation3 + $0x5c] sm:$0xf] %vm3710, %v6015
        %6032 = vst.msk [vmem:[#allocation3 + $0x68] sm:$0xf] %vm3710, %v6016
        %6033 = vst.msk [vmem:[#allocation3 + $0x74] sm:$0xf] %vm3710, %v6017
        %6034 = vst.msk [vmem:[#allocation3 + $0x80] sm:$0xf] %vm3710, %v6018
        %6035 = vst.msk [vmem:[#allocation3 + $0x8c] sm:$0xf] %vm3710, %v6019
        %6036 = vst.msk [vmem:[#allocation3 + $0x98] sm:$0xf] %vm3710, %v6020
        %6037 = vst.msk [vmem:[#allocation3 + $0xa4] sm:$0xf] %vm3710, %v6021
        %6038 = vst.msk [vmem:[#allocation3 + $0xb0] sm:$0xf] %vm3710, %v6022
        %6039 = vst.msk [vmem:[#allocation3 + $0xbc] sm:$0xf] %vm3710, %v6023
        %v6040 = vld [vmem:[#allocation2 + $0x8] sm:$0xf]
        %v6041 = vld [vmem:[#allocation2 + $0x2c] sm:$0xf]
        %v6042 = vld [vmem:[#allocation2 + $0x50] sm:$0xf]
        %v6043 = vld [vmem:[#allocation2 + $0x74] sm:$0xf]
        %v6044 = vld [vmem:[#allocation2 + $0x98] sm:$0xf]
        %v6045 = vld [vmem:[#allocation2 + $0xbc] sm:$0xf]
        %v6046 = vld [vmem:[#allocation2 + $0xe0] sm:$0xf]
        %v6047 = vld [vmem:[#allocation2 + $0x104] sm:$0xf]
        %v6048 = vld [vmem:[#allocation2 + $0x128] sm:$0xf]
        %v6049 = vld [vmem:[#allocation2 + $0x14c] sm:$0xf]
        %v6050 = vld [vmem:[#allocation2 + $0x170] sm:$0xf]
        %v6051 = vld [vmem:[#allocation2 + $0x194] sm:$0xf]
        %v6052 = vld [vmem:[#allocation2 + $0x1b8] sm:$0xf]
        %v6053 = vld [vmem:[#allocation2 + $0x1dc] sm:$0xf]
        %v6054 = vld [vmem:[#allocation2 + $0x200] sm:$0xf]
        %v6055 = vld [vmem:[#allocation2 + $0x224] sm:$0xf]
        %v6056 = vld [vmem:[#allocation2 + $0x14] sm:$0xf]
        %v6057 = vld [vmem:[#allocation2 + $0x38] sm:$0xf]
        %v6058 = vld [vmem:[#allocation2 + $0x5c] sm:$0xf]
        %v6059 = vld [vmem:[#allocation2 + $0x80] sm:$0xf]
        %v6060 = vld [vmem:[#allocation2 + $0xa4] sm:$0xf]
        %v6061 = vld [vmem:[#allocation2 + $0xc8] sm:$0xf]
        %v6062 = vld [vmem:[#allocation2 + $0xec] sm:$0xf]
        %v6063 = vld [vmem:[#allocation2 + $0x110] sm:$0xf]
        %v6064 = vld [vmem:[#allocation2 + $0x134] sm:$0xf]
        %v6065 = vld [vmem:[#allocation2 + $0x158] sm:$0xf]
        %v6066 = vld [vmem:[#allocation2 + $0x17c] sm:$0xf]
        %v6067 = vld [vmem:[#allocation2 + $0x1a0] sm:$0xf]
        %v6068 = vld [vmem:[#allocation2 + $0x1c4] sm:$0xf]
        %v6069 = vld [vmem:[#allocation2 + $0x1e8] sm:$0xf]
        %v6070 = vld [vmem:[#allocation2 + $0x20c] sm:$0xf]
        %v6071 = vld [vmem:[#allocation2 + $0x230] sm:$0xf]
        %v6072 = vld [vmem:[#allocation2 + $0x20] sm:$0xf]
        %v6073 = vld [vmem:[#allocation2 + $0x44] sm:$0xf]
        %v6074 = vld [vmem:[#allocation2 + $0x68] sm:$0xf]
        %v6075 = vld [vmem:[#allocation2 + $0x8c] sm:$0xf]
        %v6076 = vld [vmem:[#allocation2 + $0xb0] sm:$0xf]
        %v6077 = vld [vmem:[#allocation2 + $0xd4] sm:$0xf]
        %v6078 = vld [vmem:[#allocation2 + $0xf8] sm:$0xf]
        %v6079 = vld [vmem:[#allocation2 + $0x11c] sm:$0xf]
        %v6080 = vld [vmem:[#allocation2 + $0x140] sm:$0xf]
        %v6081 = vld [vmem:[#allocation2 + $0x164] sm:$0xf]
        %v6082 = vld [vmem:[#allocation2 + $0x188] sm:$0xf]
        %v6083 = vld [vmem:[#allocation2 + $0x1ac] sm:$0xf]
        %v6084 = vld [vmem:[#allocation2 + $0x1d0] sm:$0xf]
        %v6085 = vld [vmem:[#allocation2 + $0x1f4] sm:$0xf]
        %v6086 = vld [vmem:[#allocation2 + $0x218] sm:$0xf]
        %v6087 = vld [vmem:[#allocation2 + $0x23c] sm:$0xf]
        %v6104 = vunpack.c.l.b16 %v6040
        %v6105 = vunpack.c.l.b16 %v6041
        %v6106 = vunpack.c.l.b16 %v6042
        %v6107 = vunpack.c.l.b16 %v6043
        %v6108 = vunpack.c.l.b16 %v6044
        %v6109 = vunpack.c.l.b16 %v6045
        %v6110 = vunpack.c.l.b16 %v6046
        %v6111 = vunpack.c.l.b16 %v6047
        %v6112 = vunpack.c.l.b16 %v6048
        %v6113 = vunpack.c.l.b16 %v6049
        %v6114 = vunpack.c.l.b16 %v6050
        %v6115 = vunpack.c.l.b16 %v6051
        %v6116 = vunpack.c.l.b16 %v6052
        %v6117 = vunpack.c.l.b16 %v6053
        %v6118 = vunpack.c.l.b16 %v6054
        %v6119 = vunpack.c.l.b16 %v6055
        %v6120 = vpack.c.b16 %v6105, %v6104
        %v6121 = vpack.c.b16 %v6107, %v6106
        %v6122 = vpack.c.b16 %v6109, %v6108
        %v6123 = vpack.c.b16 %v6111, %v6110
        %v6124 = vpack.c.b16 %v6113, %v6112
        %v6125 = vpack.c.b16 %v6115, %v6114
        %v6126 = vpack.c.b16 %v6117, %v6116
        %v6127 = vpack.c.b16 %v6119, %v6118
        %6128 = vrot.lane.b32.xlu0 %v6120, 64
        %v6129 = vpop.permute.xlu0 %6128
        %6130 = vrot.lane.b32.xlu0 %v6121, 64
        %v6131 = vpop.permute.xlu0 %6130
        %6132 = vrot.lane.b32.xlu0 %v6122, 64
        %v6133 = vpop.permute.xlu0 %6132
        %6134 = vrot.lane.b32.xlu0 %v6123, 64
        %v6135 = vpop.permute.xlu0 %6134
        %6136 = vrot.lane.b32.xlu0 %v6124, 64
        %v6137 = vpop.permute.xlu0 %6136
        %6138 = vrot.lane.b32.xlu0 %v6125, 64
        %v6139 = vpop.permute.xlu0 %6138
        %6140 = vrot.lane.b32.xlu0 %v6126, 64
        %v6141 = vpop.permute.xlu0 %6140
        %6142 = vrot.lane.b32.xlu0 %v6127, 64
        %v6143 = vpop.permute.xlu0 %6142
        %v6160 = vunpack.c.l.b16 %v6056
        %v6161 = vunpack.c.l.b16 %v6057
        %v6162 = vunpack.c.l.b16 %v6058
        %v6163 = vunpack.c.l.b16 %v6059
        %v6164 = vunpack.c.l.b16 %v6060
        %v6165 = vunpack.c.l.b16 %v6061
        %v6166 = vunpack.c.l.b16 %v6062
        %v6167 = vunpack.c.l.b16 %v6063
        %v6168 = vunpack.c.l.b16 %v6064
        %v6169 = vunpack.c.l.b16 %v6065
        %v6170 = vunpack.c.l.b16 %v6066
        %v6171 = vunpack.c.l.b16 %v6067
        %v6172 = vunpack.c.l.b16 %v6068
        %v6173 = vunpack.c.l.b16 %v6069
        %v6174 = vunpack.c.l.b16 %v6070
        %v6175 = vunpack.c.l.b16 %v6071
        %v6176 = vpack.c.b16 %v6161, %v6160
        %v6177 = vpack.c.b16 %v6163, %v6162
        %v6178 = vpack.c.b16 %v6165, %v6164
        %v6179 = vpack.c.b16 %v6167, %v6166
        %v6180 = vpack.c.b16 %v6169, %v6168
        %v6181 = vpack.c.b16 %v6171, %v6170
        %v6182 = vpack.c.b16 %v6173, %v6172
        %v6183 = vpack.c.b16 %v6175, %v6174
        %6184 = vrot.lane.b32.xlu0 %v6176, 64
        %v6185 = vpop.permute.xlu0 %6184
        %6186 = vrot.lane.b32.xlu0 %v6177, 64
        %v6187 = vpop.permute.xlu0 %6186
        %6188 = vrot.lane.b32.xlu0 %v6178, 64
        %v6189 = vpop.permute.xlu0 %6188
        %6190 = vrot.lane.b32.xlu0 %v6179, 64
        %v6191 = vpop.permute.xlu0 %6190
        %6192 = vrot.lane.b32.xlu0 %v6180, 64
        %v6193 = vpop.permute.xlu0 %6192
        %6194 = vrot.lane.b32.xlu0 %v6181, 64
        %v6195 = vpop.permute.xlu0 %6194
        %6196 = vrot.lane.b32.xlu0 %v6182, 64
        %v6197 = vpop.permute.xlu0 %6196
        %6198 = vrot.lane.b32.xlu0 %v6183, 64
        %v6199 = vpop.permute.xlu0 %6198
        %v6201 = vsel %vm3331, %v6129, 0
        %v6204 = vsel %vm3331, %v6131, 0
        %v6207 = vsel %vm3331, %v6133, 0
        %v6210 = vsel %vm3331, %v6135, 0
        %v6213 = vsel %vm3331, %v6137, 0
        %v6216 = vsel %vm3331, %v6139, 0
        %v6219 = vsel %vm3331, %v6141, 0
        %v6222 = vsel %vm3331, %v6143, 0
        %v6225 = vsel %vm3331, %v6185, 0
        %v6228 = vsel %vm3331, %v6187, 0
        %v6231 = vsel %vm3331, %v6189, 0
        %v6234 = vsel %vm3331, %v6191, 0
        %v6237 = vsel %vm3331, %v6193, 0
        %v6240 = vsel %vm3331, %v6195, 0
        %v6243 = vsel %vm3331, %v6197, 0
        %v6246 = vsel %vm3331, %v6199, 0
        %6248 = vmatpush.bf16.xpose.msra.mxu0 %v6246
        %6249 = vmatpush.bf16.xpose.msra.mxu0 %v6243
        %6250 = vmatpush.bf16.xpose.msra.mxu0 %v6240
        %6251 = vmatpush.bf16.xpose.msra.mxu0 %v6237
        %6252 = vmatpush.bf16.xpose.msra.mxu0 %v6234
        %6253 = vmatpush.bf16.xpose.msra.mxu0 %v6231
        %6254 = vmatpush.bf16.xpose.msra.mxu0 %v6228
        %6255 = vmatpush.bf16.xpose.msra.mxu0 %v6225
        %6256 = vmatmul.bf16.gmra.mxu0 %v6201
        %v6257 = vpop.f32.mrf.mxu0
        %v6258 = vadd.f32 0.0, %v6257
        %v6259 = vpop.f32.mrf.mxu0
        %v6260 = vadd.f32 0.0, %v6259
        %6261 = vmatmul.bf16.gmra.mxu0 %v6204
        %v6262 = vpop.f32.mrf.mxu0
        %v6263 = vadd.f32 0.0, %v6262
        %v6264 = vpop.f32.mrf.mxu0
        %v6265 = vadd.f32 0.0, %v6264
        %6266 = vmatmul.bf16.gmra.mxu0 %v6207
        %v6267 = vpop.f32.mrf.mxu0
        %v6268 = vadd.f32 0.0, %v6267
        %v6269 = vpop.f32.mrf.mxu0
        %v6270 = vadd.f32 0.0, %v6269
        %6271 = vmatmul.bf16.gmra.mxu0 %v6210
        %v6272 = vpop.f32.mrf.mxu0
        %v6273 = vadd.f32 0.0, %v6272
        %v6274 = vpop.f32.mrf.mxu0
        %v6275 = vadd.f32 0.0, %v6274
        %6276 = vmatmul.bf16.gmra.mxu0 %v6213
        %v6277 = vpop.f32.mrf.mxu0
        %v6278 = vadd.f32 0.0, %v6277
        %v6279 = vpop.f32.mrf.mxu0
        %v6280 = vadd.f32 0.0, %v6279
        %6281 = vmatmul.bf16.gmra.mxu0 %v6216
        %v6282 = vpop.f32.mrf.mxu0
        %v6283 = vadd.f32 0.0, %v6282
        %v6284 = vpop.f32.mrf.mxu0
        %v6285 = vadd.f32 0.0, %v6284
        %6286 = vmatmul.bf16.gmra.mxu0 %v6219
        %v6287 = vpop.f32.mrf.mxu0
        %v6288 = vadd.f32 0.0, %v6287
        %v6289 = vpop.f32.mrf.mxu0
        %v6290 = vadd.f32 0.0, %v6289
        %6291 = vmatmul.bf16.gmra.mxu0 %v6222
        %v6292 = vpop.f32.mrf.mxu0
        %v6293 = vadd.f32 0.0, %v6292
        %v6294 = vpop.f32.mrf.mxu0
        %v6295 = vadd.f32 0.0, %v6294
        %6296 = vdwg.mxu0
        %v6297 = vsel %vm3187, %v6258, -1e+30
        %v6298 = vsel %vm3188, %v6260, -1e+30
        %v6299 = vsel %vm3189, %v6263, -1e+30
        %v6300 = vsel %vm3190, %v6265, -1e+30
        %v6301 = vsel %vm3191, %v6268, -1e+30
        %v6302 = vsel %vm3192, %v6270, -1e+30
        %v6303 = vsel %vm3193, %v6273, -1e+30
        %v6304 = vsel %vm3194, %v6275, -1e+30
        %v6305 = vsel %vm3195, %v6278, -1e+30
        %v6306 = vsel %vm3196, %v6280, -1e+30
        %v6307 = vsel %vm3197, %v6283, -1e+30
        %v6308 = vsel %vm3198, %v6285, -1e+30
        %v6309 = vsel %vm3199, %v6288, -1e+30
        %v6310 = vsel %vm3200, %v6290, -1e+30
        %v6311 = vsel %vm3201, %v6293, -1e+30
        %v6312 = vsel %vm3202, %v6295, -1e+30
        %6313 = vmax.xlane.f32.xlu0 %v6297
        %v6314 = vpop.xlane.xlu0 %6313
        %6315 = vmax.xlane.f32.xlu0 %v6298
        %v6316 = vpop.xlane.xlu0 %6315
        %6317 = vmax.xlane.f32.xlu0 %v6299
        %v6318 = vpop.xlane.xlu0 %6317
        %6319 = vmax.xlane.f32.xlu0 %v6300
        %v6320 = vpop.xlane.xlu0 %6319
        %6321 = vmax.xlane.f32.xlu0 %v6301
        %v6322 = vpop.xlane.xlu0 %6321
        %6323 = vmax.xlane.f32.xlu0 %v6302
        %v6324 = vpop.xlane.xlu0 %6323
        %6325 = vmax.xlane.f32.xlu0 %v6303
        %v6326 = vpop.xlane.xlu0 %6325
        %6327 = vmax.xlane.f32.xlu0 %v6304
        %v6328 = vpop.xlane.xlu0 %6327
        %6329 = vmax.xlane.f32.xlu0 %v6305
        %v6330 = vpop.xlane.xlu0 %6329
        %6331 = vmax.xlane.f32.xlu0 %v6306
        %v6332 = vpop.xlane.xlu0 %6331
        %6333 = vmax.xlane.f32.xlu0 %v6307
        %v6334 = vpop.xlane.xlu0 %6333
        %6335 = vmax.xlane.f32.xlu0 %v6308
        %v6336 = vpop.xlane.xlu0 %6335
        %6337 = vmax.xlane.f32.xlu0 %v6309
        %v6338 = vpop.xlane.xlu0 %6337
        %6339 = vmax.xlane.f32.xlu0 %v6310
        %v6340 = vpop.xlane.xlu0 %6339
        %6341 = vmax.xlane.f32.xlu0 %v6311
        %v6342 = vpop.xlane.xlu0 %6341
        %6343 = vmax.xlane.f32.xlu0 %v6312
        %v6344 = vpop.xlane.xlu0 %6343
        %v6345 = vsub.f32 %v6297, %v6314
        %v6346 = vsub.f32 %v6298, %v6316
        %v6347 = vsub.f32 %v6299, %v6318
        %v6348 = vsub.f32 %v6300, %v6320
        %v6349 = vsub.f32 %v6301, %v6322
        %v6350 = vsub.f32 %v6302, %v6324
        %v6351 = vsub.f32 %v6303, %v6326
        %v6352 = vsub.f32 %v6304, %v6328
        %v6353 = vsub.f32 %v6305, %v6330
        %v6354 = vsub.f32 %v6306, %v6332
        %v6355 = vsub.f32 %v6307, %v6334
        %v6356 = vsub.f32 %v6308, %v6336
        %v6357 = vsub.f32 %v6309, %v6338
        %v6358 = vsub.f32 %v6310, %v6340
        %v6359 = vsub.f32 %v6311, %v6342
        %v6360 = vsub.f32 %v6312, %v6344
        %v6361 = vmul.f32 %v6345, 1.442695
        %v6362 = vpow.pop %v6361
        %v6363 = vmul.f32 %v6346, 1.442695
        %v6364 = vpow.pop %v6363
        %v6365 = vmul.f32 %v6347, 1.442695
        %v6366 = vpow.pop %v6365
        %v6367 = vmul.f32 %v6348, 1.442695
        %v6368 = vpow.pop %v6367
        %v6369 = vmul.f32 %v6349, 1.442695
        %v6370 = vpow.pop %v6369
        %v6371 = vmul.f32 %v6350, 1.442695
        %v6372 = vpow.pop %v6371
        %v6373 = vmul.f32 %v6351, 1.442695
        %v6374 = vpow.pop %v6373
        %v6375 = vmul.f32 %v6352, 1.442695
        %v6376 = vpow.pop %v6375
        %v6377 = vmul.f32 %v6353, 1.442695
        %v6378 = vpow.pop %v6377
        %v6379 = vmul.f32 %v6354, 1.442695
        %v6380 = vpow.pop %v6379
        %v6381 = vmul.f32 %v6355, 1.442695
        %v6382 = vpow.pop %v6381
        %v6383 = vmul.f32 %v6356, 1.442695
        %v6384 = vpow.pop %v6383
        %v6385 = vmul.f32 %v6357, 1.442695
        %v6386 = vpow.pop %v6385
        %v6387 = vmul.f32 %v6358, 1.442695
        %v6388 = vpow.pop %v6387
        %v6389 = vmul.f32 %v6359, 1.442695
        %v6390 = vpow.pop %v6389
        %v6391 = vmul.f32 %v6360, 1.442695
        %v6392 = vpow.pop %v6391
        %6393 = vadd.xlane.f32.xlu0 %v6362
        %v6394 = vpop.xlane.xlu0 %6393
        %6395 = vadd.xlane.f32.xlu0 %v6364
        %v6396 = vpop.xlane.xlu0 %6395
        %6397 = vadd.xlane.f32.xlu0 %v6366
        %v6398 = vpop.xlane.xlu0 %6397
        %6399 = vadd.xlane.f32.xlu0 %v6368
        %v6400 = vpop.xlane.xlu0 %6399
        %6401 = vadd.xlane.f32.xlu0 %v6370
        %v6402 = vpop.xlane.xlu0 %6401
        %6403 = vadd.xlane.f32.xlu0 %v6372
        %v6404 = vpop.xlane.xlu0 %6403
        %6405 = vadd.xlane.f32.xlu0 %v6374
        %v6406 = vpop.xlane.xlu0 %6405
        %6407 = vadd.xlane.f32.xlu0 %v6376
        %v6408 = vpop.xlane.xlu0 %6407
        %6409 = vadd.xlane.f32.xlu0 %v6378
        %v6410 = vpop.xlane.xlu0 %6409
        %6411 = vadd.xlane.f32.xlu0 %v6380
        %v6412 = vpop.xlane.xlu0 %6411
        %6413 = vadd.xlane.f32.xlu0 %v6382
        %v6414 = vpop.xlane.xlu0 %6413
        %6415 = vadd.xlane.f32.xlu0 %v6384
        %v6416 = vpop.xlane.xlu0 %6415
        %6417 = vadd.xlane.f32.xlu0 %v6386
        %v6418 = vpop.xlane.xlu0 %6417
        %6419 = vadd.xlane.f32.xlu0 %v6388
        %v6420 = vpop.xlane.xlu0 %6419
        %6421 = vadd.xlane.f32.xlu0 %v6390
        %v6422 = vpop.xlane.xlu0 %6421
        %6423 = vadd.xlane.f32.xlu0 %v6392
        %v6424 = vpop.xlane.xlu0 %6423
        %v6425 = vpack.c.bf16 %v6364, %v6362
        %v6426 = vpack.c.bf16 %v6368, %v6366
        %v6427 = vpack.c.bf16 %v6372, %v6370
        %v6428 = vpack.c.bf16 %v6376, %v6374
        %v6429 = vpack.c.bf16 %v6380, %v6378
        %v6430 = vpack.c.bf16 %v6384, %v6382
        %v6431 = vpack.c.bf16 %v6388, %v6386
        %v6432 = vpack.c.bf16 %v6392, %v6390
        %v6449 = vunpack.c.l.b16 %v6072
        %v6450 = vunpack.c.l.b16 %v6073
        %v6451 = vunpack.c.l.b16 %v6074
        %v6452 = vunpack.c.l.b16 %v6075
        %v6453 = vunpack.c.l.b16 %v6076
        %v6454 = vunpack.c.l.b16 %v6077
        %v6455 = vunpack.c.l.b16 %v6078
        %v6456 = vunpack.c.l.b16 %v6079
        %v6457 = vunpack.c.l.b16 %v6080
        %v6458 = vunpack.c.l.b16 %v6081
        %v6459 = vunpack.c.l.b16 %v6082
        %v6460 = vunpack.c.l.b16 %v6083
        %v6461 = vunpack.c.l.b16 %v6084
        %v6462 = vunpack.c.l.b16 %v6085
        %v6463 = vunpack.c.l.b16 %v6086
        %v6464 = vunpack.c.l.b16 %v6087
        %v6465 = vpack.c.b16 %v6450, %v6449
        %v6466 = vpack.c.b16 %v6452, %v6451
        %v6467 = vpack.c.b16 %v6454, %v6453
        %v6468 = vpack.c.b16 %v6456, %v6455
        %v6469 = vpack.c.b16 %v6458, %v6457
        %v6470 = vpack.c.b16 %v6460, %v6459
        %v6471 = vpack.c.b16 %v6462, %v6461
        %v6472 = vpack.c.b16 %v6464, %v6463
        %6473 = vrot.lane.b32.xlu0 %v6465, 64
        %v6474 = vpop.permute.xlu0 %6473
        %6475 = vrot.lane.b32.xlu0 %v6466, 64
        %v6476 = vpop.permute.xlu0 %6475
        %6477 = vrot.lane.b32.xlu0 %v6467, 64
        %v6478 = vpop.permute.xlu0 %6477
        %6479 = vrot.lane.b32.xlu0 %v6468, 64
        %v6480 = vpop.permute.xlu0 %6479
        %6481 = vrot.lane.b32.xlu0 %v6469, 64
        %v6482 = vpop.permute.xlu0 %6481
        %6483 = vrot.lane.b32.xlu0 %v6470, 64
        %v6484 = vpop.permute.xlu0 %6483
        %6485 = vrot.lane.b32.xlu0 %v6471, 64
        %v6486 = vpop.permute.xlu0 %6485
        %6487 = vrot.lane.b32.xlu0 %v6472, 64
        %v6488 = vpop.permute.xlu0 %6487
        %6497 = vmatpush.bf16.msra.mxu0 %v6488
        %6498 = vmatpush.bf16.msra.mxu0 %v6486
        %6499 = vmatpush.bf16.msra.mxu0 %v6484
        %6500 = vmatpush.bf16.msra.mxu0 %v6482
        %6501 = vmatpush.bf16.msra.mxu0 %v6480
        %6502 = vmatpush.bf16.msra.mxu0 %v6478
        %6503 = vmatpush.bf16.msra.mxu0 %v6476
        %6504 = vmatpush.bf16.msra.mxu0 %v6474
        %6505 = vmatmul.bf16.gmra.mxu0 %v6425
        %v6506 = vpop.f32.mrf.mxu0
        %v6507 = vadd.f32 0.0, %v6506
        %v6508 = vpop.f32.mrf.mxu0
        %v6509 = vadd.f32 0.0, %v6508
        %6510 = vmatmul.bf16.gmra.mxu0 %v6426
        %v6511 = vpop.f32.mrf.mxu0
        %v6512 = vadd.f32 0.0, %v6511
        %v6513 = vpop.f32.mrf.mxu0
        %v6514 = vadd.f32 0.0, %v6513
        %6515 = vmatmul.bf16.gmra.mxu0 %v6427
        %v6516 = vpop.f32.mrf.mxu0
        %v6517 = vadd.f32 0.0, %v6516
        %v6518 = vpop.f32.mrf.mxu0
        %v6519 = vadd.f32 0.0, %v6518
        %6520 = vmatmul.bf16.gmra.mxu0 %v6428
        %v6521 = vpop.f32.mrf.mxu0
        %v6522 = vadd.f32 0.0, %v6521
        %v6523 = vpop.f32.mrf.mxu0
        %v6524 = vadd.f32 0.0, %v6523
        %6525 = vmatmul.bf16.gmra.mxu0 %v6429
        %v6526 = vpop.f32.mrf.mxu0
        %v6527 = vadd.f32 0.0, %v6526
        %v6528 = vpop.f32.mrf.mxu0
        %v6529 = vadd.f32 0.0, %v6528
        %6530 = vmatmul.bf16.gmra.mxu0 %v6430
        %v6531 = vpop.f32.mrf.mxu0
        %v6532 = vadd.f32 0.0, %v6531
        %v6533 = vpop.f32.mrf.mxu0
        %v6534 = vadd.f32 0.0, %v6533
        %6535 = vmatmul.bf16.gmra.mxu0 %v6431
        %v6536 = vpop.f32.mrf.mxu0
        %v6537 = vadd.f32 0.0, %v6536
        %v6538 = vpop.f32.mrf.mxu0
        %v6539 = vadd.f32 0.0, %v6538
        %6540 = vmatmul.bf16.gmra.mxu0 %v6432
        %v6541 = vpop.f32.mrf.mxu0
        %v6542 = vadd.f32 0.0, %v6541
        %v6543 = vpop.f32.mrf.mxu0
        %v6544 = vadd.f32 0.0, %v6543
        %6545 = vdwg.mxu0
        %v6546 = vrcp.pop %v6394
        %v6547 = vrcp.pop %v6396
        %v6548 = vrcp.pop %v6398
        %v6549 = vrcp.pop %v6400
        %v6550 = vrcp.pop %v6402
        %v6551 = vrcp.pop %v6404
        %v6552 = vrcp.pop %v6406
        %v6553 = vrcp.pop %v6408
        %v6554 = vrcp.pop %v6410
        %v6555 = vrcp.pop %v6412
        %v6556 = vrcp.pop %v6414
        %v6557 = vrcp.pop %v6416
        %v6558 = vrcp.pop %v6418
        %v6559 = vrcp.pop %v6420
        %v6560 = vrcp.pop %v6422
        %v6561 = vrcp.pop %v6424
        %v6562 = vmul.f32 %v6507, %v6546
        %v6563 = vmul.f32 %v6509, %v6547
        %v6564 = vmul.f32 %v6512, %v6548
        %v6565 = vmul.f32 %v6514, %v6549
        %v6566 = vmul.f32 %v6517, %v6550
        %v6567 = vmul.f32 %v6519, %v6551
        %v6568 = vmul.f32 %v6522, %v6552
        %v6569 = vmul.f32 %v6524, %v6553
        %v6570 = vmul.f32 %v6527, %v6554
        %v6571 = vmul.f32 %v6529, %v6555
        %v6572 = vmul.f32 %v6532, %v6556
        %v6573 = vmul.f32 %v6534, %v6557
        %v6574 = vmul.f32 %v6537, %v6558
        %v6575 = vmul.f32 %v6539, %v6559
        %v6576 = vmul.f32 %v6542, %v6560
        %v6577 = vmul.f32 %v6544, %v6561
        %v6578 = vpack.c.bf16 %v6562, %v6562
        %v6579 = vpack.c.bf16 %v6563, %v6563
        %v6580 = vpack.c.bf16 %v6564, %v6564
        %v6581 = vpack.c.bf16 %v6565, %v6565
        %v6582 = vpack.c.bf16 %v6566, %v6566
        %v6583 = vpack.c.bf16 %v6567, %v6567
        %v6584 = vpack.c.bf16 %v6568, %v6568
        %v6585 = vpack.c.bf16 %v6569, %v6569
        %v6586 = vpack.c.bf16 %v6570, %v6570
        %v6587 = vpack.c.bf16 %v6571, %v6571
        %v6588 = vpack.c.bf16 %v6572, %v6572
        %v6589 = vpack.c.bf16 %v6573, %v6573
        %v6590 = vpack.c.bf16 %v6574, %v6574
        %v6591 = vpack.c.bf16 %v6575, %v6575
        %v6592 = vpack.c.bf16 %v6576, %v6576
        %v6593 = vpack.c.bf16 %v6577, %v6577
        %6610 = vrot.lane.b32.xlu0 %v6578, 64
        %v6611 = vpop.permute.xlu0 %6610
        %6612 = vrot.lane.b32.xlu0 %v6579, 64
        %v6613 = vpop.permute.xlu0 %6612
        %6614 = vrot.lane.b32.xlu0 %v6580, 64
        %v6615 = vpop.permute.xlu0 %6614
        %6616 = vrot.lane.b32.xlu0 %v6581, 64
        %v6617 = vpop.permute.xlu0 %6616
        %6618 = vrot.lane.b32.xlu0 %v6582, 64
        %v6619 = vpop.permute.xlu0 %6618
        %6620 = vrot.lane.b32.xlu0 %v6583, 64
        %v6621 = vpop.permute.xlu0 %6620
        %6622 = vrot.lane.b32.xlu0 %v6584, 64
        %v6623 = vpop.permute.xlu0 %6622
        %6624 = vrot.lane.b32.xlu0 %v6585, 64
        %v6625 = vpop.permute.xlu0 %6624
        %6626 = vrot.lane.b32.xlu0 %v6586, 64
        %v6627 = vpop.permute.xlu0 %6626
        %6628 = vrot.lane.b32.xlu0 %v6587, 64
        %v6629 = vpop.permute.xlu0 %6628
        %6630 = vrot.lane.b32.xlu0 %v6588, 64
        %v6631 = vpop.permute.xlu0 %6630
        %6632 = vrot.lane.b32.xlu0 %v6589, 64
        %v6633 = vpop.permute.xlu0 %6632
        %6634 = vrot.lane.b32.xlu0 %v6590, 64
        %v6635 = vpop.permute.xlu0 %6634
        %6636 = vrot.lane.b32.xlu0 %v6591, 64
        %v6637 = vpop.permute.xlu0 %6636
        %6638 = vrot.lane.b32.xlu0 %v6592, 64
        %v6639 = vpop.permute.xlu0 %6638
        %6640 = vrot.lane.b32.xlu0 %v6593, 64
        %v6641 = vpop.permute.xlu0 %6640
        %6658 = vst.msk [vmem:[#allocation3 + $0x8] sm:$0xf] %vm4345, %v6611
        %6659 = vst.msk [vmem:[#allocation3 + $0x14] sm:$0xf] %vm4345, %v6613
        %6660 = vst.msk [vmem:[#allocation3 + $0x20] sm:$0xf] %vm4345, %v6615
        %6661 = vst.msk [vmem:[#allocation3 + $0x2c] sm:$0xf] %vm4345, %v6617
        %6662 = vst.msk [vmem:[#allocation3 + $0x38] sm:$0xf] %vm4345, %v6619
        %6663 = vst.msk [vmem:[#allocation3 + $0x44] sm:$0xf] %vm4345, %v6621
        %6664 = vst.msk [vmem:[#allocation3 + $0x50] sm:$0xf] %vm4345, %v6623
        %6665 = vst.msk [vmem:[#allocation3 + $0x5c] sm:$0xf] %vm4345, %v6625
        %6666 = vst.msk [vmem:[#allocation3 + $0x68] sm:$0xf] %vm4345, %v6627
        %6667 = vst.msk [vmem:[#allocation3 + $0x74] sm:$0xf] %vm4345, %v6629
        %6668 = vst.msk [vmem:[#allocation3 + $0x80] sm:$0xf] %vm4345, %v6631
        %6669 = vst.msk [vmem:[#allocation3 + $0x8c] sm:$0xf] %vm4345, %v6633
        %6670 = vst.msk [vmem:[#allocation3 + $0x98] sm:$0xf] %vm4345, %v6635
        %6671 = vst.msk [vmem:[#allocation3 + $0xa4] sm:$0xf] %vm4345, %v6637
        %6672 = vst.msk [vmem:[#allocation3 + $0xb0] sm:$0xf] %vm4345, %v6639
        %6673 = vst.msk [vmem:[#allocation3 + $0xbc] sm:$0xf] %vm4345, %v6641
        %v6674 = vld [vmem:[#allocation3] sm:$0xff]
        %v6675 = vld [vmem:[#allocation3 + $0x8] sm:$0xf]
        %v6676 = vld [vmem:[#allocation3 + $0xc] sm:$0xff]
        %v6677 = vld [vmem:[#allocation3 + $0x14] sm:$0xf]
        %v6678 = vld [vmem:[#allocation3 + $0x18] sm:$0xff]
        %v6679 = vld [vmem:[#allocation3 + $0x20] sm:$0xf]
        %v6680 = vld [vmem:[#allocation3 + $0x24] sm:$0xff]
        %v6681 = vld [vmem:[#allocation3 + $0x2c] sm:$0xf]
        %v6682 = vld [vmem:[#allocation3 + $0x30] sm:$0xff]
        %v6683 = vld [vmem:[#allocation3 + $0x38] sm:$0xf]
        %v6684 = vld [vmem:[#allocation3 + $0x3c] sm:$0xff]
        %v6685 = vld [vmem:[#allocation3 + $0x44] sm:$0xf]
        %v6686 = vld [vmem:[#allocation3 + $0x48] sm:$0xff]
        %v6687 = vld [vmem:[#allocation3 + $0x50] sm:$0xf]
        %v6688 = vld [vmem:[#allocation3 + $0x54] sm:$0xff]
        %v6689 = vld [vmem:[#allocation3 + $0x5c] sm:$0xf]
        %v6690 = vld [vmem:[#allocation3 + $0x60] sm:$0xff]
        %v6691 = vld [vmem:[#allocation3 + $0x68] sm:$0xf]
        %v6692 = vld [vmem:[#allocation3 + $0x6c] sm:$0xff]
        %v6693 = vld [vmem:[#allocation3 + $0x74] sm:$0xf]
        %v6694 = vld [vmem:[#allocation3 + $0x78] sm:$0xff]
        %v6695 = vld [vmem:[#allocation3 + $0x80] sm:$0xf]
        %v6696 = vld [vmem:[#allocation3 + $0x84] sm:$0xff]
        %v6697 = vld [vmem:[#allocation3 + $0x8c] sm:$0xf]
        %v6698 = vld [vmem:[#allocation3 + $0x90] sm:$0xff]
        %v6699 = vld [vmem:[#allocation3 + $0x98] sm:$0xf]
        %v6700 = vld [vmem:[#allocation3 + $0x9c] sm:$0xff]
        %v6701 = vld [vmem:[#allocation3 + $0xa4] sm:$0xf]
        %v6702 = vld [vmem:[#allocation3 + $0xa8] sm:$0xff]
        %v6703 = vld [vmem:[#allocation3 + $0xb0] sm:$0xf]
        %v6704 = vld [vmem:[#allocation3 + $0xb4] sm:$0xff]
        %v6705 = vld [vmem:[#allocation3 + $0xbc] sm:$0xf]
        %v6706 = vld [vmem:[#allocation9] sm:$0xff]
        %v6707 = vld [vmem:[#allocation9 + $0x8] sm:$0xf]
        %v6708 = vld [vmem:[#allocation9 + $0xc] sm:$0xff]
        %v6709 = vld [vmem:[#allocation9 + $0x14] sm:$0xf]
        %v6710 = vld [vmem:[#allocation9 + $0x18] sm:$0xff]
        %v6711 = vld [vmem:[#allocation9 + $0x20] sm:$0xf]
        %v6712 = vld [vmem:[#allocation9 + $0x24] sm:$0xff]
        %v6713 = vld [vmem:[#allocation9 + $0x2c] sm:$0xf]
        %v6714 = vld [vmem:[#allocation9 + $0x30] sm:$0xff]
        %v6715 = vld [vmem:[#allocation9 + $0x38] sm:$0xf]
        %v6716 = vld [vmem:[#allocation9 + $0x3c] sm:$0xff]
        %v6717 = vld [vmem:[#allocation9 + $0x44] sm:$0xf]
        %v6718 = vld [vmem:[#allocation9 + $0x48] sm:$0xff]
        %v6719 = vld [vmem:[#allocation9 + $0x50] sm:$0xf]
        %v6720 = vld [vmem:[#allocation9 + $0x54] sm:$0xff]
        %v6721 = vld [vmem:[#allocation9 + $0x5c] sm:$0xf]
        %v6722 = vld [vmem:[#allocation9 + $0x60] sm:$0xff]
        %v6723 = vld [vmem:[#allocation9 + $0x68] sm:$0xf]
        %v6724 = vld [vmem:[#allocation9 + $0x6c] sm:$0xff]
        %v6725 = vld [vmem:[#allocation9 + $0x74] sm:$0xf]
        %v6726 = vld [vmem:[#allocation9 + $0x78] sm:$0xff]
        %v6727 = vld [vmem:[#allocation9 + $0x80] sm:$0xf]
        %v6728 = vld [vmem:[#allocation9 + $0x84] sm:$0xff]
        %v6729 = vld [vmem:[#allocation9 + $0x8c] sm:$0xf]
        %v6730 = vld [vmem:[#allocation9 + $0x90] sm:$0xff]
        %v6731 = vld [vmem:[#allocation9 + $0x98] sm:$0xf]
        %v6732 = vld [vmem:[#allocation9 + $0x9c] sm:$0xff]
        %v6733 = vld [vmem:[#allocation9 + $0xa4] sm:$0xf]
        %v6734 = vld [vmem:[#allocation9 + $0xa8] sm:$0xff]
        %v6735 = vld [vmem:[#allocation9 + $0xb0] sm:$0xf]
        %v6736 = vld [vmem:[#allocation9 + $0xb4] sm:$0xff]
        %v6737 = vld [vmem:[#allocation9 + $0xbc] sm:$0xf]
        %v6738 = vld [vmem:[#allocation9 + $0xc0] sm:$0xff]
        %v6739 = vld [vmem:[#allocation9 + $0xc8] sm:$0xf]
        %v6740 = vld [vmem:[#allocation9 + $0xcc] sm:$0xff]
        %v6741 = vld [vmem:[#allocation9 + $0xd4] sm:$0xf]
        %v6742 = vld [vmem:[#allocation9 + $0xd8] sm:$0xff]
        %v6743 = vld [vmem:[#allocation9 + $0xe0] sm:$0xf]
        %v6744 = vld [vmem:[#allocation9 + $0xe4] sm:$0xff]
        %v6745 = vld [vmem:[#allocation9 + $0xec] sm:$0xf]
        %v6746 = vld [vmem:[#allocation9 + $0xf0] sm:$0xff]
        %v6747 = vld [vmem:[#allocation9 + $0xf8] sm:$0xf]
        %v6748 = vld [vmem:[#allocation9 + $0xfc] sm:$0xff]
        %v6749 = vld [vmem:[#allocation9 + $0x104] sm:$0xf]
        %v6750 = vld [vmem:[#allocation9 + $0x108] sm:$0xff]
        %v6751 = vld [vmem:[#allocation9 + $0x110] sm:$0xf]
        %v6752 = vld [vmem:[#allocation9 + $0x114] sm:$0xff]
        %v6753 = vld [vmem:[#allocation9 + $0x11c] sm:$0xf]
        %v6754 = vld [vmem:[#allocation9 + $0x120] sm:$0xff]
        %v6755 = vld [vmem:[#allocation9 + $0x128] sm:$0xf]
        %v6756 = vld [vmem:[#allocation9 + $0x12c] sm:$0xff]
        %v6757 = vld [vmem:[#allocation9 + $0x134] sm:$0xf]
        %v6758 = vld [vmem:[#allocation9 + $0x138] sm:$0xff]
        %v6759 = vld [vmem:[#allocation9 + $0x140] sm:$0xf]
        %v6760 = vld [vmem:[#allocation9 + $0x144] sm:$0xff]
        %v6761 = vld [vmem:[#allocation9 + $0x14c] sm:$0xf]
        %v6762 = vld [vmem:[#allocation9 + $0x150] sm:$0xff]
        %v6763 = vld [vmem:[#allocation9 + $0x158] sm:$0xf]
        %v6764 = vld [vmem:[#allocation9 + $0x15c] sm:$0xff]
        %v6765 = vld [vmem:[#allocation9 + $0x164] sm:$0xf]
        %v6766 = vld [vmem:[#allocation9 + $0x168] sm:$0xff]
        %v6767 = vld [vmem:[#allocation9 + $0x170] sm:$0xf]
        %v6768 = vld [vmem:[#allocation9 + $0x174] sm:$0xff]
        %v6769 = vld [vmem:[#allocation9 + $0x17c] sm:$0xf]
        %v6770 = vld [vmem:[#allocation9 + $0x180] sm:$0xff]
        %v6771 = vld [vmem:[#allocation9 + $0x188] sm:$0xf]
        %v6772 = vld [vmem:[#allocation9 + $0x18c] sm:$0xff]
        %v6773 = vld [vmem:[#allocation9 + $0x194] sm:$0xf]
        %v6774 = vld [vmem:[#allocation9 + $0x198] sm:$0xff]
        %v6775 = vld [vmem:[#allocation9 + $0x1a0] sm:$0xf]
        %v6776 = vld [vmem:[#allocation9 + $0x1a4] sm:$0xff]
        %v6777 = vld [vmem:[#allocation9 + $0x1ac] sm:$0xf]
        %v6778 = vld [vmem:[#allocation9 + $0x1b0] sm:$0xff]
        %v6779 = vld [vmem:[#allocation9 + $0x1b8] sm:$0xf]
        %v6780 = vld [vmem:[#allocation9 + $0x1bc] sm:$0xff]
        %v6781 = vld [vmem:[#allocation9 + $0x1c4] sm:$0xf]
        %v6782 = vld [vmem:[#allocation9 + $0x1c8] sm:$0xff]
        %v6783 = vld [vmem:[#allocation9 + $0x1d0] sm:$0xf]
        %v6784 = vld [vmem:[#allocation9 + $0x1d4] sm:$0xff]
        %v6785 = vld [vmem:[#allocation9 + $0x1dc] sm:$0xf]
        %v6786 = vld [vmem:[#allocation9 + $0x1e0] sm:$0xff]
        %v6787 = vld [vmem:[#allocation9 + $0x1e8] sm:$0xf]
        %v6788 = vld [vmem:[#allocation9 + $0x1ec] sm:$0xff]
        %v6789 = vld [vmem:[#allocation9 + $0x1f4] sm:$0xf]
        %v6790 = vld [vmem:[#allocation9 + $0x1f8] sm:$0xff]
        %v6791 = vld [vmem:[#allocation9 + $0x200] sm:$0xf]
        %v6792 = vld [vmem:[#allocation9 + $0x204] sm:$0xff]
        %v6793 = vld [vmem:[#allocation9 + $0x20c] sm:$0xf]
        %v6794 = vld [vmem:[#allocation9 + $0x210] sm:$0xff]
        %v6795 = vld [vmem:[#allocation9 + $0x218] sm:$0xf]
        %v6796 = vld [vmem:[#allocation9 + $0x21c] sm:$0xff]
        %v6797 = vld [vmem:[#allocation9 + $0x224] sm:$0xf]
        %v6798 = vld [vmem:[#allocation9 + $0x228] sm:$0xff]
        %v6799 = vld [vmem:[#allocation9 + $0x230] sm:$0xf]
        %v6800 = vld [vmem:[#allocation9 + $0x234] sm:$0xff]
        %v6801 = vld [vmem:[#allocation9 + $0x23c] sm:$0xf]
        %v6802 = vld [vmem:[#allocation10] sm:$0x7]
        %v6804 = vperm.slane %v6802, 0
        %v6805 = vperm.slane %v6802, 1
        %v6806 = vperm.slane %v6802, 2
        %v6842 = vunpack.c.l.b16 %v6674
        %v6843 = vunpack.c.h.b16 %v6674
        %v6844 = vunpack.c.l.b16 %v6675
        %v6845 = vunpack.c.l.b16 %v6676
        %v6846 = vunpack.c.h.b16 %v6676
        %v6847 = vunpack.c.l.b16 %v6677
        %v6848 = vunpack.c.l.b16 %v6678
        %v6849 = vunpack.c.h.b16 %v6678
        %v6850 = vunpack.c.l.b16 %v6679
        %v6851 = vunpack.c.l.b16 %v6680
        %v6852 = vunpack.c.h.b16 %v6680
        %v6853 = vunpack.c.l.b16 %v6681
        %v6854 = vunpack.c.l.b16 %v6682
        %v6855 = vunpack.c.h.b16 %v6682
        %v6856 = vunpack.c.l.b16 %v6683
        %v6857 = vunpack.c.l.b16 %v6684
        %v6858 = vunpack.c.h.b16 %v6684
        %v6859 = vunpack.c.l.b16 %v6685
        %v6860 = vunpack.c.l.b16 %v6686
        %v6861 = vunpack.c.h.b16 %v6686
        %v6862 = vunpack.c.l.b16 %v6687
        %v6863 = vunpack.c.l.b16 %v6688
        %v6864 = vunpack.c.h.b16 %v6688
        %v6865 = vunpack.c.l.b16 %v6689
        %v6866 = vunpack.c.l.b16 %v6690
        %v6867 = vunpack.c.h.b16 %v6690
        %v6868 = vunpack.c.l.b16 %v6691
        %v6869 = vunpack.c.l.b16 %v6692
        %v6870 = vunpack.c.h.b16 %v6692
        %v6871 = vunpack.c.l.b16 %v6693
        %v6872 = vunpack.c.l.b16 %v6694
        %v6873 = vunpack.c.h.b16 %v6694
        %v6874 = vunpack.c.l.b16 %v6695
        %v6875 = vunpack.c.l.b16 %v6696
        %v6876 = vunpack.c.h.b16 %v6696
        %v6877 = vunpack.c.l.b16 %v6697
        %v6878 = vunpack.c.l.b16 %v6698
        %v6879 = vunpack.c.h.b16 %v6698
        %v6880 = vunpack.c.l.b16 %v6699
        %v6881 = vunpack.c.l.b16 %v6700
        %v6882 = vunpack.c.h.b16 %v6700
        %v6883 = vunpack.c.l.b16 %v6701
        %v6884 = vunpack.c.l.b16 %v6702
        %v6885 = vunpack.c.h.b16 %v6702
        %v6886 = vunpack.c.l.b16 %v6703
        %v6887 = vunpack.c.l.b16 %v6704
        %v6888 = vunpack.c.h.b16 %v6704
        %v6889 = vunpack.c.l.b16 %v6705
        %v6890 = vpack.c.b16 %v6845, %v6842
        %v6891 = vpack.c.b16 %v6846, %v6843
        %v6892 = vpack.c.b16 %v6847, %v6844
        %v6893 = vpack.c.b16 %v6851, %v6848
        %v6894 = vpack.c.b16 %v6852, %v6849
        %v6895 = vpack.c.b16 %v6853, %v6850
        %v6896 = vpack.c.b16 %v6857, %v6854
        %v6897 = vpack.c.b16 %v6858, %v6855
        %v6898 = vpack.c.b16 %v6859, %v6856
        %v6899 = vpack.c.b16 %v6863, %v6860
        %v6900 = vpack.c.b16 %v6864, %v6861
        %v6901 = vpack.c.b16 %v6865, %v6862
        %v6902 = vpack.c.b16 %v6869, %v6866
        %v6903 = vpack.c.b16 %v6870, %v6867
        %v6904 = vpack.c.b16 %v6871, %v6868
        %v6905 = vpack.c.b16 %v6875, %v6872
        %v6906 = vpack.c.b16 %v6876, %v6873
        %v6907 = vpack.c.b16 %v6877, %v6874
        %v6908 = vpack.c.b16 %v6881, %v6878
        %v6909 = vpack.c.b16 %v6882, %v6879
        %v6910 = vpack.c.b16 %v6883, %v6880
        %v6911 = vpack.c.b16 %v6887, %v6884
        %v6912 = vpack.c.b16 %v6888, %v6885
        %v6913 = vpack.c.b16 %v6889, %v6886
        %v7034 = vunpack.c.l.b16 %v6706
        %v7035 = vunpack.c.h.b16 %v6706
        %v7036 = vunpack.c.l.b16 %v6707
        %v7037 = vunpack.c.l.b16 %v6708
        %v7038 = vunpack.c.h.b16 %v6708
        %v7039 = vunpack.c.l.b16 %v6709
        %v7040 = vunpack.c.l.b16 %v6710
        %v7041 = vunpack.c.h.b16 %v6710
        %v7042 = vunpack.c.l.b16 %v6711
        %v7043 = vunpack.c.l.b16 %v6712
        %v7044 = vunpack.c.h.b16 %v6712
        %v7045 = vunpack.c.l.b16 %v6713
        %v7046 = vunpack.c.l.b16 %v6714
        %v7047 = vunpack.c.h.b16 %v6714
        %v7048 = vunpack.c.l.b16 %v6715
        %v7049 = vunpack.c.l.b16 %v6716
        %v7050 = vunpack.c.h.b16 %v6716
        %v7051 = vunpack.c.l.b16 %v6717
        %v7052 = vunpack.c.l.b16 %v6718
        %v7053 = vunpack.c.h.b16 %v6718
        %v7054 = vunpack.c.l.b16 %v6719
        %v7055 = vunpack.c.l.b16 %v6720
        %v7056 = vunpack.c.h.b16 %v6720
        %v7057 = vunpack.c.l.b16 %v6721
        %v7058 = vunpack.c.l.b16 %v6722
        %v7059 = vunpack.c.h.b16 %v6722
        %v7060 = vunpack.c.l.b16 %v6723
        %v7061 = vunpack.c.l.b16 %v6724
        %v7062 = vunpack.c.h.b16 %v6724
        %v7063 = vunpack.c.l.b16 %v6725
        %v7064 = vunpack.c.l.b16 %v6726
        %v7065 = vunpack.c.h.b16 %v6726
        %v7066 = vunpack.c.l.b16 %v6727
        %v7067 = vunpack.c.l.b16 %v6728
        %v7068 = vunpack.c.h.b16 %v6728
        %v7069 = vunpack.c.l.b16 %v6729
        %v7070 = vunpack.c.l.b16 %v6730
        %v7071 = vunpack.c.h.b16 %v6730
        %v7072 = vunpack.c.l.b16 %v6731
        %v7073 = vunpack.c.l.b16 %v6732
        %v7074 = vunpack.c.h.b16 %v6732
        %v7075 = vunpack.c.l.b16 %v6733
        %v7076 = vunpack.c.l.b16 %v6734
        %v7077 = vunpack.c.h.b16 %v6734
        %v7078 = vunpack.c.l.b16 %v6735
        %v7079 = vunpack.c.l.b16 %v6736
        %v7080 = vunpack.c.h.b16 %v6736
        %v7081 = vunpack.c.l.b16 %v6737
        %v7082 = vunpack.c.l.b16 %v6738
        %v7083 = vunpack.c.h.b16 %v6738
        %v7084 = vunpack.c.l.b16 %v6739
        %v7085 = vunpack.c.l.b16 %v6740
        %v7086 = vunpack.c.h.b16 %v6740
        %v7087 = vunpack.c.l.b16 %v6741
        %v7088 = vunpack.c.l.b16 %v6742
        %v7089 = vunpack.c.h.b16 %v6742
        %v7090 = vunpack.c.l.b16 %v6743
        %v7091 = vunpack.c.l.b16 %v6744
        %v7092 = vunpack.c.h.b16 %v6744
        %v7093 = vunpack.c.l.b16 %v6745
        %v7094 = vunpack.c.l.b16 %v6746
        %v7095 = vunpack.c.h.b16 %v6746
        %v7096 = vunpack.c.l.b16 %v6747
        %v7097 = vunpack.c.l.b16 %v6748
        %v7098 = vunpack.c.h.b16 %v6748
        %v7099 = vunpack.c.l.b16 %v6749
        %v7100 = vunpack.c.l.b16 %v6750
        %v7101 = vunpack.c.h.b16 %v6750
        %v7102 = vunpack.c.l.b16 %v6751
        %v7103 = vunpack.c.l.b16 %v6752
        %v7104 = vunpack.c.h.b16 %v6752
        %v7105 = vunpack.c.l.b16 %v6753
        %v7106 = vunpack.c.l.b16 %v6754
        %v7107 = vunpack.c.h.b16 %v6754
        %v7108 = vunpack.c.l.b16 %v6755
        %v7109 = vunpack.c.l.b16 %v6756
        %v7110 = vunpack.c.h.b16 %v6756
        %v7111 = vunpack.c.l.b16 %v6757
        %v7112 = vunpack.c.l.b16 %v6758
        %v7113 = vunpack.c.h.b16 %v6758
        %v7114 = vunpack.c.l.b16 %v6759
        %v7115 = vunpack.c.l.b16 %v6760
        %v7116 = vunpack.c.h.b16 %v6760
        %v7117 = vunpack.c.l.b16 %v6761
        %v7118 = vunpack.c.l.b16 %v6762
        %v7119 = vunpack.c.h.b16 %v6762
        %v7120 = vunpack.c.l.b16 %v6763
        %v7121 = vunpack.c.l.b16 %v6764
        %v7122 = vunpack.c.h.b16 %v6764
        %v7123 = vunpack.c.l.b16 %v6765
        %v7124 = vunpack.c.l.b16 %v6766
        %v7125 = vunpack.c.h.b16 %v6766
        %v7126 = vunpack.c.l.b16 %v6767
        %v7127 = vunpack.c.l.b16 %v6768
        %v7128 = vunpack.c.h.b16 %v6768
        %v7129 = vunpack.c.l.b16 %v6769
        %v7130 = vunpack.c.l.b16 %v6770
        %v7131 = vunpack.c.h.b16 %v6770
        %v7132 = vunpack.c.l.b16 %v6771
        %v7133 = vunpack.c.l.b16 %v6772
        %v7134 = vunpack.c.h.b16 %v6772
        %v7135 = vunpack.c.l.b16 %v6773
        %v7136 = vunpack.c.l.b16 %v6774
        %v7137 = vunpack.c.h.b16 %v6774
        %v7138 = vunpack.c.l.b16 %v6775
        %v7139 = vunpack.c.l.b16 %v6776
        %v7140 = vunpack.c.h.b16 %v6776
        %v7141 = vunpack.c.l.b16 %v6777
        %v7142 = vunpack.c.l.b16 %v6778
        %v7143 = vunpack.c.h.b16 %v6778
        %v7144 = vunpack.c.l.b16 %v6779
        %v7145 = vunpack.c.l.b16 %v6780
        %v7146 = vunpack.c.h.b16 %v6780
        %v7147 = vunpack.c.l.b16 %v6781
        %v7148 = vunpack.c.l.b16 %v6782
        %v7149 = vunpack.c.h.b16 %v6782
        %v7150 = vunpack.c.l.b16 %v6783
        %v7151 = vunpack.c.l.b16 %v6784
        %v7152 = vunpack.c.h.b16 %v6784
        %v7153 = vunpack.c.l.b16 %v6785
        %v7154 = vunpack.c.l.b16 %v6786
        %v7155 = vunpack.c.h.b16 %v6786
        %v7156 = vunpack.c.l.b16 %v6787
        %v7157 = vunpack.c.l.b16 %v6788
        %v7158 = vunpack.c.h.b16 %v6788
        %v7159 = vunpack.c.l.b16 %v6789
        %v7160 = vunpack.c.l.b16 %v6790
        %v7161 = vunpack.c.h.b16 %v6790
        %v7162 = vunpack.c.l.b16 %v6791
        %v7163 = vunpack.c.l.b16 %v6792
        %v7164 = vunpack.c.h.b16 %v6792
        %v7165 = vunpack.c.l.b16 %v6793
        %v7166 = vunpack.c.l.b16 %v6794
        %v7167 = vunpack.c.h.b16 %v6794
        %v7168 = vunpack.c.l.b16 %v6795
        %v7169 = vunpack.c.l.b16 %v6796
        %v7170 = vunpack.c.h.b16 %v6796
        %v7171 = vunpack.c.l.b16 %v6797
        %v7172 = vunpack.c.l.b16 %v6798
        %v7173 = vunpack.c.h.b16 %v6798
        %v7174 = vunpack.c.l.b16 %v6799
        %v7175 = vunpack.c.l.b16 %v6800
        %v7176 = vunpack.c.h.b16 %v6800
        %v7177 = vunpack.c.l.b16 %v6801
        %v7178 = vpack.c.b16 %v7037, %v7034
        %v7179 = vpack.c.b16 %v7038, %v7035
        %v7180 = vpack.c.b16 %v7039, %v7036
        %v7181 = vpack.c.b16 %v7043, %v7040
        %v7182 = vpack.c.b16 %v7044, %v7041
        %v7183 = vpack.c.b16 %v7045, %v7042
        %v7184 = vpack.c.b16 %v7049, %v7046
        %v7185 = vpack.c.b16 %v7050, %v7047
        %v7186 = vpack.c.b16 %v7051, %v7048
        %v7187 = vpack.c.b16 %v7055, %v7052
        %v7188 = vpack.c.b16 %v7056, %v7053
        %v7189 = vpack.c.b16 %v7057, %v7054
        %v7190 = vpack.c.b16 %v7061, %v7058
        %v7191 = vpack.c.b16 %v7062, %v7059
        %v7192 = vpack.c.b16 %v7063, %v7060
        %v7193 = vpack.c.b16 %v7067, %v7064
        %v7194 = vpack.c.b16 %v7068, %v7065
        %v7195 = vpack.c.b16 %v7069, %v7066
        %v7196 = vpack.c.b16 %v7073, %v7070
        %v7197 = vpack.c.b16 %v7074, %v7071
        %v7198 = vpack.c.b16 %v7075, %v7072
        %v7199 = vpack.c.b16 %v7079, %v7076
        %v7200 = vpack.c.b16 %v7080, %v7077
        %v7201 = vpack.c.b16 %v7081, %v7078
        %v7202 = vpack.c.b16 %v7085, %v7082
        %v7203 = vpack.c.b16 %v7086, %v7083
        %v7204 = vpack.c.b16 %v7087, %v7084
        %v7205 = vpack.c.b16 %v7091, %v7088
        %v7206 = vpack.c.b16 %v7092, %v7089
        %v7207 = vpack.c.b16 %v7093, %v7090
        %v7208 = vpack.c.b16 %v7097, %v7094
        %v7209 = vpack.c.b16 %v7098, %v7095
        %v7210 = vpack.c.b16 %v7099, %v7096
        %v7211 = vpack.c.b16 %v7103, %v7100
        %v7212 = vpack.c.b16 %v7104, %v7101
        %v7213 = vpack.c.b16 %v7105, %v7102
        %v7214 = vpack.c.b16 %v7109, %v7106
        %v7215 = vpack.c.b16 %v7110, %v7107
        %v7216 = vpack.c.b16 %v7111, %v7108
        %v7217 = vpack.c.b16 %v7115, %v7112
        %v7218 = vpack.c.b16 %v7116, %v7113
        %v7219 = vpack.c.b16 %v7117, %v7114
        %v7220 = vpack.c.b16 %v7121, %v7118
        %v7221 = vpack.c.b16 %v7122, %v7119
        %v7222 = vpack.c.b16 %v7123, %v7120
        %v7223 = vpack.c.b16 %v7127, %v7124
        %v7224 = vpack.c.b16 %v7128, %v7125
        %v7225 = vpack.c.b16 %v7129, %v7126
        %v7226 = vpack.c.b16 %v7133, %v7130
        %v7227 = vpack.c.b16 %v7134, %v7131
        %v7228 = vpack.c.b16 %v7135, %v7132
        %v7229 = vpack.c.b16 %v7139, %v7136
        %v7230 = vpack.c.b16 %v7140, %v7137
        %v7231 = vpack.c.b16 %v7141, %v7138
        %v7232 = vpack.c.b16 %v7145, %v7142
        %v7233 = vpack.c.b16 %v7146, %v7143
        %v7234 = vpack.c.b16 %v7147, %v7144
        %v7235 = vpack.c.b16 %v7151, %v7148
        %v7236 = vpack.c.b16 %v7152, %v7149
        %v7237 = vpack.c.b16 %v7153, %v7150
        %v7238 = vpack.c.b16 %v7157, %v7154
        %v7239 = vpack.c.b16 %v7158, %v7155
        %v7240 = vpack.c.b16 %v7159, %v7156
        %v7241 = vpack.c.b16 %v7163, %v7160
        %v7242 = vpack.c.b16 %v7164, %v7161
        %v7243 = vpack.c.b16 %v7165, %v7162
        %v7244 = vpack.c.b16 %v7169, %v7166
        %v7245 = vpack.c.b16 %v7170, %v7167
        %v7246 = vpack.c.b16 %v7171, %v7168
        %v7247 = vpack.c.b16 %v7175, %v7172
        %v7248 = vpack.c.b16 %v7176, %v7173
        %v7249 = vpack.c.b16 %v7177, %v7174
        %7322 = vmatpush.bf16.msra.mxu0 %v7199
        %7323 = vmatpush.bf16.msra.mxu0 %v7196
        %7324 = vmatpush.bf16.msra.mxu0 %v7193
        %7325 = vmatpush.bf16.msra.mxu0 %v7190
        %7326 = vmatpush.bf16.msra.mxu0 %v7187
        %7327 = vmatpush.bf16.msra.mxu0 %v7184
        %7328 = vmatpush.bf16.msra.mxu0 %v7181
        %7329 = vmatpush.bf16.msra.mxu0 %v7178
        %7330 = vmatmul.bf16.gmra.mxu0 %v6890
        %v7331 = vpop.f32.mrf.mxu0
        %v7332 = vadd.f32 %v6804, %v7331
        %v7333 = vpop.f32.mrf.mxu0
        %v7334 = vadd.f32 %v6804, %v7333
        %7335 = vmatmul.bf16.gmra.mxu0 %v6893
        %v7336 = vpop.f32.mrf.mxu0
        %v7337 = vadd.f32 %v6804, %v7336
        %v7338 = vpop.f32.mrf.mxu0
        %v7339 = vadd.f32 %v6804, %v7338
        %7340 = vmatmul.bf16.gmra.mxu0 %v6896
        %v7341 = vpop.f32.mrf.mxu0
        %v7342 = vadd.f32 %v6804, %v7341
        %v7343 = vpop.f32.mrf.mxu0
        %v7344 = vadd.f32 %v6804, %v7343
        %7345 = vmatmul.bf16.gmra.mxu0 %v6899
        %v7346 = vpop.f32.mrf.mxu0
        %v7347 = vadd.f32 %v6804, %v7346
        %v7348 = vpop.f32.mrf.mxu0
        %v7349 = vadd.f32 %v6804, %v7348
        %7350 = vmatmul.bf16.gmra.mxu0 %v6902
        %v7351 = vpop.f32.mrf.mxu0
        %v7352 = vadd.f32 %v6804, %v7351
        %v7353 = vpop.f32.mrf.mxu0
        %v7354 = vadd.f32 %v6804, %v7353
        %7355 = vmatmul.bf16.gmra.mxu0 %v6905
        %v7356 = vpop.f32.mrf.mxu0
        %v7357 = vadd.f32 %v6804, %v7356
        %v7358 = vpop.f32.mrf.mxu0
        %v7359 = vadd.f32 %v6804, %v7358
        %7360 = vmatmul.bf16.gmra.mxu0 %v6908
        %v7361 = vpop.f32.mrf.mxu0
        %v7362 = vadd.f32 %v6804, %v7361
        %v7363 = vpop.f32.mrf.mxu0
        %v7364 = vadd.f32 %v6804, %v7363
        %7365 = vmatmul.bf16.gmra.mxu0 %v6911
        %v7366 = vpop.f32.mrf.mxu0
        %v7367 = vadd.f32 %v6804, %v7366
        %v7368 = vpop.f32.mrf.mxu0
        %v7369 = vadd.f32 %v6804, %v7368
        %7370 = vdwg.mxu0
        %7371 = vmatpush.bf16.msra.mxu0 %v7223
        %7372 = vmatpush.bf16.msra.mxu0 %v7220
        %7373 = vmatpush.bf16.msra.mxu0 %v7217
        %7374 = vmatpush.bf16.msra.mxu0 %v7214
        %7375 = vmatpush.bf16.msra.mxu0 %v7211
        %7376 = vmatpush.bf16.msra.mxu0 %v7208
        %7377 = vmatpush.bf16.msra.mxu0 %v7205
        %7378 = vmatpush.bf16.msra.mxu0 %v7202
        %7379 = vmatmul.bf16.gmra.mxu0 %v6891
        %v7380 = vpop.f32.mrf.mxu0
        %v7381 = vadd.f32 %v7332, %v7380
        %v7382 = vpop.f32.mrf.mxu0
        %v7383 = vadd.f32 %v7334, %v7382
        %7384 = vmatmul.bf16.gmra.mxu0 %v6894
        %v7385 = vpop.f32.mrf.mxu0
        %v7386 = vadd.f32 %v7337, %v7385
        %v7387 = vpop.f32.mrf.mxu0
        %v7388 = vadd.f32 %v7339, %v7387
        %7389 = vmatmul.bf16.gmra.mxu0 %v6897
        %v7390 = vpop.f32.mrf.mxu0
        %v7391 = vadd.f32 %v7342, %v7390
        %v7392 = vpop.f32.mrf.mxu0
        %v7393 = vadd.f32 %v7344, %v7392
        %7394 = vmatmul.bf16.gmra.mxu0 %v6900
        %v7395 = vpop.f32.mrf.mxu0
        %v7396 = vadd.f32 %v7347, %v7395
        %v7397 = vpop.f32.mrf.mxu0
        %v7398 = vadd.f32 %v7349, %v7397
        %7399 = vmatmul.bf16.gmra.mxu0 %v6903
        %v7400 = vpop.f32.mrf.mxu0
        %v7401 = vadd.f32 %v7352, %v7400
        %v7402 = vpop.f32.mrf.mxu0
        %v7403 = vadd.f32 %v7354, %v7402
        %7404 = vmatmul.bf16.gmra.mxu0 %v6906
        %v7405 = vpop.f32.mrf.mxu0
        %v7406 = vadd.f32 %v7357, %v7405
        %v7407 = vpop.f32.mrf.mxu0
        %v7408 = vadd.f32 %v7359, %v7407
        %7409 = vmatmul.bf16.gmra.mxu0 %v6909
        %v7410 = vpop.f32.mrf.mxu0
        %v7411 = vadd.f32 %v7362, %v7410
        %v7412 = vpop.f32.mrf.mxu0
        %v7413 = vadd.f32 %v7364, %v7412
        %7414 = vmatmul.bf16.gmra.mxu0 %v6912
        %v7415 = vpop.f32.mrf.mxu0
        %v7416 = vadd.f32 %v7367, %v7415
        %v7417 = vpop.f32.mrf.mxu0
        %v7418 = vadd.f32 %v7369, %v7417
        %7419 = vdwg.mxu0
        %7420 = vmatpush.bf16.msra.mxu0 %v7247
        %7421 = vmatpush.bf16.msra.mxu0 %v7244
        %7422 = vmatpush.bf16.msra.mxu0 %v7241
        %7423 = vmatpush.bf16.msra.mxu0 %v7238
        %7424 = vmatpush.bf16.msra.mxu0 %v7235
        %7425 = vmatpush.bf16.msra.mxu0 %v7232
        %7426 = vmatpush.bf16.msra.mxu0 %v7229
        %7427 = vmatpush.bf16.msra.mxu0 %v7226
        %7428 = vmatmul.bf16.gmra.mxu0 %v6892
        %v7429 = vpop.f32.mrf.mxu0
        %v7430 = vadd.f32 %v7381, %v7429
        %v7431 = vpop.f32.mrf.mxu0
        %v7432 = vadd.f32 %v7383, %v7431
        %7433 = vmatmul.bf16.gmra.mxu0 %v6895
        %v7434 = vpop.f32.mrf.mxu0
        %v7435 = vadd.f32 %v7386, %v7434
        %v7436 = vpop.f32.mrf.mxu0
        %v7437 = vadd.f32 %v7388, %v7436
        %7438 = vmatmul.bf16.gmra.mxu0 %v6898
        %v7439 = vpop.f32.mrf.mxu0
        %v7440 = vadd.f32 %v7391, %v7439
        %v7441 = vpop.f32.mrf.mxu0
        %v7442 = vadd.f32 %v7393, %v7441
        %7443 = vmatmul.bf16.gmra.mxu0 %v6901
        %v7444 = vpop.f32.mrf.mxu0
        %v7445 = vadd.f32 %v7396, %v7444
        %v7446 = vpop.f32.mrf.mxu0
        %v7447 = vadd.f32 %v7398, %v7446
        %7448 = vmatmul.bf16.gmra.mxu0 %v6904
        %v7449 = vpop.f32.mrf.mxu0
        %v7450 = vadd.f32 %v7401, %v7449
        %v7451 = vpop.f32.mrf.mxu0
        %v7452 = vadd.f32 %v7403, %v7451
        %7453 = vmatmul.bf16.gmra.mxu0 %v6907
        %v7454 = vpop.f32.mrf.mxu0
        %v7455 = vadd.f32 %v7406, %v7454
        %v7456 = vpop.f32.mrf.mxu0
        %v7457 = vadd.f32 %v7408, %v7456
        %7458 = vmatmul.bf16.gmra.mxu0 %v6910
        %v7459 = vpop.f32.mrf.mxu0
        %v7460 = vadd.f32 %v7411, %v7459
        %v7461 = vpop.f32.mrf.mxu0
        %v7462 = vadd.f32 %v7413, %v7461
        %7463 = vmatmul.bf16.gmra.mxu0 %v6913
        %v7464 = vpop.f32.mrf.mxu0
        %v7465 = vadd.f32 %v7416, %v7464
        %v7466 = vpop.f32.mrf.mxu0
        %v7467 = vadd.f32 %v7418, %v7466
        %7468 = vdwg.mxu0
        %7469 = vmatpush.bf16.msra.mxu0 %v7200
        %7470 = vmatpush.bf16.msra.mxu0 %v7197
        %7471 = vmatpush.bf16.msra.mxu0 %v7194
        %7472 = vmatpush.bf16.msra.mxu0 %v7191
        %7473 = vmatpush.bf16.msra.mxu0 %v7188
        %7474 = vmatpush.bf16.msra.mxu0 %v7185
        %7475 = vmatpush.bf16.msra.mxu0 %v7182
        %7476 = vmatpush.bf16.msra.mxu0 %v7179
        %7477 = vmatmul.bf16.gmra.mxu0 %v6890
        %v7478 = vpop.f32.mrf.mxu0
        %v7479 = vadd.f32 %v6805, %v7478
        %v7480 = vpop.f32.mrf.mxu0
        %v7481 = vadd.f32 %v6805, %v7480
        %7482 = vmatmul.bf16.gmra.mxu0 %v6893
        %v7483 = vpop.f32.mrf.mxu0
        %v7484 = vadd.f32 %v6805, %v7483
        %v7485 = vpop.f32.mrf.mxu0
        %v7486 = vadd.f32 %v6805, %v7485
        %7487 = vmatmul.bf16.gmra.mxu0 %v6896
        %v7488 = vpop.f32.mrf.mxu0
        %v7489 = vadd.f32 %v6805, %v7488
        %v7490 = vpop.f32.mrf.mxu0
        %v7491 = vadd.f32 %v6805, %v7490
        %7492 = vmatmul.bf16.gmra.mxu0 %v6899
        %v7493 = vpop.f32.mrf.mxu0
        %v7494 = vadd.f32 %v6805, %v7493
        %v7495 = vpop.f32.mrf.mxu0
        %v7496 = vadd.f32 %v6805, %v7495
        %7497 = vmatmul.bf16.gmra.mxu0 %v6902
        %v7498 = vpop.f32.mrf.mxu0
        %v7499 = vadd.f32 %v6805, %v7498
        %v7500 = vpop.f32.mrf.mxu0
        %v7501 = vadd.f32 %v6805, %v7500
        %7502 = vmatmul.bf16.gmra.mxu0 %v6905
        %v7503 = vpop.f32.mrf.mxu0
        %v7504 = vadd.f32 %v6805, %v7503
        %v7505 = vpop.f32.mrf.mxu0
        %v7506 = vadd.f32 %v6805, %v7505
        %7507 = vmatmul.bf16.gmra.mxu0 %v6908
        %v7508 = vpop.f32.mrf.mxu0
        %v7509 = vadd.f32 %v6805, %v7508
        %v7510 = vpop.f32.mrf.mxu0
        %v7511 = vadd.f32 %v6805, %v7510
        %7512 = vmatmul.bf16.gmra.mxu0 %v6911
        %v7513 = vpop.f32.mrf.mxu0
        %v7514 = vadd.f32 %v6805, %v7513
        %v7515 = vpop.f32.mrf.mxu0
        %v7516 = vadd.f32 %v6805, %v7515
        %7517 = vdwg.mxu0
        %7518 = vmatpush.bf16.msra.mxu0 %v7224
        %7519 = vmatpush.bf16.msra.mxu0 %v7221
        %7520 = vmatpush.bf16.msra.mxu0 %v7218
        %7521 = vmatpush.bf16.msra.mxu0 %v7215
        %7522 = vmatpush.bf16.msra.mxu0 %v7212
        %7523 = vmatpush.bf16.msra.mxu0 %v7209
        %7524 = vmatpush.bf16.msra.mxu0 %v7206
        %7525 = vmatpush.bf16.msra.mxu0 %v7203
        %7526 = vmatmul.bf16.gmra.mxu0 %v6891
        %v7527 = vpop.f32.mrf.mxu0
        %v7528 = vadd.f32 %v7479, %v7527
        %v7529 = vpop.f32.mrf.mxu0
        %v7530 = vadd.f32 %v7481, %v7529
        %7531 = vmatmul.bf16.gmra.mxu0 %v6894
        %v7532 = vpop.f32.mrf.mxu0
        %v7533 = vadd.f32 %v7484, %v7532
        %v7534 = vpop.f32.mrf.mxu0
        %v7535 = vadd.f32 %v7486, %v7534
        %7536 = vmatmul.bf16.gmra.mxu0 %v6897
        %v7537 = vpop.f32.mrf.mxu0
        %v7538 = vadd.f32 %v7489, %v7537
        %v7539 = vpop.f32.mrf.mxu0
        %v7540 = vadd.f32 %v7491, %v7539
        %7541 = vmatmul.bf16.gmra.mxu0 %v6900
        %v7542 = vpop.f32.mrf.mxu0
        %v7543 = vadd.f32 %v7494, %v7542
        %v7544 = vpop.f32.mrf.mxu0
        %v7545 = vadd.f32 %v7496, %v7544
        %7546 = vmatmul.bf16.gmra.mxu0 %v6903
        %v7547 = vpop.f32.mrf.mxu0
        %v7548 = vadd.f32 %v7499, %v7547
        %v7549 = vpop.f32.mrf.mxu0
        %v7550 = vadd.f32 %v7501, %v7549
        %7551 = vmatmul.bf16.gmra.mxu0 %v6906
        %v7552 = vpop.f32.mrf.mxu0
        %v7553 = vadd.f32 %v7504, %v7552
        %v7554 = vpop.f32.mrf.mxu0
        %v7555 = vadd.f32 %v7506, %v7554
        %7556 = vmatmul.bf16.gmra.mxu0 %v6909
        %v7557 = vpop.f32.mrf.mxu0
        %v7558 = vadd.f32 %v7509, %v7557
        %v7559 = vpop.f32.mrf.mxu0
        %v7560 = vadd.f32 %v7511, %v7559
        %7561 = vmatmul.bf16.gmra.mxu0 %v6912
        %v7562 = vpop.f32.mrf.mxu0
        %v7563 = vadd.f32 %v7514, %v7562
        %v7564 = vpop.f32.mrf.mxu0
        %v7565 = vadd.f32 %v7516, %v7564
        %7566 = vdwg.mxu0
        %7567 = vmatpush.bf16.msra.mxu0 %v7248
        %7568 = vmatpush.bf16.msra.mxu0 %v7245
        %7569 = vmatpush.bf16.msra.mxu0 %v7242
        %7570 = vmatpush.bf16.msra.mxu0 %v7239
        %7571 = vmatpush.bf16.msra.mxu0 %v7236
        %7572 = vmatpush.bf16.msra.mxu0 %v7233
        %7573 = vmatpush.bf16.msra.mxu0 %v7230
        %7574 = vmatpush.bf16.msra.mxu0 %v7227
        %7575 = vmatmul.bf16.gmra.mxu0 %v6892
        %v7576 = vpop.f32.mrf.mxu0
        %v7577 = vadd.f32 %v7528, %v7576
        %v7578 = vpop.f32.mrf.mxu0
        %v7579 = vadd.f32 %v7530, %v7578
        %7580 = vmatmul.bf16.gmra.mxu0 %v6895
        %v7581 = vpop.f32.mrf.mxu0
        %v7582 = vadd.f32 %v7533, %v7581
        %v7583 = vpop.f32.mrf.mxu0
        %v7584 = vadd.f32 %v7535, %v7583
        %7585 = vmatmul.bf16.gmra.mxu0 %v6898
        %v7586 = vpop.f32.mrf.mxu0
        %v7587 = vadd.f32 %v7538, %v7586
        %v7588 = vpop.f32.mrf.mxu0
        %v7589 = vadd.f32 %v7540, %v7588
        %7590 = vmatmul.bf16.gmra.mxu0 %v6901
        %v7591 = vpop.f32.mrf.mxu0
        %v7592 = vadd.f32 %v7543, %v7591
        %v7593 = vpop.f32.mrf.mxu0
        %v7594 = vadd.f32 %v7545, %v7593
        %7595 = vmatmul.bf16.gmra.mxu0 %v6904
        %v7596 = vpop.f32.mrf.mxu0
        %v7597 = vadd.f32 %v7548, %v7596
        %v7598 = vpop.f32.mrf.mxu0
        %v7599 = vadd.f32 %v7550, %v7598
        %7600 = vmatmul.bf16.gmra.mxu0 %v6907
        %v7601 = vpop.f32.mrf.mxu0
        %v7602 = vadd.f32 %v7553, %v7601
        %v7603 = vpop.f32.mrf.mxu0
        %v7604 = vadd.f32 %v7555, %v7603
        %7605 = vmatmul.bf16.gmra.mxu0 %v6910
        %v7606 = vpop.f32.mrf.mxu0
        %v7607 = vadd.f32 %v7558, %v7606
        %v7608 = vpop.f32.mrf.mxu0
        %v7609 = vadd.f32 %v7560, %v7608
        %7610 = vmatmul.bf16.gmra.mxu0 %v6913
        %v7611 = vpop.f32.mrf.mxu0
        %v7612 = vadd.f32 %v7563, %v7611
        %v7613 = vpop.f32.mrf.mxu0
        %v7614 = vadd.f32 %v7565, %v7613
        %7615 = vdwg.mxu0
        %7616 = vmatpush.bf16.msra.mxu0 %v7201
        %7617 = vmatpush.bf16.msra.mxu0 %v7198
        %7618 = vmatpush.bf16.msra.mxu0 %v7195
        %7619 = vmatpush.bf16.msra.mxu0 %v7192
        %7620 = vmatpush.bf16.msra.mxu0 %v7189
        %7621 = vmatpush.bf16.msra.mxu0 %v7186
        %7622 = vmatpush.bf16.msra.mxu0 %v7183
        %7623 = vmatpush.bf16.msra.mxu0 %v7180
        %7624 = vmatmul.bf16.gmra.mxu0 %v6890
        %v7625 = vpop.f32.mrf.mxu0
        %v7626 = vadd.f32 %v6806, %v7625
        %v7627 = vpop.f32.mrf.mxu0
        %v7628 = vadd.f32 %v6806, %v7627
        %7629 = vmatmul.bf16.gmra.mxu0 %v6893
        %v7630 = vpop.f32.mrf.mxu0
        %v7631 = vadd.f32 %v6806, %v7630
        %v7632 = vpop.f32.mrf.mxu0
        %v7633 = vadd.f32 %v6806, %v7632
        %7634 = vmatmul.bf16.gmra.mxu0 %v6896
        %v7635 = vpop.f32.mrf.mxu0
        %v7636 = vadd.f32 %v6806, %v7635
        %v7637 = vpop.f32.mrf.mxu0
        %v7638 = vadd.f32 %v6806, %v7637
        %7639 = vmatmul.bf16.gmra.mxu0 %v6899
        %v7640 = vpop.f32.mrf.mxu0
        %v7641 = vadd.f32 %v6806, %v7640
        %v7642 = vpop.f32.mrf.mxu0
        %v7643 = vadd.f32 %v6806, %v7642
        %7644 = vmatmul.bf16.gmra.mxu0 %v6902
        %v7645 = vpop.f32.mrf.mxu0
        %v7646 = vadd.f32 %v6806, %v7645
        %v7647 = vpop.f32.mrf.mxu0
        %v7648 = vadd.f32 %v6806, %v7647
        %7649 = vmatmul.bf16.gmra.mxu0 %v6905
        %v7650 = vpop.f32.mrf.mxu0
        %v7651 = vadd.f32 %v6806, %v7650
        %v7652 = vpop.f32.mrf.mxu0
        %v7653 = vadd.f32 %v6806, %v7652
        %7654 = vmatmul.bf16.gmra.mxu0 %v6908
        %v7655 = vpop.f32.mrf.mxu0
        %v7656 = vadd.f32 %v6806, %v7655
        %v7657 = vpop.f32.mrf.mxu0
        %v7658 = vadd.f32 %v6806, %v7657
        %7659 = vmatmul.bf16.gmra.mxu0 %v6911
        %v7660 = vpop.f32.mrf.mxu0
        %v7661 = vadd.f32 %v6806, %v7660
        %v7662 = vpop.f32.mrf.mxu0
        %v7663 = vadd.f32 %v6806, %v7662
        %7664 = vdwg.mxu0
        %7665 = vmatpush.bf16.msra.mxu0 %v7225
        %7666 = vmatpush.bf16.msra.mxu0 %v7222
        %7667 = vmatpush.bf16.msra.mxu0 %v7219
        %7668 = vmatpush.bf16.msra.mxu0 %v7216
        %7669 = vmatpush.bf16.msra.mxu0 %v7213
        %7670 = vmatpush.bf16.msra.mxu0 %v7210
        %7671 = vmatpush.bf16.msra.mxu0 %v7207
        %7672 = vmatpush.bf16.msra.mxu0 %v7204
        %7673 = vmatmul.bf16.gmra.mxu0 %v6891
        %v7674 = vpop.f32.mrf.mxu0
        %v7675 = vadd.f32 %v7626, %v7674
        %v7676 = vpop.f32.mrf.mxu0
        %v7677 = vadd.f32 %v7628, %v7676
        %7678 = vmatmul.bf16.gmra.mxu0 %v6894
        %v7679 = vpop.f32.mrf.mxu0
        %v7680 = vadd.f32 %v7631, %v7679
        %v7681 = vpop.f32.mrf.mxu0
        %v7682 = vadd.f32 %v7633, %v7681
        %7683 = vmatmul.bf16.gmra.mxu0 %v6897
        %v7684 = vpop.f32.mrf.mxu0
        %v7685 = vadd.f32 %v7636, %v7684
        %v7686 = vpop.f32.mrf.mxu0
        %v7687 = vadd.f32 %v7638, %v7686
        %7688 = vmatmul.bf16.gmra.mxu0 %v6900
        %v7689 = vpop.f32.mrf.mxu0
        %v7690 = vadd.f32 %v7641, %v7689
        %v7691 = vpop.f32.mrf.mxu0
        %v7692 = vadd.f32 %v7643, %v7691
        %7693 = vmatmul.bf16.gmra.mxu0 %v6903
        %v7694 = vpop.f32.mrf.mxu0
        %v7695 = vadd.f32 %v7646, %v7694
        %v7696 = vpop.f32.mrf.mxu0
        %v7697 = vadd.f32 %v7648, %v7696
        %7698 = vmatmul.bf16.gmra.mxu0 %v6906
        %v7699 = vpop.f32.mrf.mxu0
        %v7700 = vadd.f32 %v7651, %v7699
        %v7701 = vpop.f32.mrf.mxu0
        %v7702 = vadd.f32 %v7653, %v7701
        %7703 = vmatmul.bf16.gmra.mxu0 %v6909
        %v7704 = vpop.f32.mrf.mxu0
        %v7705 = vadd.f32 %v7656, %v7704
        %v7706 = vpop.f32.mrf.mxu0
        %v7707 = vadd.f32 %v7658, %v7706
        %7708 = vmatmul.bf16.gmra.mxu0 %v6912
        %v7709 = vpop.f32.mrf.mxu0
        %v7710 = vadd.f32 %v7661, %v7709
        %v7711 = vpop.f32.mrf.mxu0
        %v7712 = vadd.f32 %v7663, %v7711
        %7713 = vdwg.mxu0
        %7714 = vmatpush.bf16.msra.mxu0 %v7249
        %7715 = vmatpush.bf16.msra.mxu0 %v7246
        %7716 = vmatpush.bf16.msra.mxu0 %v7243
        %7717 = vmatpush.bf16.msra.mxu0 %v7240
        %7718 = vmatpush.bf16.msra.mxu0 %v7237
        %7719 = vmatpush.bf16.msra.mxu0 %v7234
        %7720 = vmatpush.bf16.msra.mxu0 %v7231
        %7721 = vmatpush.bf16.msra.mxu0 %v7228
        %7722 = vmatmul.bf16.gmra.mxu0 %v6892
        %v7723 = vpop.f32.mrf.mxu0
        %v7724 = vadd.f32 %v7675, %v7723
        %v7725 = vpop.f32.mrf.mxu0
        %v7726 = vadd.f32 %v7677, %v7725
        %7727 = vmatmul.bf16.gmra.mxu0 %v6895
        %v7728 = vpop.f32.mrf.mxu0
        %v7729 = vadd.f32 %v7680, %v7728
        %v7730 = vpop.f32.mrf.mxu0
        %v7731 = vadd.f32 %v7682, %v7730
        %7732 = vmatmul.bf16.gmra.mxu0 %v6898
        %v7733 = vpop.f32.mrf.mxu0
        %v7734 = vadd.f32 %v7685, %v7733
        %v7735 = vpop.f32.mrf.mxu0
        %v7736 = vadd.f32 %v7687, %v7735
        %7737 = vmatmul.bf16.gmra.mxu0 %v6901
        %v7738 = vpop.f32.mrf.mxu0
        %v7739 = vadd.f32 %v7690, %v7738
        %v7740 = vpop.f32.mrf.mxu0
        %v7741 = vadd.f32 %v7692, %v7740
        %7742 = vmatmul.bf16.gmra.mxu0 %v6904
        %v7743 = vpop.f32.mrf.mxu0
        %v7744 = vadd.f32 %v7695, %v7743
        %v7745 = vpop.f32.mrf.mxu0
        %v7746 = vadd.f32 %v7697, %v7745
        %7747 = vmatmul.bf16.gmra.mxu0 %v6907
        %v7748 = vpop.f32.mrf.mxu0
        %v7749 = vadd.f32 %v7700, %v7748
        %v7750 = vpop.f32.mrf.mxu0
        %v7751 = vadd.f32 %v7702, %v7750
        %7752 = vmatmul.bf16.gmra.mxu0 %v6910
        %v7753 = vpop.f32.mrf.mxu0
        %v7754 = vadd.f32 %v7705, %v7753
        %v7755 = vpop.f32.mrf.mxu0
        %v7756 = vadd.f32 %v7707, %v7755
        %7757 = vmatmul.bf16.gmra.mxu0 %v6913
        %v7758 = vpop.f32.mrf.mxu0
        %v7759 = vadd.f32 %v7710, %v7758
        %v7760 = vpop.f32.mrf.mxu0
        %v7761 = vadd.f32 %v7712, %v7760
        %7762 = vdwg.mxu0
        %7763 = vst [vmem:[%s266] sm:$0xff] %v7430
        %7764 = vst [vmem:[%s266 + $0x8] sm:$0xff] %v7577
        %7765 = vst [vmem:[%s266 + $0x10] sm:$0xff] %v7724
        %7766 = vst [vmem:[%s266 + $0x18] sm:$0xff] %v7432
        %7767 = vst [vmem:[%s266 + $0x20] sm:$0xff] %v7579
        %7768 = vst [vmem:[%s266 + $0x28] sm:$0xff] %v7726
        %7769 = vst [vmem:[%s266 + $0x30] sm:$0xff] %v7435
        %7770 = vst [vmem:[%s266 + $0x38] sm:$0xff] %v7582
        %7771 = vst [vmem:[%s266 + $0x40] sm:$0xff] %v7729
        %7772 = vst [vmem:[%s266 + $0x48] sm:$0xff] %v7437
        %7773 = vst [vmem:[%s266 + $0x50] sm:$0xff] %v7584
        %7774 = vst [vmem:[%s266 + $0x58] sm:$0xff] %v7731
        %7775 = vst [vmem:[%s266 + $0x60] sm:$0xff] %v7440
        %7776 = vst [vmem:[%s266 + $0x68] sm:$0xff] %v7587
        %7777 = vst [vmem:[%s266 + $0x70] sm:$0xff] %v7734
        %7778 = vst [vmem:[%s266 + $0x78] sm:$0xff] %v7442
        %7779 = vst [vmem:[%s266 + $0x80] sm:$0xff] %v7589
        %7780 = vst [vmem:[%s266 + $0x88] sm:$0xff] %v7736
        %7781 = vst [vmem:[%s266 + $0x90] sm:$0xff] %v7445
        %7782 = vst [vmem:[%s266 + $0x98] sm:$0xff] %v7592
        %7783 = vst [vmem:[%s266 + $0xa0] sm:$0xff] %v7739
        %7784 = vst [vmem:[%s266 + $0xa8] sm:$0xff] %v7447
        %7785 = vst [vmem:[%s266 + $0xb0] sm:$0xff] %v7594
        %7786 = vst [vmem:[%s266 + $0xb8] sm:$0xff] %v7741
        %7787 = vst [vmem:[%s266 + $0xc0] sm:$0xff] %v7450
        %7788 = vst [vmem:[%s266 + $0xc8] sm:$0xff] %v7597
        %7789 = vst [vmem:[%s266 + $0xd0] sm:$0xff] %v7744
        %7790 = vst [vmem:[%s266 + $0xd8] sm:$0xff] %v7452
        %7791 = vst [vmem:[%s266 + $0xe0] sm:$0xff] %v7599
        %7792 = vst [vmem:[%s266 + $0xe8] sm:$0xff] %v7746
        %7793 = vst [vmem:[%s266 + $0xf0] sm:$0xff] %v7455
        %7794 = vst [vmem:[%s266 + $0xf8] sm:$0xff] %v7602
        %7795 = vst [vmem:[%s266 + $0x100] sm:$0xff] %v7749
        %7796 = vst [vmem:[%s266 + $0x108] sm:$0xff] %v7457
        %7797 = vst [vmem:[%s266 + $0x110] sm:$0xff] %v7604
        %7798 = vst [vmem:[%s266 + $0x118] sm:$0xff] %v7751
        %7799 = vst [vmem:[%s266 + $0x120] sm:$0xff] %v7460
        %7800 = vst [vmem:[%s266 + $0x128] sm:$0xff] %v7607
        %7801 = vst [vmem:[%s266 + $0x130] sm:$0xff] %v7754
        %7802 = vst [vmem:[%s266 + $0x138] sm:$0xff] %v7462
        %7803 = vst [vmem:[%s266 + $0x140] sm:$0xff] %v7609
        %7804 = vst [vmem:[%s266 + $0x148] sm:$0xff] %v7756
        %7805 = vst [vmem:[%s266 + $0x150] sm:$0xff] %v7465
        %7806 = vst [vmem:[%s266 + $0x158] sm:$0xff] %v7612
        %7807 = vst [vmem:[%s266 + $0x160] sm:$0xff] %v7759
        %7808 = vst [vmem:[%s266 + $0x168] sm:$0xff] %v7467
        %7809 = vst [vmem:[%s266 + $0x170] sm:$0xff] %v7614
        %7810 = vst [vmem:[%s266 + $0x178] sm:$0xff] %v7761
        %s7811 = sand.u32 %s120, 1
        %s7812 = scalar_lea.sflag [#allocation6], %s7811
        %s7813 = sand.u32 %s120, 1
        %s7814 = smul.addr %s7813, 384
        %s7815 = scalar_lea.vmem [#allocation12], %s7814
        // Predicated region
        $region53: #{tpu_custom_call.1} parent=35 // pred_check
          %p7816 = pneg %p130
        $region54: #{tpu_custom_call.1} parent=35 // pred_check_branch
          %7818 = sbr.rel (%p7816) target = $region56
        $region55: #{tpu_custom_call.1} parent=35 // pred_region
          %s7819 = smul.u32 16, %s23
          %7821 = vsyncadd %s7812, 0
          %s7822 = smul.addr %s7819, 3
          %s7823 = smul.addr %s7822, 8
          %s7824 = scalar_lea.hbm %s4, %s7823
          %s7825 = sshll.u32 %s7815, 4
          %s7826 = int_to_ptr.vmem [resolvable:$true] %s7825
          %s7827 = sshll.u32 %s7824, 4
          %s7828 = int_to_ptr.hbm [resolvable:$true] %s7827
          %7833 = dma.vmem_to_hbm [thread:$0]  %s7826, 6144, %s7828, %s7812, 384, 384, 24
        $region56: #{tpu_custom_call.1} parent=35 // pred_fallthru
          _
      $region36: #{tpu_custom_call.1} parent=5 // pred_fallthru
        _
      %p7834 = scmp.le.s32.totalorder 2, %s18
      // Predicated region
      $region57: #{tpu_custom_call.1} parent=5 // pred_check
        %p7835 = pneg %p7834
      $region58: #{tpu_custom_call.1} parent=5 // pred_check_branch
        %7837 = sbr.rel (%p7835) target = $region60
      $region59: #{tpu_custom_call.1} parent=5 // pred_region
        %s7838 = ssub.s32 %s18, 2
        // Predicated region
        $region61: #{tpu_custom_call.1} parent=59 // pred_check
          %p7839 = pneg %p136
        $region62: #{tpu_custom_call.1} parent=59 // pred_check_branch
          %7841 = sbr.rel (%p7839) target = $region64
        $region63: #{tpu_custom_call.1} parent=59 // pred_region
          %s7842 = sand.u32 %s121, 1
          %s7843 = scalar_lea.sflag [#allocation6], %s7842
          %s7844 = sand.u32 %s121, 1
          %s7845 = smul.addr %s7844, 384
          %s7846 = scalar_lea.vmem [#allocation12], %s7845
          %7848 = dma.done %s7843, 6144
        $region64: #{tpu_custom_call.1} parent=59 // pred_fallthru
          _
      $region60: #{tpu_custom_call.1} parent=5 // pred_fallthru
        _
    $region6: #{tpu_custom_call.1} parent=1 // loop_footer
      %s22 = sadd.s32 1, %s18
    $region7: #{tpu_custom_call.1} parent=1 // loop_footer_branch
      %17 = sbr.rel target = $region3
    $region8: #{tpu_custom_call.1} parent=1 // loop_exit
      _
    %7849 = vsyncpa [#allocation5], 1
    %s7850 = scalar_lea.sflag [#allocation5], 1
    %7851 = vsyncpa %s7850, 1
    %7852 = vsyncpa [#allocation8], 1
    %7853 = vsyncpa [#allocation11], 1
    %7854 = vsyncpa [#allocation6], 1
    %s7855 = scalar_lea.sflag [#allocation6], 1
    %7856 = vsyncpa %s7855, 1

</llo_original>
